<compile_context>
chip_gen: v5e
topology: v5e:2x2
jax: 0.10.0
libtpu: 0.0.40
codegen_flags: <defaults>
</compile_context>

<pallas_src>
import jax
import jax.numpy as jnp
from jax.experimental import pallas as pl
from jax.experimental.pallas import tpu as pltpu

H = 1024  # hidden size fixed by nn.Linear(1024, n_classes)


def classifier_kernel(offs_ref, hid_ref, w_ref, b_ref, out_ref, acc_ref):
    """Span mean-pool TB examples, then a single linear projection.

    offs_ref: [B_pad, 2] int32 (SMEM, scalar-prefetched)
    hid_ref:  [TB, S, H] bf16 block (one batch block, full sequence)
    w_ref:    [H, C_pad] bf16 (resident)    b_ref: [1, C_pad] f32 (resident)
    out_ref:  [TB, C_pad] f32               acc_ref: [TB, H] f32 scratch
    """
    i = pl.program_id(0)
    tb, s_len, _ = hid_ref.shape
    tok = jax.lax.broadcasted_iota(jnp.int32, (1, s_len), 1)  # [1, S], hoisted

    # Static unroll over the TB examples in this batch block.
    for r in range(tb):
        off0 = offs_ref[i * tb + r, 0]
        off1 = offs_ref[i * tb + r, 1]
        mask = jnp.logical_and(tok >= off0, tok < off1)        # [1, S]
        # masked span-sum as an MXU contraction: [1, S] @ [S, H], f32 acc
        span_sum = jnp.dot(mask.astype(hid_ref.dtype), hid_ref[r],
                           preferred_element_type=jnp.float32)  # [1, H]
        # count matches the mask (offsets clamped to [0, S]); exact reciprocal.
        off0c = jnp.clip(off0, 0, s_len)
        off1c = jnp.clip(off1, off0c, s_len)
        cnt = (off1c - off0c).astype(jnp.float32)
        inv = 1.0 / cnt   # empty span -> inf -> NaN row (matches torch.mean([]))
        acc_ref[pl.ds(r, 1), :] = span_sum * inv

    # dropout is identity at inference; single dense projection for the block.
    pooled = acc_ref[...].astype(jnp.bfloat16)                  # [TB, H]
    logits = jnp.dot(pooled, w_ref[...],
                     preferred_element_type=jnp.float32)        # [TB, C_pad]
    out_ref[...] = logits + b_ref[...]


def classifier_forward(hiddens, offsets, w, b, *, tb=None,
                       vmem_budget=20 * 1024 * 1024):
    """hiddens [B,S,H] (bf16), offsets [B,2] int32, w [H,C], b [C] -> [B,C] f32."""
    B, S, h = hiddens.shape
    assert h == H
    C = w.shape[1]
    c_pad = ((C + 127) // 128) * 128  # lane-dense output / weight width

    # Pick TB so the double-buffered hiddens slab stays within ~20 MiB
    # (safe on v7x's 64 MiB VMEM; v5e/v6e have more headroom).
    if tb is None:
        cap = max(8, ((B + 7) // 8) * 8)
        tb = 8
        for cand in (32, 16, 8):
            if cand <= cap and 2 * cand * S * H * 2 <= vmem_budget:
                tb = cand
                break
    assert tb % 8 == 0
    # TODO(synk): very long sequences (double-buffered slab > ~24 MiB) need a
    # manually pipelined, span-blocked variant; not required at these shapes.
    assert 2 * tb * S * H * 2 <= 24 * 1024 * 1024, "hiddens slab too large for VMEM"

    b_pad_rows = ((B + tb - 1) // tb) * tb
    if b_pad_rows != B:
        hiddens = jnp.pad(hiddens, ((0, b_pad_rows - B), (0, 0), (0, 0)))
        pad_offs = jnp.tile(jnp.array([[0, 1]], jnp.int32), (b_pad_rows - B, 1))
        offsets = jnp.concatenate([offsets.astype(jnp.int32), pad_offs], axis=0)
    else:
        offsets = offsets.astype(jnp.int32)
    num_blocks = b_pad_rows // tb

    # bf16 weights (single-pass MXU in finalize); f32 bias added after the dot.
    w_pad = jnp.zeros((H, c_pad), jnp.bfloat16).at[:, :C].set(w.astype(jnp.bfloat16))
    bias_pad = jnp.zeros((1, c_pad), jnp.float32).at[0, :C].set(b.astype(jnp.float32))

    grid_spec = pltpu.PrefetchScalarGridSpec(
        num_scalar_prefetch=1,                       # offsets -> SMEM
        grid=(num_blocks,),
        in_specs=[
            pl.BlockSpec((tb, S, H), lambda i, offs: (i, 0, 0)),   # hiddens block
            pl.BlockSpec((H, c_pad), lambda i, offs: (0, 0)),      # w resident
            pl.BlockSpec((1, c_pad), lambda i, offs: (0, 0)),      # b resident
        ],
        out_specs=pl.BlockSpec((tb, c_pad), lambda i, offs: (i, 0)),
        scratch_shapes=[pltpu.VMEM((tb, H), jnp.float32)],
    )

    cost = pl.CostEstimate(
        flops=2 * b_pad_rows * S * H + 2 * b_pad_rows * H * c_pad,
        transcendentals=0,
        bytes_accessed=b_pad_rows * S * H * 2 + H * c_pad * 2
                       + b_pad_rows * c_pad * 4 + b_pad_rows * 2 * 4)

    out_pad = pl.pallas_call(
        classifier_kernel,
        out_shape=jax.ShapeDtypeStruct((b_pad_rows, c_pad), jnp.float32),
        grid_spec=grid_spec,
        compiler_params=pltpu.CompilerParams(
            dimension_semantics=("parallel",),       # shards batch blocks (v7x megacore)
            vmem_limit_bytes=32 * 1024 * 1024),      # v5e default is only 16 MiB
        cost_estimate=cost,
    )(offsets, hiddens, w_pad, bias_pad)
    return out_pad[:B, :C]


def bert_stub(ids, mask, emb_table):
    """Deterministic stand-in for bert(...)['last_hidden_state'] (plain JAX glue)."""
    hid = emb_table[ids].astype(jnp.bfloat16)                 # [B, S, H]
    return hid * mask[..., None].astype(jnp.bfloat16)


if __name__ == "__main__":
    B, S, C, VOCAB = 20, 128, 4, 64

    key = jax.random.PRNGKey(0)
    k_ids, k_emb, k_w, k_b, k_off0, k_len = jax.random.split(key, 6)

    ids = jax.random.randint(k_ids, (B, S), 0, VOCAB, dtype=jnp.int32)
    attn_mask = jnp.ones((B, S), dtype=jnp.int32)

    off0 = jax.random.randint(k_off0, (B,), 0, S - 64, dtype=jnp.int32)
    length = jax.random.randint(k_len, (B,), 4, 65, dtype=jnp.int32)
    off1 = jnp.minimum(off0 + length, S)
    offsets = jnp.stack([off0, off1], axis=1).astype(jnp.int32)
    offsets = offsets.at[0].set(jnp.array([0, S], jnp.int32))   # full-span edge case
    offsets = offsets.at[1].set(jnp.array([5, 6], jnp.int32))   # single-token edge case

    emb_table = jax.random.normal(k_emb, (VOCAB, H), dtype=jnp.float32) * 0.5
    w = jax.random.normal(k_w, (H, C), dtype=jnp.float32) * 0.1
    b = jax.random.normal(k_b, (C,), dtype=jnp.float32) * 0.1

    # "bert" stub (glue) -> Pallas kernel (span mean-pool + linear)
    hiddens = bert_stub(ids, attn_mask, emb_table)              # bf16 [B, S, H]
    out = classifier_forward(hiddens, offsets, w, b)
    out = jax.block_until_ready(out)

    # pure-JAX reference (same bf16 hiddens, f32 math)
    hid_f32 = hiddens.astype(jnp.float32)
    rows = []
    for i in range(B):
        o0, o1 = int(offsets[i, 0]), int(offsets[i, 1])
        rows.append(jnp.mean(hid_f32[i, o0:o1], axis=0))
    pooled = jnp.stack(rows)
    ref = pooled @ w + b

    assert out.shape == (B, C)
    assert jnp.allclose(out, ref, atol=5e-3, rtol=3e-2), "mismatch vs reference"

    print("KERNEL_OK")
</pallas_src>

<mosaic_0001>
module attributes {stable_mosaic.version = 11 : i64} {
  func.func @classifier_kernel(%arg0: i32, %arg1: memref<32x2xi32, #tpu.memory_space<smem>>, %arg2: memref<16x128x1024xbf16, #tpu.memory_space<vmem>>, %arg3: memref<1024x128xbf16, #tpu.memory_space<vmem>>, %arg4: memref<1x128xf32, #tpu.memory_space<vmem>>, %arg5: memref<16x128xf32, #tpu.memory_space<vmem>>, %arg6: memref<16x1024xf32, #tpu.memory_space<vmem>>) attributes {dimension_semantics = [#tpu.dimension_semantics<parallel>], iteration_bounds = array<i64: 2>, scalar_prefetch = 1 : i64, scratch_operands = 1 : i64, tpu.core_type = #tpu.core_type<tc>, window_params = [{transform_indices = @transform_0, window_bounds = array<i64: 16, 128, 1024>}, {pipeline_mode = #tpu.pipeline_mode<synchronous>, transform_indices = @transform_1, window_bounds = array<i64: 1024, 128>}, {pipeline_mode = #tpu.pipeline_mode<synchronous>, transform_indices = @transform_2, window_bounds = array<i64: 1, 128>}, {transform_indices = @transform_3, window_bounds = array<i64: 16, 128>}]} {
    %0 = tpu.iota {dimensions = array<i32: 1>} : vector<1x128xi32>
    %c16_i32 = arith.constant 16 : i32
    %1 = arith.muli %arg0, %c16_i32 : i32
    %c0_i32 = arith.constant 0 : i32
    %2 = arith.addi %1, %c0_i32 : i32
    %3 = arith.index_cast %2 : i32 to index
    %c0 = arith.constant 0 : index
    %4 = memref.load %arg1[%3, %c0] : memref<32x2xi32, #tpu.memory_space<smem>>
    %c16_i32_0 = arith.constant 16 : i32
    %5 = arith.muli %arg0, %c16_i32_0 : i32
    %c0_i32_1 = arith.constant 0 : i32
    %6 = arith.addi %5, %c0_i32_1 : i32
    %7 = arith.index_cast %6 : i32 to index
    %c1 = arith.constant 1 : index
    %8 = memref.load %arg1[%7, %c1] : memref<32x2xi32, #tpu.memory_space<smem>>
    %9 = vector.broadcast %4 : i32 to vector<1x128xi32>
    %10 = arith.cmpi sge, %0, %9 : vector<1x128xi32>
    %11 = vector.broadcast %8 : i32 to vector<1x128xi32>
    %12 = arith.cmpi slt, %0, %11 : vector<1x128xi32>
    %13 = arith.andi %10, %12 : vector<1x128xi1>
    %14 = arith.extui %13 : vector<1x128xi1> to vector<1x128xi32>
    %15 = arith.sitofp %14 : vector<1x128xi32> to vector<1x128xf32>
    %16 = arith.truncf %15 : vector<1x128xf32> to vector<1x128xbf16>
    %c0_2 = arith.constant 0 : index
    %c0_3 = arith.constant 0 : index
    %c0_4 = arith.constant 0 : index
    %17 = vector.load %arg2[%c0_2, %c0_3, %c0_4] : memref<16x128x1024xbf16, #tpu.memory_space<vmem>>, vector<1x128x1024xbf16>
    %18 = vector.shape_cast %17 : vector<1x128x1024xbf16> to vector<128x1024xbf16>
    %cst = arith.constant dense<0.000000e+00> : vector<1x1024xf32>
    %19 = tpu.matmul %16, %18, %cst {dimension_numbers = #tpu.dot_dimension_numbers<[1], [0], [0], [1], [0, 0, 1, 1], [], []>} : vector<1x128xbf16>, vector<128x1024xbf16>, vector<1x1024xf32> -> vector<1x1024xf32>
    %c0_i32_5 = arith.constant 0 : i32
    %c128_i32 = arith.constant 128 : i32
    %20 = arith.maxsi %c0_i32_5, %4 : i32
    %21 = arith.minsi %c128_i32, %20 : i32
    %c128_i32_6 = arith.constant 128 : i32
    %22 = arith.maxsi %21, %8 : i32
    %23 = arith.minsi %c128_i32_6, %22 : i32
    %24 = arith.subi %23, %21 : i32
    %25 = arith.sitofp %24 : i32 to f32
    %cst_7 = arith.constant 1.000000e+00 : f32
    %26 = arith.divf %cst_7, %25 : f32
    %27 = vector.broadcast %26 : f32 to vector<1x1024xf32>
    %28 = arith.mulf %19, %27 : vector<1x1024xf32>
    %c0_8 = arith.constant 0 : index
    %c0_9 = arith.constant 0 : index
    %29 = vector.load %arg6[%c0_8, %c0_9] : memref<16x1024xf32, #tpu.memory_space<vmem>>, vector<1x1024xf32>
    tpu.vector_store %arg6[%c0_8, %c0_9], %28 {strides = array<i32>} : memref<16x1024xf32, #tpu.memory_space<vmem>>, vector<1x1024xf32>,
    %c16_i32_10 = arith.constant 16 : i32
    %30 = arith.muli %arg0, %c16_i32_10 : i32
    %c1_i32 = arith.constant 1 : i32
    %31 = arith.addi %30, %c1_i32 : i32
    %32 = arith.index_cast %31 : i32 to index
    %c0_11 = arith.constant 0 : index
    %33 = memref.load %arg1[%32, %c0_11] : memref<32x2xi32, #tpu.memory_space<smem>>
    %c16_i32_12 = arith.constant 16 : i32
    %34 = arith.muli %arg0, %c16_i32_12 : i32
    %c1_i32_13 = arith.constant 1 : i32
    %35 = arith.addi %34, %c1_i32_13 : i32
    %36 = arith.index_cast %35 : i32 to index
    %c1_14 = arith.constant 1 : index
    %37 = memref.load %arg1[%36, %c1_14] : memref<32x2xi32, #tpu.memory_space<smem>>
    %38 = vector.broadcast %33 : i32 to vector<1x128xi32>
    %39 = arith.cmpi sge, %0, %38 : vector<1x128xi32>
    %40 = vector.broadcast %37 : i32 to vector<1x128xi32>
    %41 = arith.cmpi slt, %0, %40 : vector<1x128xi32>
    %42 = arith.andi %39, %41 : vector<1x128xi1>
    %43 = arith.extui %42 : vector<1x128xi1> to vector<1x128xi32>
    %44 = arith.sitofp %43 : vector<1x128xi32> to vector<1x128xf32>
    %45 = arith.truncf %44 : vector<1x128xf32> to vector<1x128xbf16>
    %c1_15 = arith.constant 1 : index
    %c0_16 = arith.constant 0 : index
    %c0_17 = arith.constant 0 : index
    %46 = vector.load %arg2[%c1_15, %c0_16, %c0_17] : memref<16x128x1024xbf16, #tpu.memory_space<vmem>>, vector<1x128x1024xbf16>
    %47 = vector.shape_cast %46 : vector<1x128x1024xbf16> to vector<128x1024xbf16>
    %cst_18 = arith.constant dense<0.000000e+00> : vector<1x1024xf32>
    %48 = tpu.matmul %45, %47, %cst_18 {dimension_numbers = #tpu.dot_dimension_numbers<[1], [0], [0], [1], [0, 0, 1, 1], [], []>} : vector<1x128xbf16>, vector<128x1024xbf16>, vector<1x1024xf32> -> vector<1x1024xf32>
    %c0_i32_19 = arith.constant 0 : i32
    %c128_i32_20 = arith.constant 128 : i32
    %49 = arith.maxsi %c0_i32_19, %33 : i32
    %50 = arith.minsi %c128_i32_20, %49 : i32
    %c128_i32_21 = arith.constant 128 : i32
    %51 = arith.maxsi %50, %37 : i32
    %52 = arith.minsi %c128_i32_21, %51 : i32
    %53 = arith.subi %52, %50 : i32
    %54 = arith.sitofp %53 : i32 to f32
    %cst_22 = arith.constant 1.000000e+00 : f32
    %55 = arith.divf %cst_22, %54 : f32
    %56 = vector.broadcast %55 : f32 to vector<1x1024xf32>
    %57 = arith.mulf %48, %56 : vector<1x1024xf32>
    %c1_23 = arith.constant 1 : index
    %c0_24 = arith.constant 0 : index
    %58 = vector.load %arg6[%c1_23, %c0_24] : memref<16x1024xf32, #tpu.memory_space<vmem>>, vector<1x1024xf32>
    tpu.vector_store %arg6[%c1_23, %c0_24], %57 {strides = array<i32>} : memref<16x1024xf32, #tpu.memory_space<vmem>>, vector<1x1024xf32>,
    %c16_i32_25 = arith.constant 16 : i32
    %59 = arith.muli %arg0, %c16_i32_25 : i32
    %c2_i32 = arith.constant 2 : i32
    %60 = arith.addi %59, %c2_i32 : i32
    %61 = arith.index_cast %60 : i32 to index
    %c0_26 = arith.constant 0 : index
    %62 = memref.load %arg1[%61, %c0_26] : memref<32x2xi32, #tpu.memory_space<smem>>
    %c16_i32_27 = arith.constant 16 : i32
    %63 = arith.muli %arg0, %c16_i32_27 : i32
    %c2_i32_28 = arith.constant 2 : i32
    %64 = arith.addi %63, %c2_i32_28 : i32
    %65 = arith.index_cast %64 : i32 to index
    %c1_29 = arith.constant 1 : index
    %66 = memref.load %arg1[%65, %c1_29] : memref<32x2xi32, #tpu.memory_space<smem>>
    %67 = vector.broadcast %62 : i32 to vector<1x128xi32>
    %68 = arith.cmpi sge, %0, %67 : vector<1x128xi32>
    %69 = vector.broadcast %66 : i32 to vector<1x128xi32>
    %70 = arith.cmpi slt, %0, %69 : vector<1x128xi32>
    %71 = arith.andi %68, %70 : vector<1x128xi1>
    %72 = arith.extui %71 : vector<1x128xi1> to vector<1x128xi32>
    %73 = arith.sitofp %72 : vector<1x128xi32> to vector<1x128xf32>
    %74 = arith.truncf %73 : vector<1x128xf32> to vector<1x128xbf16>
    %c2 = arith.constant 2 : index
    %c0_30 = arith.constant 0 : index
    %c0_31 = arith.constant 0 : index
    %75 = vector.load %arg2[%c2, %c0_30, %c0_31] : memref<16x128x1024xbf16, #tpu.memory_space<vmem>>, vector<1x128x1024xbf16>
    %76 = vector.shape_cast %75 : vector<1x128x1024xbf16> to vector<128x1024xbf16>
    %cst_32 = arith.constant dense<0.000000e+00> : vector<1x1024xf32>
    %77 = tpu.matmul %74, %76, %cst_32 {dimension_numbers = #tpu.dot_dimension_numbers<[1], [0], [0], [1], [0, 0, 1, 1], [], []>} : vector<1x128xbf16>, vector<128x1024xbf16>, vector<1x1024xf32> -> vector<1x1024xf32>
    %c0_i32_33 = arith.constant 0 : i32
    %c128_i32_34 = arith.constant 128 : i32
    %78 = arith.maxsi %c0_i32_33, %62 : i32
    %79 = arith.minsi %c128_i32_34, %78 : i32
    %c128_i32_35 = arith.constant 128 : i32
    %80 = arith.maxsi %79, %66 : i32
    %81 = arith.minsi %c128_i32_35, %80 : i32
    %82 = arith.subi %81, %79 : i32
    %83 = arith.sitofp %82 : i32 to f32
    %cst_36 = arith.constant 1.000000e+00 : f32
    %84 = arith.divf %cst_36, %83 : f32
    %85 = vector.broadcast %84 : f32 to vector<1x1024xf32>
    %86 = arith.mulf %77, %85 : vector<1x1024xf32>
    %c2_37 = arith.constant 2 : index
    %c0_38 = arith.constant 0 : index
    %87 = vector.load %arg6[%c2_37, %c0_38] : memref<16x1024xf32, #tpu.memory_space<vmem>>, vector<1x1024xf32>
    tpu.vector_store %arg6[%c2_37, %c0_38], %86 {strides = array<i32>} : memref<16x1024xf32, #tpu.memory_space<vmem>>, vector<1x1024xf32>,
    %c16_i32_39 = arith.constant 16 : i32
    %88 = arith.muli %arg0, %c16_i32_39 : i32
    %c3_i32 = arith.constant 3 : i32
    %89 = arith.addi %88, %c3_i32 : i32
    %90 = arith.index_cast %89 : i32 to index
    %c0_40 = arith.constant 0 : index
    %91 = memref.load %arg1[%90, %c0_40] : memref<32x2xi32, #tpu.memory_space<smem>>
    %c16_i32_41 = arith.constant 16 : i32
    %92 = arith.muli %arg0, %c16_i32_41 : i32
    %c3_i32_42 = arith.constant 3 : i32
    %93 = arith.addi %92, %c3_i32_42 : i32
    %94 = arith.index_cast %93 : i32 to index
    %c1_43 = arith.constant 1 : index
    %95 = memref.load %arg1[%94, %c1_43] : memref<32x2xi32, #tpu.memory_space<smem>>
    %96 = vector.broadcast %91 : i32 to vector<1x128xi32>
    %97 = arith.cmpi sge, %0, %96 : vector<1x128xi32>
    %98 = vector.broadcast %95 : i32 to vector<1x128xi32>
    %99 = arith.cmpi slt, %0, %98 : vector<1x128xi32>
    %100 = arith.andi %97, %99 : vector<1x128xi1>
    %101 = arith.extui %100 : vector<1x128xi1> to vector<1x128xi32>
    %102 = arith.sitofp %101 : vector<1x128xi32> to vector<1x128xf32>
    %103 = arith.truncf %102 : vector<1x128xf32> to vector<1x128xbf16>
    %c3 = arith.constant 3 : index
    %c0_44 = arith.constant 0 : index
    %c0_45 = arith.constant 0 : index
    %104 = vector.load %arg2[%c3, %c0_44, %c0_45] : memref<16x128x1024xbf16, #tpu.memory_space<vmem>>, vector<1x128x1024xbf16>
    %105 = vector.shape_cast %104 : vector<1x128x1024xbf16> to vector<128x1024xbf16>
    %cst_46 = arith.constant dense<0.000000e+00> : vector<1x1024xf32>
    %106 = tpu.matmul %103, %105, %cst_46 {dimension_numbers = #tpu.dot_dimension_numbers<[1], [0], [0], [1], [0, 0, 1, 1], [], []>} : vector<1x128xbf16>, vector<128x1024xbf16>, vector<1x1024xf32> -> vector<1x1024xf32>
    %c0_i32_47 = arith.constant 0 : i32
    %c128_i32_48 = arith.constant 128 : i32
    %107 = arith.maxsi %c0_i32_47, %91 : i32
    %108 = arith.minsi %c128_i32_48, %107 : i32
    %c128_i32_49 = arith.constant 128 : i32
    %109 = arith.maxsi %108, %95 : i32
    %110 = arith.minsi %c128_i32_49, %109 : i32
    %111 = arith.subi %110, %108 : i32
    %112 = arith.sitofp %111 : i32 to f32
    %cst_50 = arith.constant 1.000000e+00 : f32
    %113 = arith.divf %cst_50, %112 : f32
    %114 = vector.broadcast %113 : f32 to vector<1x1024xf32>
    %115 = arith.mulf %106, %114 : vector<1x1024xf32>
    %c3_51 = arith.constant 3 : index
    %c0_52 = arith.constant 0 : index
    %116 = vector.load %arg6[%c3_51, %c0_52] : memref<16x1024xf32, #tpu.memory_space<vmem>>, vector<1x1024xf32>
    tpu.vector_store %arg6[%c3_51, %c0_52], %115 {strides = array<i32>} : memref<16x1024xf32, #tpu.memory_space<vmem>>, vector<1x1024xf32>,
    %c16_i32_53 = arith.constant 16 : i32
    %117 = arith.muli %arg0, %c16_i32_53 : i32
    %c4_i32 = arith.constant 4 : i32
    %118 = arith.addi %117, %c4_i32 : i32
    %119 = arith.index_cast %118 : i32 to index
    %c0_54 = arith.constant 0 : index
    %120 = memref.load %arg1[%119, %c0_54] : memref<32x2xi32, #tpu.memory_space<smem>>
    %c16_i32_55 = arith.constant 16 : i32
    %121 = arith.muli %arg0, %c16_i32_55 : i32
    %c4_i32_56 = arith.constant 4 : i32
    %122 = arith.addi %121, %c4_i32_56 : i32
    %123 = arith.index_cast %122 : i32 to index
    %c1_57 = arith.constant 1 : index
    %124 = memref.load %arg1[%123, %c1_57] : memref<32x2xi32, #tpu.memory_space<smem>>
    %125 = vector.broadcast %120 : i32 to vector<1x128xi32>
    %126 = arith.cmpi sge, %0, %125 : vector<1x128xi32>
    %127 = vector.broadcast %124 : i32 to vector<1x128xi32>
    %128 = arith.cmpi slt, %0, %127 : vector<1x128xi32>
    %129 = arith.andi %126, %128 : vector<1x128xi1>
    %130 = arith.extui %129 : vector<1x128xi1> to vector<1x128xi32>
    %131 = arith.sitofp %130 : vector<1x128xi32> to vector<1x128xf32>
    %132 = arith.truncf %131 : vector<1x128xf32> to vector<1x128xbf16>
    %c4 = arith.constant 4 : index
    %c0_58 = arith.constant 0 : index
    %c0_59 = arith.constant 0 : index
    %133 = vector.load %arg2[%c4, %c0_58, %c0_59] : memref<16x128x1024xbf16, #tpu.memory_space<vmem>>, vector<1x128x1024xbf16>
    %134 = vector.shape_cast %133 : vector<1x128x1024xbf16> to vector<128x1024xbf16>
    %cst_60 = arith.constant dense<0.000000e+00> : vector<1x1024xf32>
    %135 = tpu.matmul %132, %134, %cst_60 {dimension_numbers = #tpu.dot_dimension_numbers<[1], [0], [0], [1], [0, 0, 1, 1], [], []>} : vector<1x128xbf16>, vector<128x1024xbf16>, vector<1x1024xf32> -> vector<1x1024xf32>
    %c0_i32_61 = arith.constant 0 : i32
    %c128_i32_62 = arith.constant 128 : i32
    %136 = arith.maxsi %c0_i32_61, %120 : i32
    %137 = arith.minsi %c128_i32_62, %136 : i32
    %c128_i32_63 = arith.constant 128 : i32
    %138 = arith.maxsi %137, %124 : i32
    %139 = arith.minsi %c128_i32_63, %138 : i32
    %140 = arith.subi %139, %137 : i32
    %141 = arith.sitofp %140 : i32 to f32
    %cst_64 = arith.constant 1.000000e+00 : f32
    %142 = arith.divf %cst_64, %141 : f32
    %143 = vector.broadcast %142 : f32 to vector<1x1024xf32>
    %144 = arith.mulf %135, %143 : vector<1x1024xf32>
    %c4_65 = arith.constant 4 : index
    %c0_66 = arith.constant 0 : index
    %145 = vector.load %arg6[%c4_65, %c0_66] : memref<16x1024xf32, #tpu.memory_space<vmem>>, vector<1x1024xf32>
    tpu.vector_store %arg6[%c4_65, %c0_66], %144 {strides = array<i32>} : memref<16x1024xf32, #tpu.memory_space<vmem>>, vector<1x1024xf32>,
    %c16_i32_67 = arith.constant 16 : i32
    %146 = arith.muli %arg0, %c16_i32_67 : i32
    %c5_i32 = arith.constant 5 : i32
    %147 = arith.addi %146, %c5_i32 : i32
    %148 = arith.index_cast %147 : i32 to index
    %c0_68 = arith.constant 0 : index
    %149 = memref.load %arg1[%148, %c0_68] : memref<32x2xi32, #tpu.memory_space<smem>>
    %c16_i32_69 = arith.constant 16 : i32
    %150 = arith.muli %arg0, %c16_i32_69 : i32
    %c5_i32_70 = arith.constant 5 : i32
    %151 = arith.addi %150, %c5_i32_70 : i32
    %152 = arith.index_cast %151 : i32 to index
    %c1_71 = arith.constant 1 : index
    %153 = memref.load %arg1[%152, %c1_71] : memref<32x2xi32, #tpu.memory_space<smem>>
    %154 = vector.broadcast %149 : i32 to vector<1x128xi32>
    %155 = arith.cmpi sge, %0, %154 : vector<1x128xi32>
    %156 = vector.broadcast %153 : i32 to vector<1x128xi32>
    %157 = arith.cmpi slt, %0, %156 : vector<1x128xi32>
    %158 = arith.andi %155, %157 : vector<1x128xi1>
    %159 = arith.extui %158 : vector<1x128xi1> to vector<1x128xi32>
    %160 = arith.sitofp %159 : vector<1x128xi32> to vector<1x128xf32>
    %161 = arith.truncf %160 : vector<1x128xf32> to vector<1x128xbf16>
    %c5 = arith.constant 5 : index
    %c0_72 = arith.constant 0 : index
    %c0_73 = arith.constant 0 : index
    %162 = vector.load %arg2[%c5, %c0_72, %c0_73] : memref<16x128x1024xbf16, #tpu.memory_space<vmem>>, vector<1x128x1024xbf16>
    %163 = vector.shape_cast %162 : vector<1x128x1024xbf16> to vector<128x1024xbf16>
    %cst_74 = arith.constant dense<0.000000e+00> : vector<1x1024xf32>
    %164 = tpu.matmul %161, %163, %cst_74 {dimension_numbers = #tpu.dot_dimension_numbers<[1], [0], [0], [1], [0, 0, 1, 1], [], []>} : vector<1x128xbf16>, vector<128x1024xbf16>, vector<1x1024xf32> -> vector<1x1024xf32>
    %c0_i32_75 = arith.constant 0 : i32
    %c128_i32_76 = arith.constant 128 : i32
    %165 = arith.maxsi %c0_i32_75, %149 : i32
    %166 = arith.minsi %c128_i32_76, %165 : i32
    %c128_i32_77 = arith.constant 128 : i32
    %167 = arith.maxsi %166, %153 : i32
    %168 = arith.minsi %c128_i32_77, %167 : i32
    %169 = arith.subi %168, %166 : i32
    %170 = arith.sitofp %169 : i32 to f32
    %cst_78 = arith.constant 1.000000e+00 : f32
    %171 = arith.divf %cst_78, %170 : f32
    %172 = vector.broadcast %171 : f32 to vector<1x1024xf32>
    %173 = arith.mulf %164, %172 : vector<1x1024xf32>
    %c5_79 = arith.constant 5 : index
    %c0_80 = arith.constant 0 : index
    %174 = vector.load %arg6[%c5_79, %c0_80] : memref<16x1024xf32, #tpu.memory_space<vmem>>, vector<1x1024xf32>
    tpu.vector_store %arg6[%c5_79, %c0_80], %173 {strides = array<i32>} : memref<16x1024xf32, #tpu.memory_space<vmem>>, vector<1x1024xf32>,
    %c16_i32_81 = arith.constant 16 : i32
    %175 = arith.muli %arg0, %c16_i32_81 : i32
    %c6_i32 = arith.constant 6 : i32
    %176 = arith.addi %175, %c6_i32 : i32
    %177 = arith.index_cast %176 : i32 to index
    %c0_82 = arith.constant 0 : index
    %178 = memref.load %arg1[%177, %c0_82] : memref<32x2xi32, #tpu.memory_space<smem>>
    %c16_i32_83 = arith.constant 16 : i32
    %179 = arith.muli %arg0, %c16_i32_83 : i32
    %c6_i32_84 = arith.constant 6 : i32
    %180 = arith.addi %179, %c6_i32_84 : i32
    %181 = arith.index_cast %180 : i32 to index
    %c1_85 = arith.constant 1 : index
    %182 = memref.load %arg1[%181, %c1_85] : memref<32x2xi32, #tpu.memory_space<smem>>
    %183 = vector.broadcast %178 : i32 to vector<1x128xi32>
    %184 = arith.cmpi sge, %0, %183 : vector<1x128xi32>
    %185 = vector.broadcast %182 : i32 to vector<1x128xi32>
    %186 = arith.cmpi slt, %0, %185 : vector<1x128xi32>
    %187 = arith.andi %184, %186 : vector<1x128xi1>
    %188 = arith.extui %187 : vector<1x128xi1> to vector<1x128xi32>
    %189 = arith.sitofp %188 : vector<1x128xi32> to vector<1x128xf32>
    %190 = arith.truncf %189 : vector<1x128xf32> to vector<1x128xbf16>
    %c6 = arith.constant 6 : index
    %c0_86 = arith.constant 0 : index
    %c0_87 = arith.constant 0 : index
    %191 = vector.load %arg2[%c6, %c0_86, %c0_87] : memref<16x128x1024xbf16, #tpu.memory_space<vmem>>, vector<1x128x1024xbf16>
    %192 = vector.shape_cast %191 : vector<1x128x1024xbf16> to vector<128x1024xbf16>
    %cst_88 = arith.constant dense<0.000000e+00> : vector<1x1024xf32>
    %193 = tpu.matmul %190, %192, %cst_88 {dimension_numbers = #tpu.dot_dimension_numbers<[1], [0], [0], [1], [0, 0, 1, 1], [], []>} : vector<1x128xbf16>, vector<128x1024xbf16>, vector<1x1024xf32> -> vector<1x1024xf32>
    %c0_i32_89 = arith.constant 0 : i32
    %c128_i32_90 = arith.constant 128 : i32
    %194 = arith.maxsi %c0_i32_89, %178 : i32
    %195 = arith.minsi %c128_i32_90, %194 : i32
    %c128_i32_91 = arith.constant 128 : i32
    %196 = arith.maxsi %195, %182 : i32
    %197 = arith.minsi %c128_i32_91, %196 : i32
    %198 = arith.subi %197, %195 : i32
    %199 = arith.sitofp %198 : i32 to f32
    %cst_92 = arith.constant 1.000000e+00 : f32
    %200 = arith.divf %cst_92, %199 : f32
    %201 = vector.broadcast %200 : f32 to vector<1x1024xf32>
    %202 = arith.mulf %193, %201 : vector<1x1024xf32>
    %c6_93 = arith.constant 6 : index
    %c0_94 = arith.constant 0 : index
    %203 = vector.load %arg6[%c6_93, %c0_94] : memref<16x1024xf32, #tpu.memory_space<vmem>>, vector<1x1024xf32>
    tpu.vector_store %arg6[%c6_93, %c0_94], %202 {strides = array<i32>} : memref<16x1024xf32, #tpu.memory_space<vmem>>, vector<1x1024xf32>,
    %c16_i32_95 = arith.constant 16 : i32
    %204 = arith.muli %arg0, %c16_i32_95 : i32
    %c7_i32 = arith.constant 7 : i32
    %205 = arith.addi %204, %c7_i32 : i32
    %206 = arith.index_cast %205 : i32 to index
    %c0_96 = arith.constant 0 : index
    %207 = memref.load %arg1[%206, %c0_96] : memref<32x2xi32, #tpu.memory_space<smem>>
    %c16_i32_97 = arith.constant 16 : i32
    %208 = arith.muli %arg0, %c16_i32_97 : i32
    %c7_i32_98 = arith.constant 7 : i32
    %209 = arith.addi %208, %c7_i32_98 : i32
    %210 = arith.index_cast %209 : i32 to index
    %c1_99 = arith.constant 1 : index
    %211 = memref.load %arg1[%210, %c1_99] : memref<32x2xi32, #tpu.memory_space<smem>>
    %212 = vector.broadcast %207 : i32 to vector<1x128xi32>
    %213 = arith.cmpi sge, %0, %212 : vector<1x128xi32>
    %214 = vector.broadcast %211 : i32 to vector<1x128xi32>
    %215 = arith.cmpi slt, %0, %214 : vector<1x128xi32>
    %216 = arith.andi %213, %215 : vector<1x128xi1>
    %217 = arith.extui %216 : vector<1x128xi1> to vector<1x128xi32>
    %218 = arith.sitofp %217 : vector<1x128xi32> to vector<1x128xf32>
    %219 = arith.truncf %218 : vector<1x128xf32> to vector<1x128xbf16>
    %c7 = arith.constant 7 : index
    %c0_100 = arith.constant 0 : index
    %c0_101 = arith.constant 0 : index
    %220 = vector.load %arg2[%c7, %c0_100, %c0_101] : memref<16x128x1024xbf16, #tpu.memory_space<vmem>>, vector<1x128x1024xbf16>
    %221 = vector.shape_cast %220 : vector<1x128x1024xbf16> to vector<128x1024xbf16>
    %cst_102 = arith.constant dense<0.000000e+00> : vector<1x1024xf32>
    %222 = tpu.matmul %219, %221, %cst_102 {dimension_numbers = #tpu.dot_dimension_numbers<[1], [0], [0], [1], [0, 0, 1, 1], [], []>} : vector<1x128xbf16>, vector<128x1024xbf16>, vector<1x1024xf32> -> vector<1x1024xf32>
    %c0_i32_103 = arith.constant 0 : i32
    %c128_i32_104 = arith.constant 128 : i32
    %223 = arith.maxsi %c0_i32_103, %207 : i32
    %224 = arith.minsi %c128_i32_104, %223 : i32
    %c128_i32_105 = arith.constant 128 : i32
    %225 = arith.maxsi %224, %211 : i32
    %226 = arith.minsi %c128_i32_105, %225 : i32
    %227 = arith.subi %226, %224 : i32
    %228 = arith.sitofp %227 : i32 to f32
    %cst_106 = arith.constant 1.000000e+00 : f32
    %229 = arith.divf %cst_106, %228 : f32
    %230 = vector.broadcast %229 : f32 to vector<1x1024xf32>
    %231 = arith.mulf %222, %230 : vector<1x1024xf32>
    %c7_107 = arith.constant 7 : index
    %c0_108 = arith.constant 0 : index
    %232 = vector.load %arg6[%c7_107, %c0_108] : memref<16x1024xf32, #tpu.memory_space<vmem>>, vector<1x1024xf32>
    tpu.vector_store %arg6[%c7_107, %c0_108], %231 {strides = array<i32>} : memref<16x1024xf32, #tpu.memory_space<vmem>>, vector<1x1024xf32>,
    %c16_i32_109 = arith.constant 16 : i32
    %233 = arith.muli %arg0, %c16_i32_109 : i32
    %c8_i32 = arith.constant 8 : i32
    %234 = arith.addi %233, %c8_i32 : i32
    %235 = arith.index_cast %234 : i32 to index
    %c0_110 = arith.constant 0 : index
    %236 = memref.load %arg1[%235, %c0_110] : memref<32x2xi32, #tpu.memory_space<smem>>
    %c16_i32_111 = arith.constant 16 : i32
    %237 = arith.muli %arg0, %c16_i32_111 : i32
    %c8_i32_112 = arith.constant 8 : i32
    %238 = arith.addi %237, %c8_i32_112 : i32
    %239 = arith.index_cast %238 : i32 to index
    %c1_113 = arith.constant 1 : index
    %240 = memref.load %arg1[%239, %c1_113] : memref<32x2xi32, #tpu.memory_space<smem>>
    %241 = vector.broadcast %236 : i32 to vector<1x128xi32>
    %242 = arith.cmpi sge, %0, %241 : vector<1x128xi32>
    %243 = vector.broadcast %240 : i32 to vector<1x128xi32>
    %244 = arith.cmpi slt, %0, %243 : vector<1x128xi32>
    %245 = arith.andi %242, %244 : vector<1x128xi1>
    %246 = arith.extui %245 : vector<1x128xi1> to vector<1x128xi32>
    %247 = arith.sitofp %246 : vector<1x128xi32> to vector<1x128xf32>
    %248 = arith.truncf %247 : vector<1x128xf32> to vector<1x128xbf16>
    %c8 = arith.constant 8 : index
    %c0_114 = arith.constant 0 : index
    %c0_115 = arith.constant 0 : index
    %249 = vector.load %arg2[%c8, %c0_114, %c0_115] : memref<16x128x1024xbf16, #tpu.memory_space<vmem>>, vector<1x128x1024xbf16>
    %250 = vector.shape_cast %249 : vector<1x128x1024xbf16> to vector<128x1024xbf16>
    %cst_116 = arith.constant dense<0.000000e+00> : vector<1x1024xf32>
    %251 = tpu.matmul %248, %250, %cst_116 {dimension_numbers = #tpu.dot_dimension_numbers<[1], [0], [0], [1], [0, 0, 1, 1], [], []>} : vector<1x128xbf16>, vector<128x1024xbf16>, vector<1x1024xf32> -> vector<1x1024xf32>
    %c0_i32_117 = arith.constant 0 : i32
    %c128_i32_118 = arith.constant 128 : i32
    %252 = arith.maxsi %c0_i32_117, %236 : i32
    %253 = arith.minsi %c128_i32_118, %252 : i32
    %c128_i32_119 = arith.constant 128 : i32
    %254 = arith.maxsi %253, %240 : i32
    %255 = arith.minsi %c128_i32_119, %254 : i32
    %256 = arith.subi %255, %253 : i32
    %257 = arith.sitofp %256 : i32 to f32
    %cst_120 = arith.constant 1.000000e+00 : f32
    %258 = arith.divf %cst_120, %257 : f32
    %259 = vector.broadcast %258 : f32 to vector<1x1024xf32>
    %260 = arith.mulf %251, %259 : vector<1x1024xf32>
    %c8_121 = arith.constant 8 : index
    %c0_122 = arith.constant 0 : index
    %261 = vector.load %arg6[%c8_121, %c0_122] : memref<16x1024xf32, #tpu.memory_space<vmem>>, vector<1x1024xf32>
    tpu.vector_store %arg6[%c8_121, %c0_122], %260 {strides = array<i32>} : memref<16x1024xf32, #tpu.memory_space<vmem>>, vector<1x1024xf32>,
    %c16_i32_123 = arith.constant 16 : i32
    %262 = arith.muli %arg0, %c16_i32_123 : i32
    %c9_i32 = arith.constant 9 : i32
    %263 = arith.addi %262, %c9_i32 : i32
    %264 = arith.index_cast %263 : i32 to index
    %c0_124 = arith.constant 0 : index
    %265 = memref.load %arg1[%264, %c0_124] : memref<32x2xi32, #tpu.memory_space<smem>>
    %c16_i32_125 = arith.constant 16 : i32
    %266 = arith.muli %arg0, %c16_i32_125 : i32
    %c9_i32_126 = arith.constant 9 : i32
    %267 = arith.addi %266, %c9_i32_126 : i32
    %268 = arith.index_cast %267 : i32 to index
    %c1_127 = arith.constant 1 : index
    %269 = memref.load %arg1[%268, %c1_127] : memref<32x2xi32, #tpu.memory_space<smem>>
    %270 = vector.broadcast %265 : i32 to vector<1x128xi32>
    %271 = arith.cmpi sge, %0, %270 : vector<1x128xi32>
    %272 = vector.broadcast %269 : i32 to vector<1x128xi32>
    %273 = arith.cmpi slt, %0, %272 : vector<1x128xi32>
    %274 = arith.andi %271, %273 : vector<1x128xi1>
    %275 = arith.extui %274 : vector<1x128xi1> to vector<1x128xi32>
    %276 = arith.sitofp %275 : vector<1x128xi32> to vector<1x128xf32>
    %277 = arith.truncf %276 : vector<1x128xf32> to vector<1x128xbf16>
    %c9 = arith.constant 9 : index
    %c0_128 = arith.constant 0 : index
    %c0_129 = arith.constant 0 : index
    %278 = vector.load %arg2[%c9, %c0_128, %c0_129] : memref<16x128x1024xbf16, #tpu.memory_space<vmem>>, vector<1x128x1024xbf16>
    %279 = vector.shape_cast %278 : vector<1x128x1024xbf16> to vector<128x1024xbf16>
    %cst_130 = arith.constant dense<0.000000e+00> : vector<1x1024xf32>
    %280 = tpu.matmul %277, %279, %cst_130 {dimension_numbers = #tpu.dot_dimension_numbers<[1], [0], [0], [1], [0, 0, 1, 1], [], []>} : vector<1x128xbf16>, vector<128x1024xbf16>, vector<1x1024xf32> -> vector<1x1024xf32>
    %c0_i32_131 = arith.constant 0 : i32
    %c128_i32_132 = arith.constant 128 : i32
    %281 = arith.maxsi %c0_i32_131, %265 : i32
    %282 = arith.minsi %c128_i32_132, %281 : i32
    %c128_i32_133 = arith.constant 128 : i32
    %283 = arith.maxsi %282, %269 : i32
    %284 = arith.minsi %c128_i32_133, %283 : i32
    %285 = arith.subi %284, %282 : i32
    %286 = arith.sitofp %285 : i32 to f32
    %cst_134 = arith.constant 1.000000e+00 : f32
    %287 = arith.divf %cst_134, %286 : f32
    %288 = vector.broadcast %287 : f32 to vector<1x1024xf32>
    %289 = arith.mulf %280, %288 : vector<1x1024xf32>
    %c9_135 = arith.constant 9 : index
    %c0_136 = arith.constant 0 : index
    %290 = vector.load %arg6[%c9_135, %c0_136] : memref<16x1024xf32, #tpu.memory_space<vmem>>, vector<1x1024xf32>
    tpu.vector_store %arg6[%c9_135, %c0_136], %289 {strides = array<i32>} : memref<16x1024xf32, #tpu.memory_space<vmem>>, vector<1x1024xf32>,
    %c16_i32_137 = arith.constant 16 : i32
    %291 = arith.muli %arg0, %c16_i32_137 : i32
    %c10_i32 = arith.constant 10 : i32
    %292 = arith.addi %291, %c10_i32 : i32
    %293 = arith.index_cast %292 : i32 to index
    %c0_138 = arith.constant 0 : index
    %294 = memref.load %arg1[%293, %c0_138] : memref<32x2xi32, #tpu.memory_space<smem>>
    %c16_i32_139 = arith.constant 16 : i32
    %295 = arith.muli %arg0, %c16_i32_139 : i32
    %c10_i32_140 = arith.constant 10 : i32
    %296 = arith.addi %295, %c10_i32_140 : i32
    %297 = arith.index_cast %296 : i32 to index
    %c1_141 = arith.constant 1 : index
    %298 = memref.load %arg1[%297, %c1_141] : memref<32x2xi32, #tpu.memory_space<smem>>
    %299 = vector.broadcast %294 : i32 to vector<1x128xi32>
    %300 = arith.cmpi sge, %0, %299 : vector<1x128xi32>
    %301 = vector.broadcast %298 : i32 to vector<1x128xi32>
    %302 = arith.cmpi slt, %0, %301 : vector<1x128xi32>
    %303 = arith.andi %300, %302 : vector<1x128xi1>
    %304 = arith.extui %303 : vector<1x128xi1> to vector<1x128xi32>
    %305 = arith.sitofp %304 : vector<1x128xi32> to vector<1x128xf32>
    %306 = arith.truncf %305 : vector<1x128xf32> to vector<1x128xbf16>
    %c10 = arith.constant 10 : index
    %c0_142 = arith.constant 0 : index
    %c0_143 = arith.constant 0 : index
    %307 = vector.load %arg2[%c10, %c0_142, %c0_143] : memref<16x128x1024xbf16, #tpu.memory_space<vmem>>, vector<1x128x1024xbf16>
    %308 = vector.shape_cast %307 : vector<1x128x1024xbf16> to vector<128x1024xbf16>
    %cst_144 = arith.constant dense<0.000000e+00> : vector<1x1024xf32>
    %309 = tpu.matmul %306, %308, %cst_144 {dimension_numbers = #tpu.dot_dimension_numbers<[1], [0], [0], [1], [0, 0, 1, 1], [], []>} : vector<1x128xbf16>, vector<128x1024xbf16>, vector<1x1024xf32> -> vector<1x1024xf32>
    %c0_i32_145 = arith.constant 0 : i32
    %c128_i32_146 = arith.constant 128 : i32
    %310 = arith.maxsi %c0_i32_145, %294 : i32
    %311 = arith.minsi %c128_i32_146, %310 : i32
    %c128_i32_147 = arith.constant 128 : i32
    %312 = arith.maxsi %311, %298 : i32
    %313 = arith.minsi %c128_i32_147, %312 : i32
    %314 = arith.subi %313, %311 : i32
    %315 = arith.sitofp %314 : i32 to f32
    %cst_148 = arith.constant 1.000000e+00 : f32
    %316 = arith.divf %cst_148, %315 : f32
    %317 = vector.broadcast %316 : f32 to vector<1x1024xf32>
    %318 = arith.mulf %309, %317 : vector<1x1024xf32>
    %c10_149 = arith.constant 10 : index
    %c0_150 = arith.constant 0 : index
    %319 = vector.load %arg6[%c10_149, %c0_150] : memref<16x1024xf32, #tpu.memory_space<vmem>>, vector<1x1024xf32>
    tpu.vector_store %arg6[%c10_149, %c0_150], %318 {strides = array<i32>} : memref<16x1024xf32, #tpu.memory_space<vmem>>, vector<1x1024xf32>,
    %c16_i32_151 = arith.constant 16 : i32
    %320 = arith.muli %arg0, %c16_i32_151 : i32
    %c11_i32 = arith.constant 11 : i32
    %321 = arith.addi %320, %c11_i32 : i32
    %322 = arith.index_cast %321 : i32 to index
    %c0_152 = arith.constant 0 : index
    %323 = memref.load %arg1[%322, %c0_152] : memref<32x2xi32, #tpu.memory_space<smem>>
    %c16_i32_153 = arith.constant 16 : i32
    %324 = arith.muli %arg0, %c16_i32_153 : i32
    %c11_i32_154 = arith.constant 11 : i32
    %325 = arith.addi %324, %c11_i32_154 : i32
    %326 = arith.index_cast %325 : i32 to index
    %c1_155 = arith.constant 1 : index
    %327 = memref.load %arg1[%326, %c1_155] : memref<32x2xi32, #tpu.memory_space<smem>>
    %328 = vector.broadcast %323 : i32 to vector<1x128xi32>
    %329 = arith.cmpi sge, %0, %328 : vector<1x128xi32>
    %330 = vector.broadcast %327 : i32 to vector<1x128xi32>
    %331 = arith.cmpi slt, %0, %330 : vector<1x128xi32>
    %332 = arith.andi %329, %331 : vector<1x128xi1>
    %333 = arith.extui %332 : vector<1x128xi1> to vector<1x128xi32>
    %334 = arith.sitofp %333 : vector<1x128xi32> to vector<1x128xf32>
    %335 = arith.truncf %334 : vector<1x128xf32> to vector<1x128xbf16>
    %c11 = arith.constant 11 : index
    %c0_156 = arith.constant 0 : index
    %c0_157 = arith.constant 0 : index
    %336 = vector.load %arg2[%c11, %c0_156, %c0_157] : memref<16x128x1024xbf16, #tpu.memory_space<vmem>>, vector<1x128x1024xbf16>
    %337 = vector.shape_cast %336 : vector<1x128x1024xbf16> to vector<128x1024xbf16>
    %cst_158 = arith.constant dense<0.000000e+00> : vector<1x1024xf32>
    %338 = tpu.matmul %335, %337, %cst_158 {dimension_numbers = #tpu.dot_dimension_numbers<[1], [0], [0], [1], [0, 0, 1, 1], [], []>} : vector<1x128xbf16>, vector<128x1024xbf16>, vector<1x1024xf32> -> vector<1x1024xf32>
    %c0_i32_159 = arith.constant 0 : i32
    %c128_i32_160 = arith.constant 128 : i32
    %339 = arith.maxsi %c0_i32_159, %323 : i32
    %340 = arith.minsi %c128_i32_160, %339 : i32
    %c128_i32_161 = arith.constant 128 : i32
    %341 = arith.maxsi %340, %327 : i32
    %342 = arith.minsi %c128_i32_161, %341 : i32
    %343 = arith.subi %342, %340 : i32
    %344 = arith.sitofp %343 : i32 to f32
    %cst_162 = arith.constant 1.000000e+00 : f32
    %345 = arith.divf %cst_162, %344 : f32
    %346 = vector.broadcast %345 : f32 to vector<1x1024xf32>
    %347 = arith.mulf %338, %346 : vector<1x1024xf32>
    %c11_163 = arith.constant 11 : index
    %c0_164 = arith.constant 0 : index
    %348 = vector.load %arg6[%c11_163, %c0_164] : memref<16x1024xf32, #tpu.memory_space<vmem>>, vector<1x1024xf32>
    tpu.vector_store %arg6[%c11_163, %c0_164], %347 {strides = array<i32>} : memref<16x1024xf32, #tpu.memory_space<vmem>>, vector<1x1024xf32>,
    %c16_i32_165 = arith.constant 16 : i32
    %349 = arith.muli %arg0, %c16_i32_165 : i32
    %c12_i32 = arith.constant 12 : i32
    %350 = arith.addi %349, %c12_i32 : i32
    %351 = arith.index_cast %350 : i32 to index
    %c0_166 = arith.constant 0 : index
    %352 = memref.load %arg1[%351, %c0_166] : memref<32x2xi32, #tpu.memory_space<smem>>
    %c16_i32_167 = arith.constant 16 : i32
    %353 = arith.muli %arg0, %c16_i32_167 : i32
    %c12_i32_168 = arith.constant 12 : i32
    %354 = arith.addi %353, %c12_i32_168 : i32
    %355 = arith.index_cast %354 : i32 to index
    %c1_169 = arith.constant 1 : index
    %356 = memref.load %arg1[%355, %c1_169] : memref<32x2xi32, #tpu.memory_space<smem>>
    %357 = vector.broadcast %352 : i32 to vector<1x128xi32>
    %358 = arith.cmpi sge, %0, %357 : vector<1x128xi32>
    %359 = vector.broadcast %356 : i32 to vector<1x128xi32>
    %360 = arith.cmpi slt, %0, %359 : vector<1x128xi32>
    %361 = arith.andi %358, %360 : vector<1x128xi1>
    %362 = arith.extui %361 : vector<1x128xi1> to vector<1x128xi32>
    %363 = arith.sitofp %362 : vector<1x128xi32> to vector<1x128xf32>
    %364 = arith.truncf %363 : vector<1x128xf32> to vector<1x128xbf16>
    %c12 = arith.constant 12 : index
    %c0_170 = arith.constant 0 : index
    %c0_171 = arith.constant 0 : index
    %365 = vector.load %arg2[%c12, %c0_170, %c0_171] : memref<16x128x1024xbf16, #tpu.memory_space<vmem>>, vector<1x128x1024xbf16>
    %366 = vector.shape_cast %365 : vector<1x128x1024xbf16> to vector<128x1024xbf16>
    %cst_172 = arith.constant dense<0.000000e+00> : vector<1x1024xf32>
    %367 = tpu.matmul %364, %366, %cst_172 {dimension_numbers = #tpu.dot_dimension_numbers<[1], [0], [0], [1], [0, 0, 1, 1], [], []>} : vector<1x128xbf16>, vector<128x1024xbf16>, vector<1x1024xf32> -> vector<1x1024xf32>
    %c0_i32_173 = arith.constant 0 : i32
    %c128_i32_174 = arith.constant 128 : i32
    %368 = arith.maxsi %c0_i32_173, %352 : i32
    %369 = arith.minsi %c128_i32_174, %368 : i32
    %c128_i32_175 = arith.constant 128 : i32
    %370 = arith.maxsi %369, %356 : i32
    %371 = arith.minsi %c128_i32_175, %370 : i32
    %372 = arith.subi %371, %369 : i32
    %373 = arith.sitofp %372 : i32 to f32
    %cst_176 = arith.constant 1.000000e+00 : f32
    %374 = arith.divf %cst_176, %373 : f32
    %375 = vector.broadcast %374 : f32 to vector<1x1024xf32>
    %376 = arith.mulf %367, %375 : vector<1x1024xf32>
    %c12_177 = arith.constant 12 : index
    %c0_178 = arith.constant 0 : index
    %377 = vector.load %arg6[%c12_177, %c0_178] : memref<16x1024xf32, #tpu.memory_space<vmem>>, vector<1x1024xf32>
    tpu.vector_store %arg6[%c12_177, %c0_178], %376 {strides = array<i32>} : memref<16x1024xf32, #tpu.memory_space<vmem>>, vector<1x1024xf32>,
    %c16_i32_179 = arith.constant 16 : i32
    %378 = arith.muli %arg0, %c16_i32_179 : i32
    %c13_i32 = arith.constant 13 : i32
    %379 = arith.addi %378, %c13_i32 : i32
    %380 = arith.index_cast %379 : i32 to index
    %c0_180 = arith.constant 0 : index
    %381 = memref.load %arg1[%380, %c0_180] : memref<32x2xi32, #tpu.memory_space<smem>>
    %c16_i32_181 = arith.constant 16 : i32
    %382 = arith.muli %arg0, %c16_i32_181 : i32
    %c13_i32_182 = arith.constant 13 : i32
    %383 = arith.addi %382, %c13_i32_182 : i32
    %384 = arith.index_cast %383 : i32 to index
    %c1_183 = arith.constant 1 : index
    %385 = memref.load %arg1[%384, %c1_183] : memref<32x2xi32, #tpu.memory_space<smem>>
    %386 = vector.broadcast %381 : i32 to vector<1x128xi32>
    %387 = arith.cmpi sge, %0, %386 : vector<1x128xi32>
    %388 = vector.broadcast %385 : i32 to vector<1x128xi32>
    %389 = arith.cmpi slt, %0, %388 : vector<1x128xi32>
    %390 = arith.andi %387, %389 : vector<1x128xi1>
    %391 = arith.extui %390 : vector<1x128xi1> to vector<1x128xi32>
    %392 = arith.sitofp %391 : vector<1x128xi32> to vector<1x128xf32>
    %393 = arith.truncf %392 : vector<1x128xf32> to vector<1x128xbf16>
    %c13 = arith.constant 13 : index
    %c0_184 = arith.constant 0 : index
    %c0_185 = arith.constant 0 : index
    %394 = vector.load %arg2[%c13, %c0_184, %c0_185] : memref<16x128x1024xbf16, #tpu.memory_space<vmem>>, vector<1x128x1024xbf16>
    %395 = vector.shape_cast %394 : vector<1x128x1024xbf16> to vector<128x1024xbf16>
    %cst_186 = arith.constant dense<0.000000e+00> : vector<1x1024xf32>
    %396 = tpu.matmul %393, %395, %cst_186 {dimension_numbers = #tpu.dot_dimension_numbers<[1], [0], [0], [1], [0, 0, 1, 1], [], []>} : vector<1x128xbf16>, vector<128x1024xbf16>, vector<1x1024xf32> -> vector<1x1024xf32>
    %c0_i32_187 = arith.constant 0 : i32
    %c128_i32_188 = arith.constant 128 : i32
    %397 = arith.maxsi %c0_i32_187, %381 : i32
    %398 = arith.minsi %c128_i32_188, %397 : i32
    %c128_i32_189 = arith.constant 128 : i32
    %399 = arith.maxsi %398, %385 : i32
    %400 = arith.minsi %c128_i32_189, %399 : i32
    %401 = arith.subi %400, %398 : i32
    %402 = arith.sitofp %401 : i32 to f32
    %cst_190 = arith.constant 1.000000e+00 : f32
    %403 = arith.divf %cst_190, %402 : f32
    %404 = vector.broadcast %403 : f32 to vector<1x1024xf32>
    %405 = arith.mulf %396, %404 : vector<1x1024xf32>
    %c13_191 = arith.constant 13 : index
    %c0_192 = arith.constant 0 : index
    %406 = vector.load %arg6[%c13_191, %c0_192] : memref<16x1024xf32, #tpu.memory_space<vmem>>, vector<1x1024xf32>
    tpu.vector_store %arg6[%c13_191, %c0_192], %405 {strides = array<i32>} : memref<16x1024xf32, #tpu.memory_space<vmem>>, vector<1x1024xf32>,
    %c16_i32_193 = arith.constant 16 : i32
    %407 = arith.muli %arg0, %c16_i32_193 : i32
    %c14_i32 = arith.constant 14 : i32
    %408 = arith.addi %407, %c14_i32 : i32
    %409 = arith.index_cast %408 : i32 to index
    %c0_194 = arith.constant 0 : index
    %410 = memref.load %arg1[%409, %c0_194] : memref<32x2xi32, #tpu.memory_space<smem>>
    %c16_i32_195 = arith.constant 16 : i32
    %411 = arith.muli %arg0, %c16_i32_195 : i32
    %c14_i32_196 = arith.constant 14 : i32
    %412 = arith.addi %411, %c14_i32_196 : i32
    %413 = arith.index_cast %412 : i32 to index
    %c1_197 = arith.constant 1 : index
    %414 = memref.load %arg1[%413, %c1_197] : memref<32x2xi32, #tpu.memory_space<smem>>
    %415 = vector.broadcast %410 : i32 to vector<1x128xi32>
    %416 = arith.cmpi sge, %0, %415 : vector<1x128xi32>
    %417 = vector.broadcast %414 : i32 to vector<1x128xi32>
    %418 = arith.cmpi slt, %0, %417 : vector<1x128xi32>
    %419 = arith.andi %416, %418 : vector<1x128xi1>
    %420 = arith.extui %419 : vector<1x128xi1> to vector<1x128xi32>
    %421 = arith.sitofp %420 : vector<1x128xi32> to vector<1x128xf32>
    %422 = arith.truncf %421 : vector<1x128xf32> to vector<1x128xbf16>
    %c14 = arith.constant 14 : index
    %c0_198 = arith.constant 0 : index
    %c0_199 = arith.constant 0 : index
    %423 = vector.load %arg2[%c14, %c0_198, %c0_199] : memref<16x128x1024xbf16, #tpu.memory_space<vmem>>, vector<1x128x1024xbf16>
    %424 = vector.shape_cast %423 : vector<1x128x1024xbf16> to vector<128x1024xbf16>
    %cst_200 = arith.constant dense<0.000000e+00> : vector<1x1024xf32>
    %425 = tpu.matmul %422, %424, %cst_200 {dimension_numbers = #tpu.dot_dimension_numbers<[1], [0], [0], [1], [0, 0, 1, 1], [], []>} : vector<1x128xbf16>, vector<128x1024xbf16>, vector<1x1024xf32> -> vector<1x1024xf32>
    %c0_i32_201 = arith.constant 0 : i32
    %c128_i32_202 = arith.constant 128 : i32
    %426 = arith.maxsi %c0_i32_201, %410 : i32
    %427 = arith.minsi %c128_i32_202, %426 : i32
    %c128_i32_203 = arith.constant 128 : i32
    %428 = arith.maxsi %427, %414 : i32
    %429 = arith.minsi %c128_i32_203, %428 : i32
    %430 = arith.subi %429, %427 : i32
    %431 = arith.sitofp %430 : i32 to f32
    %cst_204 = arith.constant 1.000000e+00 : f32
    %432 = arith.divf %cst_204, %431 : f32
    %433 = vector.broadcast %432 : f32 to vector<1x1024xf32>
    %434 = arith.mulf %425, %433 : vector<1x1024xf32>
    %c14_205 = arith.constant 14 : index
    %c0_206 = arith.constant 0 : index
    %435 = vector.load %arg6[%c14_205, %c0_206] : memref<16x1024xf32, #tpu.memory_space<vmem>>, vector<1x1024xf32>
    tpu.vector_store %arg6[%c14_205, %c0_206], %434 {strides = array<i32>} : memref<16x1024xf32, #tpu.memory_space<vmem>>, vector<1x1024xf32>,
    %c16_i32_207 = arith.constant 16 : i32
    %436 = arith.muli %arg0, %c16_i32_207 : i32
    %c15_i32 = arith.constant 15 : i32
    %437 = arith.addi %436, %c15_i32 : i32
    %438 = arith.index_cast %437 : i32 to index
    %c0_208 = arith.constant 0 : index
    %439 = memref.load %arg1[%438, %c0_208] : memref<32x2xi32, #tpu.memory_space<smem>>
    %c16_i32_209 = arith.constant 16 : i32
    %440 = arith.muli %arg0, %c16_i32_209 : i32
    %c15_i32_210 = arith.constant 15 : i32
    %441 = arith.addi %440, %c15_i32_210 : i32
    %442 = arith.index_cast %441 : i32 to index
    %c1_211 = arith.constant 1 : index
    %443 = memref.load %arg1[%442, %c1_211] : memref<32x2xi32, #tpu.memory_space<smem>>
    %444 = vector.broadcast %439 : i32 to vector<1x128xi32>
    %445 = arith.cmpi sge, %0, %444 : vector<1x128xi32>
    %446 = vector.broadcast %443 : i32 to vector<1x128xi32>
    %447 = arith.cmpi slt, %0, %446 : vector<1x128xi32>
    %448 = arith.andi %445, %447 : vector<1x128xi1>
    %449 = arith.extui %448 : vector<1x128xi1> to vector<1x128xi32>
    %450 = arith.sitofp %449 : vector<1x128xi32> to vector<1x128xf32>
    %451 = arith.truncf %450 : vector<1x128xf32> to vector<1x128xbf16>
    %c15 = arith.constant 15 : index
    %c0_212 = arith.constant 0 : index
    %c0_213 = arith.constant 0 : index
    %452 = vector.load %arg2[%c15, %c0_212, %c0_213] : memref<16x128x1024xbf16, #tpu.memory_space<vmem>>, vector<1x128x1024xbf16>
    %453 = vector.shape_cast %452 : vector<1x128x1024xbf16> to vector<128x1024xbf16>
    %cst_214 = arith.constant dense<0.000000e+00> : vector<1x1024xf32>
    %454 = tpu.matmul %451, %453, %cst_214 {dimension_numbers = #tpu.dot_dimension_numbers<[1], [0], [0], [1], [0, 0, 1, 1], [], []>} : vector<1x128xbf16>, vector<128x1024xbf16>, vector<1x1024xf32> -> vector<1x1024xf32>
    %c0_i32_215 = arith.constant 0 : i32
    %c128_i32_216 = arith.constant 128 : i32
    %455 = arith.maxsi %c0_i32_215, %439 : i32
    %456 = arith.minsi %c128_i32_216, %455 : i32
    %c128_i32_217 = arith.constant 128 : i32
    %457 = arith.maxsi %456, %443 : i32
    %458 = arith.minsi %c128_i32_217, %457 : i32
    %459 = arith.subi %458, %456 : i32
    %460 = arith.sitofp %459 : i32 to f32
    %cst_218 = arith.constant 1.000000e+00 : f32
    %461 = arith.divf %cst_218, %460 : f32
    %462 = vector.broadcast %461 : f32 to vector<1x1024xf32>
    %463 = arith.mulf %454, %462 : vector<1x1024xf32>
    %c15_219 = arith.constant 15 : index
    %c0_220 = arith.constant 0 : index
    %464 = vector.load %arg6[%c15_219, %c0_220] : memref<16x1024xf32, #tpu.memory_space<vmem>>, vector<1x1024xf32>
    tpu.vector_store %arg6[%c15_219, %c0_220], %463 {strides = array<i32>} : memref<16x1024xf32, #tpu.memory_space<vmem>>, vector<1x1024xf32>,
    %c0_221 = arith.constant 0 : index
    %c0_222 = arith.constant 0 : index
    %465 = vector.load %arg6[%c0_221, %c0_222] : memref<16x1024xf32, #tpu.memory_space<vmem>>, vector<16x1024xf32>
    %466 = arith.truncf %465 : vector<16x1024xf32> to vector<16x1024xbf16>
    %c0_223 = arith.constant 0 : index
    %c0_224 = arith.constant 0 : index
    %467 = vector.load %arg3[%c0_223, %c0_224] : memref<1024x128xbf16, #tpu.memory_space<vmem>>, vector<1024x128xbf16>
    %cst_225 = arith.constant dense<0.000000e+00> : vector<16x128xf32>
    %468 = tpu.matmul %466, %467, %cst_225 {dimension_numbers = #tpu.dot_dimension_numbers<[1], [0], [0], [1], [0, 0, 1, 1], [], []>} : vector<16x1024xbf16>, vector<1024x128xbf16>, vector<16x128xf32> -> vector<16x128xf32>
    %c0_226 = arith.constant 0 : index
    %c0_227 = arith.constant 0 : index
    %469 = vector.load %arg4[%c0_226, %c0_227] : memref<1x128xf32, #tpu.memory_space<vmem>>, vector<1x128xf32>
    %470 = vector.broadcast %469 : vector<1x128xf32> to vector<16x128xf32>
    %471 = arith.addf %468, %470 : vector<16x128xf32>
    %c0_228 = arith.constant 0 : index
    %c0_229 = arith.constant 0 : index
    %472 = vector.load %arg5[%c0_228, %c0_229] : memref<16x128xf32, #tpu.memory_space<vmem>>, vector<16x128xf32>
    tpu.vector_store %arg5[%c0_228, %c0_229], %471 {strides = array<i32>} : memref<16x128xf32, #tpu.memory_space<vmem>>, vector<16x128xf32>,
    return
  }
  func.func @transform_0(%arg0: i32, %arg1: memref<32x2xi32, #tpu.memory_space<smem>>) -> (i32, i32, i32) {
    %c0_i32 = arith.constant 0 : i32
    %c0_i32_0 = arith.constant 0 : i32
    %c0_i32_1 = arith.constant 0 : i32
    return %arg0, %c0_i32, %c0_i32_0 : i32, i32, i32
  }
  func.func @transform_1(%arg0: i32, %arg1: memref<32x2xi32, #tpu.memory_space<smem>>) -> (i32, i32) {
    %c0_i32 = arith.constant 0 : i32
    %c0_i32_0 = arith.constant 0 : i32
    %c0_i32_1 = arith.constant 0 : i32
    return %c0_i32, %c0_i32_0 : i32, i32
  }
  func.func @transform_2(%arg0: i32, %arg1: memref<32x2xi32, #tpu.memory_space<smem>>) -> (i32, i32) {
    %c0_i32 = arith.constant 0 : i32
    %c0_i32_0 = arith.constant 0 : i32
    %c0_i32_1 = arith.constant 0 : i32
    return %c0_i32, %c0_i32_0 : i32, i32
  }
  func.func @transform_3(%arg0: i32, %arg1: memref<32x2xi32, #tpu.memory_space<smem>>) -> (i32, i32) {
    %c0_i32 = arith.constant 0 : i32
    %c0_i32_0 = arith.constant 0 : i32
    return %arg0, %c0_i32 : i32, i32
  }
}

</mosaic_0001>

<llo_original>
// kernel: tpu_custom_call.1
$region0: #{tpu_custom_call.1}
  #allocation0 [shape = 'u32[]', space=smem, size = 0x4, offset = 0x4, fixed_abs, tag = 'smem constant byte address 0x4 - core index']
  #allocation1 [shape = 'u32[72,128]{1,0:T(1,128)}', space=vmem, size = 0x9000, scoped, tag = 'internal scratch']
  #allocation2 [shape = 'f32[16,1024]{1,0:T(8,128)}', space=vmem, size = 0x10000, scoped, tag = 'scratch operand']
  #allocation3 [shape = 's32[1]{0}', space=sflag, size = 0x4, scoped, tag = 'scoped memory for tpu_custom_call.1']
  #allocation4 [shape = 'u8[16384]{0}', space=smem, size = 0x4000, scoped, tag = 'prefetched SMEM operand 0']
  %s0 = inlined_call_operand.vmem [shape: s32[32,2], index: 0, kind: input, shape index: {}]
  %s1 = inlined_call_operand.hbm [shape: bf16[32,128,1024], index: 1, kind: input, shape index: {}]
  %s2 = inlined_call_operand.hbm [shape: bf16[1024,128], index: 2, kind: input, shape index: {}]
  %s3 = inlined_call_operand.hbm [shape: f32[1,128], index: 3, kind: input, shape index: {}]
  %s4 = inlined_call_operand.hbm [shape: f32[32,128], index: 4, kind: output, shape index: {}]
  %s5 = sld [smem:[#allocation0]]
  $region57: #{tpu_custom_call.1} parent=0
    _
  %s7 = ssub.s32 1, %s5
  %s8 = scalar_select 0, %s7, %s5
  %s10 = sshll.u32 %s0, 4
  %s11 = int_to_ptr.vmem [resolvable:$true] %s10
  %13 = dma.vmem_to_smem %s11, 512, [#allocation4], [#allocation3]
  %15 = dma.done [#allocation3], 512
  %16 = sfence
  $region1: #{tpu_custom_call.1} parent=0
    #allocation5 [shape = 'u8[8388608]{0}', space=vmem, size = 0x800000, scoped, tag = 'input window, operand 1']
    #allocation6 [shape = 's32[2]{0}', space=sflag, size = 0x8, scoped, tag = 'scoped memory for tpu_custom_call.1']
    #allocation7 [shape = 's32[2]{0}', space=sflag, size = 0x8, scoped, tag = 'scoped memory for tpu_custom_call.1']
    #allocation8 [shape = 'u8[262144]{0}', space=vmem, size = 0x40000, scoped, tag = 'input window, operand 2, single buffered']
    #allocation9 [shape = 's32[1]{0}', space=sflag, size = 0x4, scoped, tag = 'scoped memory for tpu_custom_call.1']
    #allocation10 [shape = 'u8[512]{0}', space=vmem, size = 0x400, scoped, tag = 'input window, operand 3, single buffered']
    #allocation11 [shape = 'u8[16384]{0}', space=vmem, size = 0x4000, scoped, tag = 'output window, operand 0']
    %17 = vsyncpa [#allocation6], 0
    %s18 = scalar_lea.sflag [#allocation6], 1
    %19 = vsyncpa %s18, 0
    %20 = vsyncpa [#allocation9], 0
    %21 = vsyncpa [#allocation7], 0
    %s22 = scalar_lea.sflag [#allocation7], 1
    %23 = vsyncpa %s22, 0
    loop: start=0, step=1, limit=4
    $region2: #{tpu_custom_call.1} parent=1 // loop_pre_header
      _
    $region3: #{tpu_custom_call.1} parent=1 // loop_header
      %s25 = sphi 0, %s29
      %p26 = scmp.ge.s32.totalorder %s25, 4
      %s35 = sphi 0, %s37
      %s38 = sphi 0, %s35
      %s39 = sphi 0, %s38
      %s55 = sphi 0, %s39
      %s59 = sphi 0, %s59
      %s61 = sphi 0, %s59
      %s62 = sphi 0, %s61
      %s76 = sphi 0, %s62
      %s80 = sphi 0, %s80
      %s82 = sphi 0, %s80
      %s83 = sphi 0, %s82
      %s97 = sphi 0, %s83
      %s103 = sphi 0, %s105
      %s106 = sphi 0, %s103
      %s107 = sphi 0, %s106
      %s123 = sphi 0, %s107
    $region4: #{tpu_custom_call.1} parent=1 // loop_header_branch
      %28 = sbr.rel (%p26) target = $region8
    $region5: #{tpu_custom_call.1} parent=1 // loop_body
      %s30 = ssub.s32 %s25, 1
      %s31 = ssub.s32 %s25, 2
      %s32 = sadd.s32 %s25, 1
      %s33 = ssub.s32 %s25, %s32
      %p34 = scmp.eq.s32.totalorder %s33, 0
      %s36 = sadd.s32 %s35, 1
      %s37 = scalar_select %p34, %s35, %s36
      %p40 = pneg %p34
      %p41 = scmp.eq.s32.totalorder %s25, 1
      %p42 = por %p40, %p41
      %p43 = scmp.ne.s32.totalorder %s35, %s38
      %p44 = scmp.eq.s32.totalorder %s25, 0
      %p45 = por %p43, %p44
      %p46 = scmp.ne.s32.totalorder %s35, %s38
      %p47 = scmp.eq.s32.totalorder %s30, 1
      %p48 = por %p46, %p47
      %p49 = scmp.ne.s32.totalorder %s38, %s39
      %p50 = scmp.eq.s32.totalorder %s30, 0
      %p51 = por %p49, %p50
      %p52 = scmp.ne.s32.totalorder %s38, %s39
      %p53 = scmp.eq.s32.totalorder %s31, 1
      %p54 = por %p52, %p53
      %p56 = scmp.ne.s32.totalorder %s39, %s55
      %p57 = scmp.eq.s32.totalorder %s31, 0
      %p58 = por %p56, %p57
      %s60 = sadd.s32 %s59, 1
      %p63 = scmp.eq.s32.totalorder %s25, 1
      %p64 = scmp.ne.s32.totalorder %s59, %s61
      %p65 = scmp.eq.s32.totalorder %s25, 0
      %p66 = por %p64, %p65
      %p67 = scmp.ne.s32.totalorder %s59, %s61
      %p68 = scmp.eq.s32.totalorder %s30, 1
      %p69 = por %p67, %p68
      %p70 = scmp.ne.s32.totalorder %s61, %s62
      %p71 = scmp.eq.s32.totalorder %s30, 0
      %p72 = por %p70, %p71
      %p73 = scmp.ne.s32.totalorder %s61, %s62
      %p74 = scmp.eq.s32.totalorder %s31, 1
      %p75 = por %p73, %p74
      %p77 = scmp.ne.s32.totalorder %s62, %s76
      %p78 = scmp.eq.s32.totalorder %s31, 0
      %p79 = por %p77, %p78
      %s81 = sadd.s32 %s80, 1
      %p84 = scmp.eq.s32.totalorder %s25, 1
      %p85 = scmp.ne.s32.totalorder %s80, %s82
      %p86 = scmp.eq.s32.totalorder %s25, 0
      %p87 = por %p85, %p86
      %p88 = scmp.ne.s32.totalorder %s80, %s82
      %p89 = scmp.eq.s32.totalorder %s30, 1
      %p90 = por %p88, %p89
      %p91 = scmp.ne.s32.totalorder %s82, %s83
      %p92 = scmp.eq.s32.totalorder %s30, 0
      %p93 = por %p91, %p92
      %p94 = scmp.ne.s32.totalorder %s82, %s83
      %p95 = scmp.eq.s32.totalorder %s31, 1
      %p96 = por %p94, %p95
      %p98 = scmp.ne.s32.totalorder %s83, %s97
      %p99 = scmp.eq.s32.totalorder %s31, 0
      %p100 = por %p98, %p99
      %s101 = ssub.s32 %s25, %s32
      %p102 = scmp.eq.s32.totalorder %s101, 0
      %s104 = sadd.s32 %s103, 1
      %s105 = scalar_select %p102, %s103, %s104
      %p108 = pneg %p102
      %p109 = scmp.eq.s32.totalorder %s25, 1
      %p110 = por %p108, %p109
      %p111 = scmp.ne.s32.totalorder %s103, %s106
      %p112 = scmp.eq.s32.totalorder %s25, 0
      %p113 = por %p111, %p112
      %p114 = scmp.ne.s32.totalorder %s103, %s106
      %p115 = scmp.eq.s32.totalorder %s30, 1
      %p116 = por %p114, %p115
      %p117 = scmp.ne.s32.totalorder %s106, %s107
      %p118 = scmp.eq.s32.totalorder %s30, 0
      %p119 = por %p117, %p118
      %p120 = scmp.ne.s32.totalorder %s106, %s107
      %p121 = scmp.eq.s32.totalorder %s31, 1
      %p122 = por %p120, %p121
      %p124 = scmp.ne.s32.totalorder %s107, %s123
      %p125 = scmp.eq.s32.totalorder %s31, 0
      %p126 = por %p124, %p125
      %p127 = scmp.le.s32.totalorder 1, %s25
      %p128 = scmp.lt.s32.totalorder %s25, 3
      %p129 = pnand %p127, %p128
      %p130 = pneg %p129
      // Predicated region
      $region9: #{tpu_custom_call.1} parent=5 // pred_check
        _
      $region10: #{tpu_custom_call.1} parent=5 // pred_check_branch
        %132 = sbr.rel (%p129) target = $region12
      $region11: #{tpu_custom_call.1} parent=5 // pred_region
        %s133 = ssub.s32 %s25, 1
        // Predicated region
        $region13: #{tpu_custom_call.1} parent=11 // pred_check
          %p134 = pneg %p72
        $region14: #{tpu_custom_call.1} parent=11 // pred_check_branch
          %136 = sbr.rel (%p134) target = $region16
        $region15: #{tpu_custom_call.1} parent=11 // pred_region
          %138 = vsyncadd [#allocation9], 0
          %s139 = sshll.u32 %s2, 4
          %s140 = int_to_ptr.hbm [resolvable:$true] %s139
          %s141 = sshll.u32 [#allocation8], 4
          %s142 = int_to_ptr.vmem [resolvable:$true] %s141
          %147 = dma.hbm_to_vmem [thread:$0]  %s140, 8192, %s142, [#allocation9], 64, 64, 4
        $region16: #{tpu_custom_call.1} parent=11 // pred_fallthru
          _
        // Predicated region
        $region17: #{tpu_custom_call.1} parent=11 // pred_check
          %p148 = pneg %p93
        $region18: #{tpu_custom_call.1} parent=11 // pred_check_branch
          %150 = sbr.rel (%p148) target = $region20
        $region19: #{tpu_custom_call.1} parent=11 // pred_region
          %152 = vsyncadd [#allocation9], 0
          %s154 = sshll.u32 %s3, 4
          %s155 = int_to_ptr.hbm [resolvable:$true] %s154
          %s156 = sshll.u32 [#allocation10], 4
          %s157 = int_to_ptr.vmem [resolvable:$true] %s156
          %159 = dma.hbm_to_vmem [thread:$0]  %s155, 16, %s157, [#allocation9]
        $region20: #{tpu_custom_call.1} parent=11 // pred_fallthru
          _
      $region12: #{tpu_custom_call.1} parent=5 // pred_fallthru
        _
      %p160 = scmp.lt.s32.totalorder %s25, 2
      // Predicated region
      $region21: #{tpu_custom_call.1} parent=5 // pred_check
        %p161 = pneg %p160
      $region22: #{tpu_custom_call.1} parent=5 // pred_check_branch
        %163 = sbr.rel (%p161) target = $region24
      $region23: #{tpu_custom_call.1} parent=5 // pred_region
        // Predicated region
        $region25: #{tpu_custom_call.1} parent=23 // pred_check
          %p164 = pneg %p45
        $region26: #{tpu_custom_call.1} parent=23 // pred_check_branch
          %166 = sbr.rel (%p164) target = $region28
        $region27: #{tpu_custom_call.1} parent=23 // pred_region
          %s167 = sand.u32 %s35, 1
          %s168 = scalar_lea.sflag [#allocation6], %s167
          %s169 = sand.u32 %s35, 1
          %s170 = smul.addr %s169, 8192
          %s171 = scalar_lea.vmem [#allocation5], %s170
          %s172 = smul.u32 16, %s25
          %174 = vsyncadd %s168, 0
          %s175 = smul.addr %s172, 128
          %s176 = smul.addr %s175, 4
          %s177 = scalar_lea.hbm %s1, %s176
          %s178 = sshll.u32 %s177, 4
          %s179 = int_to_ptr.hbm [resolvable:$true] %s178
          %s180 = sshll.u32 %s171, 4
          %s181 = int_to_ptr.vmem [resolvable:$true] %s180
          %186 = dma.hbm_to_vmem [thread:$0]  %s179, 131072, %s181, %s168, 512, 512, 32
        $region28: #{tpu_custom_call.1} parent=23 // pred_fallthru
          _
      $region24: #{tpu_custom_call.1} parent=5 // pred_fallthru
        _
      %p187 = scmp.le.s32.totalorder 1, %s25
      %p188 = scmp.lt.s32.totalorder %s25, 3
      %p189 = pnand %p187, %p188
      %p190 = pneg %p189
      // Predicated region
      $region29: #{tpu_custom_call.1} parent=5 // pred_check
        _
      $region30: #{tpu_custom_call.1} parent=5 // pred_check_branch
        %192 = sbr.rel (%p189) target = $region32
      $region31: #{tpu_custom_call.1} parent=5 // pred_region
        %s193 = ssub.s32 %s25, 1
        %s194 = sand.u32 %s38, 1
        %s195 = scalar_lea.sflag [#allocation6], %s194
        %s196 = sand.u32 %s38, 1
        %s197 = smul.addr %s196, 8192
        %s198 = scalar_lea.vmem [#allocation5], %s197
        // Predicated region
        $region33: #{tpu_custom_call.1} parent=31 // pred_check
          %p199 = pneg %p51
        $region34: #{tpu_custom_call.1} parent=31 // pred_check_branch
          %201 = sbr.rel (%p199) target = $region36
        $region35: #{tpu_custom_call.1} parent=31 // pred_region
          %203 = dma.done %s195, 131072
        $region36: #{tpu_custom_call.1} parent=31 // pred_fallthru
          _
        // Predicated region
        $region37: #{tpu_custom_call.1} parent=31 // pred_check
          %p204 = pneg %p72
        $region38: #{tpu_custom_call.1} parent=31 // pred_check_branch
          %206 = sbr.rel (%p204) target = $region40
        $region39: #{tpu_custom_call.1} parent=31 // pred_region
          %208 = dma.done [#allocation9], 8192
        $region40: #{tpu_custom_call.1} parent=31 // pred_fallthru
          _
        // Predicated region
        $region41: #{tpu_custom_call.1} parent=31 // pred_check
          %p209 = pneg %p93
        $region42: #{tpu_custom_call.1} parent=31 // pred_check_branch
          %211 = sbr.rel (%p209) target = $region44
        $region43: #{tpu_custom_call.1} parent=31 // pred_region
          %213 = dma.done [#allocation9], 16
        $region44: #{tpu_custom_call.1} parent=31 // pred_fallthru
          _
        %s214 = sand.u32 %s38, 1
        %s215 = scalar_lea.sflag [#allocation6], %s214
        %s216 = sand.u32 %s38, 1
        %s217 = smul.addr %s216, 8192
        %s218 = scalar_lea.vmem [#allocation5], %s217
        %p219 = pneg %p51
        %p220 = pneg %p48
        %p221 = pneg %p72
        %p222 = pneg %p69
        %p223 = pneg %p93
        %p224 = pneg %p90
        %p225 = pneg %p119
        %p226 = pneg %p116
        %s227 = sand.u32 %s106, 1
        %s228 = scalar_lea.sflag [#allocation7], %s227
        %s229 = sand.u32 %s106, 1
        %s230 = smul.addr %s229, 16
        %s231 = scalar_lea.vmem [#allocation11], %s230
        %s232 = smul.u32 16, %s30
        %s233 = smul.u32 2, %s30
        %v234 = vlaneseq
        %v235 = vand.u32 %v234, 127
        %s236 = smul.u32 %s30, 16
        %s237 = smul.u32 %s236, 128
        %s238 = sld [smem:[#allocation4 + %s237]]
        %s239 = sadd.s32 %s237, 1
        %s240 = sld [smem:[#allocation4 + %s239]]
        %v241 = vstv %s238
        %vm242 = vcmp.ge.s32.totalorder %v235, %v241
        %v243 = vstv %s240
        %vm244 = vcmp.lt.s32.totalorder %v235, %v243
        %vm245 = vmand %vm242, %vm244
        %v246 = vsel %vm245, 1, 0
        %v247 = vcvt.s32.f32 %v246
        %v248 = vpack.c.bf16 %v247, %v247
        %v249 = vld [vmem:[%s198] sm:$0xff]
        %v250 = vld [vmem:[%s198 + $0x8] sm:$0xff]
        %v251 = vld [vmem:[%s198 + $0x10] sm:$0xff]
        %v252 = vld [vmem:[%s198 + $0x18] sm:$0xff]
        %v253 = vld [vmem:[%s198 + $0x20] sm:$0xff]
        %v254 = vld [vmem:[%s198 + $0x28] sm:$0xff]
        %v255 = vld [vmem:[%s198 + $0x30] sm:$0xff]
        %v256 = vld [vmem:[%s198 + $0x38] sm:$0xff]
        %v257 = vld [vmem:[%s198 + $0x40] sm:$0xff]
        %v258 = vld [vmem:[%s198 + $0x48] sm:$0xff]
        %v259 = vld [vmem:[%s198 + $0x50] sm:$0xff]
        %v260 = vld [vmem:[%s198 + $0x58] sm:$0xff]
        %v261 = vld [vmem:[%s198 + $0x60] sm:$0xff]
        %v262 = vld [vmem:[%s198 + $0x68] sm:$0xff]
        %v263 = vld [vmem:[%s198 + $0x70] sm:$0xff]
        %v264 = vld [vmem:[%s198 + $0x78] sm:$0xff]
        %v265 = vld [vmem:[%s198 + $0x80] sm:$0xff]
        %v266 = vld [vmem:[%s198 + $0x88] sm:$0xff]
        %v267 = vld [vmem:[%s198 + $0x90] sm:$0xff]
        %v268 = vld [vmem:[%s198 + $0x98] sm:$0xff]
        %v269 = vld [vmem:[%s198 + $0xa0] sm:$0xff]
        %v270 = vld [vmem:[%s198 + $0xa8] sm:$0xff]
        %v271 = vld [vmem:[%s198 + $0xb0] sm:$0xff]
        %v272 = vld [vmem:[%s198 + $0xb8] sm:$0xff]
        %v273 = vld [vmem:[%s198 + $0xc0] sm:$0xff]
        %v274 = vld [vmem:[%s198 + $0xc8] sm:$0xff]
        %v275 = vld [vmem:[%s198 + $0xd0] sm:$0xff]
        %v276 = vld [vmem:[%s198 + $0xd8] sm:$0xff]
        %v277 = vld [vmem:[%s198 + $0xe0] sm:$0xff]
        %v278 = vld [vmem:[%s198 + $0xe8] sm:$0xff]
        %v279 = vld [vmem:[%s198 + $0xf0] sm:$0xff]
        %v280 = vld [vmem:[%s198 + $0xf8] sm:$0xff]
        %v281 = vld [vmem:[%s198 + $0x100] sm:$0xff]
        %v282 = vld [vmem:[%s198 + $0x108] sm:$0xff]
        %v283 = vld [vmem:[%s198 + $0x110] sm:$0xff]
        %v284 = vld [vmem:[%s198 + $0x118] sm:$0xff]
        %v285 = vld [vmem:[%s198 + $0x120] sm:$0xff]
        %v286 = vld [vmem:[%s198 + $0x128] sm:$0xff]
        %v287 = vld [vmem:[%s198 + $0x130] sm:$0xff]
        %v288 = vld [vmem:[%s198 + $0x138] sm:$0xff]
        %v289 = vld [vmem:[%s198 + $0x140] sm:$0xff]
        %v290 = vld [vmem:[%s198 + $0x148] sm:$0xff]
        %v291 = vld [vmem:[%s198 + $0x150] sm:$0xff]
        %v292 = vld [vmem:[%s198 + $0x158] sm:$0xff]
        %v293 = vld [vmem:[%s198 + $0x160] sm:$0xff]
        %v294 = vld [vmem:[%s198 + $0x168] sm:$0xff]
        %v295 = vld [vmem:[%s198 + $0x170] sm:$0xff]
        %v296 = vld [vmem:[%s198 + $0x178] sm:$0xff]
        %v297 = vld [vmem:[%s198 + $0x180] sm:$0xff]
        %v298 = vld [vmem:[%s198 + $0x188] sm:$0xff]
        %v299 = vld [vmem:[%s198 + $0x190] sm:$0xff]
        %v300 = vld [vmem:[%s198 + $0x198] sm:$0xff]
        %v301 = vld [vmem:[%s198 + $0x1a0] sm:$0xff]
        %v302 = vld [vmem:[%s198 + $0x1a8] sm:$0xff]
        %v303 = vld [vmem:[%s198 + $0x1b0] sm:$0xff]
        %v304 = vld [vmem:[%s198 + $0x1b8] sm:$0xff]
        %v305 = vld [vmem:[%s198 + $0x1c0] sm:$0xff]
        %v306 = vld [vmem:[%s198 + $0x1c8] sm:$0xff]
        %v307 = vld [vmem:[%s198 + $0x1d0] sm:$0xff]
        %v308 = vld [vmem:[%s198 + $0x1d8] sm:$0xff]
        %v309 = vld [vmem:[%s198 + $0x1e0] sm:$0xff]
        %v310 = vld [vmem:[%s198 + $0x1e8] sm:$0xff]
        %v311 = vld [vmem:[%s198 + $0x1f0] sm:$0xff]
        %v312 = vld [vmem:[%s198 + $0x1f8] sm:$0xff]
        %v377 = vunpack.c.l.b16 %v249
        %v378 = vunpack.c.h.b16 %v249
        %v379 = vunpack.c.l.b16 %v250
        %v380 = vunpack.c.h.b16 %v250
        %v381 = vunpack.c.l.b16 %v251
        %v382 = vunpack.c.h.b16 %v251
        %v383 = vunpack.c.l.b16 %v252
        %v384 = vunpack.c.h.b16 %v252
        %v385 = vunpack.c.l.b16 %v253
        %v386 = vunpack.c.h.b16 %v253
        %v387 = vunpack.c.l.b16 %v254
        %v388 = vunpack.c.h.b16 %v254
        %v389 = vunpack.c.l.b16 %v255
        %v390 = vunpack.c.h.b16 %v255
        %v391 = vunpack.c.l.b16 %v256
        %v392 = vunpack.c.h.b16 %v256
        %v393 = vunpack.c.l.b16 %v257
        %v394 = vunpack.c.h.b16 %v257
        %v395 = vunpack.c.l.b16 %v258
        %v396 = vunpack.c.h.b16 %v258
        %v397 = vunpack.c.l.b16 %v259
        %v398 = vunpack.c.h.b16 %v259
        %v399 = vunpack.c.l.b16 %v260
        %v400 = vunpack.c.h.b16 %v260
        %v401 = vunpack.c.l.b16 %v261
        %v402 = vunpack.c.h.b16 %v261
        %v403 = vunpack.c.l.b16 %v262
        %v404 = vunpack.c.h.b16 %v262
        %v405 = vunpack.c.l.b16 %v263
        %v406 = vunpack.c.h.b16 %v263
        %v407 = vunpack.c.l.b16 %v264
        %v408 = vunpack.c.h.b16 %v264
        %v409 = vunpack.c.l.b16 %v265
        %v410 = vunpack.c.h.b16 %v265
        %v411 = vunpack.c.l.b16 %v266
        %v412 = vunpack.c.h.b16 %v266
        %v413 = vunpack.c.l.b16 %v267
        %v414 = vunpack.c.h.b16 %v267
        %v415 = vunpack.c.l.b16 %v268
        %v416 = vunpack.c.h.b16 %v268
        %v417 = vunpack.c.l.b16 %v269
        %v418 = vunpack.c.h.b16 %v269
        %v419 = vunpack.c.l.b16 %v270
        %v420 = vunpack.c.h.b16 %v270
        %v421 = vunpack.c.l.b16 %v271
        %v422 = vunpack.c.h.b16 %v271
        %v423 = vunpack.c.l.b16 %v272
        %v424 = vunpack.c.h.b16 %v272
        %v425 = vunpack.c.l.b16 %v273
        %v426 = vunpack.c.h.b16 %v273
        %v427 = vunpack.c.l.b16 %v274
        %v428 = vunpack.c.h.b16 %v274
        %v429 = vunpack.c.l.b16 %v275
        %v430 = vunpack.c.h.b16 %v275
        %v431 = vunpack.c.l.b16 %v276
        %v432 = vunpack.c.h.b16 %v276
        %v433 = vunpack.c.l.b16 %v277
        %v434 = vunpack.c.h.b16 %v277
        %v435 = vunpack.c.l.b16 %v278
        %v436 = vunpack.c.h.b16 %v278
        %v437 = vunpack.c.l.b16 %v279
        %v438 = vunpack.c.h.b16 %v279
        %v439 = vunpack.c.l.b16 %v280
        %v440 = vunpack.c.h.b16 %v280
        %v441 = vunpack.c.l.b16 %v281
        %v442 = vunpack.c.h.b16 %v281
        %v443 = vunpack.c.l.b16 %v282
        %v444 = vunpack.c.h.b16 %v282
        %v445 = vunpack.c.l.b16 %v283
        %v446 = vunpack.c.h.b16 %v283
        %v447 = vunpack.c.l.b16 %v284
        %v448 = vunpack.c.h.b16 %v284
        %v449 = vunpack.c.l.b16 %v285
        %v450 = vunpack.c.h.b16 %v285
        %v451 = vunpack.c.l.b16 %v286
        %v452 = vunpack.c.h.b16 %v286
        %v453 = vunpack.c.l.b16 %v287
        %v454 = vunpack.c.h.b16 %v287
        %v455 = vunpack.c.l.b16 %v288
        %v456 = vunpack.c.h.b16 %v288
        %v457 = vunpack.c.l.b16 %v289
        %v458 = vunpack.c.h.b16 %v289
        %v459 = vunpack.c.l.b16 %v290
        %v460 = vunpack.c.h.b16 %v290
        %v461 = vunpack.c.l.b16 %v291
        %v462 = vunpack.c.h.b16 %v291
        %v463 = vunpack.c.l.b16 %v292
        %v464 = vunpack.c.h.b16 %v292
        %v465 = vunpack.c.l.b16 %v293
        %v466 = vunpack.c.h.b16 %v293
        %v467 = vunpack.c.l.b16 %v294
        %v468 = vunpack.c.h.b16 %v294
        %v469 = vunpack.c.l.b16 %v295
        %v470 = vunpack.c.h.b16 %v295
        %v471 = vunpack.c.l.b16 %v296
        %v472 = vunpack.c.h.b16 %v296
        %v473 = vunpack.c.l.b16 %v297
        %v474 = vunpack.c.h.b16 %v297
        %v475 = vunpack.c.l.b16 %v298
        %v476 = vunpack.c.h.b16 %v298
        %v477 = vunpack.c.l.b16 %v299
        %v478 = vunpack.c.h.b16 %v299
        %v479 = vunpack.c.l.b16 %v300
        %v480 = vunpack.c.h.b16 %v300
        %v481 = vunpack.c.l.b16 %v301
        %v482 = vunpack.c.h.b16 %v301
        %v483 = vunpack.c.l.b16 %v302
        %v484 = vunpack.c.h.b16 %v302
        %v485 = vunpack.c.l.b16 %v303
        %v486 = vunpack.c.h.b16 %v303
        %v487 = vunpack.c.l.b16 %v304
        %v488 = vunpack.c.h.b16 %v304
        %v489 = vunpack.c.l.b16 %v305
        %v490 = vunpack.c.h.b16 %v305
        %v491 = vunpack.c.l.b16 %v306
        %v492 = vunpack.c.h.b16 %v306
        %v493 = vunpack.c.l.b16 %v307
        %v494 = vunpack.c.h.b16 %v307
        %v495 = vunpack.c.l.b16 %v308
        %v496 = vunpack.c.h.b16 %v308
        %v497 = vunpack.c.l.b16 %v309
        %v498 = vunpack.c.h.b16 %v309
        %v499 = vunpack.c.l.b16 %v310
        %v500 = vunpack.c.h.b16 %v310
        %v501 = vunpack.c.l.b16 %v311
        %v502 = vunpack.c.h.b16 %v311
        %v503 = vunpack.c.l.b16 %v312
        %v504 = vunpack.c.h.b16 %v312
        %v505 = vpack.c.b16 %v385, %v377
        %v506 = vpack.c.b16 %v386, %v378
        %v507 = vpack.c.b16 %v387, %v379
        %v508 = vpack.c.b16 %v388, %v380
        %v509 = vpack.c.b16 %v389, %v381
        %v510 = vpack.c.b16 %v390, %v382
        %v511 = vpack.c.b16 %v391, %v383
        %v512 = vpack.c.b16 %v392, %v384
        %v513 = vpack.c.b16 %v401, %v393
        %v514 = vpack.c.b16 %v402, %v394
        %v515 = vpack.c.b16 %v403, %v395
        %v516 = vpack.c.b16 %v404, %v396
        %v517 = vpack.c.b16 %v405, %v397
        %v518 = vpack.c.b16 %v406, %v398
        %v519 = vpack.c.b16 %v407, %v399
        %v520 = vpack.c.b16 %v408, %v400
        %v521 = vpack.c.b16 %v417, %v409
        %v522 = vpack.c.b16 %v418, %v410
        %v523 = vpack.c.b16 %v419, %v411
        %v524 = vpack.c.b16 %v420, %v412
        %v525 = vpack.c.b16 %v421, %v413
        %v526 = vpack.c.b16 %v422, %v414
        %v527 = vpack.c.b16 %v423, %v415
        %v528 = vpack.c.b16 %v424, %v416
        %v529 = vpack.c.b16 %v433, %v425
        %v530 = vpack.c.b16 %v434, %v426
        %v531 = vpack.c.b16 %v435, %v427
        %v532 = vpack.c.b16 %v436, %v428
        %v533 = vpack.c.b16 %v437, %v429
        %v534 = vpack.c.b16 %v438, %v430
        %v535 = vpack.c.b16 %v439, %v431
        %v536 = vpack.c.b16 %v440, %v432
        %v537 = vpack.c.b16 %v449, %v441
        %v538 = vpack.c.b16 %v450, %v442
        %v539 = vpack.c.b16 %v451, %v443
        %v540 = vpack.c.b16 %v452, %v444
        %v541 = vpack.c.b16 %v453, %v445
        %v542 = vpack.c.b16 %v454, %v446
        %v543 = vpack.c.b16 %v455, %v447
        %v544 = vpack.c.b16 %v456, %v448
        %v545 = vpack.c.b16 %v465, %v457
        %v546 = vpack.c.b16 %v466, %v458
        %v547 = vpack.c.b16 %v467, %v459
        %v548 = vpack.c.b16 %v468, %v460
        %v549 = vpack.c.b16 %v469, %v461
        %v550 = vpack.c.b16 %v470, %v462
        %v551 = vpack.c.b16 %v471, %v463
        %v552 = vpack.c.b16 %v472, %v464
        %v553 = vpack.c.b16 %v481, %v473
        %v554 = vpack.c.b16 %v482, %v474
        %v555 = vpack.c.b16 %v483, %v475
        %v556 = vpack.c.b16 %v484, %v476
        %v557 = vpack.c.b16 %v485, %v477
        %v558 = vpack.c.b16 %v486, %v478
        %v559 = vpack.c.b16 %v487, %v479
        %v560 = vpack.c.b16 %v488, %v480
        %v561 = vpack.c.b16 %v497, %v489
        %v562 = vpack.c.b16 %v498, %v490
        %v563 = vpack.c.b16 %v499, %v491
        %v564 = vpack.c.b16 %v500, %v492
        %v565 = vpack.c.b16 %v501, %v493
        %v566 = vpack.c.b16 %v502, %v494
        %v567 = vpack.c.b16 %v503, %v495
        %v568 = vpack.c.b16 %v504, %v496
        %633 = vmatpush.bf16.msra.mxu0 %v561
        %634 = vmatpush.bf16.msra.mxu0 %v553
        %635 = vmatpush.bf16.msra.mxu0 %v545
        %636 = vmatpush.bf16.msra.mxu0 %v537
        %637 = vmatpush.bf16.msra.mxu0 %v529
        %638 = vmatpush.bf16.msra.mxu0 %v521
        %639 = vmatpush.bf16.msra.mxu0 %v513
        %640 = vmatpush.bf16.msra.mxu0 %v505
        %641 = vmatmul.bf16.gmra.mxu0 %v248
        %v642 = vpop.f32.mrf.mxu0
        %v643 = vadd.f32 0.0, %v642
        %v644 = vpop.f32.mrf.mxu0
        %645 = vdwg.mxu0
        %646 = vmatpush.bf16.msra.mxu0 %v562
        %647 = vmatpush.bf16.msra.mxu0 %v554
        %648 = vmatpush.bf16.msra.mxu0 %v546
        %649 = vmatpush.bf16.msra.mxu0 %v538
        %650 = vmatpush.bf16.msra.mxu0 %v530
        %651 = vmatpush.bf16.msra.mxu0 %v522
        %652 = vmatpush.bf16.msra.mxu0 %v514
        %653 = vmatpush.bf16.msra.mxu0 %v506
        %654 = vmatmul.bf16.gmra.mxu0 %v248
        %v655 = vpop.f32.mrf.mxu0
        %v656 = vadd.f32 0.0, %v655
        %v657 = vpop.f32.mrf.mxu0
        %658 = vdwg.mxu0
        %659 = vmatpush.bf16.msra.mxu0 %v563
        %660 = vmatpush.bf16.msra.mxu0 %v555
        %661 = vmatpush.bf16.msra.mxu0 %v547
        %662 = vmatpush.bf16.msra.mxu0 %v539
        %663 = vmatpush.bf16.msra.mxu0 %v531
        %664 = vmatpush.bf16.msra.mxu0 %v523
        %665 = vmatpush.bf16.msra.mxu0 %v515
        %666 = vmatpush.bf16.msra.mxu0 %v507
        %667 = vmatmul.bf16.gmra.mxu0 %v248
        %v668 = vpop.f32.mrf.mxu0
        %v669 = vadd.f32 0.0, %v668
        %v670 = vpop.f32.mrf.mxu0
        %671 = vdwg.mxu0
        %672 = vmatpush.bf16.msra.mxu0 %v564
        %673 = vmatpush.bf16.msra.mxu0 %v556
        %674 = vmatpush.bf16.msra.mxu0 %v548
        %675 = vmatpush.bf16.msra.mxu0 %v540
        %676 = vmatpush.bf16.msra.mxu0 %v532
        %677 = vmatpush.bf16.msra.mxu0 %v524
        %678 = vmatpush.bf16.msra.mxu0 %v516
        %679 = vmatpush.bf16.msra.mxu0 %v508
        %680 = vmatmul.bf16.gmra.mxu0 %v248
        %v681 = vpop.f32.mrf.mxu0
        %v682 = vadd.f32 0.0, %v681
        %v683 = vpop.f32.mrf.mxu0
        %684 = vdwg.mxu0
        %685 = vmatpush.bf16.msra.mxu0 %v565
        %686 = vmatpush.bf16.msra.mxu0 %v557
        %687 = vmatpush.bf16.msra.mxu0 %v549
        %688 = vmatpush.bf16.msra.mxu0 %v541
        %689 = vmatpush.bf16.msra.mxu0 %v533
        %690 = vmatpush.bf16.msra.mxu0 %v525
        %691 = vmatpush.bf16.msra.mxu0 %v517
        %692 = vmatpush.bf16.msra.mxu0 %v509
        %693 = vmatmul.bf16.gmra.mxu0 %v248
        %v694 = vpop.f32.mrf.mxu0
        %v695 = vadd.f32 0.0, %v694
        %v696 = vpop.f32.mrf.mxu0
        %697 = vdwg.mxu0
        %698 = vmatpush.bf16.msra.mxu0 %v566
        %699 = vmatpush.bf16.msra.mxu0 %v558
        %700 = vmatpush.bf16.msra.mxu0 %v550
        %701 = vmatpush.bf16.msra.mxu0 %v542
        %702 = vmatpush.bf16.msra.mxu0 %v534
        %703 = vmatpush.bf16.msra.mxu0 %v526
        %704 = vmatpush.bf16.msra.mxu0 %v518
        %705 = vmatpush.bf16.msra.mxu0 %v510
        %706 = vmatmul.bf16.gmra.mxu0 %v248
        %v707 = vpop.f32.mrf.mxu0
        %v708 = vadd.f32 0.0, %v707
        %v709 = vpop.f32.mrf.mxu0
        %710 = vdwg.mxu0
        %711 = vmatpush.bf16.msra.mxu0 %v567
        %712 = vmatpush.bf16.msra.mxu0 %v559
        %713 = vmatpush.bf16.msra.mxu0 %v551
        %714 = vmatpush.bf16.msra.mxu0 %v543
        %715 = vmatpush.bf16.msra.mxu0 %v535
        %716 = vmatpush.bf16.msra.mxu0 %v527
        %717 = vmatpush.bf16.msra.mxu0 %v519
        %718 = vmatpush.bf16.msra.mxu0 %v511
        %719 = vmatmul.bf16.gmra.mxu0 %v248
        %v720 = vpop.f32.mrf.mxu0
        %v721 = vadd.f32 0.0, %v720
        %v722 = vpop.f32.mrf.mxu0
        %723 = vdwg.mxu0
        %724 = vmatpush.bf16.msra.mxu0 %v568
        %725 = vmatpush.bf16.msra.mxu0 %v560
        %726 = vmatpush.bf16.msra.mxu0 %v552
        %727 = vmatpush.bf16.msra.mxu0 %v544
        %728 = vmatpush.bf16.msra.mxu0 %v536
        %729 = vmatpush.bf16.msra.mxu0 %v528
        %730 = vmatpush.bf16.msra.mxu0 %v520
        %731 = vmatpush.bf16.msra.mxu0 %v512
        %732 = vmatmul.bf16.gmra.mxu0 %v248
        %v733 = vpop.f32.mrf.mxu0
        %v734 = vadd.f32 0.0, %v733
        %v735 = vpop.f32.mrf.mxu0
        %736 = vdwg.mxu0
        %p737 = scmp.gt.s32.totalorder %s238, 0
        %s738 = scalar_select %p737, %s238, 0
        %p739 = scmp.lt.s32.totalorder %s738, 128
        %s740 = scalar_select %p739, %s738, 128
        %p741 = scmp.gt.s32.totalorder %s740, %s240
        %s742 = scalar_select %p741, %s740, %s240
        %p743 = scmp.lt.s32.totalorder %s742, 128
        %s744 = scalar_select %p743, %s742, 128
        %s745 = ssub.s32 %s744, %s740
        %s746 = scvt.s32.f32 %s745
        %v747 = vstv %s746
        %v748 = vrcp.pop %v747
        %v749 = vmul.f32 %v747, %v748
        %v750 = vsub.f32 1.0, %v749
        %v751 = vmul.f32 %v748, %v750
        %v752 = vadd.f32 %v748, %v751
        %vm753 = vweird.f32 %v747
        %vm754 = vweird.f32 %v748
        %vm755 = vmor %vm753, %vm754
        %v756 = vsel %vm755, %v748, %v752
        %v757 = vand.u32 2147483647, %v747
        %vm758 = vcmp.eq.f32.partialorder %v757, 8.507059e+37
        %v759 = vand.u32 %v747, 2147483648
        %v760 = vor.u32 1.1754944e-38, %v759
        %v761 = vsel %vm758, %v760, %v756
        %s762 = vtos %v761
        %v763 = vstv %s762
        %v764 = vmul.f32 %v643, %v763
        %v765 = vmul.f32 %v656, %v763
        %v766 = vmul.f32 %v669, %v763
        %v767 = vmul.f32 %v682, %v763
        %v768 = vmul.f32 %v695, %v763
        %v769 = vmul.f32 %v708, %v763
        %v770 = vmul.f32 %v721, %v763
        %v771 = vmul.f32 %v734, %v763
        %v780 = vrot.slane %v765, 7
        %v781 = vrot.slane %v766, 6
        %v782 = vrot.slane %v767, 5
        %v783 = vrot.slane %v768, 4
        %v784 = vrot.slane %v769, 3
        %v785 = vrot.slane %v770, 2
        %v786 = vrot.slane %v771, 1
        %vm787 = vcmask 1040384
        %v788 = vsel %vm787, %v764, %v780
        %vm789 = vcmask 1042434
        %v790 = vsel %vm789, %v781, %v782
        %vm791 = vcmask 1041408
        %v792 = vsel %vm791, %v788, %v790
        %vm793 = vcmask 1044484
        %v794 = vsel %vm793, %v783, %v784
        %vm795 = vcmask 1046534
        %v796 = vsel %vm795, %v785, %v786
        %vm797 = vcmask 1045508
        %v798 = vsel %vm797, %v794, %v796
        %vm799 = vcmask 1043456
        %v800 = vsel %vm799, %v792, %v798
        %802 = vst [vmem:[#allocation2] ss:$8 sm:$0xf] %v800
        %803 = vst [vmem:[#allocation2] ss:$8 sm:$0xf0] %v800
        %s804 = sadd.s32 %s236, 1
        %s805 = smul.u32 %s804, 128
        %s806 = sld [smem:[#allocation4 + %s805]]
        %s807 = sadd.s32 %s805, 1
        %s808 = sld [smem:[#allocation4 + %s807]]
        %v809 = vstv %s806
        %vm810 = vcmp.ge.s32.totalorder %v235, %v809
        %v811 = vstv %s808
        %vm812 = vcmp.lt.s32.totalorder %v235, %v811
        %vm813 = vmand %vm810, %vm812
        %v814 = vsel %vm813, 1, 0
        %v815 = vcvt.s32.f32 %v814
        %v816 = vpack.c.bf16 %v815, %v815
        %s817 = scalar_lea.vmem %s198, 512 [#allocation5]
        %v818 = vld [vmem:[%s817] sm:$0xff]
        %v819 = vld [vmem:[%s817 + $0x8] sm:$0xff]
        %v820 = vld [vmem:[%s817 + $0x10] sm:$0xff]
        %v821 = vld [vmem:[%s817 + $0x18] sm:$0xff]
        %v822 = vld [vmem:[%s817 + $0x20] sm:$0xff]
        %v823 = vld [vmem:[%s817 + $0x28] sm:$0xff]
        %v824 = vld [vmem:[%s817 + $0x30] sm:$0xff]
        %v825 = vld [vmem:[%s817 + $0x38] sm:$0xff]
        %v826 = vld [vmem:[%s817 + $0x40] sm:$0xff]
        %v827 = vld [vmem:[%s817 + $0x48] sm:$0xff]
        %v828 = vld [vmem:[%s817 + $0x50] sm:$0xff]
        %v829 = vld [vmem:[%s817 + $0x58] sm:$0xff]
        %v830 = vld [vmem:[%s817 + $0x60] sm:$0xff]
        %v831 = vld [vmem:[%s817 + $0x68] sm:$0xff]
        %v832 = vld [vmem:[%s817 + $0x70] sm:$0xff]
        %v833 = vld [vmem:[%s817 + $0x78] sm:$0xff]
        %v834 = vld [vmem:[%s817 + $0x80] sm:$0xff]
        %v835 = vld [vmem:[%s817 + $0x88] sm:$0xff]
        %v836 = vld [vmem:[%s817 + $0x90] sm:$0xff]
        %v837 = vld [vmem:[%s817 + $0x98] sm:$0xff]
        %v838 = vld [vmem:[%s817 + $0xa0] sm:$0xff]
        %v839 = vld [vmem:[%s817 + $0xa8] sm:$0xff]
        %v840 = vld [vmem:[%s817 + $0xb0] sm:$0xff]
        %v841 = vld [vmem:[%s817 + $0xb8] sm:$0xff]
        %v842 = vld [vmem:[%s817 + $0xc0] sm:$0xff]
        %v843 = vld [vmem:[%s817 + $0xc8] sm:$0xff]
        %v844 = vld [vmem:[%s817 + $0xd0] sm:$0xff]
        %v845 = vld [vmem:[%s817 + $0xd8] sm:$0xff]
        %v846 = vld [vmem:[%s817 + $0xe0] sm:$0xff]
        %v847 = vld [vmem:[%s817 + $0xe8] sm:$0xff]
        %v848 = vld [vmem:[%s817 + $0xf0] sm:$0xff]
        %v849 = vld [vmem:[%s817 + $0xf8] sm:$0xff]
        %v850 = vld [vmem:[%s817 + $0x100] sm:$0xff]
        %v851 = vld [vmem:[%s817 + $0x108] sm:$0xff]
        %v852 = vld [vmem:[%s817 + $0x110] sm:$0xff]
        %v853 = vld [vmem:[%s817 + $0x118] sm:$0xff]
        %v854 = vld [vmem:[%s817 + $0x120] sm:$0xff]
        %v855 = vld [vmem:[%s817 + $0x128] sm:$0xff]
        %v856 = vld [vmem:[%s817 + $0x130] sm:$0xff]
        %v857 = vld [vmem:[%s817 + $0x138] sm:$0xff]
        %v858 = vld [vmem:[%s817 + $0x140] sm:$0xff]
        %v859 = vld [vmem:[%s817 + $0x148] sm:$0xff]
        %v860 = vld [vmem:[%s817 + $0x150] sm:$0xff]
        %v861 = vld [vmem:[%s817 + $0x158] sm:$0xff]
        %v862 = vld [vmem:[%s817 + $0x160] sm:$0xff]
        %v863 = vld [vmem:[%s817 + $0x168] sm:$0xff]
        %v864 = vld [vmem:[%s817 + $0x170] sm:$0xff]
        %v865 = vld [vmem:[%s817 + $0x178] sm:$0xff]
        %v866 = vld [vmem:[%s817 + $0x180] sm:$0xff]
        %v867 = vld [vmem:[%s817 + $0x188] sm:$0xff]
        %v868 = vld [vmem:[%s817 + $0x190] sm:$0xff]
        %v869 = vld [vmem:[%s817 + $0x198] sm:$0xff]
        %v870 = vld [vmem:[%s817 + $0x1a0] sm:$0xff]
        %v871 = vld [vmem:[%s817 + $0x1a8] sm:$0xff]
        %v872 = vld [vmem:[%s817 + $0x1b0] sm:$0xff]
        %v873 = vld [vmem:[%s817 + $0x1b8] sm:$0xff]
        %v874 = vld [vmem:[%s817 + $0x1c0] sm:$0xff]
        %v875 = vld [vmem:[%s817 + $0x1c8] sm:$0xff]
        %v876 = vld [vmem:[%s817 + $0x1d0] sm:$0xff]
        %v877 = vld [vmem:[%s817 + $0x1d8] sm:$0xff]
        %v878 = vld [vmem:[%s817 + $0x1e0] sm:$0xff]
        %v879 = vld [vmem:[%s817 + $0x1e8] sm:$0xff]
        %v880 = vld [vmem:[%s817 + $0x1f0] sm:$0xff]
        %v881 = vld [vmem:[%s817 + $0x1f8] sm:$0xff]
        %v946 = vunpack.c.l.b16 %v818
        %v947 = vunpack.c.h.b16 %v818
        %v948 = vunpack.c.l.b16 %v819
        %v949 = vunpack.c.h.b16 %v819
        %v950 = vunpack.c.l.b16 %v820
        %v951 = vunpack.c.h.b16 %v820
        %v952 = vunpack.c.l.b16 %v821
        %v953 = vunpack.c.h.b16 %v821
        %v954 = vunpack.c.l.b16 %v822
        %v955 = vunpack.c.h.b16 %v822
        %v956 = vunpack.c.l.b16 %v823
        %v957 = vunpack.c.h.b16 %v823
        %v958 = vunpack.c.l.b16 %v824
        %v959 = vunpack.c.h.b16 %v824
        %v960 = vunpack.c.l.b16 %v825
        %v961 = vunpack.c.h.b16 %v825
        %v962 = vunpack.c.l.b16 %v826
        %v963 = vunpack.c.h.b16 %v826
        %v964 = vunpack.c.l.b16 %v827
        %v965 = vunpack.c.h.b16 %v827
        %v966 = vunpack.c.l.b16 %v828
        %v967 = vunpack.c.h.b16 %v828
        %v968 = vunpack.c.l.b16 %v829
        %v969 = vunpack.c.h.b16 %v829
        %v970 = vunpack.c.l.b16 %v830
        %v971 = vunpack.c.h.b16 %v830
        %v972 = vunpack.c.l.b16 %v831
        %v973 = vunpack.c.h.b16 %v831
        %v974 = vunpack.c.l.b16 %v832
        %v975 = vunpack.c.h.b16 %v832
        %v976 = vunpack.c.l.b16 %v833
        %v977 = vunpack.c.h.b16 %v833
        %v978 = vunpack.c.l.b16 %v834
        %v979 = vunpack.c.h.b16 %v834
        %v980 = vunpack.c.l.b16 %v835
        %v981 = vunpack.c.h.b16 %v835
        %v982 = vunpack.c.l.b16 %v836
        %v983 = vunpack.c.h.b16 %v836
        %v984 = vunpack.c.l.b16 %v837
        %v985 = vunpack.c.h.b16 %v837
        %v986 = vunpack.c.l.b16 %v838
        %v987 = vunpack.c.h.b16 %v838
        %v988 = vunpack.c.l.b16 %v839
        %v989 = vunpack.c.h.b16 %v839
        %v990 = vunpack.c.l.b16 %v840
        %v991 = vunpack.c.h.b16 %v840
        %v992 = vunpack.c.l.b16 %v841
        %v993 = vunpack.c.h.b16 %v841
        %v994 = vunpack.c.l.b16 %v842
        %v995 = vunpack.c.h.b16 %v842
        %v996 = vunpack.c.l.b16 %v843
        %v997 = vunpack.c.h.b16 %v843
        %v998 = vunpack.c.l.b16 %v844
        %v999 = vunpack.c.h.b16 %v844
        %v1000 = vunpack.c.l.b16 %v845
        %v1001 = vunpack.c.h.b16 %v845
        %v1002 = vunpack.c.l.b16 %v846
        %v1003 = vunpack.c.h.b16 %v846
        %v1004 = vunpack.c.l.b16 %v847
        %v1005 = vunpack.c.h.b16 %v847
        %v1006 = vunpack.c.l.b16 %v848
        %v1007 = vunpack.c.h.b16 %v848
        %v1008 = vunpack.c.l.b16 %v849
        %v1009 = vunpack.c.h.b16 %v849
        %v1010 = vunpack.c.l.b16 %v850
        %v1011 = vunpack.c.h.b16 %v850
        %v1012 = vunpack.c.l.b16 %v851
        %v1013 = vunpack.c.h.b16 %v851
        %v1014 = vunpack.c.l.b16 %v852
        %v1015 = vunpack.c.h.b16 %v852
        %v1016 = vunpack.c.l.b16 %v853
        %v1017 = vunpack.c.h.b16 %v853
        %v1018 = vunpack.c.l.b16 %v854
        %v1019 = vunpack.c.h.b16 %v854
        %v1020 = vunpack.c.l.b16 %v855
        %v1021 = vunpack.c.h.b16 %v855
        %v1022 = vunpack.c.l.b16 %v856
        %v1023 = vunpack.c.h.b16 %v856
        %v1024 = vunpack.c.l.b16 %v857
        %v1025 = vunpack.c.h.b16 %v857
        %v1026 = vunpack.c.l.b16 %v858
        %v1027 = vunpack.c.h.b16 %v858
        %v1028 = vunpack.c.l.b16 %v859
        %v1029 = vunpack.c.h.b16 %v859
        %v1030 = vunpack.c.l.b16 %v860
        %v1031 = vunpack.c.h.b16 %v860
        %v1032 = vunpack.c.l.b16 %v861
        %v1033 = vunpack.c.h.b16 %v861
        %v1034 = vunpack.c.l.b16 %v862
        %v1035 = vunpack.c.h.b16 %v862
        %v1036 = vunpack.c.l.b16 %v863
        %v1037 = vunpack.c.h.b16 %v863
        %v1038 = vunpack.c.l.b16 %v864
        %v1039 = vunpack.c.h.b16 %v864
        %v1040 = vunpack.c.l.b16 %v865
        %v1041 = vunpack.c.h.b16 %v865
        %v1042 = vunpack.c.l.b16 %v866
        %v1043 = vunpack.c.h.b16 %v866
        %v1044 = vunpack.c.l.b16 %v867
        %v1045 = vunpack.c.h.b16 %v867
        %v1046 = vunpack.c.l.b16 %v868
        %v1047 = vunpack.c.h.b16 %v868
        %v1048 = vunpack.c.l.b16 %v869
        %v1049 = vunpack.c.h.b16 %v869
        %v1050 = vunpack.c.l.b16 %v870
        %v1051 = vunpack.c.h.b16 %v870
        %v1052 = vunpack.c.l.b16 %v871
        %v1053 = vunpack.c.h.b16 %v871
        %v1054 = vunpack.c.l.b16 %v872
        %v1055 = vunpack.c.h.b16 %v872
        %v1056 = vunpack.c.l.b16 %v873
        %v1057 = vunpack.c.h.b16 %v873
        %v1058 = vunpack.c.l.b16 %v874
        %v1059 = vunpack.c.h.b16 %v874
        %v1060 = vunpack.c.l.b16 %v875
        %v1061 = vunpack.c.h.b16 %v875
        %v1062 = vunpack.c.l.b16 %v876
        %v1063 = vunpack.c.h.b16 %v876
        %v1064 = vunpack.c.l.b16 %v877
        %v1065 = vunpack.c.h.b16 %v877
        %v1066 = vunpack.c.l.b16 %v878
        %v1067 = vunpack.c.h.b16 %v878
        %v1068 = vunpack.c.l.b16 %v879
        %v1069 = vunpack.c.h.b16 %v879
        %v1070 = vunpack.c.l.b16 %v880
        %v1071 = vunpack.c.h.b16 %v880
        %v1072 = vunpack.c.l.b16 %v881
        %v1073 = vunpack.c.h.b16 %v881
        %v1074 = vpack.c.b16 %v954, %v946
        %v1075 = vpack.c.b16 %v955, %v947
        %v1076 = vpack.c.b16 %v956, %v948
        %v1077 = vpack.c.b16 %v957, %v949
        %v1078 = vpack.c.b16 %v958, %v950
        %v1079 = vpack.c.b16 %v959, %v951
        %v1080 = vpack.c.b16 %v960, %v952
        %v1081 = vpack.c.b16 %v961, %v953
        %v1082 = vpack.c.b16 %v970, %v962
        %v1083 = vpack.c.b16 %v971, %v963
        %v1084 = vpack.c.b16 %v972, %v964
        %v1085 = vpack.c.b16 %v973, %v965
        %v1086 = vpack.c.b16 %v974, %v966
        %v1087 = vpack.c.b16 %v975, %v967
        %v1088 = vpack.c.b16 %v976, %v968
        %v1089 = vpack.c.b16 %v977, %v969
        %v1090 = vpack.c.b16 %v986, %v978
        %v1091 = vpack.c.b16 %v987, %v979
        %v1092 = vpack.c.b16 %v988, %v980
        %v1093 = vpack.c.b16 %v989, %v981
        %v1094 = vpack.c.b16 %v990, %v982
        %v1095 = vpack.c.b16 %v991, %v983
        %v1096 = vpack.c.b16 %v992, %v984
        %v1097 = vpack.c.b16 %v993, %v985
        %v1098 = vpack.c.b16 %v1002, %v994
        %v1099 = vpack.c.b16 %v1003, %v995
        %v1100 = vpack.c.b16 %v1004, %v996
        %v1101 = vpack.c.b16 %v1005, %v997
        %v1102 = vpack.c.b16 %v1006, %v998
        %v1103 = vpack.c.b16 %v1007, %v999
        %v1104 = vpack.c.b16 %v1008, %v1000
        %v1105 = vpack.c.b16 %v1009, %v1001
        %v1106 = vpack.c.b16 %v1018, %v1010
        %v1107 = vpack.c.b16 %v1019, %v1011
        %v1108 = vpack.c.b16 %v1020, %v1012
        %v1109 = vpack.c.b16 %v1021, %v1013
        %v1110 = vpack.c.b16 %v1022, %v1014
        %v1111 = vpack.c.b16 %v1023, %v1015
        %v1112 = vpack.c.b16 %v1024, %v1016
        %v1113 = vpack.c.b16 %v1025, %v1017
        %v1114 = vpack.c.b16 %v1034, %v1026
        %v1115 = vpack.c.b16 %v1035, %v1027
        %v1116 = vpack.c.b16 %v1036, %v1028
        %v1117 = vpack.c.b16 %v1037, %v1029
        %v1118 = vpack.c.b16 %v1038, %v1030
        %v1119 = vpack.c.b16 %v1039, %v1031
        %v1120 = vpack.c.b16 %v1040, %v1032
        %v1121 = vpack.c.b16 %v1041, %v1033
        %v1122 = vpack.c.b16 %v1050, %v1042
        %v1123 = vpack.c.b16 %v1051, %v1043
        %v1124 = vpack.c.b16 %v1052, %v1044
        %v1125 = vpack.c.b16 %v1053, %v1045
        %v1126 = vpack.c.b16 %v1054, %v1046
        %v1127 = vpack.c.b16 %v1055, %v1047
        %v1128 = vpack.c.b16 %v1056, %v1048
        %v1129 = vpack.c.b16 %v1057, %v1049
        %v1130 = vpack.c.b16 %v1066, %v1058
        %v1131 = vpack.c.b16 %v1067, %v1059
        %v1132 = vpack.c.b16 %v1068, %v1060
        %v1133 = vpack.c.b16 %v1069, %v1061
        %v1134 = vpack.c.b16 %v1070, %v1062
        %v1135 = vpack.c.b16 %v1071, %v1063
        %v1136 = vpack.c.b16 %v1072, %v1064
        %v1137 = vpack.c.b16 %v1073, %v1065
        %1202 = vmatpush.bf16.msra.mxu0 %v1130
        %1203 = vmatpush.bf16.msra.mxu0 %v1122
        %1204 = vmatpush.bf16.msra.mxu0 %v1114
        %1205 = vmatpush.bf16.msra.mxu0 %v1106
        %1206 = vmatpush.bf16.msra.mxu0 %v1098
        %1207 = vmatpush.bf16.msra.mxu0 %v1090
        %1208 = vmatpush.bf16.msra.mxu0 %v1082
        %1209 = vmatpush.bf16.msra.mxu0 %v1074
        %1210 = vmatmul.bf16.gmra.mxu0 %v816
        %v1211 = vpop.f32.mrf.mxu0
        %v1212 = vadd.f32 0.0, %v1211
        %v1213 = vpop.f32.mrf.mxu0
        %1214 = vdwg.mxu0
        %1215 = vmatpush.bf16.msra.mxu0 %v1131
        %1216 = vmatpush.bf16.msra.mxu0 %v1123
        %1217 = vmatpush.bf16.msra.mxu0 %v1115
        %1218 = vmatpush.bf16.msra.mxu0 %v1107
        %1219 = vmatpush.bf16.msra.mxu0 %v1099
        %1220 = vmatpush.bf16.msra.mxu0 %v1091
        %1221 = vmatpush.bf16.msra.mxu0 %v1083
        %1222 = vmatpush.bf16.msra.mxu0 %v1075
        %1223 = vmatmul.bf16.gmra.mxu0 %v816
        %v1224 = vpop.f32.mrf.mxu0
        %v1225 = vadd.f32 0.0, %v1224
        %v1226 = vpop.f32.mrf.mxu0
        %1227 = vdwg.mxu0
        %1228 = vmatpush.bf16.msra.mxu0 %v1132
        %1229 = vmatpush.bf16.msra.mxu0 %v1124
        %1230 = vmatpush.bf16.msra.mxu0 %v1116
        %1231 = vmatpush.bf16.msra.mxu0 %v1108
        %1232 = vmatpush.bf16.msra.mxu0 %v1100
        %1233 = vmatpush.bf16.msra.mxu0 %v1092
        %1234 = vmatpush.bf16.msra.mxu0 %v1084
        %1235 = vmatpush.bf16.msra.mxu0 %v1076
        %1236 = vmatmul.bf16.gmra.mxu0 %v816
        %v1237 = vpop.f32.mrf.mxu0
        %v1238 = vadd.f32 0.0, %v1237
        %v1239 = vpop.f32.mrf.mxu0
        %1240 = vdwg.mxu0
        %1241 = vmatpush.bf16.msra.mxu0 %v1133
        %1242 = vmatpush.bf16.msra.mxu0 %v1125
        %1243 = vmatpush.bf16.msra.mxu0 %v1117
        %1244 = vmatpush.bf16.msra.mxu0 %v1109
        %1245 = vmatpush.bf16.msra.mxu0 %v1101
        %1246 = vmatpush.bf16.msra.mxu0 %v1093
        %1247 = vmatpush.bf16.msra.mxu0 %v1085
        %1248 = vmatpush.bf16.msra.mxu0 %v1077
        %1249 = vmatmul.bf16.gmra.mxu0 %v816
        %v1250 = vpop.f32.mrf.mxu0
        %v1251 = vadd.f32 0.0, %v1250
        %v1252 = vpop.f32.mrf.mxu0
        %1253 = vdwg.mxu0
        %1254 = vmatpush.bf16.msra.mxu0 %v1134
        %1255 = vmatpush.bf16.msra.mxu0 %v1126
        %1256 = vmatpush.bf16.msra.mxu0 %v1118
        %1257 = vmatpush.bf16.msra.mxu0 %v1110
        %1258 = vmatpush.bf16.msra.mxu0 %v1102
        %1259 = vmatpush.bf16.msra.mxu0 %v1094
        %1260 = vmatpush.bf16.msra.mxu0 %v1086
        %1261 = vmatpush.bf16.msra.mxu0 %v1078
        %1262 = vmatmul.bf16.gmra.mxu0 %v816
        %v1263 = vpop.f32.mrf.mxu0
        %v1264 = vadd.f32 0.0, %v1263
        %v1265 = vpop.f32.mrf.mxu0
        %1266 = vdwg.mxu0
        %1267 = vmatpush.bf16.msra.mxu0 %v1135
        %1268 = vmatpush.bf16.msra.mxu0 %v1127
        %1269 = vmatpush.bf16.msra.mxu0 %v1119
        %1270 = vmatpush.bf16.msra.mxu0 %v1111
        %1271 = vmatpush.bf16.msra.mxu0 %v1103
        %1272 = vmatpush.bf16.msra.mxu0 %v1095
        %1273 = vmatpush.bf16.msra.mxu0 %v1087
        %1274 = vmatpush.bf16.msra.mxu0 %v1079
        %1275 = vmatmul.bf16.gmra.mxu0 %v816
        %v1276 = vpop.f32.mrf.mxu0
        %v1277 = vadd.f32 0.0, %v1276
        %v1278 = vpop.f32.mrf.mxu0
        %1279 = vdwg.mxu0
        %1280 = vmatpush.bf16.msra.mxu0 %v1136
        %1281 = vmatpush.bf16.msra.mxu0 %v1128
        %1282 = vmatpush.bf16.msra.mxu0 %v1120
        %1283 = vmatpush.bf16.msra.mxu0 %v1112
        %1284 = vmatpush.bf16.msra.mxu0 %v1104
        %1285 = vmatpush.bf16.msra.mxu0 %v1096
        %1286 = vmatpush.bf16.msra.mxu0 %v1088
        %1287 = vmatpush.bf16.msra.mxu0 %v1080
        %1288 = vmatmul.bf16.gmra.mxu0 %v816
        %v1289 = vpop.f32.mrf.mxu0
        %v1290 = vadd.f32 0.0, %v1289
        %v1291 = vpop.f32.mrf.mxu0
        %1292 = vdwg.mxu0
        %1293 = vmatpush.bf16.msra.mxu0 %v1137
        %1294 = vmatpush.bf16.msra.mxu0 %v1129
        %1295 = vmatpush.bf16.msra.mxu0 %v1121
        %1296 = vmatpush.bf16.msra.mxu0 %v1113
        %1297 = vmatpush.bf16.msra.mxu0 %v1105
        %1298 = vmatpush.bf16.msra.mxu0 %v1097
        %1299 = vmatpush.bf16.msra.mxu0 %v1089
        %1300 = vmatpush.bf16.msra.mxu0 %v1081
        %1301 = vmatmul.bf16.gmra.mxu0 %v816
        %v1302 = vpop.f32.mrf.mxu0
        %v1303 = vadd.f32 0.0, %v1302
        %v1304 = vpop.f32.mrf.mxu0
        %1305 = vdwg.mxu0
        %p1306 = scmp.gt.s32.totalorder %s806, 0
        %s1307 = scalar_select %p1306, %s806, 0
        %p1308 = scmp.lt.s32.totalorder %s1307, 128
        %s1309 = scalar_select %p1308, %s1307, 128
        %p1310 = scmp.gt.s32.totalorder %s1309, %s808
        %s1311 = scalar_select %p1310, %s1309, %s808
        %p1312 = scmp.lt.s32.totalorder %s1311, 128
        %s1313 = scalar_select %p1312, %s1311, 128
        %s1314 = ssub.s32 %s1313, %s1309
        %s1315 = scvt.s32.f32 %s1314
        %v1316 = vstv %s1315
        %v1317 = vrcp.pop %v1316
        %v1318 = vmul.f32 %v1316, %v1317
        %v1319 = vsub.f32 1.0, %v1318
        %v1320 = vmul.f32 %v1317, %v1319
        %v1321 = vadd.f32 %v1317, %v1320
        %vm1322 = vweird.f32 %v1316
        %vm1323 = vweird.f32 %v1317
        %vm1324 = vmor %vm1322, %vm1323
        %v1325 = vsel %vm1324, %v1317, %v1321
        %v1326 = vand.u32 2147483647, %v1316
        %vm1327 = vcmp.eq.f32.partialorder %v1326, 8.507059e+37
        %v1328 = vand.u32 %v1316, 2147483648
        %v1329 = vor.u32 1.1754944e-38, %v1328
        %v1330 = vsel %vm1327, %v1329, %v1325
        %s1331 = vtos %v1330
        %v1332 = vstv %s1331
        %v1333 = vmul.f32 %v1212, %v1332
        %v1334 = vmul.f32 %v1225, %v1332
        %v1335 = vmul.f32 %v1238, %v1332
        %v1336 = vmul.f32 %v1251, %v1332
        %v1337 = vmul.f32 %v1264, %v1332
        %v1338 = vmul.f32 %v1277, %v1332
        %v1339 = vmul.f32 %v1290, %v1332
        %v1340 = vmul.f32 %v1303, %v1332
        %v1349 = vrot.slane %v1334, 7
        %v1350 = vrot.slane %v1335, 6
        %v1351 = vrot.slane %v1336, 5
        %v1352 = vrot.slane %v1337, 4
        %v1353 = vrot.slane %v1338, 3
        %v1354 = vrot.slane %v1339, 2
        %v1355 = vrot.slane %v1340, 1
        %v1356 = vsel %vm787, %v1333, %v1349
        %v1357 = vsel %vm789, %v1350, %v1351
        %v1358 = vsel %vm791, %v1356, %v1357
        %v1359 = vsel %vm793, %v1352, %v1353
        %v1360 = vsel %vm795, %v1354, %v1355
        %v1361 = vsel %vm797, %v1359, %v1360
        %v1362 = vsel %vm799, %v1358, %v1361
        %s1364 = scalar_lea.vmem [#allocation2], 1
        %1365 = vst [vmem:[%s1364] ss:$8 sm:$0xf] %v1362
        %1366 = vst [vmem:[%s1364] ss:$8 sm:$0xf0] %v1362
        %s1367 = sadd.s32 %s236, 2
        %s1368 = smul.u32 %s1367, 128
        %s1369 = sld [smem:[#allocation4 + %s1368]]
        %s1370 = sadd.s32 %s1368, 1
        %s1371 = sld [smem:[#allocation4 + %s1370]]
        %v1372 = vstv %s1369
        %vm1373 = vcmp.ge.s32.totalorder %v235, %v1372
        %v1374 = vstv %s1371
        %vm1375 = vcmp.lt.s32.totalorder %v235, %v1374
        %vm1376 = vmand %vm1373, %vm1375
        %v1377 = vsel %vm1376, 1, 0
        %v1378 = vcvt.s32.f32 %v1377
        %v1379 = vpack.c.bf16 %v1378, %v1378
        %s1380 = scalar_lea.vmem %s198, 1024 [#allocation5]
        %v1381 = vld [vmem:[%s1380] sm:$0xff]
        %v1382 = vld [vmem:[%s1380 + $0x8] sm:$0xff]
        %v1383 = vld [vmem:[%s1380 + $0x10] sm:$0xff]
        %v1384 = vld [vmem:[%s1380 + $0x18] sm:$0xff]
        %v1385 = vld [vmem:[%s1380 + $0x20] sm:$0xff]
        %v1386 = vld [vmem:[%s1380 + $0x28] sm:$0xff]
        %v1387 = vld [vmem:[%s1380 + $0x30] sm:$0xff]
        %v1388 = vld [vmem:[%s1380 + $0x38] sm:$0xff]
        %v1389 = vld [vmem:[%s1380 + $0x40] sm:$0xff]
        %v1390 = vld [vmem:[%s1380 + $0x48] sm:$0xff]
        %v1391 = vld [vmem:[%s1380 + $0x50] sm:$0xff]
        %v1392 = vld [vmem:[%s1380 + $0x58] sm:$0xff]
        %v1393 = vld [vmem:[%s1380 + $0x60] sm:$0xff]
        %v1394 = vld [vmem:[%s1380 + $0x68] sm:$0xff]
        %v1395 = vld [vmem:[%s1380 + $0x70] sm:$0xff]
        %v1396 = vld [vmem:[%s1380 + $0x78] sm:$0xff]
        %v1397 = vld [vmem:[%s1380 + $0x80] sm:$0xff]
        %v1398 = vld [vmem:[%s1380 + $0x88] sm:$0xff]
        %v1399 = vld [vmem:[%s1380 + $0x90] sm:$0xff]
        %v1400 = vld [vmem:[%s1380 + $0x98] sm:$0xff]
        %v1401 = vld [vmem:[%s1380 + $0xa0] sm:$0xff]
        %v1402 = vld [vmem:[%s1380 + $0xa8] sm:$0xff]
        %v1403 = vld [vmem:[%s1380 + $0xb0] sm:$0xff]
        %v1404 = vld [vmem:[%s1380 + $0xb8] sm:$0xff]
        %v1405 = vld [vmem:[%s1380 + $0xc0] sm:$0xff]
        %v1406 = vld [vmem:[%s1380 + $0xc8] sm:$0xff]
        %v1407 = vld [vmem:[%s1380 + $0xd0] sm:$0xff]
        %v1408 = vld [vmem:[%s1380 + $0xd8] sm:$0xff]
        %v1409 = vld [vmem:[%s1380 + $0xe0] sm:$0xff]
        %v1410 = vld [vmem:[%s1380 + $0xe8] sm:$0xff]
        %v1411 = vld [vmem:[%s1380 + $0xf0] sm:$0xff]
        %v1412 = vld [vmem:[%s1380 + $0xf8] sm:$0xff]
        %v1413 = vld [vmem:[%s1380 + $0x100] sm:$0xff]
        %v1414 = vld [vmem:[%s1380 + $0x108] sm:$0xff]
        %v1415 = vld [vmem:[%s1380 + $0x110] sm:$0xff]
        %v1416 = vld [vmem:[%s1380 + $0x118] sm:$0xff]
        %v1417 = vld [vmem:[%s1380 + $0x120] sm:$0xff]
        %v1418 = vld [vmem:[%s1380 + $0x128] sm:$0xff]
        %v1419 = vld [vmem:[%s1380 + $0x130] sm:$0xff]
        %v1420 = vld [vmem:[%s1380 + $0x138] sm:$0xff]
        %v1421 = vld [vmem:[%s1380 + $0x140] sm:$0xff]
        %v1422 = vld [vmem:[%s1380 + $0x148] sm:$0xff]
        %v1423 = vld [vmem:[%s1380 + $0x150] sm:$0xff]
        %v1424 = vld [vmem:[%s1380 + $0x158] sm:$0xff]
        %v1425 = vld [vmem:[%s1380 + $0x160] sm:$0xff]
        %v1426 = vld [vmem:[%s1380 + $0x168] sm:$0xff]
        %v1427 = vld [vmem:[%s1380 + $0x170] sm:$0xff]
        %v1428 = vld [vmem:[%s1380 + $0x178] sm:$0xff]
        %v1429 = vld [vmem:[%s1380 + $0x180] sm:$0xff]
        %v1430 = vld [vmem:[%s1380 + $0x188] sm:$0xff]
        %v1431 = vld [vmem:[%s1380 + $0x190] sm:$0xff]
        %v1432 = vld [vmem:[%s1380 + $0x198] sm:$0xff]
        %v1433 = vld [vmem:[%s1380 + $0x1a0] sm:$0xff]
        %v1434 = vld [vmem:[%s1380 + $0x1a8] sm:$0xff]
        %v1435 = vld [vmem:[%s1380 + $0x1b0] sm:$0xff]
        %v1436 = vld [vmem:[%s1380 + $0x1b8] sm:$0xff]
        %v1437 = vld [vmem:[%s1380 + $0x1c0] sm:$0xff]
        %v1438 = vld [vmem:[%s1380 + $0x1c8] sm:$0xff]
        %v1439 = vld [vmem:[%s1380 + $0x1d0] sm:$0xff]
        %v1440 = vld [vmem:[%s1380 + $0x1d8] sm:$0xff]
        %v1441 = vld [vmem:[%s1380 + $0x1e0] sm:$0xff]
        %v1442 = vld [vmem:[%s1380 + $0x1e8] sm:$0xff]
        %v1443 = vld [vmem:[%s1380 + $0x1f0] sm:$0xff]
        %v1444 = vld [vmem:[%s1380 + $0x1f8] sm:$0xff]
        %v1509 = vunpack.c.l.b16 %v1381
        %v1510 = vunpack.c.h.b16 %v1381
        %v1511 = vunpack.c.l.b16 %v1382
        %v1512 = vunpack.c.h.b16 %v1382
        %v1513 = vunpack.c.l.b16 %v1383
        %v1514 = vunpack.c.h.b16 %v1383
        %v1515 = vunpack.c.l.b16 %v1384
        %v1516 = vunpack.c.h.b16 %v1384
        %v1517 = vunpack.c.l.b16 %v1385
        %v1518 = vunpack.c.h.b16 %v1385
        %v1519 = vunpack.c.l.b16 %v1386
        %v1520 = vunpack.c.h.b16 %v1386
        %v1521 = vunpack.c.l.b16 %v1387
        %v1522 = vunpack.c.h.b16 %v1387
        %v1523 = vunpack.c.l.b16 %v1388
        %v1524 = vunpack.c.h.b16 %v1388
        %v1525 = vunpack.c.l.b16 %v1389
        %v1526 = vunpack.c.h.b16 %v1389
        %v1527 = vunpack.c.l.b16 %v1390
        %v1528 = vunpack.c.h.b16 %v1390
        %v1529 = vunpack.c.l.b16 %v1391
        %v1530 = vunpack.c.h.b16 %v1391
        %v1531 = vunpack.c.l.b16 %v1392
        %v1532 = vunpack.c.h.b16 %v1392
        %v1533 = vunpack.c.l.b16 %v1393
        %v1534 = vunpack.c.h.b16 %v1393
        %v1535 = vunpack.c.l.b16 %v1394
        %v1536 = vunpack.c.h.b16 %v1394
        %v1537 = vunpack.c.l.b16 %v1395
        %v1538 = vunpack.c.h.b16 %v1395
        %v1539 = vunpack.c.l.b16 %v1396
        %v1540 = vunpack.c.h.b16 %v1396
        %v1541 = vunpack.c.l.b16 %v1397
        %v1542 = vunpack.c.h.b16 %v1397
        %v1543 = vunpack.c.l.b16 %v1398
        %v1544 = vunpack.c.h.b16 %v1398
        %v1545 = vunpack.c.l.b16 %v1399
        %v1546 = vunpack.c.h.b16 %v1399
        %v1547 = vunpack.c.l.b16 %v1400
        %v1548 = vunpack.c.h.b16 %v1400
        %v1549 = vunpack.c.l.b16 %v1401
        %v1550 = vunpack.c.h.b16 %v1401
        %v1551 = vunpack.c.l.b16 %v1402
        %v1552 = vunpack.c.h.b16 %v1402
        %v1553 = vunpack.c.l.b16 %v1403
        %v1554 = vunpack.c.h.b16 %v1403
        %v1555 = vunpack.c.l.b16 %v1404
        %v1556 = vunpack.c.h.b16 %v1404
        %v1557 = vunpack.c.l.b16 %v1405
        %v1558 = vunpack.c.h.b16 %v1405
        %v1559 = vunpack.c.l.b16 %v1406
        %v1560 = vunpack.c.h.b16 %v1406
        %v1561 = vunpack.c.l.b16 %v1407
        %v1562 = vunpack.c.h.b16 %v1407
        %v1563 = vunpack.c.l.b16 %v1408
        %v1564 = vunpack.c.h.b16 %v1408
        %v1565 = vunpack.c.l.b16 %v1409
        %v1566 = vunpack.c.h.b16 %v1409
        %v1567 = vunpack.c.l.b16 %v1410
        %v1568 = vunpack.c.h.b16 %v1410
        %v1569 = vunpack.c.l.b16 %v1411
        %v1570 = vunpack.c.h.b16 %v1411
        %v1571 = vunpack.c.l.b16 %v1412
        %v1572 = vunpack.c.h.b16 %v1412
        %v1573 = vunpack.c.l.b16 %v1413
        %v1574 = vunpack.c.h.b16 %v1413
        %v1575 = vunpack.c.l.b16 %v1414
        %v1576 = vunpack.c.h.b16 %v1414
        %v1577 = vunpack.c.l.b16 %v1415
        %v1578 = vunpack.c.h.b16 %v1415
        %v1579 = vunpack.c.l.b16 %v1416
        %v1580 = vunpack.c.h.b16 %v1416
        %v1581 = vunpack.c.l.b16 %v1417
        %v1582 = vunpack.c.h.b16 %v1417
        %v1583 = vunpack.c.l.b16 %v1418
        %v1584 = vunpack.c.h.b16 %v1418
        %v1585 = vunpack.c.l.b16 %v1419
        %v1586 = vunpack.c.h.b16 %v1419
        %v1587 = vunpack.c.l.b16 %v1420
        %v1588 = vunpack.c.h.b16 %v1420
        %v1589 = vunpack.c.l.b16 %v1421
        %v1590 = vunpack.c.h.b16 %v1421
        %v1591 = vunpack.c.l.b16 %v1422
        %v1592 = vunpack.c.h.b16 %v1422
        %v1593 = vunpack.c.l.b16 %v1423
        %v1594 = vunpack.c.h.b16 %v1423
        %v1595 = vunpack.c.l.b16 %v1424
        %v1596 = vunpack.c.h.b16 %v1424
        %v1597 = vunpack.c.l.b16 %v1425
        %v1598 = vunpack.c.h.b16 %v1425
        %v1599 = vunpack.c.l.b16 %v1426
        %v1600 = vunpack.c.h.b16 %v1426
        %v1601 = vunpack.c.l.b16 %v1427
        %v1602 = vunpack.c.h.b16 %v1427
        %v1603 = vunpack.c.l.b16 %v1428
        %v1604 = vunpack.c.h.b16 %v1428
        %v1605 = vunpack.c.l.b16 %v1429
        %v1606 = vunpack.c.h.b16 %v1429
        %v1607 = vunpack.c.l.b16 %v1430
        %v1608 = vunpack.c.h.b16 %v1430
        %v1609 = vunpack.c.l.b16 %v1431
        %v1610 = vunpack.c.h.b16 %v1431
        %v1611 = vunpack.c.l.b16 %v1432
        %v1612 = vunpack.c.h.b16 %v1432
        %v1613 = vunpack.c.l.b16 %v1433
        %v1614 = vunpack.c.h.b16 %v1433
        %v1615 = vunpack.c.l.b16 %v1434
        %v1616 = vunpack.c.h.b16 %v1434
        %v1617 = vunpack.c.l.b16 %v1435
        %v1618 = vunpack.c.h.b16 %v1435
        %v1619 = vunpack.c.l.b16 %v1436
        %v1620 = vunpack.c.h.b16 %v1436
        %v1621 = vunpack.c.l.b16 %v1437
        %v1622 = vunpack.c.h.b16 %v1437
        %v1623 = vunpack.c.l.b16 %v1438
        %v1624 = vunpack.c.h.b16 %v1438
        %v1625 = vunpack.c.l.b16 %v1439
        %v1626 = vunpack.c.h.b16 %v1439
        %v1627 = vunpack.c.l.b16 %v1440
        %v1628 = vunpack.c.h.b16 %v1440
        %v1629 = vunpack.c.l.b16 %v1441
        %v1630 = vunpack.c.h.b16 %v1441
        %v1631 = vunpack.c.l.b16 %v1442
        %v1632 = vunpack.c.h.b16 %v1442
        %v1633 = vunpack.c.l.b16 %v1443
        %v1634 = vunpack.c.h.b16 %v1443
        %v1635 = vunpack.c.l.b16 %v1444
        %v1636 = vunpack.c.h.b16 %v1444
        %v1637 = vpack.c.b16 %v1517, %v1509
        %v1638 = vpack.c.b16 %v1518, %v1510
        %v1639 = vpack.c.b16 %v1519, %v1511
        %v1640 = vpack.c.b16 %v1520, %v1512
        %v1641 = vpack.c.b16 %v1521, %v1513
        %v1642 = vpack.c.b16 %v1522, %v1514
        %v1643 = vpack.c.b16 %v1523, %v1515
        %v1644 = vpack.c.b16 %v1524, %v1516
        %v1645 = vpack.c.b16 %v1533, %v1525
        %v1646 = vpack.c.b16 %v1534, %v1526
        %v1647 = vpack.c.b16 %v1535, %v1527
        %v1648 = vpack.c.b16 %v1536, %v1528
        %v1649 = vpack.c.b16 %v1537, %v1529
        %v1650 = vpack.c.b16 %v1538, %v1530
        %v1651 = vpack.c.b16 %v1539, %v1531
        %v1652 = vpack.c.b16 %v1540, %v1532
        %v1653 = vpack.c.b16 %v1549, %v1541
        %v1654 = vpack.c.b16 %v1550, %v1542
        %v1655 = vpack.c.b16 %v1551, %v1543
        %v1656 = vpack.c.b16 %v1552, %v1544
        %v1657 = vpack.c.b16 %v1553, %v1545
        %v1658 = vpack.c.b16 %v1554, %v1546
        %v1659 = vpack.c.b16 %v1555, %v1547
        %v1660 = vpack.c.b16 %v1556, %v1548
        %v1661 = vpack.c.b16 %v1565, %v1557
        %v1662 = vpack.c.b16 %v1566, %v1558
        %v1663 = vpack.c.b16 %v1567, %v1559
        %v1664 = vpack.c.b16 %v1568, %v1560
        %v1665 = vpack.c.b16 %v1569, %v1561
        %v1666 = vpack.c.b16 %v1570, %v1562
        %v1667 = vpack.c.b16 %v1571, %v1563
        %v1668 = vpack.c.b16 %v1572, %v1564
        %v1669 = vpack.c.b16 %v1581, %v1573
        %v1670 = vpack.c.b16 %v1582, %v1574
        %v1671 = vpack.c.b16 %v1583, %v1575
        %v1672 = vpack.c.b16 %v1584, %v1576
        %v1673 = vpack.c.b16 %v1585, %v1577
        %v1674 = vpack.c.b16 %v1586, %v1578
        %v1675 = vpack.c.b16 %v1587, %v1579
        %v1676 = vpack.c.b16 %v1588, %v1580
        %v1677 = vpack.c.b16 %v1597, %v1589
        %v1678 = vpack.c.b16 %v1598, %v1590
        %v1679 = vpack.c.b16 %v1599, %v1591
        %v1680 = vpack.c.b16 %v1600, %v1592
        %v1681 = vpack.c.b16 %v1601, %v1593
        %v1682 = vpack.c.b16 %v1602, %v1594
        %v1683 = vpack.c.b16 %v1603, %v1595
        %v1684 = vpack.c.b16 %v1604, %v1596
        %v1685 = vpack.c.b16 %v1613, %v1605
        %v1686 = vpack.c.b16 %v1614, %v1606
        %v1687 = vpack.c.b16 %v1615, %v1607
        %v1688 = vpack.c.b16 %v1616, %v1608
        %v1689 = vpack.c.b16 %v1617, %v1609
        %v1690 = vpack.c.b16 %v1618, %v1610
        %v1691 = vpack.c.b16 %v1619, %v1611
        %v1692 = vpack.c.b16 %v1620, %v1612
        %v1693 = vpack.c.b16 %v1629, %v1621
        %v1694 = vpack.c.b16 %v1630, %v1622
        %v1695 = vpack.c.b16 %v1631, %v1623
        %v1696 = vpack.c.b16 %v1632, %v1624
        %v1697 = vpack.c.b16 %v1633, %v1625
        %v1698 = vpack.c.b16 %v1634, %v1626
        %v1699 = vpack.c.b16 %v1635, %v1627
        %v1700 = vpack.c.b16 %v1636, %v1628
        %1765 = vmatpush.bf16.msra.mxu0 %v1693
        %1766 = vmatpush.bf16.msra.mxu0 %v1685
        %1767 = vmatpush.bf16.msra.mxu0 %v1677
        %1768 = vmatpush.bf16.msra.mxu0 %v1669
        %1769 = vmatpush.bf16.msra.mxu0 %v1661
        %1770 = vmatpush.bf16.msra.mxu0 %v1653
        %1771 = vmatpush.bf16.msra.mxu0 %v1645
        %1772 = vmatpush.bf16.msra.mxu0 %v1637
        %1773 = vmatmul.bf16.gmra.mxu0 %v1379
        %v1774 = vpop.f32.mrf.mxu0
        %v1775 = vadd.f32 0.0, %v1774
        %v1776 = vpop.f32.mrf.mxu0
        %1777 = vdwg.mxu0
        %1778 = vmatpush.bf16.msra.mxu0 %v1694
        %1779 = vmatpush.bf16.msra.mxu0 %v1686
        %1780 = vmatpush.bf16.msra.mxu0 %v1678
        %1781 = vmatpush.bf16.msra.mxu0 %v1670
        %1782 = vmatpush.bf16.msra.mxu0 %v1662
        %1783 = vmatpush.bf16.msra.mxu0 %v1654
        %1784 = vmatpush.bf16.msra.mxu0 %v1646
        %1785 = vmatpush.bf16.msra.mxu0 %v1638
        %1786 = vmatmul.bf16.gmra.mxu0 %v1379
        %v1787 = vpop.f32.mrf.mxu0
        %v1788 = vadd.f32 0.0, %v1787
        %v1789 = vpop.f32.mrf.mxu0
        %1790 = vdwg.mxu0
        %1791 = vmatpush.bf16.msra.mxu0 %v1695
        %1792 = vmatpush.bf16.msra.mxu0 %v1687
        %1793 = vmatpush.bf16.msra.mxu0 %v1679
        %1794 = vmatpush.bf16.msra.mxu0 %v1671
        %1795 = vmatpush.bf16.msra.mxu0 %v1663
        %1796 = vmatpush.bf16.msra.mxu0 %v1655
        %1797 = vmatpush.bf16.msra.mxu0 %v1647
        %1798 = vmatpush.bf16.msra.mxu0 %v1639
        %1799 = vmatmul.bf16.gmra.mxu0 %v1379
        %v1800 = vpop.f32.mrf.mxu0
        %v1801 = vadd.f32 0.0, %v1800
        %v1802 = vpop.f32.mrf.mxu0
        %1803 = vdwg.mxu0
        %1804 = vmatpush.bf16.msra.mxu0 %v1696
        %1805 = vmatpush.bf16.msra.mxu0 %v1688
        %1806 = vmatpush.bf16.msra.mxu0 %v1680
        %1807 = vmatpush.bf16.msra.mxu0 %v1672
        %1808 = vmatpush.bf16.msra.mxu0 %v1664
        %1809 = vmatpush.bf16.msra.mxu0 %v1656
        %1810 = vmatpush.bf16.msra.mxu0 %v1648
        %1811 = vmatpush.bf16.msra.mxu0 %v1640
        %1812 = vmatmul.bf16.gmra.mxu0 %v1379
        %v1813 = vpop.f32.mrf.mxu0
        %v1814 = vadd.f32 0.0, %v1813
        %v1815 = vpop.f32.mrf.mxu0
        %1816 = vdwg.mxu0
        %1817 = vmatpush.bf16.msra.mxu0 %v1697
        %1818 = vmatpush.bf16.msra.mxu0 %v1689
        %1819 = vmatpush.bf16.msra.mxu0 %v1681
        %1820 = vmatpush.bf16.msra.mxu0 %v1673
        %1821 = vmatpush.bf16.msra.mxu0 %v1665
        %1822 = vmatpush.bf16.msra.mxu0 %v1657
        %1823 = vmatpush.bf16.msra.mxu0 %v1649
        %1824 = vmatpush.bf16.msra.mxu0 %v1641
        %1825 = vmatmul.bf16.gmra.mxu0 %v1379
        %v1826 = vpop.f32.mrf.mxu0
        %v1827 = vadd.f32 0.0, %v1826
        %v1828 = vpop.f32.mrf.mxu0
        %1829 = vdwg.mxu0
        %1830 = vmatpush.bf16.msra.mxu0 %v1698
        %1831 = vmatpush.bf16.msra.mxu0 %v1690
        %1832 = vmatpush.bf16.msra.mxu0 %v1682
        %1833 = vmatpush.bf16.msra.mxu0 %v1674
        %1834 = vmatpush.bf16.msra.mxu0 %v1666
        %1835 = vmatpush.bf16.msra.mxu0 %v1658
        %1836 = vmatpush.bf16.msra.mxu0 %v1650
        %1837 = vmatpush.bf16.msra.mxu0 %v1642
        %1838 = vmatmul.bf16.gmra.mxu0 %v1379
        %v1839 = vpop.f32.mrf.mxu0
        %v1840 = vadd.f32 0.0, %v1839
        %v1841 = vpop.f32.mrf.mxu0
        %1842 = vdwg.mxu0
        %1843 = vmatpush.bf16.msra.mxu0 %v1699
        %1844 = vmatpush.bf16.msra.mxu0 %v1691
        %1845 = vmatpush.bf16.msra.mxu0 %v1683
        %1846 = vmatpush.bf16.msra.mxu0 %v1675
        %1847 = vmatpush.bf16.msra.mxu0 %v1667
        %1848 = vmatpush.bf16.msra.mxu0 %v1659
        %1849 = vmatpush.bf16.msra.mxu0 %v1651
        %1850 = vmatpush.bf16.msra.mxu0 %v1643
        %1851 = vmatmul.bf16.gmra.mxu0 %v1379
        %v1852 = vpop.f32.mrf.mxu0
        %v1853 = vadd.f32 0.0, %v1852
        %v1854 = vpop.f32.mrf.mxu0
        %1855 = vdwg.mxu0
        %1856 = vmatpush.bf16.msra.mxu0 %v1700
        %1857 = vmatpush.bf16.msra.mxu0 %v1692
        %1858 = vmatpush.bf16.msra.mxu0 %v1684
        %1859 = vmatpush.bf16.msra.mxu0 %v1676
        %1860 = vmatpush.bf16.msra.mxu0 %v1668
        %1861 = vmatpush.bf16.msra.mxu0 %v1660
        %1862 = vmatpush.bf16.msra.mxu0 %v1652
        %1863 = vmatpush.bf16.msra.mxu0 %v1644
        %1864 = vmatmul.bf16.gmra.mxu0 %v1379
        %v1865 = vpop.f32.mrf.mxu0
        %v1866 = vadd.f32 0.0, %v1865
        %v1867 = vpop.f32.mrf.mxu0
        %1868 = vdwg.mxu0
        %p1869 = scmp.gt.s32.totalorder %s1369, 0
        %s1870 = scalar_select %p1869, %s1369, 0
        %p1871 = scmp.lt.s32.totalorder %s1870, 128
        %s1872 = scalar_select %p1871, %s1870, 128
        %p1873 = scmp.gt.s32.totalorder %s1872, %s1371
        %s1874 = scalar_select %p1873, %s1872, %s1371
        %p1875 = scmp.lt.s32.totalorder %s1874, 128
        %s1876 = scalar_select %p1875, %s1874, 128
        %s1877 = ssub.s32 %s1876, %s1872
        %s1878 = scvt.s32.f32 %s1877
        %v1879 = vstv %s1878
        %v1880 = vrcp.pop %v1879
        %v1881 = vmul.f32 %v1879, %v1880
        %v1882 = vsub.f32 1.0, %v1881
        %v1883 = vmul.f32 %v1880, %v1882
        %v1884 = vadd.f32 %v1880, %v1883
        %vm1885 = vweird.f32 %v1879
        %vm1886 = vweird.f32 %v1880
        %vm1887 = vmor %vm1885, %vm1886
        %v1888 = vsel %vm1887, %v1880, %v1884
        %v1889 = vand.u32 2147483647, %v1879
        %vm1890 = vcmp.eq.f32.partialorder %v1889, 8.507059e+37
        %v1891 = vand.u32 %v1879, 2147483648
        %v1892 = vor.u32 1.1754944e-38, %v1891
        %v1893 = vsel %vm1890, %v1892, %v1888
        %s1894 = vtos %v1893
        %v1895 = vstv %s1894
        %v1896 = vmul.f32 %v1775, %v1895
        %v1897 = vmul.f32 %v1788, %v1895
        %v1898 = vmul.f32 %v1801, %v1895
        %v1899 = vmul.f32 %v1814, %v1895
        %v1900 = vmul.f32 %v1827, %v1895
        %v1901 = vmul.f32 %v1840, %v1895
        %v1902 = vmul.f32 %v1853, %v1895
        %v1903 = vmul.f32 %v1866, %v1895
        %v1912 = vrot.slane %v1897, 7
        %v1913 = vrot.slane %v1898, 6
        %v1914 = vrot.slane %v1899, 5
        %v1915 = vrot.slane %v1900, 4
        %v1916 = vrot.slane %v1901, 3
        %v1917 = vrot.slane %v1902, 2
        %v1918 = vrot.slane %v1903, 1
        %v1919 = vsel %vm787, %v1896, %v1912
        %v1920 = vsel %vm789, %v1913, %v1914
        %v1921 = vsel %vm791, %v1919, %v1920
        %v1922 = vsel %vm793, %v1915, %v1916
        %v1923 = vsel %vm795, %v1917, %v1918
        %v1924 = vsel %vm797, %v1922, %v1923
        %v1925 = vsel %vm799, %v1921, %v1924
        %s1927 = scalar_lea.vmem [#allocation2], 2
        %1928 = vst [vmem:[%s1927] ss:$8 sm:$0xf] %v1925
        %1929 = vst [vmem:[%s1927] ss:$8 sm:$0xf0] %v1925
        %s1930 = sadd.s32 %s236, 3
        %s1931 = smul.u32 %s1930, 128
        %s1932 = sld [smem:[#allocation4 + %s1931]]
        %s1933 = sadd.s32 %s1931, 1
        %s1934 = sld [smem:[#allocation4 + %s1933]]
        %v1935 = vstv %s1932
        %vm1936 = vcmp.ge.s32.totalorder %v235, %v1935
        %v1937 = vstv %s1934
        %vm1938 = vcmp.lt.s32.totalorder %v235, %v1937
        %vm1939 = vmand %vm1936, %vm1938
        %v1940 = vsel %vm1939, 1, 0
        %v1941 = vcvt.s32.f32 %v1940
        %v1942 = vpack.c.bf16 %v1941, %v1941
        %s1943 = scalar_lea.vmem %s198, 1536 [#allocation5]
        %v1944 = vld [vmem:[%s1943] sm:$0xff]
        %v1945 = vld [vmem:[%s1943 + $0x8] sm:$0xff]
        %v1946 = vld [vmem:[%s1943 + $0x10] sm:$0xff]
        %v1947 = vld [vmem:[%s1943 + $0x18] sm:$0xff]
        %v1948 = vld [vmem:[%s1943 + $0x20] sm:$0xff]
        %v1949 = vld [vmem:[%s1943 + $0x28] sm:$0xff]
        %v1950 = vld [vmem:[%s1943 + $0x30] sm:$0xff]
        %v1951 = vld [vmem:[%s1943 + $0x38] sm:$0xff]
        %v1952 = vld [vmem:[%s1943 + $0x40] sm:$0xff]
        %v1953 = vld [vmem:[%s1943 + $0x48] sm:$0xff]
        %v1954 = vld [vmem:[%s1943 + $0x50] sm:$0xff]
        %v1955 = vld [vmem:[%s1943 + $0x58] sm:$0xff]
        %v1956 = vld [vmem:[%s1943 + $0x60] sm:$0xff]
        %v1957 = vld [vmem:[%s1943 + $0x68] sm:$0xff]
        %v1958 = vld [vmem:[%s1943 + $0x70] sm:$0xff]
        %v1959 = vld [vmem:[%s1943 + $0x78] sm:$0xff]
        %v1960 = vld [vmem:[%s1943 + $0x80] sm:$0xff]
        %v1961 = vld [vmem:[%s1943 + $0x88] sm:$0xff]
        %v1962 = vld [vmem:[%s1943 + $0x90] sm:$0xff]
        %v1963 = vld [vmem:[%s1943 + $0x98] sm:$0xff]
        %v1964 = vld [vmem:[%s1943 + $0xa0] sm:$0xff]
        %v1965 = vld [vmem:[%s1943 + $0xa8] sm:$0xff]
        %v1966 = vld [vmem:[%s1943 + $0xb0] sm:$0xff]
        %v1967 = vld [vmem:[%s1943 + $0xb8] sm:$0xff]
        %v1968 = vld [vmem:[%s1943 + $0xc0] sm:$0xff]
        %v1969 = vld [vmem:[%s1943 + $0xc8] sm:$0xff]
        %v1970 = vld [vmem:[%s1943 + $0xd0] sm:$0xff]
        %v1971 = vld [vmem:[%s1943 + $0xd8] sm:$0xff]
        %v1972 = vld [vmem:[%s1943 + $0xe0] sm:$0xff]
        %v1973 = vld [vmem:[%s1943 + $0xe8] sm:$0xff]
        %v1974 = vld [vmem:[%s1943 + $0xf0] sm:$0xff]
        %v1975 = vld [vmem:[%s1943 + $0xf8] sm:$0xff]
        %v1976 = vld [vmem:[%s1943 + $0x100] sm:$0xff]
        %v1977 = vld [vmem:[%s1943 + $0x108] sm:$0xff]
        %v1978 = vld [vmem:[%s1943 + $0x110] sm:$0xff]
        %v1979 = vld [vmem:[%s1943 + $0x118] sm:$0xff]
        %v1980 = vld [vmem:[%s1943 + $0x120] sm:$0xff]
        %v1981 = vld [vmem:[%s1943 + $0x128] sm:$0xff]
        %v1982 = vld [vmem:[%s1943 + $0x130] sm:$0xff]
        %v1983 = vld [vmem:[%s1943 + $0x138] sm:$0xff]
        %v1984 = vld [vmem:[%s1943 + $0x140] sm:$0xff]
        %v1985 = vld [vmem:[%s1943 + $0x148] sm:$0xff]
        %v1986 = vld [vmem:[%s1943 + $0x150] sm:$0xff]
        %v1987 = vld [vmem:[%s1943 + $0x158] sm:$0xff]
        %v1988 = vld [vmem:[%s1943 + $0x160] sm:$0xff]
        %v1989 = vld [vmem:[%s1943 + $0x168] sm:$0xff]
        %v1990 = vld [vmem:[%s1943 + $0x170] sm:$0xff]
        %v1991 = vld [vmem:[%s1943 + $0x178] sm:$0xff]
        %v1992 = vld [vmem:[%s1943 + $0x180] sm:$0xff]
        %v1993 = vld [vmem:[%s1943 + $0x188] sm:$0xff]
        %v1994 = vld [vmem:[%s1943 + $0x190] sm:$0xff]
        %v1995 = vld [vmem:[%s1943 + $0x198] sm:$0xff]
        %v1996 = vld [vmem:[%s1943 + $0x1a0] sm:$0xff]
        %v1997 = vld [vmem:[%s1943 + $0x1a8] sm:$0xff]
        %v1998 = vld [vmem:[%s1943 + $0x1b0] sm:$0xff]
        %v1999 = vld [vmem:[%s1943 + $0x1b8] sm:$0xff]
        %v2000 = vld [vmem:[%s1943 + $0x1c0] sm:$0xff]
        %v2001 = vld [vmem:[%s1943 + $0x1c8] sm:$0xff]
        %v2002 = vld [vmem:[%s1943 + $0x1d0] sm:$0xff]
        %v2003 = vld [vmem:[%s1943 + $0x1d8] sm:$0xff]
        %v2004 = vld [vmem:[%s1943 + $0x1e0] sm:$0xff]
        %v2005 = vld [vmem:[%s1943 + $0x1e8] sm:$0xff]
        %v2006 = vld [vmem:[%s1943 + $0x1f0] sm:$0xff]
        %v2007 = vld [vmem:[%s1943 + $0x1f8] sm:$0xff]
        %v2072 = vunpack.c.l.b16 %v1944
        %v2073 = vunpack.c.h.b16 %v1944
        %v2074 = vunpack.c.l.b16 %v1945
        %v2075 = vunpack.c.h.b16 %v1945
        %v2076 = vunpack.c.l.b16 %v1946
        %v2077 = vunpack.c.h.b16 %v1946
        %v2078 = vunpack.c.l.b16 %v1947
        %v2079 = vunpack.c.h.b16 %v1947
        %v2080 = vunpack.c.l.b16 %v1948
        %v2081 = vunpack.c.h.b16 %v1948
        %v2082 = vunpack.c.l.b16 %v1949
        %v2083 = vunpack.c.h.b16 %v1949
        %v2084 = vunpack.c.l.b16 %v1950
        %v2085 = vunpack.c.h.b16 %v1950
        %v2086 = vunpack.c.l.b16 %v1951
        %v2087 = vunpack.c.h.b16 %v1951
        %v2088 = vunpack.c.l.b16 %v1952
        %v2089 = vunpack.c.h.b16 %v1952
        %v2090 = vunpack.c.l.b16 %v1953
        %v2091 = vunpack.c.h.b16 %v1953
        %v2092 = vunpack.c.l.b16 %v1954
        %v2093 = vunpack.c.h.b16 %v1954
        %v2094 = vunpack.c.l.b16 %v1955
        %v2095 = vunpack.c.h.b16 %v1955
        %v2096 = vunpack.c.l.b16 %v1956
        %v2097 = vunpack.c.h.b16 %v1956
        %v2098 = vunpack.c.l.b16 %v1957
        %v2099 = vunpack.c.h.b16 %v1957
        %v2100 = vunpack.c.l.b16 %v1958
        %v2101 = vunpack.c.h.b16 %v1958
        %v2102 = vunpack.c.l.b16 %v1959
        %v2103 = vunpack.c.h.b16 %v1959
        %v2104 = vunpack.c.l.b16 %v1960
        %v2105 = vunpack.c.h.b16 %v1960
        %v2106 = vunpack.c.l.b16 %v1961
        %v2107 = vunpack.c.h.b16 %v1961
        %v2108 = vunpack.c.l.b16 %v1962
        %v2109 = vunpack.c.h.b16 %v1962
        %v2110 = vunpack.c.l.b16 %v1963
        %v2111 = vunpack.c.h.b16 %v1963
        %v2112 = vunpack.c.l.b16 %v1964
        %v2113 = vunpack.c.h.b16 %v1964
        %v2114 = vunpack.c.l.b16 %v1965
        %v2115 = vunpack.c.h.b16 %v1965
        %v2116 = vunpack.c.l.b16 %v1966
        %v2117 = vunpack.c.h.b16 %v1966
        %v2118 = vunpack.c.l.b16 %v1967
        %v2119 = vunpack.c.h.b16 %v1967
        %v2120 = vunpack.c.l.b16 %v1968
        %v2121 = vunpack.c.h.b16 %v1968
        %v2122 = vunpack.c.l.b16 %v1969
        %v2123 = vunpack.c.h.b16 %v1969
        %v2124 = vunpack.c.l.b16 %v1970
        %v2125 = vunpack.c.h.b16 %v1970
        %v2126 = vunpack.c.l.b16 %v1971
        %v2127 = vunpack.c.h.b16 %v1971
        %v2128 = vunpack.c.l.b16 %v1972
        %v2129 = vunpack.c.h.b16 %v1972
        %v2130 = vunpack.c.l.b16 %v1973
        %v2131 = vunpack.c.h.b16 %v1973
        %v2132 = vunpack.c.l.b16 %v1974
        %v2133 = vunpack.c.h.b16 %v1974
        %v2134 = vunpack.c.l.b16 %v1975
        %v2135 = vunpack.c.h.b16 %v1975
        %v2136 = vunpack.c.l.b16 %v1976
        %v2137 = vunpack.c.h.b16 %v1976
        %v2138 = vunpack.c.l.b16 %v1977
        %v2139 = vunpack.c.h.b16 %v1977
        %v2140 = vunpack.c.l.b16 %v1978
        %v2141 = vunpack.c.h.b16 %v1978
        %v2142 = vunpack.c.l.b16 %v1979
        %v2143 = vunpack.c.h.b16 %v1979
        %v2144 = vunpack.c.l.b16 %v1980
        %v2145 = vunpack.c.h.b16 %v1980
        %v2146 = vunpack.c.l.b16 %v1981
        %v2147 = vunpack.c.h.b16 %v1981
        %v2148 = vunpack.c.l.b16 %v1982
        %v2149 = vunpack.c.h.b16 %v1982
        %v2150 = vunpack.c.l.b16 %v1983
        %v2151 = vunpack.c.h.b16 %v1983
        %v2152 = vunpack.c.l.b16 %v1984
        %v2153 = vunpack.c.h.b16 %v1984
        %v2154 = vunpack.c.l.b16 %v1985
        %v2155 = vunpack.c.h.b16 %v1985
        %v2156 = vunpack.c.l.b16 %v1986
        %v2157 = vunpack.c.h.b16 %v1986
        %v2158 = vunpack.c.l.b16 %v1987
        %v2159 = vunpack.c.h.b16 %v1987
        %v2160 = vunpack.c.l.b16 %v1988
        %v2161 = vunpack.c.h.b16 %v1988
        %v2162 = vunpack.c.l.b16 %v1989
        %v2163 = vunpack.c.h.b16 %v1989
        %v2164 = vunpack.c.l.b16 %v1990
        %v2165 = vunpack.c.h.b16 %v1990
        %v2166 = vunpack.c.l.b16 %v1991
        %v2167 = vunpack.c.h.b16 %v1991
        %v2168 = vunpack.c.l.b16 %v1992
        %v2169 = vunpack.c.h.b16 %v1992
        %v2170 = vunpack.c.l.b16 %v1993
        %v2171 = vunpack.c.h.b16 %v1993
        %v2172 = vunpack.c.l.b16 %v1994
        %v2173 = vunpack.c.h.b16 %v1994
        %v2174 = vunpack.c.l.b16 %v1995
        %v2175 = vunpack.c.h.b16 %v1995
        %v2176 = vunpack.c.l.b16 %v1996
        %v2177 = vunpack.c.h.b16 %v1996
        %v2178 = vunpack.c.l.b16 %v1997
        %v2179 = vunpack.c.h.b16 %v1997
        %v2180 = vunpack.c.l.b16 %v1998
        %v2181 = vunpack.c.h.b16 %v1998
        %v2182 = vunpack.c.l.b16 %v1999
        %v2183 = vunpack.c.h.b16 %v1999
        %v2184 = vunpack.c.l.b16 %v2000
        %v2185 = vunpack.c.h.b16 %v2000
        %v2186 = vunpack.c.l.b16 %v2001
        %v2187 = vunpack.c.h.b16 %v2001
        %v2188 = vunpack.c.l.b16 %v2002
        %v2189 = vunpack.c.h.b16 %v2002
        %v2190 = vunpack.c.l.b16 %v2003
        %v2191 = vunpack.c.h.b16 %v2003
        %v2192 = vunpack.c.l.b16 %v2004
        %v2193 = vunpack.c.h.b16 %v2004
        %v2194 = vunpack.c.l.b16 %v2005
        %v2195 = vunpack.c.h.b16 %v2005
        %v2196 = vunpack.c.l.b16 %v2006
        %v2197 = vunpack.c.h.b16 %v2006
        %v2198 = vunpack.c.l.b16 %v2007
        %v2199 = vunpack.c.h.b16 %v2007
        %v2200 = vpack.c.b16 %v2080, %v2072
        %v2201 = vpack.c.b16 %v2081, %v2073
        %v2202 = vpack.c.b16 %v2082, %v2074
        %v2203 = vpack.c.b16 %v2083, %v2075
        %v2204 = vpack.c.b16 %v2084, %v2076
        %v2205 = vpack.c.b16 %v2085, %v2077
        %v2206 = vpack.c.b16 %v2086, %v2078
        %v2207 = vpack.c.b16 %v2087, %v2079
        %v2208 = vpack.c.b16 %v2096, %v2088
        %v2209 = vpack.c.b16 %v2097, %v2089
        %v2210 = vpack.c.b16 %v2098, %v2090
        %v2211 = vpack.c.b16 %v2099, %v2091
        %v2212 = vpack.c.b16 %v2100, %v2092
        %v2213 = vpack.c.b16 %v2101, %v2093
        %v2214 = vpack.c.b16 %v2102, %v2094
        %v2215 = vpack.c.b16 %v2103, %v2095
        %v2216 = vpack.c.b16 %v2112, %v2104
        %v2217 = vpack.c.b16 %v2113, %v2105
        %v2218 = vpack.c.b16 %v2114, %v2106
        %v2219 = vpack.c.b16 %v2115, %v2107
        %v2220 = vpack.c.b16 %v2116, %v2108
        %v2221 = vpack.c.b16 %v2117, %v2109
        %v2222 = vpack.c.b16 %v2118, %v2110
        %v2223 = vpack.c.b16 %v2119, %v2111
        %v2224 = vpack.c.b16 %v2128, %v2120
        %v2225 = vpack.c.b16 %v2129, %v2121
        %v2226 = vpack.c.b16 %v2130, %v2122
        %v2227 = vpack.c.b16 %v2131, %v2123
        %v2228 = vpack.c.b16 %v2132, %v2124
        %v2229 = vpack.c.b16 %v2133, %v2125
        %v2230 = vpack.c.b16 %v2134, %v2126
        %v2231 = vpack.c.b16 %v2135, %v2127
        %v2232 = vpack.c.b16 %v2144, %v2136
        %v2233 = vpack.c.b16 %v2145, %v2137
        %v2234 = vpack.c.b16 %v2146, %v2138
        %v2235 = vpack.c.b16 %v2147, %v2139
        %v2236 = vpack.c.b16 %v2148, %v2140
        %v2237 = vpack.c.b16 %v2149, %v2141
        %v2238 = vpack.c.b16 %v2150, %v2142
        %v2239 = vpack.c.b16 %v2151, %v2143
        %v2240 = vpack.c.b16 %v2160, %v2152
        %v2241 = vpack.c.b16 %v2161, %v2153
        %v2242 = vpack.c.b16 %v2162, %v2154
        %v2243 = vpack.c.b16 %v2163, %v2155
        %v2244 = vpack.c.b16 %v2164, %v2156
        %v2245 = vpack.c.b16 %v2165, %v2157
        %v2246 = vpack.c.b16 %v2166, %v2158
        %v2247 = vpack.c.b16 %v2167, %v2159
        %v2248 = vpack.c.b16 %v2176, %v2168
        %v2249 = vpack.c.b16 %v2177, %v2169
        %v2250 = vpack.c.b16 %v2178, %v2170
        %v2251 = vpack.c.b16 %v2179, %v2171
        %v2252 = vpack.c.b16 %v2180, %v2172
        %v2253 = vpack.c.b16 %v2181, %v2173
        %v2254 = vpack.c.b16 %v2182, %v2174
        %v2255 = vpack.c.b16 %v2183, %v2175
        %v2256 = vpack.c.b16 %v2192, %v2184
        %v2257 = vpack.c.b16 %v2193, %v2185
        %v2258 = vpack.c.b16 %v2194, %v2186
        %v2259 = vpack.c.b16 %v2195, %v2187
        %v2260 = vpack.c.b16 %v2196, %v2188
        %v2261 = vpack.c.b16 %v2197, %v2189
        %v2262 = vpack.c.b16 %v2198, %v2190
        %v2263 = vpack.c.b16 %v2199, %v2191
        %2328 = vmatpush.bf16.msra.mxu0 %v2256
        %2329 = vmatpush.bf16.msra.mxu0 %v2248
        %2330 = vmatpush.bf16.msra.mxu0 %v2240
        %2331 = vmatpush.bf16.msra.mxu0 %v2232
        %2332 = vmatpush.bf16.msra.mxu0 %v2224
        %2333 = vmatpush.bf16.msra.mxu0 %v2216
        %2334 = vmatpush.bf16.msra.mxu0 %v2208
        %2335 = vmatpush.bf16.msra.mxu0 %v2200
        %2336 = vmatmul.bf16.gmra.mxu0 %v1942
        %v2337 = vpop.f32.mrf.mxu0
        %v2338 = vadd.f32 0.0, %v2337
        %v2339 = vpop.f32.mrf.mxu0
        %2340 = vdwg.mxu0
        %2341 = vmatpush.bf16.msra.mxu0 %v2257
        %2342 = vmatpush.bf16.msra.mxu0 %v2249
        %2343 = vmatpush.bf16.msra.mxu0 %v2241
        %2344 = vmatpush.bf16.msra.mxu0 %v2233
        %2345 = vmatpush.bf16.msra.mxu0 %v2225
        %2346 = vmatpush.bf16.msra.mxu0 %v2217
        %2347 = vmatpush.bf16.msra.mxu0 %v2209
        %2348 = vmatpush.bf16.msra.mxu0 %v2201
        %2349 = vmatmul.bf16.gmra.mxu0 %v1942
        %v2350 = vpop.f32.mrf.mxu0
        %v2351 = vadd.f32 0.0, %v2350
        %v2352 = vpop.f32.mrf.mxu0
        %2353 = vdwg.mxu0
        %2354 = vmatpush.bf16.msra.mxu0 %v2258
        %2355 = vmatpush.bf16.msra.mxu0 %v2250
        %2356 = vmatpush.bf16.msra.mxu0 %v2242
        %2357 = vmatpush.bf16.msra.mxu0 %v2234
        %2358 = vmatpush.bf16.msra.mxu0 %v2226
        %2359 = vmatpush.bf16.msra.mxu0 %v2218
        %2360 = vmatpush.bf16.msra.mxu0 %v2210
        %2361 = vmatpush.bf16.msra.mxu0 %v2202
        %2362 = vmatmul.bf16.gmra.mxu0 %v1942
        %v2363 = vpop.f32.mrf.mxu0
        %v2364 = vadd.f32 0.0, %v2363
        %v2365 = vpop.f32.mrf.mxu0
        %2366 = vdwg.mxu0
        %2367 = vmatpush.bf16.msra.mxu0 %v2259
        %2368 = vmatpush.bf16.msra.mxu0 %v2251
        %2369 = vmatpush.bf16.msra.mxu0 %v2243
        %2370 = vmatpush.bf16.msra.mxu0 %v2235
        %2371 = vmatpush.bf16.msra.mxu0 %v2227
        %2372 = vmatpush.bf16.msra.mxu0 %v2219
        %2373 = vmatpush.bf16.msra.mxu0 %v2211
        %2374 = vmatpush.bf16.msra.mxu0 %v2203
        %2375 = vmatmul.bf16.gmra.mxu0 %v1942
        %v2376 = vpop.f32.mrf.mxu0
        %v2377 = vadd.f32 0.0, %v2376
        %v2378 = vpop.f32.mrf.mxu0
        %2379 = vdwg.mxu0
        %2380 = vmatpush.bf16.msra.mxu0 %v2260
        %2381 = vmatpush.bf16.msra.mxu0 %v2252
        %2382 = vmatpush.bf16.msra.mxu0 %v2244
        %2383 = vmatpush.bf16.msra.mxu0 %v2236
        %2384 = vmatpush.bf16.msra.mxu0 %v2228
        %2385 = vmatpush.bf16.msra.mxu0 %v2220
        %2386 = vmatpush.bf16.msra.mxu0 %v2212
        %2387 = vmatpush.bf16.msra.mxu0 %v2204
        %2388 = vmatmul.bf16.gmra.mxu0 %v1942
        %v2389 = vpop.f32.mrf.mxu0
        %v2390 = vadd.f32 0.0, %v2389
        %v2391 = vpop.f32.mrf.mxu0
        %2392 = vdwg.mxu0
        %2393 = vmatpush.bf16.msra.mxu0 %v2261
        %2394 = vmatpush.bf16.msra.mxu0 %v2253
        %2395 = vmatpush.bf16.msra.mxu0 %v2245
        %2396 = vmatpush.bf16.msra.mxu0 %v2237
        %2397 = vmatpush.bf16.msra.mxu0 %v2229
        %2398 = vmatpush.bf16.msra.mxu0 %v2221
        %2399 = vmatpush.bf16.msra.mxu0 %v2213
        %2400 = vmatpush.bf16.msra.mxu0 %v2205
        %2401 = vmatmul.bf16.gmra.mxu0 %v1942
        %v2402 = vpop.f32.mrf.mxu0
        %v2403 = vadd.f32 0.0, %v2402
        %v2404 = vpop.f32.mrf.mxu0
        %2405 = vdwg.mxu0
        %2406 = vmatpush.bf16.msra.mxu0 %v2262
        %2407 = vmatpush.bf16.msra.mxu0 %v2254
        %2408 = vmatpush.bf16.msra.mxu0 %v2246
        %2409 = vmatpush.bf16.msra.mxu0 %v2238
        %2410 = vmatpush.bf16.msra.mxu0 %v2230
        %2411 = vmatpush.bf16.msra.mxu0 %v2222
        %2412 = vmatpush.bf16.msra.mxu0 %v2214
        %2413 = vmatpush.bf16.msra.mxu0 %v2206
        %2414 = vmatmul.bf16.gmra.mxu0 %v1942
        %v2415 = vpop.f32.mrf.mxu0
        %v2416 = vadd.f32 0.0, %v2415
        %v2417 = vpop.f32.mrf.mxu0
        %2418 = vdwg.mxu0
        %2419 = vmatpush.bf16.msra.mxu0 %v2263
        %2420 = vmatpush.bf16.msra.mxu0 %v2255
        %2421 = vmatpush.bf16.msra.mxu0 %v2247
        %2422 = vmatpush.bf16.msra.mxu0 %v2239
        %2423 = vmatpush.bf16.msra.mxu0 %v2231
        %2424 = vmatpush.bf16.msra.mxu0 %v2223
        %2425 = vmatpush.bf16.msra.mxu0 %v2215
        %2426 = vmatpush.bf16.msra.mxu0 %v2207
        %2427 = vmatmul.bf16.gmra.mxu0 %v1942
        %v2428 = vpop.f32.mrf.mxu0
        %v2429 = vadd.f32 0.0, %v2428
        %v2430 = vpop.f32.mrf.mxu0
        %2431 = vdwg.mxu0
        %p2432 = scmp.gt.s32.totalorder %s1932, 0
        %s2433 = scalar_select %p2432, %s1932, 0
        %p2434 = scmp.lt.s32.totalorder %s2433, 128
        %s2435 = scalar_select %p2434, %s2433, 128
        %p2436 = scmp.gt.s32.totalorder %s2435, %s1934
        %s2437 = scalar_select %p2436, %s2435, %s1934
        %p2438 = scmp.lt.s32.totalorder %s2437, 128
        %s2439 = scalar_select %p2438, %s2437, 128
        %s2440 = ssub.s32 %s2439, %s2435
        %s2441 = scvt.s32.f32 %s2440
        %v2442 = vstv %s2441
        %v2443 = vrcp.pop %v2442
        %v2444 = vmul.f32 %v2442, %v2443
        %v2445 = vsub.f32 1.0, %v2444
        %v2446 = vmul.f32 %v2443, %v2445
        %v2447 = vadd.f32 %v2443, %v2446
        %vm2448 = vweird.f32 %v2442
        %vm2449 = vweird.f32 %v2443
        %vm2450 = vmor %vm2448, %vm2449
        %v2451 = vsel %vm2450, %v2443, %v2447
        %v2452 = vand.u32 2147483647, %v2442
        %vm2453 = vcmp.eq.f32.partialorder %v2452, 8.507059e+37
        %v2454 = vand.u32 %v2442, 2147483648
        %v2455 = vor.u32 1.1754944e-38, %v2454
        %v2456 = vsel %vm2453, %v2455, %v2451
        %s2457 = vtos %v2456
        %v2458 = vstv %s2457
        %v2459 = vmul.f32 %v2338, %v2458
        %v2460 = vmul.f32 %v2351, %v2458
        %v2461 = vmul.f32 %v2364, %v2458
        %v2462 = vmul.f32 %v2377, %v2458
        %v2463 = vmul.f32 %v2390, %v2458
        %v2464 = vmul.f32 %v2403, %v2458
        %v2465 = vmul.f32 %v2416, %v2458
        %v2466 = vmul.f32 %v2429, %v2458
        %v2475 = vrot.slane %v2460, 7
        %v2476 = vrot.slane %v2461, 6
        %v2477 = vrot.slane %v2462, 5
        %v2478 = vrot.slane %v2463, 4
        %v2479 = vrot.slane %v2464, 3
        %v2480 = vrot.slane %v2465, 2
        %v2481 = vrot.slane %v2466, 1
        %v2482 = vsel %vm787, %v2459, %v2475
        %v2483 = vsel %vm789, %v2476, %v2477
        %v2484 = vsel %vm791, %v2482, %v2483
        %v2485 = vsel %vm793, %v2478, %v2479
        %v2486 = vsel %vm795, %v2480, %v2481
        %v2487 = vsel %vm797, %v2485, %v2486
        %v2488 = vsel %vm799, %v2484, %v2487
        %s2490 = scalar_lea.vmem [#allocation2], 3
        %2491 = vst [vmem:[%s2490] ss:$8 sm:$0xf] %v2488
        %2492 = vst [vmem:[%s2490] ss:$8 sm:$0xf0] %v2488
        %s2493 = sadd.s32 %s236, 4
        %s2494 = smul.u32 %s2493, 128
        %s2495 = sld [smem:[#allocation4 + %s2494]]
        %s2496 = sadd.s32 %s2494, 1
        %s2497 = sld [smem:[#allocation4 + %s2496]]
        %v2498 = vstv %s2495
        %vm2499 = vcmp.ge.s32.totalorder %v235, %v2498
        %v2500 = vstv %s2497
        %vm2501 = vcmp.lt.s32.totalorder %v235, %v2500
        %vm2502 = vmand %vm2499, %vm2501
        %v2503 = vsel %vm2502, 1, 0
        %v2504 = vcvt.s32.f32 %v2503
        %v2505 = vpack.c.bf16 %v2504, %v2504
        %s2506 = scalar_lea.vmem %s198, 2048 [#allocation5]
        %v2507 = vld [vmem:[%s2506] sm:$0xff]
        %v2508 = vld [vmem:[%s2506 + $0x8] sm:$0xff]
        %v2509 = vld [vmem:[%s2506 + $0x10] sm:$0xff]
        %v2510 = vld [vmem:[%s2506 + $0x18] sm:$0xff]
        %v2511 = vld [vmem:[%s2506 + $0x20] sm:$0xff]
        %v2512 = vld [vmem:[%s2506 + $0x28] sm:$0xff]
        %v2513 = vld [vmem:[%s2506 + $0x30] sm:$0xff]
        %v2514 = vld [vmem:[%s2506 + $0x38] sm:$0xff]
        %v2515 = vld [vmem:[%s2506 + $0x40] sm:$0xff]
        %v2516 = vld [vmem:[%s2506 + $0x48] sm:$0xff]
        %v2517 = vld [vmem:[%s2506 + $0x50] sm:$0xff]
        %v2518 = vld [vmem:[%s2506 + $0x58] sm:$0xff]
        %v2519 = vld [vmem:[%s2506 + $0x60] sm:$0xff]
        %v2520 = vld [vmem:[%s2506 + $0x68] sm:$0xff]
        %v2521 = vld [vmem:[%s2506 + $0x70] sm:$0xff]
        %v2522 = vld [vmem:[%s2506 + $0x78] sm:$0xff]
        %v2523 = vld [vmem:[%s2506 + $0x80] sm:$0xff]
        %v2524 = vld [vmem:[%s2506 + $0x88] sm:$0xff]
        %v2525 = vld [vmem:[%s2506 + $0x90] sm:$0xff]
        %v2526 = vld [vmem:[%s2506 + $0x98] sm:$0xff]
        %v2527 = vld [vmem:[%s2506 + $0xa0] sm:$0xff]
        %v2528 = vld [vmem:[%s2506 + $0xa8] sm:$0xff]
        %v2529 = vld [vmem:[%s2506 + $0xb0] sm:$0xff]
        %v2530 = vld [vmem:[%s2506 + $0xb8] sm:$0xff]
        %v2531 = vld [vmem:[%s2506 + $0xc0] sm:$0xff]
        %v2532 = vld [vmem:[%s2506 + $0xc8] sm:$0xff]
        %v2533 = vld [vmem:[%s2506 + $0xd0] sm:$0xff]
        %v2534 = vld [vmem:[%s2506 + $0xd8] sm:$0xff]
        %v2535 = vld [vmem:[%s2506 + $0xe0] sm:$0xff]
        %v2536 = vld [vmem:[%s2506 + $0xe8] sm:$0xff]
        %v2537 = vld [vmem:[%s2506 + $0xf0] sm:$0xff]
        %v2538 = vld [vmem:[%s2506 + $0xf8] sm:$0xff]
        %v2539 = vld [vmem:[%s2506 + $0x100] sm:$0xff]
        %v2540 = vld [vmem:[%s2506 + $0x108] sm:$0xff]
        %v2541 = vld [vmem:[%s2506 + $0x110] sm:$0xff]
        %v2542 = vld [vmem:[%s2506 + $0x118] sm:$0xff]
        %v2543 = vld [vmem:[%s2506 + $0x120] sm:$0xff]
        %v2544 = vld [vmem:[%s2506 + $0x128] sm:$0xff]
        %v2545 = vld [vmem:[%s2506 + $0x130] sm:$0xff]
        %v2546 = vld [vmem:[%s2506 + $0x138] sm:$0xff]
        %v2547 = vld [vmem:[%s2506 + $0x140] sm:$0xff]
        %v2548 = vld [vmem:[%s2506 + $0x148] sm:$0xff]
        %v2549 = vld [vmem:[%s2506 + $0x150] sm:$0xff]
        %v2550 = vld [vmem:[%s2506 + $0x158] sm:$0xff]
        %v2551 = vld [vmem:[%s2506 + $0x160] sm:$0xff]
        %v2552 = vld [vmem:[%s2506 + $0x168] sm:$0xff]
        %v2553 = vld [vmem:[%s2506 + $0x170] sm:$0xff]
        %v2554 = vld [vmem:[%s2506 + $0x178] sm:$0xff]
        %v2555 = vld [vmem:[%s2506 + $0x180] sm:$0xff]
        %v2556 = vld [vmem:[%s2506 + $0x188] sm:$0xff]
        %v2557 = vld [vmem:[%s2506 + $0x190] sm:$0xff]
        %v2558 = vld [vmem:[%s2506 + $0x198] sm:$0xff]
        %v2559 = vld [vmem:[%s2506 + $0x1a0] sm:$0xff]
        %v2560 = vld [vmem:[%s2506 + $0x1a8] sm:$0xff]
        %v2561 = vld [vmem:[%s2506 + $0x1b0] sm:$0xff]
        %v2562 = vld [vmem:[%s2506 + $0x1b8] sm:$0xff]
        %v2563 = vld [vmem:[%s2506 + $0x1c0] sm:$0xff]
        %v2564 = vld [vmem:[%s2506 + $0x1c8] sm:$0xff]
        %v2565 = vld [vmem:[%s2506 + $0x1d0] sm:$0xff]
        %v2566 = vld [vmem:[%s2506 + $0x1d8] sm:$0xff]
        %v2567 = vld [vmem:[%s2506 + $0x1e0] sm:$0xff]
        %v2568 = vld [vmem:[%s2506 + $0x1e8] sm:$0xff]
        %v2569 = vld [vmem:[%s2506 + $0x1f0] sm:$0xff]
        %v2570 = vld [vmem:[%s2506 + $0x1f8] sm:$0xff]
        %v2635 = vunpack.c.l.b16 %v2507
        %v2636 = vunpack.c.h.b16 %v2507
        %v2637 = vunpack.c.l.b16 %v2508
        %v2638 = vunpack.c.h.b16 %v2508
        %v2639 = vunpack.c.l.b16 %v2509
        %v2640 = vunpack.c.h.b16 %v2509
        %v2641 = vunpack.c.l.b16 %v2510
        %v2642 = vunpack.c.h.b16 %v2510
        %v2643 = vunpack.c.l.b16 %v2511
        %v2644 = vunpack.c.h.b16 %v2511
        %v2645 = vunpack.c.l.b16 %v2512
        %v2646 = vunpack.c.h.b16 %v2512
        %v2647 = vunpack.c.l.b16 %v2513
        %v2648 = vunpack.c.h.b16 %v2513
        %v2649 = vunpack.c.l.b16 %v2514
        %v2650 = vunpack.c.h.b16 %v2514
        %v2651 = vunpack.c.l.b16 %v2515
        %v2652 = vunpack.c.h.b16 %v2515
        %v2653 = vunpack.c.l.b16 %v2516
        %v2654 = vunpack.c.h.b16 %v2516
        %v2655 = vunpack.c.l.b16 %v2517
        %v2656 = vunpack.c.h.b16 %v2517
        %v2657 = vunpack.c.l.b16 %v2518
        %v2658 = vunpack.c.h.b16 %v2518
        %v2659 = vunpack.c.l.b16 %v2519
        %v2660 = vunpack.c.h.b16 %v2519
        %v2661 = vunpack.c.l.b16 %v2520
        %v2662 = vunpack.c.h.b16 %v2520
        %v2663 = vunpack.c.l.b16 %v2521
        %v2664 = vunpack.c.h.b16 %v2521
        %v2665 = vunpack.c.l.b16 %v2522
        %v2666 = vunpack.c.h.b16 %v2522
        %v2667 = vunpack.c.l.b16 %v2523
        %v2668 = vunpack.c.h.b16 %v2523
        %v2669 = vunpack.c.l.b16 %v2524
        %v2670 = vunpack.c.h.b16 %v2524
        %v2671 = vunpack.c.l.b16 %v2525
        %v2672 = vunpack.c.h.b16 %v2525
        %v2673 = vunpack.c.l.b16 %v2526
        %v2674 = vunpack.c.h.b16 %v2526
        %v2675 = vunpack.c.l.b16 %v2527
        %v2676 = vunpack.c.h.b16 %v2527
        %v2677 = vunpack.c.l.b16 %v2528
        %v2678 = vunpack.c.h.b16 %v2528
        %v2679 = vunpack.c.l.b16 %v2529
        %v2680 = vunpack.c.h.b16 %v2529
        %v2681 = vunpack.c.l.b16 %v2530
        %v2682 = vunpack.c.h.b16 %v2530
        %v2683 = vunpack.c.l.b16 %v2531
        %v2684 = vunpack.c.h.b16 %v2531
        %v2685 = vunpack.c.l.b16 %v2532
        %v2686 = vunpack.c.h.b16 %v2532
        %v2687 = vunpack.c.l.b16 %v2533
        %v2688 = vunpack.c.h.b16 %v2533
        %v2689 = vunpack.c.l.b16 %v2534
        %v2690 = vunpack.c.h.b16 %v2534
        %v2691 = vunpack.c.l.b16 %v2535
        %v2692 = vunpack.c.h.b16 %v2535
        %v2693 = vunpack.c.l.b16 %v2536
        %v2694 = vunpack.c.h.b16 %v2536
        %v2695 = vunpack.c.l.b16 %v2537
        %v2696 = vunpack.c.h.b16 %v2537
        %v2697 = vunpack.c.l.b16 %v2538
        %v2698 = vunpack.c.h.b16 %v2538
        %v2699 = vunpack.c.l.b16 %v2539
        %v2700 = vunpack.c.h.b16 %v2539
        %v2701 = vunpack.c.l.b16 %v2540
        %v2702 = vunpack.c.h.b16 %v2540
        %v2703 = vunpack.c.l.b16 %v2541
        %v2704 = vunpack.c.h.b16 %v2541
        %v2705 = vunpack.c.l.b16 %v2542
        %v2706 = vunpack.c.h.b16 %v2542
        %v2707 = vunpack.c.l.b16 %v2543
        %v2708 = vunpack.c.h.b16 %v2543
        %v2709 = vunpack.c.l.b16 %v2544
        %v2710 = vunpack.c.h.b16 %v2544
        %v2711 = vunpack.c.l.b16 %v2545
        %v2712 = vunpack.c.h.b16 %v2545
        %v2713 = vunpack.c.l.b16 %v2546
        %v2714 = vunpack.c.h.b16 %v2546
        %v2715 = vunpack.c.l.b16 %v2547
        %v2716 = vunpack.c.h.b16 %v2547
        %v2717 = vunpack.c.l.b16 %v2548
        %v2718 = vunpack.c.h.b16 %v2548
        %v2719 = vunpack.c.l.b16 %v2549
        %v2720 = vunpack.c.h.b16 %v2549
        %v2721 = vunpack.c.l.b16 %v2550
        %v2722 = vunpack.c.h.b16 %v2550
        %v2723 = vunpack.c.l.b16 %v2551
        %v2724 = vunpack.c.h.b16 %v2551
        %v2725 = vunpack.c.l.b16 %v2552
        %v2726 = vunpack.c.h.b16 %v2552
        %v2727 = vunpack.c.l.b16 %v2553
        %v2728 = vunpack.c.h.b16 %v2553
        %v2729 = vunpack.c.l.b16 %v2554
        %v2730 = vunpack.c.h.b16 %v2554
        %v2731 = vunpack.c.l.b16 %v2555
        %v2732 = vunpack.c.h.b16 %v2555
        %v2733 = vunpack.c.l.b16 %v2556
        %v2734 = vunpack.c.h.b16 %v2556
        %v2735 = vunpack.c.l.b16 %v2557
        %v2736 = vunpack.c.h.b16 %v2557
        %v2737 = vunpack.c.l.b16 %v2558
        %v2738 = vunpack.c.h.b16 %v2558
        %v2739 = vunpack.c.l.b16 %v2559
        %v2740 = vunpack.c.h.b16 %v2559
        %v2741 = vunpack.c.l.b16 %v2560
        %v2742 = vunpack.c.h.b16 %v2560
        %v2743 = vunpack.c.l.b16 %v2561
        %v2744 = vunpack.c.h.b16 %v2561
        %v2745 = vunpack.c.l.b16 %v2562
        %v2746 = vunpack.c.h.b16 %v2562
        %v2747 = vunpack.c.l.b16 %v2563
        %v2748 = vunpack.c.h.b16 %v2563
        %v2749 = vunpack.c.l.b16 %v2564
        %v2750 = vunpack.c.h.b16 %v2564
        %v2751 = vunpack.c.l.b16 %v2565
        %v2752 = vunpack.c.h.b16 %v2565
        %v2753 = vunpack.c.l.b16 %v2566
        %v2754 = vunpack.c.h.b16 %v2566
        %v2755 = vunpack.c.l.b16 %v2567
        %v2756 = vunpack.c.h.b16 %v2567
        %v2757 = vunpack.c.l.b16 %v2568
        %v2758 = vunpack.c.h.b16 %v2568
        %v2759 = vunpack.c.l.b16 %v2569
        %v2760 = vunpack.c.h.b16 %v2569
        %v2761 = vunpack.c.l.b16 %v2570
        %v2762 = vunpack.c.h.b16 %v2570
        %v2763 = vpack.c.b16 %v2643, %v2635
        %v2764 = vpack.c.b16 %v2644, %v2636
        %v2765 = vpack.c.b16 %v2645, %v2637
        %v2766 = vpack.c.b16 %v2646, %v2638
        %v2767 = vpack.c.b16 %v2647, %v2639
        %v2768 = vpack.c.b16 %v2648, %v2640
        %v2769 = vpack.c.b16 %v2649, %v2641
        %v2770 = vpack.c.b16 %v2650, %v2642
        %v2771 = vpack.c.b16 %v2659, %v2651
        %v2772 = vpack.c.b16 %v2660, %v2652
        %v2773 = vpack.c.b16 %v2661, %v2653
        %v2774 = vpack.c.b16 %v2662, %v2654
        %v2775 = vpack.c.b16 %v2663, %v2655
        %v2776 = vpack.c.b16 %v2664, %v2656
        %v2777 = vpack.c.b16 %v2665, %v2657
        %v2778 = vpack.c.b16 %v2666, %v2658
        %v2779 = vpack.c.b16 %v2675, %v2667
        %v2780 = vpack.c.b16 %v2676, %v2668
        %v2781 = vpack.c.b16 %v2677, %v2669
        %v2782 = vpack.c.b16 %v2678, %v2670
        %v2783 = vpack.c.b16 %v2679, %v2671
        %v2784 = vpack.c.b16 %v2680, %v2672
        %v2785 = vpack.c.b16 %v2681, %v2673
        %v2786 = vpack.c.b16 %v2682, %v2674
        %v2787 = vpack.c.b16 %v2691, %v2683
        %v2788 = vpack.c.b16 %v2692, %v2684
        %v2789 = vpack.c.b16 %v2693, %v2685
        %v2790 = vpack.c.b16 %v2694, %v2686
        %v2791 = vpack.c.b16 %v2695, %v2687
        %v2792 = vpack.c.b16 %v2696, %v2688
        %v2793 = vpack.c.b16 %v2697, %v2689
        %v2794 = vpack.c.b16 %v2698, %v2690
        %v2795 = vpack.c.b16 %v2707, %v2699
        %v2796 = vpack.c.b16 %v2708, %v2700
        %v2797 = vpack.c.b16 %v2709, %v2701
        %v2798 = vpack.c.b16 %v2710, %v2702
        %v2799 = vpack.c.b16 %v2711, %v2703
        %v2800 = vpack.c.b16 %v2712, %v2704
        %v2801 = vpack.c.b16 %v2713, %v2705
        %v2802 = vpack.c.b16 %v2714, %v2706
        %v2803 = vpack.c.b16 %v2723, %v2715
        %v2804 = vpack.c.b16 %v2724, %v2716
        %v2805 = vpack.c.b16 %v2725, %v2717
        %v2806 = vpack.c.b16 %v2726, %v2718
        %v2807 = vpack.c.b16 %v2727, %v2719
        %v2808 = vpack.c.b16 %v2728, %v2720
        %v2809 = vpack.c.b16 %v2729, %v2721
        %v2810 = vpack.c.b16 %v2730, %v2722
        %v2811 = vpack.c.b16 %v2739, %v2731
        %v2812 = vpack.c.b16 %v2740, %v2732
        %v2813 = vpack.c.b16 %v2741, %v2733
        %v2814 = vpack.c.b16 %v2742, %v2734
        %v2815 = vpack.c.b16 %v2743, %v2735
        %v2816 = vpack.c.b16 %v2744, %v2736
        %v2817 = vpack.c.b16 %v2745, %v2737
        %v2818 = vpack.c.b16 %v2746, %v2738
        %v2819 = vpack.c.b16 %v2755, %v2747
        %v2820 = vpack.c.b16 %v2756, %v2748
        %v2821 = vpack.c.b16 %v2757, %v2749
        %v2822 = vpack.c.b16 %v2758, %v2750
        %v2823 = vpack.c.b16 %v2759, %v2751
        %v2824 = vpack.c.b16 %v2760, %v2752
        %v2825 = vpack.c.b16 %v2761, %v2753
        %v2826 = vpack.c.b16 %v2762, %v2754
        %2891 = vmatpush.bf16.msra.mxu0 %v2819
        %2892 = vmatpush.bf16.msra.mxu0 %v2811
        %2893 = vmatpush.bf16.msra.mxu0 %v2803
        %2894 = vmatpush.bf16.msra.mxu0 %v2795
        %2895 = vmatpush.bf16.msra.mxu0 %v2787
        %2896 = vmatpush.bf16.msra.mxu0 %v2779
        %2897 = vmatpush.bf16.msra.mxu0 %v2771
        %2898 = vmatpush.bf16.msra.mxu0 %v2763
        %2899 = vmatmul.bf16.gmra.mxu0 %v2505
        %v2900 = vpop.f32.mrf.mxu0
        %v2901 = vadd.f32 0.0, %v2900
        %v2902 = vpop.f32.mrf.mxu0
        %2903 = vdwg.mxu0
        %2904 = vmatpush.bf16.msra.mxu0 %v2820
        %2905 = vmatpush.bf16.msra.mxu0 %v2812
        %2906 = vmatpush.bf16.msra.mxu0 %v2804
        %2907 = vmatpush.bf16.msra.mxu0 %v2796
        %2908 = vmatpush.bf16.msra.mxu0 %v2788
        %2909 = vmatpush.bf16.msra.mxu0 %v2780
        %2910 = vmatpush.bf16.msra.mxu0 %v2772
        %2911 = vmatpush.bf16.msra.mxu0 %v2764
        %2912 = vmatmul.bf16.gmra.mxu0 %v2505
        %v2913 = vpop.f32.mrf.mxu0
        %v2914 = vadd.f32 0.0, %v2913
        %v2915 = vpop.f32.mrf.mxu0
        %2916 = vdwg.mxu0
        %2917 = vmatpush.bf16.msra.mxu0 %v2821
        %2918 = vmatpush.bf16.msra.mxu0 %v2813
        %2919 = vmatpush.bf16.msra.mxu0 %v2805
        %2920 = vmatpush.bf16.msra.mxu0 %v2797
        %2921 = vmatpush.bf16.msra.mxu0 %v2789
        %2922 = vmatpush.bf16.msra.mxu0 %v2781
        %2923 = vmatpush.bf16.msra.mxu0 %v2773
        %2924 = vmatpush.bf16.msra.mxu0 %v2765
        %2925 = vmatmul.bf16.gmra.mxu0 %v2505
        %v2926 = vpop.f32.mrf.mxu0
        %v2927 = vadd.f32 0.0, %v2926
        %v2928 = vpop.f32.mrf.mxu0
        %2929 = vdwg.mxu0
        %2930 = vmatpush.bf16.msra.mxu0 %v2822
        %2931 = vmatpush.bf16.msra.mxu0 %v2814
        %2932 = vmatpush.bf16.msra.mxu0 %v2806
        %2933 = vmatpush.bf16.msra.mxu0 %v2798
        %2934 = vmatpush.bf16.msra.mxu0 %v2790
        %2935 = vmatpush.bf16.msra.mxu0 %v2782
        %2936 = vmatpush.bf16.msra.mxu0 %v2774
        %2937 = vmatpush.bf16.msra.mxu0 %v2766
        %2938 = vmatmul.bf16.gmra.mxu0 %v2505
        %v2939 = vpop.f32.mrf.mxu0
        %v2940 = vadd.f32 0.0, %v2939
        %v2941 = vpop.f32.mrf.mxu0
        %2942 = vdwg.mxu0
        %2943 = vmatpush.bf16.msra.mxu0 %v2823
        %2944 = vmatpush.bf16.msra.mxu0 %v2815
        %2945 = vmatpush.bf16.msra.mxu0 %v2807
        %2946 = vmatpush.bf16.msra.mxu0 %v2799
        %2947 = vmatpush.bf16.msra.mxu0 %v2791
        %2948 = vmatpush.bf16.msra.mxu0 %v2783
        %2949 = vmatpush.bf16.msra.mxu0 %v2775
        %2950 = vmatpush.bf16.msra.mxu0 %v2767
        %2951 = vmatmul.bf16.gmra.mxu0 %v2505
        %v2952 = vpop.f32.mrf.mxu0
        %v2953 = vadd.f32 0.0, %v2952
        %v2954 = vpop.f32.mrf.mxu0
        %2955 = vdwg.mxu0
        %2956 = vmatpush.bf16.msra.mxu0 %v2824
        %2957 = vmatpush.bf16.msra.mxu0 %v2816
        %2958 = vmatpush.bf16.msra.mxu0 %v2808
        %2959 = vmatpush.bf16.msra.mxu0 %v2800
        %2960 = vmatpush.bf16.msra.mxu0 %v2792
        %2961 = vmatpush.bf16.msra.mxu0 %v2784
        %2962 = vmatpush.bf16.msra.mxu0 %v2776
        %2963 = vmatpush.bf16.msra.mxu0 %v2768
        %2964 = vmatmul.bf16.gmra.mxu0 %v2505
        %v2965 = vpop.f32.mrf.mxu0
        %v2966 = vadd.f32 0.0, %v2965
        %v2967 = vpop.f32.mrf.mxu0
        %2968 = vdwg.mxu0
        %2969 = vmatpush.bf16.msra.mxu0 %v2825
        %2970 = vmatpush.bf16.msra.mxu0 %v2817
        %2971 = vmatpush.bf16.msra.mxu0 %v2809
        %2972 = vmatpush.bf16.msra.mxu0 %v2801
        %2973 = vmatpush.bf16.msra.mxu0 %v2793
        %2974 = vmatpush.bf16.msra.mxu0 %v2785
        %2975 = vmatpush.bf16.msra.mxu0 %v2777
        %2976 = vmatpush.bf16.msra.mxu0 %v2769
        %2977 = vmatmul.bf16.gmra.mxu0 %v2505
        %v2978 = vpop.f32.mrf.mxu0
        %v2979 = vadd.f32 0.0, %v2978
        %v2980 = vpop.f32.mrf.mxu0
        %2981 = vdwg.mxu0
        %2982 = vmatpush.bf16.msra.mxu0 %v2826
        %2983 = vmatpush.bf16.msra.mxu0 %v2818
        %2984 = vmatpush.bf16.msra.mxu0 %v2810
        %2985 = vmatpush.bf16.msra.mxu0 %v2802
        %2986 = vmatpush.bf16.msra.mxu0 %v2794
        %2987 = vmatpush.bf16.msra.mxu0 %v2786
        %2988 = vmatpush.bf16.msra.mxu0 %v2778
        %2989 = vmatpush.bf16.msra.mxu0 %v2770
        %2990 = vmatmul.bf16.gmra.mxu0 %v2505
        %v2991 = vpop.f32.mrf.mxu0
        %v2992 = vadd.f32 0.0, %v2991
        %v2993 = vpop.f32.mrf.mxu0
        %2994 = vdwg.mxu0
        %p2995 = scmp.gt.s32.totalorder %s2495, 0
        %s2996 = scalar_select %p2995, %s2495, 0
        %p2997 = scmp.lt.s32.totalorder %s2996, 128
        %s2998 = scalar_select %p2997, %s2996, 128
        %p2999 = scmp.gt.s32.totalorder %s2998, %s2497
        %s3000 = scalar_select %p2999, %s2998, %s2497
        %p3001 = scmp.lt.s32.totalorder %s3000, 128
        %s3002 = scalar_select %p3001, %s3000, 128
        %s3003 = ssub.s32 %s3002, %s2998
        %s3004 = scvt.s32.f32 %s3003
        %v3005 = vstv %s3004
        %v3006 = vrcp.pop %v3005
        %v3007 = vmul.f32 %v3005, %v3006
        %v3008 = vsub.f32 1.0, %v3007
        %v3009 = vmul.f32 %v3006, %v3008
        %v3010 = vadd.f32 %v3006, %v3009
        %vm3011 = vweird.f32 %v3005
        %vm3012 = vweird.f32 %v3006
        %vm3013 = vmor %vm3011, %vm3012
        %v3014 = vsel %vm3013, %v3006, %v3010
        %v3015 = vand.u32 2147483647, %v3005
        %vm3016 = vcmp.eq.f32.partialorder %v3015, 8.507059e+37
        %v3017 = vand.u32 %v3005, 2147483648
        %v3018 = vor.u32 1.1754944e-38, %v3017
        %v3019 = vsel %vm3016, %v3018, %v3014
        %s3020 = vtos %v3019
        %v3021 = vstv %s3020
        %v3022 = vmul.f32 %v2901, %v3021
        %v3023 = vmul.f32 %v2914, %v3021
        %v3024 = vmul.f32 %v2927, %v3021
        %v3025 = vmul.f32 %v2940, %v3021
        %v3026 = vmul.f32 %v2953, %v3021
        %v3027 = vmul.f32 %v2966, %v3021
        %v3028 = vmul.f32 %v2979, %v3021
        %v3029 = vmul.f32 %v2992, %v3021
        %v3038 = vrot.slane %v3023, 7
        %v3039 = vrot.slane %v3024, 6
        %v3040 = vrot.slane %v3025, 5
        %v3041 = vrot.slane %v3026, 4
        %v3042 = vrot.slane %v3027, 3
        %v3043 = vrot.slane %v3028, 2
        %v3044 = vrot.slane %v3029, 1
        %v3045 = vsel %vm787, %v3022, %v3038
        %v3046 = vsel %vm789, %v3039, %v3040
        %v3047 = vsel %vm791, %v3045, %v3046
        %v3048 = vsel %vm793, %v3041, %v3042
        %v3049 = vsel %vm795, %v3043, %v3044
        %v3050 = vsel %vm797, %v3048, %v3049
        %v3051 = vsel %vm799, %v3047, %v3050
        %s3053 = scalar_lea.vmem [#allocation2], 4
        %3054 = vst [vmem:[%s3053] ss:$8 sm:$0xf] %v3051
        %3055 = vst [vmem:[%s3053] ss:$8 sm:$0xf0] %v3051
        %s3056 = sadd.s32 %s236, 5
        %s3057 = smul.u32 %s3056, 128
        %s3058 = sld [smem:[#allocation4 + %s3057]]
        %s3059 = sadd.s32 %s3057, 1
        %s3060 = sld [smem:[#allocation4 + %s3059]]
        %v3061 = vstv %s3058
        %vm3062 = vcmp.ge.s32.totalorder %v235, %v3061
        %v3063 = vstv %s3060
        %vm3064 = vcmp.lt.s32.totalorder %v235, %v3063
        %vm3065 = vmand %vm3062, %vm3064
        %v3066 = vsel %vm3065, 1, 0
        %v3067 = vcvt.s32.f32 %v3066
        %v3068 = vpack.c.bf16 %v3067, %v3067
        %s3069 = scalar_lea.vmem %s198, 2560 [#allocation5]
        %v3070 = vld [vmem:[%s3069] sm:$0xff]
        %v3071 = vld [vmem:[%s3069 + $0x8] sm:$0xff]
        %v3072 = vld [vmem:[%s3069 + $0x10] sm:$0xff]
        %v3073 = vld [vmem:[%s3069 + $0x18] sm:$0xff]
        %v3074 = vld [vmem:[%s3069 + $0x20] sm:$0xff]
        %v3075 = vld [vmem:[%s3069 + $0x28] sm:$0xff]
        %v3076 = vld [vmem:[%s3069 + $0x30] sm:$0xff]
        %v3077 = vld [vmem:[%s3069 + $0x38] sm:$0xff]
        %v3078 = vld [vmem:[%s3069 + $0x40] sm:$0xff]
        %v3079 = vld [vmem:[%s3069 + $0x48] sm:$0xff]
        %v3080 = vld [vmem:[%s3069 + $0x50] sm:$0xff]
        %v3081 = vld [vmem:[%s3069 + $0x58] sm:$0xff]
        %v3082 = vld [vmem:[%s3069 + $0x60] sm:$0xff]
        %v3083 = vld [vmem:[%s3069 + $0x68] sm:$0xff]
        %v3084 = vld [vmem:[%s3069 + $0x70] sm:$0xff]
        %v3085 = vld [vmem:[%s3069 + $0x78] sm:$0xff]
        %v3086 = vld [vmem:[%s3069 + $0x80] sm:$0xff]
        %v3087 = vld [vmem:[%s3069 + $0x88] sm:$0xff]
        %v3088 = vld [vmem:[%s3069 + $0x90] sm:$0xff]
        %v3089 = vld [vmem:[%s3069 + $0x98] sm:$0xff]
        %v3090 = vld [vmem:[%s3069 + $0xa0] sm:$0xff]
        %v3091 = vld [vmem:[%s3069 + $0xa8] sm:$0xff]
        %v3092 = vld [vmem:[%s3069 + $0xb0] sm:$0xff]
        %v3093 = vld [vmem:[%s3069 + $0xb8] sm:$0xff]
        %v3094 = vld [vmem:[%s3069 + $0xc0] sm:$0xff]
        %v3095 = vld [vmem:[%s3069 + $0xc8] sm:$0xff]
        %v3096 = vld [vmem:[%s3069 + $0xd0] sm:$0xff]
        %v3097 = vld [vmem:[%s3069 + $0xd8] sm:$0xff]
        %v3098 = vld [vmem:[%s3069 + $0xe0] sm:$0xff]
        %v3099 = vld [vmem:[%s3069 + $0xe8] sm:$0xff]
        %v3100 = vld [vmem:[%s3069 + $0xf0] sm:$0xff]
        %v3101 = vld [vmem:[%s3069 + $0xf8] sm:$0xff]
        %v3102 = vld [vmem:[%s3069 + $0x100] sm:$0xff]
        %v3103 = vld [vmem:[%s3069 + $0x108] sm:$0xff]
        %v3104 = vld [vmem:[%s3069 + $0x110] sm:$0xff]
        %v3105 = vld [vmem:[%s3069 + $0x118] sm:$0xff]
        %v3106 = vld [vmem:[%s3069 + $0x120] sm:$0xff]
        %v3107 = vld [vmem:[%s3069 + $0x128] sm:$0xff]
        %v3108 = vld [vmem:[%s3069 + $0x130] sm:$0xff]
        %v3109 = vld [vmem:[%s3069 + $0x138] sm:$0xff]
        %v3110 = vld [vmem:[%s3069 + $0x140] sm:$0xff]
        %v3111 = vld [vmem:[%s3069 + $0x148] sm:$0xff]
        %v3112 = vld [vmem:[%s3069 + $0x150] sm:$0xff]
        %v3113 = vld [vmem:[%s3069 + $0x158] sm:$0xff]
        %v3114 = vld [vmem:[%s3069 + $0x160] sm:$0xff]
        %v3115 = vld [vmem:[%s3069 + $0x168] sm:$0xff]
        %v3116 = vld [vmem:[%s3069 + $0x170] sm:$0xff]
        %v3117 = vld [vmem:[%s3069 + $0x178] sm:$0xff]
        %v3118 = vld [vmem:[%s3069 + $0x180] sm:$0xff]
        %v3119 = vld [vmem:[%s3069 + $0x188] sm:$0xff]
        %v3120 = vld [vmem:[%s3069 + $0x190] sm:$0xff]
        %v3121 = vld [vmem:[%s3069 + $0x198] sm:$0xff]
        %v3122 = vld [vmem:[%s3069 + $0x1a0] sm:$0xff]
        %v3123 = vld [vmem:[%s3069 + $0x1a8] sm:$0xff]
        %v3124 = vld [vmem:[%s3069 + $0x1b0] sm:$0xff]
        %v3125 = vld [vmem:[%s3069 + $0x1b8] sm:$0xff]
        %v3126 = vld [vmem:[%s3069 + $0x1c0] sm:$0xff]
        %v3127 = vld [vmem:[%s3069 + $0x1c8] sm:$0xff]
        %v3128 = vld [vmem:[%s3069 + $0x1d0] sm:$0xff]
        %v3129 = vld [vmem:[%s3069 + $0x1d8] sm:$0xff]
        %v3130 = vld [vmem:[%s3069 + $0x1e0] sm:$0xff]
        %v3131 = vld [vmem:[%s3069 + $0x1e8] sm:$0xff]
        %v3132 = vld [vmem:[%s3069 + $0x1f0] sm:$0xff]
        %v3133 = vld [vmem:[%s3069 + $0x1f8] sm:$0xff]
        %v3198 = vunpack.c.l.b16 %v3070
        %v3199 = vunpack.c.h.b16 %v3070
        %v3200 = vunpack.c.l.b16 %v3071
        %v3201 = vunpack.c.h.b16 %v3071
        %v3202 = vunpack.c.l.b16 %v3072
        %v3203 = vunpack.c.h.b16 %v3072
        %v3204 = vunpack.c.l.b16 %v3073
        %v3205 = vunpack.c.h.b16 %v3073
        %v3206 = vunpack.c.l.b16 %v3074
        %v3207 = vunpack.c.h.b16 %v3074
        %v3208 = vunpack.c.l.b16 %v3075
        %v3209 = vunpack.c.h.b16 %v3075
        %v3210 = vunpack.c.l.b16 %v3076
        %v3211 = vunpack.c.h.b16 %v3076
        %v3212 = vunpack.c.l.b16 %v3077
        %v3213 = vunpack.c.h.b16 %v3077
        %v3214 = vunpack.c.l.b16 %v3078
        %v3215 = vunpack.c.h.b16 %v3078
        %v3216 = vunpack.c.l.b16 %v3079
        %v3217 = vunpack.c.h.b16 %v3079
        %v3218 = vunpack.c.l.b16 %v3080
        %v3219 = vunpack.c.h.b16 %v3080
        %v3220 = vunpack.c.l.b16 %v3081
        %v3221 = vunpack.c.h.b16 %v3081
        %v3222 = vunpack.c.l.b16 %v3082
        %v3223 = vunpack.c.h.b16 %v3082
        %v3224 = vunpack.c.l.b16 %v3083
        %v3225 = vunpack.c.h.b16 %v3083
        %v3226 = vunpack.c.l.b16 %v3084
        %v3227 = vunpack.c.h.b16 %v3084
        %v3228 = vunpack.c.l.b16 %v3085
        %v3229 = vunpack.c.h.b16 %v3085
        %v3230 = vunpack.c.l.b16 %v3086
        %v3231 = vunpack.c.h.b16 %v3086
        %v3232 = vunpack.c.l.b16 %v3087
        %v3233 = vunpack.c.h.b16 %v3087
        %v3234 = vunpack.c.l.b16 %v3088
        %v3235 = vunpack.c.h.b16 %v3088
        %v3236 = vunpack.c.l.b16 %v3089
        %v3237 = vunpack.c.h.b16 %v3089
        %v3238 = vunpack.c.l.b16 %v3090
        %v3239 = vunpack.c.h.b16 %v3090
        %v3240 = vunpack.c.l.b16 %v3091
        %v3241 = vunpack.c.h.b16 %v3091
        %v3242 = vunpack.c.l.b16 %v3092
        %v3243 = vunpack.c.h.b16 %v3092
        %v3244 = vunpack.c.l.b16 %v3093
        %v3245 = vunpack.c.h.b16 %v3093
        %v3246 = vunpack.c.l.b16 %v3094
        %v3247 = vunpack.c.h.b16 %v3094
        %v3248 = vunpack.c.l.b16 %v3095
        %v3249 = vunpack.c.h.b16 %v3095
        %v3250 = vunpack.c.l.b16 %v3096
        %v3251 = vunpack.c.h.b16 %v3096
        %v3252 = vunpack.c.l.b16 %v3097
        %v3253 = vunpack.c.h.b16 %v3097
        %v3254 = vunpack.c.l.b16 %v3098
        %v3255 = vunpack.c.h.b16 %v3098
        %v3256 = vunpack.c.l.b16 %v3099
        %v3257 = vunpack.c.h.b16 %v3099
        %v3258 = vunpack.c.l.b16 %v3100
        %v3259 = vunpack.c.h.b16 %v3100
        %v3260 = vunpack.c.l.b16 %v3101
        %v3261 = vunpack.c.h.b16 %v3101
        %v3262 = vunpack.c.l.b16 %v3102
        %v3263 = vunpack.c.h.b16 %v3102
        %v3264 = vunpack.c.l.b16 %v3103
        %v3265 = vunpack.c.h.b16 %v3103
        %v3266 = vunpack.c.l.b16 %v3104
        %v3267 = vunpack.c.h.b16 %v3104
        %v3268 = vunpack.c.l.b16 %v3105
        %v3269 = vunpack.c.h.b16 %v3105
        %v3270 = vunpack.c.l.b16 %v3106
        %v3271 = vunpack.c.h.b16 %v3106
        %v3272 = vunpack.c.l.b16 %v3107
        %v3273 = vunpack.c.h.b16 %v3107
        %v3274 = vunpack.c.l.b16 %v3108
        %v3275 = vunpack.c.h.b16 %v3108
        %v3276 = vunpack.c.l.b16 %v3109
        %v3277 = vunpack.c.h.b16 %v3109
        %v3278 = vunpack.c.l.b16 %v3110
        %v3279 = vunpack.c.h.b16 %v3110
        %v3280 = vunpack.c.l.b16 %v3111
        %v3281 = vunpack.c.h.b16 %v3111
        %v3282 = vunpack.c.l.b16 %v3112
        %v3283 = vunpack.c.h.b16 %v3112
        %v3284 = vunpack.c.l.b16 %v3113
        %v3285 = vunpack.c.h.b16 %v3113
        %v3286 = vunpack.c.l.b16 %v3114
        %v3287 = vunpack.c.h.b16 %v3114
        %v3288 = vunpack.c.l.b16 %v3115
        %v3289 = vunpack.c.h.b16 %v3115
        %v3290 = vunpack.c.l.b16 %v3116
        %v3291 = vunpack.c.h.b16 %v3116
        %v3292 = vunpack.c.l.b16 %v3117
        %v3293 = vunpack.c.h.b16 %v3117
        %v3294 = vunpack.c.l.b16 %v3118
        %v3295 = vunpack.c.h.b16 %v3118
        %v3296 = vunpack.c.l.b16 %v3119
        %v3297 = vunpack.c.h.b16 %v3119
        %v3298 = vunpack.c.l.b16 %v3120
        %v3299 = vunpack.c.h.b16 %v3120
        %v3300 = vunpack.c.l.b16 %v3121
        %v3301 = vunpack.c.h.b16 %v3121
        %v3302 = vunpack.c.l.b16 %v3122
        %v3303 = vunpack.c.h.b16 %v3122
        %v3304 = vunpack.c.l.b16 %v3123
        %v3305 = vunpack.c.h.b16 %v3123
        %v3306 = vunpack.c.l.b16 %v3124
        %v3307 = vunpack.c.h.b16 %v3124
        %v3308 = vunpack.c.l.b16 %v3125
        %v3309 = vunpack.c.h.b16 %v3125
        %v3310 = vunpack.c.l.b16 %v3126
        %v3311 = vunpack.c.h.b16 %v3126
        %v3312 = vunpack.c.l.b16 %v3127
        %v3313 = vunpack.c.h.b16 %v3127
        %v3314 = vunpack.c.l.b16 %v3128
        %v3315 = vunpack.c.h.b16 %v3128
        %v3316 = vunpack.c.l.b16 %v3129
        %v3317 = vunpack.c.h.b16 %v3129
        %v3318 = vunpack.c.l.b16 %v3130
        %v3319 = vunpack.c.h.b16 %v3130
        %v3320 = vunpack.c.l.b16 %v3131
        %v3321 = vunpack.c.h.b16 %v3131
        %v3322 = vunpack.c.l.b16 %v3132
        %v3323 = vunpack.c.h.b16 %v3132
        %v3324 = vunpack.c.l.b16 %v3133
        %v3325 = vunpack.c.h.b16 %v3133
        %v3326 = vpack.c.b16 %v3206, %v3198
        %v3327 = vpack.c.b16 %v3207, %v3199
        %v3328 = vpack.c.b16 %v3208, %v3200
        %v3329 = vpack.c.b16 %v3209, %v3201
        %v3330 = vpack.c.b16 %v3210, %v3202
        %v3331 = vpack.c.b16 %v3211, %v3203
        %v3332 = vpack.c.b16 %v3212, %v3204
        %v3333 = vpack.c.b16 %v3213, %v3205
        %v3334 = vpack.c.b16 %v3222, %v3214
        %v3335 = vpack.c.b16 %v3223, %v3215
        %v3336 = vpack.c.b16 %v3224, %v3216
        %v3337 = vpack.c.b16 %v3225, %v3217
        %v3338 = vpack.c.b16 %v3226, %v3218
        %v3339 = vpack.c.b16 %v3227, %v3219
        %v3340 = vpack.c.b16 %v3228, %v3220
        %v3341 = vpack.c.b16 %v3229, %v3221
        %v3342 = vpack.c.b16 %v3238, %v3230
        %v3343 = vpack.c.b16 %v3239, %v3231
        %v3344 = vpack.c.b16 %v3240, %v3232
        %v3345 = vpack.c.b16 %v3241, %v3233
        %v3346 = vpack.c.b16 %v3242, %v3234
        %v3347 = vpack.c.b16 %v3243, %v3235
        %v3348 = vpack.c.b16 %v3244, %v3236
        %v3349 = vpack.c.b16 %v3245, %v3237
        %v3350 = vpack.c.b16 %v3254, %v3246
        %v3351 = vpack.c.b16 %v3255, %v3247
        %v3352 = vpack.c.b16 %v3256, %v3248
        %v3353 = vpack.c.b16 %v3257, %v3249
        %v3354 = vpack.c.b16 %v3258, %v3250
        %v3355 = vpack.c.b16 %v3259, %v3251
        %v3356 = vpack.c.b16 %v3260, %v3252
        %v3357 = vpack.c.b16 %v3261, %v3253
        %v3358 = vpack.c.b16 %v3270, %v3262
        %v3359 = vpack.c.b16 %v3271, %v3263
        %v3360 = vpack.c.b16 %v3272, %v3264
        %v3361 = vpack.c.b16 %v3273, %v3265
        %v3362 = vpack.c.b16 %v3274, %v3266
        %v3363 = vpack.c.b16 %v3275, %v3267
        %v3364 = vpack.c.b16 %v3276, %v3268
        %v3365 = vpack.c.b16 %v3277, %v3269
        %v3366 = vpack.c.b16 %v3286, %v3278
        %v3367 = vpack.c.b16 %v3287, %v3279
        %v3368 = vpack.c.b16 %v3288, %v3280
        %v3369 = vpack.c.b16 %v3289, %v3281
        %v3370 = vpack.c.b16 %v3290, %v3282
        %v3371 = vpack.c.b16 %v3291, %v3283
        %v3372 = vpack.c.b16 %v3292, %v3284
        %v3373 = vpack.c.b16 %v3293, %v3285
        %v3374 = vpack.c.b16 %v3302, %v3294
        %v3375 = vpack.c.b16 %v3303, %v3295
        %v3376 = vpack.c.b16 %v3304, %v3296
        %v3377 = vpack.c.b16 %v3305, %v3297
        %v3378 = vpack.c.b16 %v3306, %v3298
        %v3379 = vpack.c.b16 %v3307, %v3299
        %v3380 = vpack.c.b16 %v3308, %v3300
        %v3381 = vpack.c.b16 %v3309, %v3301
        %v3382 = vpack.c.b16 %v3318, %v3310
        %v3383 = vpack.c.b16 %v3319, %v3311
        %v3384 = vpack.c.b16 %v3320, %v3312
        %v3385 = vpack.c.b16 %v3321, %v3313
        %v3386 = vpack.c.b16 %v3322, %v3314
        %v3387 = vpack.c.b16 %v3323, %v3315
        %v3388 = vpack.c.b16 %v3324, %v3316
        %v3389 = vpack.c.b16 %v3325, %v3317
        %3454 = vmatpush.bf16.msra.mxu0 %v3382
        %3455 = vmatpush.bf16.msra.mxu0 %v3374
        %3456 = vmatpush.bf16.msra.mxu0 %v3366
        %3457 = vmatpush.bf16.msra.mxu0 %v3358
        %3458 = vmatpush.bf16.msra.mxu0 %v3350
        %3459 = vmatpush.bf16.msra.mxu0 %v3342
        %3460 = vmatpush.bf16.msra.mxu0 %v3334
        %3461 = vmatpush.bf16.msra.mxu0 %v3326
        %3462 = vmatmul.bf16.gmra.mxu0 %v3068
        %v3463 = vpop.f32.mrf.mxu0
        %v3464 = vadd.f32 0.0, %v3463
        %v3465 = vpop.f32.mrf.mxu0
        %3466 = vdwg.mxu0
        %3467 = vmatpush.bf16.msra.mxu0 %v3383
        %3468 = vmatpush.bf16.msra.mxu0 %v3375
        %3469 = vmatpush.bf16.msra.mxu0 %v3367
        %3470 = vmatpush.bf16.msra.mxu0 %v3359
        %3471 = vmatpush.bf16.msra.mxu0 %v3351
        %3472 = vmatpush.bf16.msra.mxu0 %v3343
        %3473 = vmatpush.bf16.msra.mxu0 %v3335
        %3474 = vmatpush.bf16.msra.mxu0 %v3327
        %3475 = vmatmul.bf16.gmra.mxu0 %v3068
        %v3476 = vpop.f32.mrf.mxu0
        %v3477 = vadd.f32 0.0, %v3476
        %v3478 = vpop.f32.mrf.mxu0
        %3479 = vdwg.mxu0
        %3480 = vmatpush.bf16.msra.mxu0 %v3384
        %3481 = vmatpush.bf16.msra.mxu0 %v3376
        %3482 = vmatpush.bf16.msra.mxu0 %v3368
        %3483 = vmatpush.bf16.msra.mxu0 %v3360
        %3484 = vmatpush.bf16.msra.mxu0 %v3352
        %3485 = vmatpush.bf16.msra.mxu0 %v3344
        %3486 = vmatpush.bf16.msra.mxu0 %v3336
        %3487 = vmatpush.bf16.msra.mxu0 %v3328
        %3488 = vmatmul.bf16.gmra.mxu0 %v3068
        %v3489 = vpop.f32.mrf.mxu0
        %v3490 = vadd.f32 0.0, %v3489
        %v3491 = vpop.f32.mrf.mxu0
        %3492 = vdwg.mxu0
        %3493 = vmatpush.bf16.msra.mxu0 %v3385
        %3494 = vmatpush.bf16.msra.mxu0 %v3377
        %3495 = vmatpush.bf16.msra.mxu0 %v3369
        %3496 = vmatpush.bf16.msra.mxu0 %v3361
        %3497 = vmatpush.bf16.msra.mxu0 %v3353
        %3498 = vmatpush.bf16.msra.mxu0 %v3345
        %3499 = vmatpush.bf16.msra.mxu0 %v3337
        %3500 = vmatpush.bf16.msra.mxu0 %v3329
        %3501 = vmatmul.bf16.gmra.mxu0 %v3068
        %v3502 = vpop.f32.mrf.mxu0
        %v3503 = vadd.f32 0.0, %v3502
        %v3504 = vpop.f32.mrf.mxu0
        %3505 = vdwg.mxu0
        %3506 = vmatpush.bf16.msra.mxu0 %v3386
        %3507 = vmatpush.bf16.msra.mxu0 %v3378
        %3508 = vmatpush.bf16.msra.mxu0 %v3370
        %3509 = vmatpush.bf16.msra.mxu0 %v3362
        %3510 = vmatpush.bf16.msra.mxu0 %v3354
        %3511 = vmatpush.bf16.msra.mxu0 %v3346
        %3512 = vmatpush.bf16.msra.mxu0 %v3338
        %3513 = vmatpush.bf16.msra.mxu0 %v3330
        %3514 = vmatmul.bf16.gmra.mxu0 %v3068
        %v3515 = vpop.f32.mrf.mxu0
        %v3516 = vadd.f32 0.0, %v3515
        %v3517 = vpop.f32.mrf.mxu0
        %3518 = vdwg.mxu0
        %3519 = vmatpush.bf16.msra.mxu0 %v3387
        %3520 = vmatpush.bf16.msra.mxu0 %v3379
        %3521 = vmatpush.bf16.msra.mxu0 %v3371
        %3522 = vmatpush.bf16.msra.mxu0 %v3363
        %3523 = vmatpush.bf16.msra.mxu0 %v3355
        %3524 = vmatpush.bf16.msra.mxu0 %v3347
        %3525 = vmatpush.bf16.msra.mxu0 %v3339
        %3526 = vmatpush.bf16.msra.mxu0 %v3331
        %3527 = vmatmul.bf16.gmra.mxu0 %v3068
        %v3528 = vpop.f32.mrf.mxu0
        %v3529 = vadd.f32 0.0, %v3528
        %v3530 = vpop.f32.mrf.mxu0
        %3531 = vdwg.mxu0
        %3532 = vmatpush.bf16.msra.mxu0 %v3388
        %3533 = vmatpush.bf16.msra.mxu0 %v3380
        %3534 = vmatpush.bf16.msra.mxu0 %v3372
        %3535 = vmatpush.bf16.msra.mxu0 %v3364
        %3536 = vmatpush.bf16.msra.mxu0 %v3356
        %3537 = vmatpush.bf16.msra.mxu0 %v3348
        %3538 = vmatpush.bf16.msra.mxu0 %v3340
        %3539 = vmatpush.bf16.msra.mxu0 %v3332
        %3540 = vmatmul.bf16.gmra.mxu0 %v3068
        %v3541 = vpop.f32.mrf.mxu0
        %v3542 = vadd.f32 0.0, %v3541
        %v3543 = vpop.f32.mrf.mxu0
        %3544 = vdwg.mxu0
        %3545 = vmatpush.bf16.msra.mxu0 %v3389
        %3546 = vmatpush.bf16.msra.mxu0 %v3381
        %3547 = vmatpush.bf16.msra.mxu0 %v3373
        %3548 = vmatpush.bf16.msra.mxu0 %v3365
        %3549 = vmatpush.bf16.msra.mxu0 %v3357
        %3550 = vmatpush.bf16.msra.mxu0 %v3349
        %3551 = vmatpush.bf16.msra.mxu0 %v3341
        %3552 = vmatpush.bf16.msra.mxu0 %v3333
        %3553 = vmatmul.bf16.gmra.mxu0 %v3068
        %v3554 = vpop.f32.mrf.mxu0
        %v3555 = vadd.f32 0.0, %v3554
        %v3556 = vpop.f32.mrf.mxu0
        %3557 = vdwg.mxu0
        %p3558 = scmp.gt.s32.totalorder %s3058, 0
        %s3559 = scalar_select %p3558, %s3058, 0
        %p3560 = scmp.lt.s32.totalorder %s3559, 128
        %s3561 = scalar_select %p3560, %s3559, 128
        %p3562 = scmp.gt.s32.totalorder %s3561, %s3060
        %s3563 = scalar_select %p3562, %s3561, %s3060
        %p3564 = scmp.lt.s32.totalorder %s3563, 128
        %s3565 = scalar_select %p3564, %s3563, 128
        %s3566 = ssub.s32 %s3565, %s3561
        %s3567 = scvt.s32.f32 %s3566
        %v3568 = vstv %s3567
        %v3569 = vrcp.pop %v3568
        %v3570 = vmul.f32 %v3568, %v3569
        %v3571 = vsub.f32 1.0, %v3570
        %v3572 = vmul.f32 %v3569, %v3571
        %v3573 = vadd.f32 %v3569, %v3572
        %vm3574 = vweird.f32 %v3568
        %vm3575 = vweird.f32 %v3569
        %vm3576 = vmor %vm3574, %vm3575
        %v3577 = vsel %vm3576, %v3569, %v3573
        %v3578 = vand.u32 2147483647, %v3568
        %vm3579 = vcmp.eq.f32.partialorder %v3578, 8.507059e+37
        %v3580 = vand.u32 %v3568, 2147483648
        %v3581 = vor.u32 1.1754944e-38, %v3580
        %v3582 = vsel %vm3579, %v3581, %v3577
        %s3583 = vtos %v3582
        %v3584 = vstv %s3583
        %v3585 = vmul.f32 %v3464, %v3584
        %v3586 = vmul.f32 %v3477, %v3584
        %v3587 = vmul.f32 %v3490, %v3584
        %v3588 = vmul.f32 %v3503, %v3584
        %v3589 = vmul.f32 %v3516, %v3584
        %v3590 = vmul.f32 %v3529, %v3584
        %v3591 = vmul.f32 %v3542, %v3584
        %v3592 = vmul.f32 %v3555, %v3584
        %v3601 = vrot.slane %v3586, 7
        %v3602 = vrot.slane %v3587, 6
        %v3603 = vrot.slane %v3588, 5
        %v3604 = vrot.slane %v3589, 4
        %v3605 = vrot.slane %v3590, 3
        %v3606 = vrot.slane %v3591, 2
        %v3607 = vrot.slane %v3592, 1
        %v3608 = vsel %vm787, %v3585, %v3601
        %v3609 = vsel %vm789, %v3602, %v3603
        %v3610 = vsel %vm791, %v3608, %v3609
        %v3611 = vsel %vm793, %v3604, %v3605
        %v3612 = vsel %vm795, %v3606, %v3607
        %v3613 = vsel %vm797, %v3611, %v3612
        %v3614 = vsel %vm799, %v3610, %v3613
        %s3616 = scalar_lea.vmem [#allocation2], 5
        %3617 = vst [vmem:[%s3616] ss:$8 sm:$0xf] %v3614
        %3618 = vst [vmem:[%s3616] ss:$8 sm:$0xf0] %v3614
        %s3619 = sadd.s32 %s236, 6
        %s3620 = smul.u32 %s3619, 128
        %s3621 = sld [smem:[#allocation4 + %s3620]]
        %s3622 = sadd.s32 %s3620, 1
        %s3623 = sld [smem:[#allocation4 + %s3622]]
        %v3624 = vstv %s3621
        %vm3625 = vcmp.ge.s32.totalorder %v235, %v3624
        %v3626 = vstv %s3623
        %vm3627 = vcmp.lt.s32.totalorder %v235, %v3626
        %vm3628 = vmand %vm3625, %vm3627
        %v3629 = vsel %vm3628, 1, 0
        %v3630 = vcvt.s32.f32 %v3629
        %v3631 = vpack.c.bf16 %v3630, %v3630
        %s3632 = scalar_lea.vmem %s198, 3072 [#allocation5]
        %v3633 = vld [vmem:[%s3632] sm:$0xff]
        %v3634 = vld [vmem:[%s3632 + $0x8] sm:$0xff]
        %v3635 = vld [vmem:[%s3632 + $0x10] sm:$0xff]
        %v3636 = vld [vmem:[%s3632 + $0x18] sm:$0xff]
        %v3637 = vld [vmem:[%s3632 + $0x20] sm:$0xff]
        %v3638 = vld [vmem:[%s3632 + $0x28] sm:$0xff]
        %v3639 = vld [vmem:[%s3632 + $0x30] sm:$0xff]
        %v3640 = vld [vmem:[%s3632 + $0x38] sm:$0xff]
        %v3641 = vld [vmem:[%s3632 + $0x40] sm:$0xff]
        %v3642 = vld [vmem:[%s3632 + $0x48] sm:$0xff]
        %v3643 = vld [vmem:[%s3632 + $0x50] sm:$0xff]
        %v3644 = vld [vmem:[%s3632 + $0x58] sm:$0xff]
        %v3645 = vld [vmem:[%s3632 + $0x60] sm:$0xff]
        %v3646 = vld [vmem:[%s3632 + $0x68] sm:$0xff]
        %v3647 = vld [vmem:[%s3632 + $0x70] sm:$0xff]
        %v3648 = vld [vmem:[%s3632 + $0x78] sm:$0xff]
        %v3649 = vld [vmem:[%s3632 + $0x80] sm:$0xff]
        %v3650 = vld [vmem:[%s3632 + $0x88] sm:$0xff]
        %v3651 = vld [vmem:[%s3632 + $0x90] sm:$0xff]
        %v3652 = vld [vmem:[%s3632 + $0x98] sm:$0xff]
        %v3653 = vld [vmem:[%s3632 + $0xa0] sm:$0xff]
        %v3654 = vld [vmem:[%s3632 + $0xa8] sm:$0xff]
        %v3655 = vld [vmem:[%s3632 + $0xb0] sm:$0xff]
        %v3656 = vld [vmem:[%s3632 + $0xb8] sm:$0xff]
        %v3657 = vld [vmem:[%s3632 + $0xc0] sm:$0xff]
        %v3658 = vld [vmem:[%s3632 + $0xc8] sm:$0xff]
        %v3659 = vld [vmem:[%s3632 + $0xd0] sm:$0xff]
        %v3660 = vld [vmem:[%s3632 + $0xd8] sm:$0xff]
        %v3661 = vld [vmem:[%s3632 + $0xe0] sm:$0xff]
        %v3662 = vld [vmem:[%s3632 + $0xe8] sm:$0xff]
        %v3663 = vld [vmem:[%s3632 + $0xf0] sm:$0xff]
        %v3664 = vld [vmem:[%s3632 + $0xf8] sm:$0xff]
        %v3665 = vld [vmem:[%s3632 + $0x100] sm:$0xff]
        %v3666 = vld [vmem:[%s3632 + $0x108] sm:$0xff]
        %v3667 = vld [vmem:[%s3632 + $0x110] sm:$0xff]
        %v3668 = vld [vmem:[%s3632 + $0x118] sm:$0xff]
        %v3669 = vld [vmem:[%s3632 + $0x120] sm:$0xff]
        %v3670 = vld [vmem:[%s3632 + $0x128] sm:$0xff]
        %v3671 = vld [vmem:[%s3632 + $0x130] sm:$0xff]
        %v3672 = vld [vmem:[%s3632 + $0x138] sm:$0xff]
        %v3673 = vld [vmem:[%s3632 + $0x140] sm:$0xff]
        %v3674 = vld [vmem:[%s3632 + $0x148] sm:$0xff]
        %v3675 = vld [vmem:[%s3632 + $0x150] sm:$0xff]
        %v3676 = vld [vmem:[%s3632 + $0x158] sm:$0xff]
        %v3677 = vld [vmem:[%s3632 + $0x160] sm:$0xff]
        %v3678 = vld [vmem:[%s3632 + $0x168] sm:$0xff]
        %v3679 = vld [vmem:[%s3632 + $0x170] sm:$0xff]
        %v3680 = vld [vmem:[%s3632 + $0x178] sm:$0xff]
        %v3681 = vld [vmem:[%s3632 + $0x180] sm:$0xff]
        %v3682 = vld [vmem:[%s3632 + $0x188] sm:$0xff]
        %v3683 = vld [vmem:[%s3632 + $0x190] sm:$0xff]
        %v3684 = vld [vmem:[%s3632 + $0x198] sm:$0xff]
        %v3685 = vld [vmem:[%s3632 + $0x1a0] sm:$0xff]
        %v3686 = vld [vmem:[%s3632 + $0x1a8] sm:$0xff]
        %v3687 = vld [vmem:[%s3632 + $0x1b0] sm:$0xff]
        %v3688 = vld [vmem:[%s3632 + $0x1b8] sm:$0xff]
        %v3689 = vld [vmem:[%s3632 + $0x1c0] sm:$0xff]
        %v3690 = vld [vmem:[%s3632 + $0x1c8] sm:$0xff]
        %v3691 = vld [vmem:[%s3632 + $0x1d0] sm:$0xff]
        %v3692 = vld [vmem:[%s3632 + $0x1d8] sm:$0xff]
        %v3693 = vld [vmem:[%s3632 + $0x1e0] sm:$0xff]
        %v3694 = vld [vmem:[%s3632 + $0x1e8] sm:$0xff]
        %v3695 = vld [vmem:[%s3632 + $0x1f0] sm:$0xff]
        %v3696 = vld [vmem:[%s3632 + $0x1f8] sm:$0xff]
        %v3761 = vunpack.c.l.b16 %v3633
        %v3762 = vunpack.c.h.b16 %v3633
        %v3763 = vunpack.c.l.b16 %v3634
        %v3764 = vunpack.c.h.b16 %v3634
        %v3765 = vunpack.c.l.b16 %v3635
        %v3766 = vunpack.c.h.b16 %v3635
        %v3767 = vunpack.c.l.b16 %v3636
        %v3768 = vunpack.c.h.b16 %v3636
        %v3769 = vunpack.c.l.b16 %v3637
        %v3770 = vunpack.c.h.b16 %v3637
        %v3771 = vunpack.c.l.b16 %v3638
        %v3772 = vunpack.c.h.b16 %v3638
        %v3773 = vunpack.c.l.b16 %v3639
        %v3774 = vunpack.c.h.b16 %v3639
        %v3775 = vunpack.c.l.b16 %v3640
        %v3776 = vunpack.c.h.b16 %v3640
        %v3777 = vunpack.c.l.b16 %v3641
        %v3778 = vunpack.c.h.b16 %v3641
        %v3779 = vunpack.c.l.b16 %v3642
        %v3780 = vunpack.c.h.b16 %v3642
        %v3781 = vunpack.c.l.b16 %v3643
        %v3782 = vunpack.c.h.b16 %v3643
        %v3783 = vunpack.c.l.b16 %v3644
        %v3784 = vunpack.c.h.b16 %v3644
        %v3785 = vunpack.c.l.b16 %v3645
        %v3786 = vunpack.c.h.b16 %v3645
        %v3787 = vunpack.c.l.b16 %v3646
        %v3788 = vunpack.c.h.b16 %v3646
        %v3789 = vunpack.c.l.b16 %v3647
        %v3790 = vunpack.c.h.b16 %v3647
        %v3791 = vunpack.c.l.b16 %v3648
        %v3792 = vunpack.c.h.b16 %v3648
        %v3793 = vunpack.c.l.b16 %v3649
        %v3794 = vunpack.c.h.b16 %v3649
        %v3795 = vunpack.c.l.b16 %v3650
        %v3796 = vunpack.c.h.b16 %v3650
        %v3797 = vunpack.c.l.b16 %v3651
        %v3798 = vunpack.c.h.b16 %v3651
        %v3799 = vunpack.c.l.b16 %v3652
        %v3800 = vunpack.c.h.b16 %v3652
        %v3801 = vunpack.c.l.b16 %v3653
        %v3802 = vunpack.c.h.b16 %v3653
        %v3803 = vunpack.c.l.b16 %v3654
        %v3804 = vunpack.c.h.b16 %v3654
        %v3805 = vunpack.c.l.b16 %v3655
        %v3806 = vunpack.c.h.b16 %v3655
        %v3807 = vunpack.c.l.b16 %v3656
        %v3808 = vunpack.c.h.b16 %v3656
        %v3809 = vunpack.c.l.b16 %v3657
        %v3810 = vunpack.c.h.b16 %v3657
        %v3811 = vunpack.c.l.b16 %v3658
        %v3812 = vunpack.c.h.b16 %v3658
        %v3813 = vunpack.c.l.b16 %v3659
        %v3814 = vunpack.c.h.b16 %v3659
        %v3815 = vunpack.c.l.b16 %v3660
        %v3816 = vunpack.c.h.b16 %v3660
        %v3817 = vunpack.c.l.b16 %v3661
        %v3818 = vunpack.c.h.b16 %v3661
        %v3819 = vunpack.c.l.b16 %v3662
        %v3820 = vunpack.c.h.b16 %v3662
        %v3821 = vunpack.c.l.b16 %v3663
        %v3822 = vunpack.c.h.b16 %v3663
        %v3823 = vunpack.c.l.b16 %v3664
        %v3824 = vunpack.c.h.b16 %v3664
        %v3825 = vunpack.c.l.b16 %v3665
        %v3826 = vunpack.c.h.b16 %v3665
        %v3827 = vunpack.c.l.b16 %v3666
        %v3828 = vunpack.c.h.b16 %v3666
        %v3829 = vunpack.c.l.b16 %v3667
        %v3830 = vunpack.c.h.b16 %v3667
        %v3831 = vunpack.c.l.b16 %v3668
        %v3832 = vunpack.c.h.b16 %v3668
        %v3833 = vunpack.c.l.b16 %v3669
        %v3834 = vunpack.c.h.b16 %v3669
        %v3835 = vunpack.c.l.b16 %v3670
        %v3836 = vunpack.c.h.b16 %v3670
        %v3837 = vunpack.c.l.b16 %v3671
        %v3838 = vunpack.c.h.b16 %v3671
        %v3839 = vunpack.c.l.b16 %v3672
        %v3840 = vunpack.c.h.b16 %v3672
        %v3841 = vunpack.c.l.b16 %v3673
        %v3842 = vunpack.c.h.b16 %v3673
        %v3843 = vunpack.c.l.b16 %v3674
        %v3844 = vunpack.c.h.b16 %v3674
        %v3845 = vunpack.c.l.b16 %v3675
        %v3846 = vunpack.c.h.b16 %v3675
        %v3847 = vunpack.c.l.b16 %v3676
        %v3848 = vunpack.c.h.b16 %v3676
        %v3849 = vunpack.c.l.b16 %v3677
        %v3850 = vunpack.c.h.b16 %v3677
        %v3851 = vunpack.c.l.b16 %v3678
        %v3852 = vunpack.c.h.b16 %v3678
        %v3853 = vunpack.c.l.b16 %v3679
        %v3854 = vunpack.c.h.b16 %v3679
        %v3855 = vunpack.c.l.b16 %v3680
        %v3856 = vunpack.c.h.b16 %v3680
        %v3857 = vunpack.c.l.b16 %v3681
        %v3858 = vunpack.c.h.b16 %v3681
        %v3859 = vunpack.c.l.b16 %v3682
        %v3860 = vunpack.c.h.b16 %v3682
        %v3861 = vunpack.c.l.b16 %v3683
        %v3862 = vunpack.c.h.b16 %v3683
        %v3863 = vunpack.c.l.b16 %v3684
        %v3864 = vunpack.c.h.b16 %v3684
        %v3865 = vunpack.c.l.b16 %v3685
        %v3866 = vunpack.c.h.b16 %v3685
        %v3867 = vunpack.c.l.b16 %v3686
        %v3868 = vunpack.c.h.b16 %v3686
        %v3869 = vunpack.c.l.b16 %v3687
        %v3870 = vunpack.c.h.b16 %v3687
        %v3871 = vunpack.c.l.b16 %v3688
        %v3872 = vunpack.c.h.b16 %v3688
        %v3873 = vunpack.c.l.b16 %v3689
        %v3874 = vunpack.c.h.b16 %v3689
        %v3875 = vunpack.c.l.b16 %v3690
        %v3876 = vunpack.c.h.b16 %v3690
        %v3877 = vunpack.c.l.b16 %v3691
        %v3878 = vunpack.c.h.b16 %v3691
        %v3879 = vunpack.c.l.b16 %v3692
        %v3880 = vunpack.c.h.b16 %v3692
        %v3881 = vunpack.c.l.b16 %v3693
        %v3882 = vunpack.c.h.b16 %v3693
        %v3883 = vunpack.c.l.b16 %v3694
        %v3884 = vunpack.c.h.b16 %v3694
        %v3885 = vunpack.c.l.b16 %v3695
        %v3886 = vunpack.c.h.b16 %v3695
        %v3887 = vunpack.c.l.b16 %v3696
        %v3888 = vunpack.c.h.b16 %v3696
        %v3889 = vpack.c.b16 %v3769, %v3761
        %v3890 = vpack.c.b16 %v3770, %v3762
        %v3891 = vpack.c.b16 %v3771, %v3763
        %v3892 = vpack.c.b16 %v3772, %v3764
        %v3893 = vpack.c.b16 %v3773, %v3765
        %v3894 = vpack.c.b16 %v3774, %v3766
        %v3895 = vpack.c.b16 %v3775, %v3767
        %v3896 = vpack.c.b16 %v3776, %v3768
        %v3897 = vpack.c.b16 %v3785, %v3777
        %v3898 = vpack.c.b16 %v3786, %v3778
        %v3899 = vpack.c.b16 %v3787, %v3779
        %v3900 = vpack.c.b16 %v3788, %v3780
        %v3901 = vpack.c.b16 %v3789, %v3781
        %v3902 = vpack.c.b16 %v3790, %v3782
        %v3903 = vpack.c.b16 %v3791, %v3783
        %v3904 = vpack.c.b16 %v3792, %v3784
        %v3905 = vpack.c.b16 %v3801, %v3793
        %v3906 = vpack.c.b16 %v3802, %v3794
        %v3907 = vpack.c.b16 %v3803, %v3795
        %v3908 = vpack.c.b16 %v3804, %v3796
        %v3909 = vpack.c.b16 %v3805, %v3797
        %v3910 = vpack.c.b16 %v3806, %v3798
        %v3911 = vpack.c.b16 %v3807, %v3799
        %v3912 = vpack.c.b16 %v3808, %v3800
        %v3913 = vpack.c.b16 %v3817, %v3809
        %v3914 = vpack.c.b16 %v3818, %v3810
        %v3915 = vpack.c.b16 %v3819, %v3811
        %v3916 = vpack.c.b16 %v3820, %v3812
        %v3917 = vpack.c.b16 %v3821, %v3813
        %v3918 = vpack.c.b16 %v3822, %v3814
        %v3919 = vpack.c.b16 %v3823, %v3815
        %v3920 = vpack.c.b16 %v3824, %v3816
        %v3921 = vpack.c.b16 %v3833, %v3825
        %v3922 = vpack.c.b16 %v3834, %v3826
        %v3923 = vpack.c.b16 %v3835, %v3827
        %v3924 = vpack.c.b16 %v3836, %v3828
        %v3925 = vpack.c.b16 %v3837, %v3829
        %v3926 = vpack.c.b16 %v3838, %v3830
        %v3927 = vpack.c.b16 %v3839, %v3831
        %v3928 = vpack.c.b16 %v3840, %v3832
        %v3929 = vpack.c.b16 %v3849, %v3841
        %v3930 = vpack.c.b16 %v3850, %v3842
        %v3931 = vpack.c.b16 %v3851, %v3843
        %v3932 = vpack.c.b16 %v3852, %v3844
        %v3933 = vpack.c.b16 %v3853, %v3845
        %v3934 = vpack.c.b16 %v3854, %v3846
        %v3935 = vpack.c.b16 %v3855, %v3847
        %v3936 = vpack.c.b16 %v3856, %v3848
        %v3937 = vpack.c.b16 %v3865, %v3857
        %v3938 = vpack.c.b16 %v3866, %v3858
        %v3939 = vpack.c.b16 %v3867, %v3859
        %v3940 = vpack.c.b16 %v3868, %v3860
        %v3941 = vpack.c.b16 %v3869, %v3861
        %v3942 = vpack.c.b16 %v3870, %v3862
        %v3943 = vpack.c.b16 %v3871, %v3863
        %v3944 = vpack.c.b16 %v3872, %v3864
        %v3945 = vpack.c.b16 %v3881, %v3873
        %v3946 = vpack.c.b16 %v3882, %v3874
        %v3947 = vpack.c.b16 %v3883, %v3875
        %v3948 = vpack.c.b16 %v3884, %v3876
        %v3949 = vpack.c.b16 %v3885, %v3877
        %v3950 = vpack.c.b16 %v3886, %v3878
        %v3951 = vpack.c.b16 %v3887, %v3879
        %v3952 = vpack.c.b16 %v3888, %v3880
        %4017 = vmatpush.bf16.msra.mxu0 %v3945
        %4018 = vmatpush.bf16.msra.mxu0 %v3937
        %4019 = vmatpush.bf16.msra.mxu0 %v3929
        %4020 = vmatpush.bf16.msra.mxu0 %v3921
        %4021 = vmatpush.bf16.msra.mxu0 %v3913
        %4022 = vmatpush.bf16.msra.mxu0 %v3905
        %4023 = vmatpush.bf16.msra.mxu0 %v3897
        %4024 = vmatpush.bf16.msra.mxu0 %v3889
        %4025 = vmatmul.bf16.gmra.mxu0 %v3631
        %v4026 = vpop.f32.mrf.mxu0
        %v4027 = vadd.f32 0.0, %v4026
        %v4028 = vpop.f32.mrf.mxu0
        %4029 = vdwg.mxu0
        %4030 = vmatpush.bf16.msra.mxu0 %v3946
        %4031 = vmatpush.bf16.msra.mxu0 %v3938
        %4032 = vmatpush.bf16.msra.mxu0 %v3930
        %4033 = vmatpush.bf16.msra.mxu0 %v3922
        %4034 = vmatpush.bf16.msra.mxu0 %v3914
        %4035 = vmatpush.bf16.msra.mxu0 %v3906
        %4036 = vmatpush.bf16.msra.mxu0 %v3898
        %4037 = vmatpush.bf16.msra.mxu0 %v3890
        %4038 = vmatmul.bf16.gmra.mxu0 %v3631
        %v4039 = vpop.f32.mrf.mxu0
        %v4040 = vadd.f32 0.0, %v4039
        %v4041 = vpop.f32.mrf.mxu0
        %4042 = vdwg.mxu0
        %4043 = vmatpush.bf16.msra.mxu0 %v3947
        %4044 = vmatpush.bf16.msra.mxu0 %v3939
        %4045 = vmatpush.bf16.msra.mxu0 %v3931
        %4046 = vmatpush.bf16.msra.mxu0 %v3923
        %4047 = vmatpush.bf16.msra.mxu0 %v3915
        %4048 = vmatpush.bf16.msra.mxu0 %v3907
        %4049 = vmatpush.bf16.msra.mxu0 %v3899
        %4050 = vmatpush.bf16.msra.mxu0 %v3891
        %4051 = vmatmul.bf16.gmra.mxu0 %v3631
        %v4052 = vpop.f32.mrf.mxu0
        %v4053 = vadd.f32 0.0, %v4052
        %v4054 = vpop.f32.mrf.mxu0
        %4055 = vdwg.mxu0
        %4056 = vmatpush.bf16.msra.mxu0 %v3948
        %4057 = vmatpush.bf16.msra.mxu0 %v3940
        %4058 = vmatpush.bf16.msra.mxu0 %v3932
        %4059 = vmatpush.bf16.msra.mxu0 %v3924
        %4060 = vmatpush.bf16.msra.mxu0 %v3916
        %4061 = vmatpush.bf16.msra.mxu0 %v3908
        %4062 = vmatpush.bf16.msra.mxu0 %v3900
        %4063 = vmatpush.bf16.msra.mxu0 %v3892
        %4064 = vmatmul.bf16.gmra.mxu0 %v3631
        %v4065 = vpop.f32.mrf.mxu0
        %v4066 = vadd.f32 0.0, %v4065
        %v4067 = vpop.f32.mrf.mxu0
        %4068 = vdwg.mxu0
        %4069 = vmatpush.bf16.msra.mxu0 %v3949
        %4070 = vmatpush.bf16.msra.mxu0 %v3941
        %4071 = vmatpush.bf16.msra.mxu0 %v3933
        %4072 = vmatpush.bf16.msra.mxu0 %v3925
        %4073 = vmatpush.bf16.msra.mxu0 %v3917
        %4074 = vmatpush.bf16.msra.mxu0 %v3909
        %4075 = vmatpush.bf16.msra.mxu0 %v3901
        %4076 = vmatpush.bf16.msra.mxu0 %v3893
        %4077 = vmatmul.bf16.gmra.mxu0 %v3631
        %v4078 = vpop.f32.mrf.mxu0
        %v4079 = vadd.f32 0.0, %v4078
        %v4080 = vpop.f32.mrf.mxu0
        %4081 = vdwg.mxu0
        %4082 = vmatpush.bf16.msra.mxu0 %v3950
        %4083 = vmatpush.bf16.msra.mxu0 %v3942
        %4084 = vmatpush.bf16.msra.mxu0 %v3934
        %4085 = vmatpush.bf16.msra.mxu0 %v3926
        %4086 = vmatpush.bf16.msra.mxu0 %v3918
        %4087 = vmatpush.bf16.msra.mxu0 %v3910
        %4088 = vmatpush.bf16.msra.mxu0 %v3902
        %4089 = vmatpush.bf16.msra.mxu0 %v3894
        %4090 = vmatmul.bf16.gmra.mxu0 %v3631
        %v4091 = vpop.f32.mrf.mxu0
        %v4092 = vadd.f32 0.0, %v4091
        %v4093 = vpop.f32.mrf.mxu0
        %4094 = vdwg.mxu0
        %4095 = vmatpush.bf16.msra.mxu0 %v3951
        %4096 = vmatpush.bf16.msra.mxu0 %v3943
        %4097 = vmatpush.bf16.msra.mxu0 %v3935
        %4098 = vmatpush.bf16.msra.mxu0 %v3927
        %4099 = vmatpush.bf16.msra.mxu0 %v3919
        %4100 = vmatpush.bf16.msra.mxu0 %v3911
        %4101 = vmatpush.bf16.msra.mxu0 %v3903
        %4102 = vmatpush.bf16.msra.mxu0 %v3895
        %4103 = vmatmul.bf16.gmra.mxu0 %v3631
        %v4104 = vpop.f32.mrf.mxu0
        %v4105 = vadd.f32 0.0, %v4104
        %v4106 = vpop.f32.mrf.mxu0
        %4107 = vdwg.mxu0
        %4108 = vmatpush.bf16.msra.mxu0 %v3952
        %4109 = vmatpush.bf16.msra.mxu0 %v3944
        %4110 = vmatpush.bf16.msra.mxu0 %v3936
        %4111 = vmatpush.bf16.msra.mxu0 %v3928
        %4112 = vmatpush.bf16.msra.mxu0 %v3920
        %4113 = vmatpush.bf16.msra.mxu0 %v3912
        %4114 = vmatpush.bf16.msra.mxu0 %v3904
        %4115 = vmatpush.bf16.msra.mxu0 %v3896
        %4116 = vmatmul.bf16.gmra.mxu0 %v3631
        %v4117 = vpop.f32.mrf.mxu0
        %v4118 = vadd.f32 0.0, %v4117
        %v4119 = vpop.f32.mrf.mxu0
        %4120 = vdwg.mxu0
        %p4121 = scmp.gt.s32.totalorder %s3621, 0
        %s4122 = scalar_select %p4121, %s3621, 0
        %p4123 = scmp.lt.s32.totalorder %s4122, 128
        %s4124 = scalar_select %p4123, %s4122, 128
        %p4125 = scmp.gt.s32.totalorder %s4124, %s3623
        %s4126 = scalar_select %p4125, %s4124, %s3623
        %p4127 = scmp.lt.s32.totalorder %s4126, 128
        %s4128 = scalar_select %p4127, %s4126, 128
        %s4129 = ssub.s32 %s4128, %s4124
        %s4130 = scvt.s32.f32 %s4129
        %v4131 = vstv %s4130
        %v4132 = vrcp.pop %v4131
        %v4133 = vmul.f32 %v4131, %v4132
        %v4134 = vsub.f32 1.0, %v4133
        %v4135 = vmul.f32 %v4132, %v4134
        %v4136 = vadd.f32 %v4132, %v4135
        %vm4137 = vweird.f32 %v4131
        %vm4138 = vweird.f32 %v4132
        %vm4139 = vmor %vm4137, %vm4138
        %v4140 = vsel %vm4139, %v4132, %v4136
        %v4141 = vand.u32 2147483647, %v4131
        %vm4142 = vcmp.eq.f32.partialorder %v4141, 8.507059e+37
        %v4143 = vand.u32 %v4131, 2147483648
        %v4144 = vor.u32 1.1754944e-38, %v4143
        %v4145 = vsel %vm4142, %v4144, %v4140
        %s4146 = vtos %v4145
        %v4147 = vstv %s4146
        %v4148 = vmul.f32 %v4027, %v4147
        %v4149 = vmul.f32 %v4040, %v4147
        %v4150 = vmul.f32 %v4053, %v4147
        %v4151 = vmul.f32 %v4066, %v4147
        %v4152 = vmul.f32 %v4079, %v4147
        %v4153 = vmul.f32 %v4092, %v4147
        %v4154 = vmul.f32 %v4105, %v4147
        %v4155 = vmul.f32 %v4118, %v4147
        %v4164 = vrot.slane %v4149, 7
        %v4165 = vrot.slane %v4150, 6
        %v4166 = vrot.slane %v4151, 5
        %v4167 = vrot.slane %v4152, 4
        %v4168 = vrot.slane %v4153, 3
        %v4169 = vrot.slane %v4154, 2
        %v4170 = vrot.slane %v4155, 1
        %v4171 = vsel %vm787, %v4148, %v4164
        %v4172 = vsel %vm789, %v4165, %v4166
        %v4173 = vsel %vm791, %v4171, %v4172
        %v4174 = vsel %vm793, %v4167, %v4168
        %v4175 = vsel %vm795, %v4169, %v4170
        %v4176 = vsel %vm797, %v4174, %v4175
        %v4177 = vsel %vm799, %v4173, %v4176
        %s4179 = scalar_lea.vmem [#allocation2], 6
        %4180 = vst [vmem:[%s4179] ss:$8 sm:$0xf] %v4177
        %4181 = vst [vmem:[%s4179] ss:$8 sm:$0xf0] %v4177
        %s4182 = sadd.s32 %s236, 7
        %s4183 = smul.u32 %s4182, 128
        %s4184 = sld [smem:[#allocation4 + %s4183]]
        %s4185 = sadd.s32 %s4183, 1
        %s4186 = sld [smem:[#allocation4 + %s4185]]
        %v4187 = vstv %s4184
        %vm4188 = vcmp.ge.s32.totalorder %v235, %v4187
        %v4189 = vstv %s4186
        %vm4190 = vcmp.lt.s32.totalorder %v235, %v4189
        %vm4191 = vmand %vm4188, %vm4190
        %v4192 = vsel %vm4191, 1, 0
        %v4193 = vcvt.s32.f32 %v4192
        %v4194 = vpack.c.bf16 %v4193, %v4193
        %s4195 = scalar_lea.vmem %s198, 3584 [#allocation5]
        %v4196 = vld [vmem:[%s4195] sm:$0xff]
        %v4197 = vld [vmem:[%s4195 + $0x8] sm:$0xff]
        %v4198 = vld [vmem:[%s4195 + $0x10] sm:$0xff]
        %v4199 = vld [vmem:[%s4195 + $0x18] sm:$0xff]
        %v4200 = vld [vmem:[%s4195 + $0x20] sm:$0xff]
        %v4201 = vld [vmem:[%s4195 + $0x28] sm:$0xff]
        %v4202 = vld [vmem:[%s4195 + $0x30] sm:$0xff]
        %v4203 = vld [vmem:[%s4195 + $0x38] sm:$0xff]
        %v4204 = vld [vmem:[%s4195 + $0x40] sm:$0xff]
        %v4205 = vld [vmem:[%s4195 + $0x48] sm:$0xff]
        %v4206 = vld [vmem:[%s4195 + $0x50] sm:$0xff]
        %v4207 = vld [vmem:[%s4195 + $0x58] sm:$0xff]
        %v4208 = vld [vmem:[%s4195 + $0x60] sm:$0xff]
        %v4209 = vld [vmem:[%s4195 + $0x68] sm:$0xff]
        %v4210 = vld [vmem:[%s4195 + $0x70] sm:$0xff]
        %v4211 = vld [vmem:[%s4195 + $0x78] sm:$0xff]
        %v4212 = vld [vmem:[%s4195 + $0x80] sm:$0xff]
        %v4213 = vld [vmem:[%s4195 + $0x88] sm:$0xff]
        %v4214 = vld [vmem:[%s4195 + $0x90] sm:$0xff]
        %v4215 = vld [vmem:[%s4195 + $0x98] sm:$0xff]
        %v4216 = vld [vmem:[%s4195 + $0xa0] sm:$0xff]
        %v4217 = vld [vmem:[%s4195 + $0xa8] sm:$0xff]
        %v4218 = vld [vmem:[%s4195 + $0xb0] sm:$0xff]
        %v4219 = vld [vmem:[%s4195 + $0xb8] sm:$0xff]
        %v4220 = vld [vmem:[%s4195 + $0xc0] sm:$0xff]
        %v4221 = vld [vmem:[%s4195 + $0xc8] sm:$0xff]
        %v4222 = vld [vmem:[%s4195 + $0xd0] sm:$0xff]
        %v4223 = vld [vmem:[%s4195 + $0xd8] sm:$0xff]
        %v4224 = vld [vmem:[%s4195 + $0xe0] sm:$0xff]
        %v4225 = vld [vmem:[%s4195 + $0xe8] sm:$0xff]
        %v4226 = vld [vmem:[%s4195 + $0xf0] sm:$0xff]
        %v4227 = vld [vmem:[%s4195 + $0xf8] sm:$0xff]
        %v4228 = vld [vmem:[%s4195 + $0x100] sm:$0xff]
        %v4229 = vld [vmem:[%s4195 + $0x108] sm:$0xff]
        %v4230 = vld [vmem:[%s4195 + $0x110] sm:$0xff]
        %v4231 = vld [vmem:[%s4195 + $0x118] sm:$0xff]
        %v4232 = vld [vmem:[%s4195 + $0x120] sm:$0xff]
        %v4233 = vld [vmem:[%s4195 + $0x128] sm:$0xff]
        %v4234 = vld [vmem:[%s4195 + $0x130] sm:$0xff]
        %v4235 = vld [vmem:[%s4195 + $0x138] sm:$0xff]
        %v4236 = vld [vmem:[%s4195 + $0x140] sm:$0xff]
        %v4237 = vld [vmem:[%s4195 + $0x148] sm:$0xff]
        %v4238 = vld [vmem:[%s4195 + $0x150] sm:$0xff]
        %v4239 = vld [vmem:[%s4195 + $0x158] sm:$0xff]
        %v4240 = vld [vmem:[%s4195 + $0x160] sm:$0xff]
        %v4241 = vld [vmem:[%s4195 + $0x168] sm:$0xff]
        %v4242 = vld [vmem:[%s4195 + $0x170] sm:$0xff]
        %v4243 = vld [vmem:[%s4195 + $0x178] sm:$0xff]
        %v4244 = vld [vmem:[%s4195 + $0x180] sm:$0xff]
        %v4245 = vld [vmem:[%s4195 + $0x188] sm:$0xff]
        %v4246 = vld [vmem:[%s4195 + $0x190] sm:$0xff]
        %v4247 = vld [vmem:[%s4195 + $0x198] sm:$0xff]
        %v4248 = vld [vmem:[%s4195 + $0x1a0] sm:$0xff]
        %v4249 = vld [vmem:[%s4195 + $0x1a8] sm:$0xff]
        %v4250 = vld [vmem:[%s4195 + $0x1b0] sm:$0xff]
        %v4251 = vld [vmem:[%s4195 + $0x1b8] sm:$0xff]
        %v4252 = vld [vmem:[%s4195 + $0x1c0] sm:$0xff]
        %v4253 = vld [vmem:[%s4195 + $0x1c8] sm:$0xff]
        %v4254 = vld [vmem:[%s4195 + $0x1d0] sm:$0xff]
        %v4255 = vld [vmem:[%s4195 + $0x1d8] sm:$0xff]
        %v4256 = vld [vmem:[%s4195 + $0x1e0] sm:$0xff]
        %v4257 = vld [vmem:[%s4195 + $0x1e8] sm:$0xff]
        %v4258 = vld [vmem:[%s4195 + $0x1f0] sm:$0xff]
        %v4259 = vld [vmem:[%s4195 + $0x1f8] sm:$0xff]
        %v4324 = vunpack.c.l.b16 %v4196
        %v4325 = vunpack.c.h.b16 %v4196
        %v4326 = vunpack.c.l.b16 %v4197
        %v4327 = vunpack.c.h.b16 %v4197
        %v4328 = vunpack.c.l.b16 %v4198
        %v4329 = vunpack.c.h.b16 %v4198
        %v4330 = vunpack.c.l.b16 %v4199
        %v4331 = vunpack.c.h.b16 %v4199
        %v4332 = vunpack.c.l.b16 %v4200
        %v4333 = vunpack.c.h.b16 %v4200
        %v4334 = vunpack.c.l.b16 %v4201
        %v4335 = vunpack.c.h.b16 %v4201
        %v4336 = vunpack.c.l.b16 %v4202
        %v4337 = vunpack.c.h.b16 %v4202
        %v4338 = vunpack.c.l.b16 %v4203
        %v4339 = vunpack.c.h.b16 %v4203
        %v4340 = vunpack.c.l.b16 %v4204
        %v4341 = vunpack.c.h.b16 %v4204
        %v4342 = vunpack.c.l.b16 %v4205
        %v4343 = vunpack.c.h.b16 %v4205
        %v4344 = vunpack.c.l.b16 %v4206
        %v4345 = vunpack.c.h.b16 %v4206
        %v4346 = vunpack.c.l.b16 %v4207
        %v4347 = vunpack.c.h.b16 %v4207
        %v4348 = vunpack.c.l.b16 %v4208
        %v4349 = vunpack.c.h.b16 %v4208
        %v4350 = vunpack.c.l.b16 %v4209
        %v4351 = vunpack.c.h.b16 %v4209
        %v4352 = vunpack.c.l.b16 %v4210
        %v4353 = vunpack.c.h.b16 %v4210
        %v4354 = vunpack.c.l.b16 %v4211
        %v4355 = vunpack.c.h.b16 %v4211
        %v4356 = vunpack.c.l.b16 %v4212
        %v4357 = vunpack.c.h.b16 %v4212
        %v4358 = vunpack.c.l.b16 %v4213
        %v4359 = vunpack.c.h.b16 %v4213
        %v4360 = vunpack.c.l.b16 %v4214
        %v4361 = vunpack.c.h.b16 %v4214
        %v4362 = vunpack.c.l.b16 %v4215
        %v4363 = vunpack.c.h.b16 %v4215
        %v4364 = vunpack.c.l.b16 %v4216
        %v4365 = vunpack.c.h.b16 %v4216
        %v4366 = vunpack.c.l.b16 %v4217
        %v4367 = vunpack.c.h.b16 %v4217
        %v4368 = vunpack.c.l.b16 %v4218
        %v4369 = vunpack.c.h.b16 %v4218
        %v4370 = vunpack.c.l.b16 %v4219
        %v4371 = vunpack.c.h.b16 %v4219
        %v4372 = vunpack.c.l.b16 %v4220
        %v4373 = vunpack.c.h.b16 %v4220
        %v4374 = vunpack.c.l.b16 %v4221
        %v4375 = vunpack.c.h.b16 %v4221
        %v4376 = vunpack.c.l.b16 %v4222
        %v4377 = vunpack.c.h.b16 %v4222
        %v4378 = vunpack.c.l.b16 %v4223
        %v4379 = vunpack.c.h.b16 %v4223
        %v4380 = vunpack.c.l.b16 %v4224
        %v4381 = vunpack.c.h.b16 %v4224
        %v4382 = vunpack.c.l.b16 %v4225
        %v4383 = vunpack.c.h.b16 %v4225
        %v4384 = vunpack.c.l.b16 %v4226
        %v4385 = vunpack.c.h.b16 %v4226
        %v4386 = vunpack.c.l.b16 %v4227
        %v4387 = vunpack.c.h.b16 %v4227
        %v4388 = vunpack.c.l.b16 %v4228
        %v4389 = vunpack.c.h.b16 %v4228
        %v4390 = vunpack.c.l.b16 %v4229
        %v4391 = vunpack.c.h.b16 %v4229
        %v4392 = vunpack.c.l.b16 %v4230
        %v4393 = vunpack.c.h.b16 %v4230
        %v4394 = vunpack.c.l.b16 %v4231
        %v4395 = vunpack.c.h.b16 %v4231
        %v4396 = vunpack.c.l.b16 %v4232
        %v4397 = vunpack.c.h.b16 %v4232
        %v4398 = vunpack.c.l.b16 %v4233
        %v4399 = vunpack.c.h.b16 %v4233
        %v4400 = vunpack.c.l.b16 %v4234
        %v4401 = vunpack.c.h.b16 %v4234
        %v4402 = vunpack.c.l.b16 %v4235
        %v4403 = vunpack.c.h.b16 %v4235
        %v4404 = vunpack.c.l.b16 %v4236
        %v4405 = vunpack.c.h.b16 %v4236
        %v4406 = vunpack.c.l.b16 %v4237
        %v4407 = vunpack.c.h.b16 %v4237
        %v4408 = vunpack.c.l.b16 %v4238
        %v4409 = vunpack.c.h.b16 %v4238
        %v4410 = vunpack.c.l.b16 %v4239
        %v4411 = vunpack.c.h.b16 %v4239
        %v4412 = vunpack.c.l.b16 %v4240
        %v4413 = vunpack.c.h.b16 %v4240
        %v4414 = vunpack.c.l.b16 %v4241
        %v4415 = vunpack.c.h.b16 %v4241
        %v4416 = vunpack.c.l.b16 %v4242
        %v4417 = vunpack.c.h.b16 %v4242
        %v4418 = vunpack.c.l.b16 %v4243
        %v4419 = vunpack.c.h.b16 %v4243
        %v4420 = vunpack.c.l.b16 %v4244
        %v4421 = vunpack.c.h.b16 %v4244
        %v4422 = vunpack.c.l.b16 %v4245
        %v4423 = vunpack.c.h.b16 %v4245
        %v4424 = vunpack.c.l.b16 %v4246
        %v4425 = vunpack.c.h.b16 %v4246
        %v4426 = vunpack.c.l.b16 %v4247
        %v4427 = vunpack.c.h.b16 %v4247
        %v4428 = vunpack.c.l.b16 %v4248
        %v4429 = vunpack.c.h.b16 %v4248
        %v4430 = vunpack.c.l.b16 %v4249
        %v4431 = vunpack.c.h.b16 %v4249
        %v4432 = vunpack.c.l.b16 %v4250
        %v4433 = vunpack.c.h.b16 %v4250
        %v4434 = vunpack.c.l.b16 %v4251
        %v4435 = vunpack.c.h.b16 %v4251
        %v4436 = vunpack.c.l.b16 %v4252
        %v4437 = vunpack.c.h.b16 %v4252
        %v4438 = vunpack.c.l.b16 %v4253
        %v4439 = vunpack.c.h.b16 %v4253
        %v4440 = vunpack.c.l.b16 %v4254
        %v4441 = vunpack.c.h.b16 %v4254
        %v4442 = vunpack.c.l.b16 %v4255
        %v4443 = vunpack.c.h.b16 %v4255
        %v4444 = vunpack.c.l.b16 %v4256
        %v4445 = vunpack.c.h.b16 %v4256
        %v4446 = vunpack.c.l.b16 %v4257
        %v4447 = vunpack.c.h.b16 %v4257
        %v4448 = vunpack.c.l.b16 %v4258
        %v4449 = vunpack.c.h.b16 %v4258
        %v4450 = vunpack.c.l.b16 %v4259
        %v4451 = vunpack.c.h.b16 %v4259
        %v4452 = vpack.c.b16 %v4332, %v4324
        %v4453 = vpack.c.b16 %v4333, %v4325
        %v4454 = vpack.c.b16 %v4334, %v4326
        %v4455 = vpack.c.b16 %v4335, %v4327
        %v4456 = vpack.c.b16 %v4336, %v4328
        %v4457 = vpack.c.b16 %v4337, %v4329
        %v4458 = vpack.c.b16 %v4338, %v4330
        %v4459 = vpack.c.b16 %v4339, %v4331
        %v4460 = vpack.c.b16 %v4348, %v4340
        %v4461 = vpack.c.b16 %v4349, %v4341
        %v4462 = vpack.c.b16 %v4350, %v4342
        %v4463 = vpack.c.b16 %v4351, %v4343
        %v4464 = vpack.c.b16 %v4352, %v4344
        %v4465 = vpack.c.b16 %v4353, %v4345
        %v4466 = vpack.c.b16 %v4354, %v4346
        %v4467 = vpack.c.b16 %v4355, %v4347
        %v4468 = vpack.c.b16 %v4364, %v4356
        %v4469 = vpack.c.b16 %v4365, %v4357
        %v4470 = vpack.c.b16 %v4366, %v4358
        %v4471 = vpack.c.b16 %v4367, %v4359
        %v4472 = vpack.c.b16 %v4368, %v4360
        %v4473 = vpack.c.b16 %v4369, %v4361
        %v4474 = vpack.c.b16 %v4370, %v4362
        %v4475 = vpack.c.b16 %v4371, %v4363
        %v4476 = vpack.c.b16 %v4380, %v4372
        %v4477 = vpack.c.b16 %v4381, %v4373
        %v4478 = vpack.c.b16 %v4382, %v4374
        %v4479 = vpack.c.b16 %v4383, %v4375
        %v4480 = vpack.c.b16 %v4384, %v4376
        %v4481 = vpack.c.b16 %v4385, %v4377
        %v4482 = vpack.c.b16 %v4386, %v4378
        %v4483 = vpack.c.b16 %v4387, %v4379
        %v4484 = vpack.c.b16 %v4396, %v4388
        %v4485 = vpack.c.b16 %v4397, %v4389
        %v4486 = vpack.c.b16 %v4398, %v4390
        %v4487 = vpack.c.b16 %v4399, %v4391
        %v4488 = vpack.c.b16 %v4400, %v4392
        %v4489 = vpack.c.b16 %v4401, %v4393
        %v4490 = vpack.c.b16 %v4402, %v4394
        %v4491 = vpack.c.b16 %v4403, %v4395
        %v4492 = vpack.c.b16 %v4412, %v4404
        %v4493 = vpack.c.b16 %v4413, %v4405
        %v4494 = vpack.c.b16 %v4414, %v4406
        %v4495 = vpack.c.b16 %v4415, %v4407
        %v4496 = vpack.c.b16 %v4416, %v4408
        %v4497 = vpack.c.b16 %v4417, %v4409
        %v4498 = vpack.c.b16 %v4418, %v4410
        %v4499 = vpack.c.b16 %v4419, %v4411
        %v4500 = vpack.c.b16 %v4428, %v4420
        %v4501 = vpack.c.b16 %v4429, %v4421
        %v4502 = vpack.c.b16 %v4430, %v4422
        %v4503 = vpack.c.b16 %v4431, %v4423
        %v4504 = vpack.c.b16 %v4432, %v4424
        %v4505 = vpack.c.b16 %v4433, %v4425
        %v4506 = vpack.c.b16 %v4434, %v4426
        %v4507 = vpack.c.b16 %v4435, %v4427
        %v4508 = vpack.c.b16 %v4444, %v4436
        %v4509 = vpack.c.b16 %v4445, %v4437
        %v4510 = vpack.c.b16 %v4446, %v4438
        %v4511 = vpack.c.b16 %v4447, %v4439
        %v4512 = vpack.c.b16 %v4448, %v4440
        %v4513 = vpack.c.b16 %v4449, %v4441
        %v4514 = vpack.c.b16 %v4450, %v4442
        %v4515 = vpack.c.b16 %v4451, %v4443
        %4580 = vmatpush.bf16.msra.mxu0 %v4508
        %4581 = vmatpush.bf16.msra.mxu0 %v4500
        %4582 = vmatpush.bf16.msra.mxu0 %v4492
        %4583 = vmatpush.bf16.msra.mxu0 %v4484
        %4584 = vmatpush.bf16.msra.mxu0 %v4476
        %4585 = vmatpush.bf16.msra.mxu0 %v4468
        %4586 = vmatpush.bf16.msra.mxu0 %v4460
        %4587 = vmatpush.bf16.msra.mxu0 %v4452
        %4588 = vmatmul.bf16.gmra.mxu0 %v4194
        %v4589 = vpop.f32.mrf.mxu0
        %v4590 = vadd.f32 0.0, %v4589
        %v4591 = vpop.f32.mrf.mxu0
        %4592 = vdwg.mxu0
        %4593 = vmatpush.bf16.msra.mxu0 %v4509
        %4594 = vmatpush.bf16.msra.mxu0 %v4501
        %4595 = vmatpush.bf16.msra.mxu0 %v4493
        %4596 = vmatpush.bf16.msra.mxu0 %v4485
        %4597 = vmatpush.bf16.msra.mxu0 %v4477
        %4598 = vmatpush.bf16.msra.mxu0 %v4469
        %4599 = vmatpush.bf16.msra.mxu0 %v4461
        %4600 = vmatpush.bf16.msra.mxu0 %v4453
        %4601 = vmatmul.bf16.gmra.mxu0 %v4194
        %v4602 = vpop.f32.mrf.mxu0
        %v4603 = vadd.f32 0.0, %v4602
        %v4604 = vpop.f32.mrf.mxu0
        %4605 = vdwg.mxu0
        %4606 = vmatpush.bf16.msra.mxu0 %v4510
        %4607 = vmatpush.bf16.msra.mxu0 %v4502
        %4608 = vmatpush.bf16.msra.mxu0 %v4494
        %4609 = vmatpush.bf16.msra.mxu0 %v4486
        %4610 = vmatpush.bf16.msra.mxu0 %v4478
        %4611 = vmatpush.bf16.msra.mxu0 %v4470
        %4612 = vmatpush.bf16.msra.mxu0 %v4462
        %4613 = vmatpush.bf16.msra.mxu0 %v4454
        %4614 = vmatmul.bf16.gmra.mxu0 %v4194
        %v4615 = vpop.f32.mrf.mxu0
        %v4616 = vadd.f32 0.0, %v4615
        %v4617 = vpop.f32.mrf.mxu0
        %4618 = vdwg.mxu0
        %4619 = vmatpush.bf16.msra.mxu0 %v4511
        %4620 = vmatpush.bf16.msra.mxu0 %v4503
        %4621 = vmatpush.bf16.msra.mxu0 %v4495
        %4622 = vmatpush.bf16.msra.mxu0 %v4487
        %4623 = vmatpush.bf16.msra.mxu0 %v4479
        %4624 = vmatpush.bf16.msra.mxu0 %v4471
        %4625 = vmatpush.bf16.msra.mxu0 %v4463
        %4626 = vmatpush.bf16.msra.mxu0 %v4455
        %4627 = vmatmul.bf16.gmra.mxu0 %v4194
        %v4628 = vpop.f32.mrf.mxu0
        %v4629 = vadd.f32 0.0, %v4628
        %v4630 = vpop.f32.mrf.mxu0
        %4631 = vdwg.mxu0
        %4632 = vmatpush.bf16.msra.mxu0 %v4512
        %4633 = vmatpush.bf16.msra.mxu0 %v4504
        %4634 = vmatpush.bf16.msra.mxu0 %v4496
        %4635 = vmatpush.bf16.msra.mxu0 %v4488
        %4636 = vmatpush.bf16.msra.mxu0 %v4480
        %4637 = vmatpush.bf16.msra.mxu0 %v4472
        %4638 = vmatpush.bf16.msra.mxu0 %v4464
        %4639 = vmatpush.bf16.msra.mxu0 %v4456
        %4640 = vmatmul.bf16.gmra.mxu0 %v4194
        %v4641 = vpop.f32.mrf.mxu0
        %v4642 = vadd.f32 0.0, %v4641
        %v4643 = vpop.f32.mrf.mxu0
        %4644 = vdwg.mxu0
        %4645 = vmatpush.bf16.msra.mxu0 %v4513
        %4646 = vmatpush.bf16.msra.mxu0 %v4505
        %4647 = vmatpush.bf16.msra.mxu0 %v4497
        %4648 = vmatpush.bf16.msra.mxu0 %v4489
        %4649 = vmatpush.bf16.msra.mxu0 %v4481
        %4650 = vmatpush.bf16.msra.mxu0 %v4473
        %4651 = vmatpush.bf16.msra.mxu0 %v4465
        %4652 = vmatpush.bf16.msra.mxu0 %v4457
        %4653 = vmatmul.bf16.gmra.mxu0 %v4194
        %v4654 = vpop.f32.mrf.mxu0
        %v4655 = vadd.f32 0.0, %v4654
        %v4656 = vpop.f32.mrf.mxu0
        %4657 = vdwg.mxu0
        %4658 = vmatpush.bf16.msra.mxu0 %v4514
        %4659 = vmatpush.bf16.msra.mxu0 %v4506
        %4660 = vmatpush.bf16.msra.mxu0 %v4498
        %4661 = vmatpush.bf16.msra.mxu0 %v4490
        %4662 = vmatpush.bf16.msra.mxu0 %v4482
        %4663 = vmatpush.bf16.msra.mxu0 %v4474
        %4664 = vmatpush.bf16.msra.mxu0 %v4466
        %4665 = vmatpush.bf16.msra.mxu0 %v4458
        %4666 = vmatmul.bf16.gmra.mxu0 %v4194
        %v4667 = vpop.f32.mrf.mxu0
        %v4668 = vadd.f32 0.0, %v4667
        %v4669 = vpop.f32.mrf.mxu0
        %4670 = vdwg.mxu0
        %4671 = vmatpush.bf16.msra.mxu0 %v4515
        %4672 = vmatpush.bf16.msra.mxu0 %v4507
        %4673 = vmatpush.bf16.msra.mxu0 %v4499
        %4674 = vmatpush.bf16.msra.mxu0 %v4491
        %4675 = vmatpush.bf16.msra.mxu0 %v4483
        %4676 = vmatpush.bf16.msra.mxu0 %v4475
        %4677 = vmatpush.bf16.msra.mxu0 %v4467
        %4678 = vmatpush.bf16.msra.mxu0 %v4459
        %4679 = vmatmul.bf16.gmra.mxu0 %v4194
        %v4680 = vpop.f32.mrf.mxu0
        %v4681 = vadd.f32 0.0, %v4680
        %v4682 = vpop.f32.mrf.mxu0
        %4683 = vdwg.mxu0
        %p4684 = scmp.gt.s32.totalorder %s4184, 0
        %s4685 = scalar_select %p4684, %s4184, 0
        %p4686 = scmp.lt.s32.totalorder %s4685, 128
        %s4687 = scalar_select %p4686, %s4685, 128
        %p4688 = scmp.gt.s32.totalorder %s4687, %s4186
        %s4689 = scalar_select %p4688, %s4687, %s4186
        %p4690 = scmp.lt.s32.totalorder %s4689, 128
        %s4691 = scalar_select %p4690, %s4689, 128
        %s4692 = ssub.s32 %s4691, %s4687
        %s4693 = scvt.s32.f32 %s4692
        %v4694 = vstv %s4693
        %v4695 = vrcp.pop %v4694
        %v4696 = vmul.f32 %v4694, %v4695
        %v4697 = vsub.f32 1.0, %v4696
        %v4698 = vmul.f32 %v4695, %v4697
        %v4699 = vadd.f32 %v4695, %v4698
        %vm4700 = vweird.f32 %v4694
        %vm4701 = vweird.f32 %v4695
        %vm4702 = vmor %vm4700, %vm4701
        %v4703 = vsel %vm4702, %v4695, %v4699
        %v4704 = vand.u32 2147483647, %v4694
        %vm4705 = vcmp.eq.f32.partialorder %v4704, 8.507059e+37
        %v4706 = vand.u32 %v4694, 2147483648
        %v4707 = vor.u32 1.1754944e-38, %v4706
        %v4708 = vsel %vm4705, %v4707, %v4703
        %s4709 = vtos %v4708
        %v4710 = vstv %s4709
        %v4711 = vmul.f32 %v4590, %v4710
        %v4712 = vmul.f32 %v4603, %v4710
        %v4713 = vmul.f32 %v4616, %v4710
        %v4714 = vmul.f32 %v4629, %v4710
        %v4715 = vmul.f32 %v4642, %v4710
        %v4716 = vmul.f32 %v4655, %v4710
        %v4717 = vmul.f32 %v4668, %v4710
        %v4718 = vmul.f32 %v4681, %v4710
        %v4727 = vrot.slane %v4712, 7
        %v4728 = vrot.slane %v4713, 6
        %v4729 = vrot.slane %v4714, 5
        %v4730 = vrot.slane %v4715, 4
        %v4731 = vrot.slane %v4716, 3
        %v4732 = vrot.slane %v4717, 2
        %v4733 = vrot.slane %v4718, 1
        %v4734 = vsel %vm787, %v4711, %v4727
        %v4735 = vsel %vm789, %v4728, %v4729
        %v4736 = vsel %vm791, %v4734, %v4735
        %v4737 = vsel %vm793, %v4730, %v4731
        %v4738 = vsel %vm795, %v4732, %v4733
        %v4739 = vsel %vm797, %v4737, %v4738
        %v4740 = vsel %vm799, %v4736, %v4739
        %s4742 = scalar_lea.vmem [#allocation2], 7
        %4743 = vst [vmem:[%s4742] ss:$8 sm:$0xf] %v4740
        %4744 = vst [vmem:[%s4742] ss:$8 sm:$0xf0] %v4740
        %s4745 = sadd.s32 %s236, 8
        %s4746 = smul.u32 %s4745, 128
        %s4747 = sld [smem:[#allocation4 + %s4746]]
        %s4748 = sadd.s32 %s4746, 1
        %s4749 = sld [smem:[#allocation4 + %s4748]]
        %v4750 = vstv %s4747
        %vm4751 = vcmp.ge.s32.totalorder %v235, %v4750
        %v4752 = vstv %s4749
        %vm4753 = vcmp.lt.s32.totalorder %v235, %v4752
        %vm4754 = vmand %vm4751, %vm4753
        %v4755 = vsel %vm4754, 1, 0
        %v4756 = vcvt.s32.f32 %v4755
        %v4757 = vpack.c.bf16 %v4756, %v4756
        %s4758 = scalar_lea.vmem %s198, 4096 [#allocation5]
        %v4759 = vld [vmem:[%s4758] sm:$0xff]
        %v4760 = vld [vmem:[%s4758 + $0x8] sm:$0xff]
        %v4761 = vld [vmem:[%s4758 + $0x10] sm:$0xff]
        %v4762 = vld [vmem:[%s4758 + $0x18] sm:$0xff]
        %v4763 = vld [vmem:[%s4758 + $0x20] sm:$0xff]
        %v4764 = vld [vmem:[%s4758 + $0x28] sm:$0xff]
        %v4765 = vld [vmem:[%s4758 + $0x30] sm:$0xff]
        %v4766 = vld [vmem:[%s4758 + $0x38] sm:$0xff]
        %v4767 = vld [vmem:[%s4758 + $0x40] sm:$0xff]
        %v4768 = vld [vmem:[%s4758 + $0x48] sm:$0xff]
        %v4769 = vld [vmem:[%s4758 + $0x50] sm:$0xff]
        %v4770 = vld [vmem:[%s4758 + $0x58] sm:$0xff]
        %v4771 = vld [vmem:[%s4758 + $0x60] sm:$0xff]
        %v4772 = vld [vmem:[%s4758 + $0x68] sm:$0xff]
        %v4773 = vld [vmem:[%s4758 + $0x70] sm:$0xff]
        %v4774 = vld [vmem:[%s4758 + $0x78] sm:$0xff]
        %v4775 = vld [vmem:[%s4758 + $0x80] sm:$0xff]
        %v4776 = vld [vmem:[%s4758 + $0x88] sm:$0xff]
        %v4777 = vld [vmem:[%s4758 + $0x90] sm:$0xff]
        %v4778 = vld [vmem:[%s4758 + $0x98] sm:$0xff]
        %v4779 = vld [vmem:[%s4758 + $0xa0] sm:$0xff]
        %v4780 = vld [vmem:[%s4758 + $0xa8] sm:$0xff]
        %v4781 = vld [vmem:[%s4758 + $0xb0] sm:$0xff]
        %v4782 = vld [vmem:[%s4758 + $0xb8] sm:$0xff]
        %v4783 = vld [vmem:[%s4758 + $0xc0] sm:$0xff]
        %v4784 = vld [vmem:[%s4758 + $0xc8] sm:$0xff]
        %v4785 = vld [vmem:[%s4758 + $0xd0] sm:$0xff]
        %v4786 = vld [vmem:[%s4758 + $0xd8] sm:$0xff]
        %v4787 = vld [vmem:[%s4758 + $0xe0] sm:$0xff]
        %v4788 = vld [vmem:[%s4758 + $0xe8] sm:$0xff]
        %v4789 = vld [vmem:[%s4758 + $0xf0] sm:$0xff]
        %v4790 = vld [vmem:[%s4758 + $0xf8] sm:$0xff]
        %v4791 = vld [vmem:[%s4758 + $0x100] sm:$0xff]
        %v4792 = vld [vmem:[%s4758 + $0x108] sm:$0xff]
        %v4793 = vld [vmem:[%s4758 + $0x110] sm:$0xff]
        %v4794 = vld [vmem:[%s4758 + $0x118] sm:$0xff]
        %v4795 = vld [vmem:[%s4758 + $0x120] sm:$0xff]
        %v4796 = vld [vmem:[%s4758 + $0x128] sm:$0xff]
        %v4797 = vld [vmem:[%s4758 + $0x130] sm:$0xff]
        %v4798 = vld [vmem:[%s4758 + $0x138] sm:$0xff]
        %v4799 = vld [vmem:[%s4758 + $0x140] sm:$0xff]
        %v4800 = vld [vmem:[%s4758 + $0x148] sm:$0xff]
        %v4801 = vld [vmem:[%s4758 + $0x150] sm:$0xff]
        %v4802 = vld [vmem:[%s4758 + $0x158] sm:$0xff]
        %v4803 = vld [vmem:[%s4758 + $0x160] sm:$0xff]
        %v4804 = vld [vmem:[%s4758 + $0x168] sm:$0xff]
        %v4805 = vld [vmem:[%s4758 + $0x170] sm:$0xff]
        %v4806 = vld [vmem:[%s4758 + $0x178] sm:$0xff]
        %v4807 = vld [vmem:[%s4758 + $0x180] sm:$0xff]
        %v4808 = vld [vmem:[%s4758 + $0x188] sm:$0xff]
        %v4809 = vld [vmem:[%s4758 + $0x190] sm:$0xff]
        %v4810 = vld [vmem:[%s4758 + $0x198] sm:$0xff]
        %v4811 = vld [vmem:[%s4758 + $0x1a0] sm:$0xff]
        %v4812 = vld [vmem:[%s4758 + $0x1a8] sm:$0xff]
        %v4813 = vld [vmem:[%s4758 + $0x1b0] sm:$0xff]
        %v4814 = vld [vmem:[%s4758 + $0x1b8] sm:$0xff]
        %v4815 = vld [vmem:[%s4758 + $0x1c0] sm:$0xff]
        %v4816 = vld [vmem:[%s4758 + $0x1c8] sm:$0xff]
        %v4817 = vld [vmem:[%s4758 + $0x1d0] sm:$0xff]
        %v4818 = vld [vmem:[%s4758 + $0x1d8] sm:$0xff]
        %v4819 = vld [vmem:[%s4758 + $0x1e0] sm:$0xff]
        %v4820 = vld [vmem:[%s4758 + $0x1e8] sm:$0xff]
        %v4821 = vld [vmem:[%s4758 + $0x1f0] sm:$0xff]
        %v4822 = vld [vmem:[%s4758 + $0x1f8] sm:$0xff]
        %v4887 = vunpack.c.l.b16 %v4759
        %v4888 = vunpack.c.h.b16 %v4759
        %v4889 = vunpack.c.l.b16 %v4760
        %v4890 = vunpack.c.h.b16 %v4760
        %v4891 = vunpack.c.l.b16 %v4761
        %v4892 = vunpack.c.h.b16 %v4761
        %v4893 = vunpack.c.l.b16 %v4762
        %v4894 = vunpack.c.h.b16 %v4762
        %v4895 = vunpack.c.l.b16 %v4763
        %v4896 = vunpack.c.h.b16 %v4763
        %v4897 = vunpack.c.l.b16 %v4764
        %v4898 = vunpack.c.h.b16 %v4764
        %v4899 = vunpack.c.l.b16 %v4765
        %v4900 = vunpack.c.h.b16 %v4765
        %v4901 = vunpack.c.l.b16 %v4766
        %v4902 = vunpack.c.h.b16 %v4766
        %v4903 = vunpack.c.l.b16 %v4767
        %v4904 = vunpack.c.h.b16 %v4767
        %v4905 = vunpack.c.l.b16 %v4768
        %v4906 = vunpack.c.h.b16 %v4768
        %v4907 = vunpack.c.l.b16 %v4769
        %v4908 = vunpack.c.h.b16 %v4769
        %v4909 = vunpack.c.l.b16 %v4770
        %v4910 = vunpack.c.h.b16 %v4770
        %v4911 = vunpack.c.l.b16 %v4771
        %v4912 = vunpack.c.h.b16 %v4771
        %v4913 = vunpack.c.l.b16 %v4772
        %v4914 = vunpack.c.h.b16 %v4772
        %v4915 = vunpack.c.l.b16 %v4773
        %v4916 = vunpack.c.h.b16 %v4773
        %v4917 = vunpack.c.l.b16 %v4774
        %v4918 = vunpack.c.h.b16 %v4774
        %v4919 = vunpack.c.l.b16 %v4775
        %v4920 = vunpack.c.h.b16 %v4775
        %v4921 = vunpack.c.l.b16 %v4776
        %v4922 = vunpack.c.h.b16 %v4776
        %v4923 = vunpack.c.l.b16 %v4777
        %v4924 = vunpack.c.h.b16 %v4777
        %v4925 = vunpack.c.l.b16 %v4778
        %v4926 = vunpack.c.h.b16 %v4778
        %v4927 = vunpack.c.l.b16 %v4779
        %v4928 = vunpack.c.h.b16 %v4779
        %v4929 = vunpack.c.l.b16 %v4780
        %v4930 = vunpack.c.h.b16 %v4780
        %v4931 = vunpack.c.l.b16 %v4781
        %v4932 = vunpack.c.h.b16 %v4781
        %v4933 = vunpack.c.l.b16 %v4782
        %v4934 = vunpack.c.h.b16 %v4782
        %v4935 = vunpack.c.l.b16 %v4783
        %v4936 = vunpack.c.h.b16 %v4783
        %v4937 = vunpack.c.l.b16 %v4784
        %v4938 = vunpack.c.h.b16 %v4784
        %v4939 = vunpack.c.l.b16 %v4785
        %v4940 = vunpack.c.h.b16 %v4785
        %v4941 = vunpack.c.l.b16 %v4786
        %v4942 = vunpack.c.h.b16 %v4786
        %v4943 = vunpack.c.l.b16 %v4787
        %v4944 = vunpack.c.h.b16 %v4787
        %v4945 = vunpack.c.l.b16 %v4788
        %v4946 = vunpack.c.h.b16 %v4788
        %v4947 = vunpack.c.l.b16 %v4789
        %v4948 = vunpack.c.h.b16 %v4789
        %v4949 = vunpack.c.l.b16 %v4790
        %v4950 = vunpack.c.h.b16 %v4790
        %v4951 = vunpack.c.l.b16 %v4791
        %v4952 = vunpack.c.h.b16 %v4791
        %v4953 = vunpack.c.l.b16 %v4792
        %v4954 = vunpack.c.h.b16 %v4792
        %v4955 = vunpack.c.l.b16 %v4793
        %v4956 = vunpack.c.h.b16 %v4793
        %v4957 = vunpack.c.l.b16 %v4794
        %v4958 = vunpack.c.h.b16 %v4794
        %v4959 = vunpack.c.l.b16 %v4795
        %v4960 = vunpack.c.h.b16 %v4795
        %v4961 = vunpack.c.l.b16 %v4796
        %v4962 = vunpack.c.h.b16 %v4796
        %v4963 = vunpack.c.l.b16 %v4797
        %v4964 = vunpack.c.h.b16 %v4797
        %v4965 = vunpack.c.l.b16 %v4798
        %v4966 = vunpack.c.h.b16 %v4798
        %v4967 = vunpack.c.l.b16 %v4799
        %v4968 = vunpack.c.h.b16 %v4799
        %v4969 = vunpack.c.l.b16 %v4800
        %v4970 = vunpack.c.h.b16 %v4800
        %v4971 = vunpack.c.l.b16 %v4801
        %v4972 = vunpack.c.h.b16 %v4801
        %v4973 = vunpack.c.l.b16 %v4802
        %v4974 = vunpack.c.h.b16 %v4802
        %v4975 = vunpack.c.l.b16 %v4803
        %v4976 = vunpack.c.h.b16 %v4803
        %v4977 = vunpack.c.l.b16 %v4804
        %v4978 = vunpack.c.h.b16 %v4804
        %v4979 = vunpack.c.l.b16 %v4805
        %v4980 = vunpack.c.h.b16 %v4805
        %v4981 = vunpack.c.l.b16 %v4806
        %v4982 = vunpack.c.h.b16 %v4806
        %v4983 = vunpack.c.l.b16 %v4807
        %v4984 = vunpack.c.h.b16 %v4807
        %v4985 = vunpack.c.l.b16 %v4808
        %v4986 = vunpack.c.h.b16 %v4808
        %v4987 = vunpack.c.l.b16 %v4809
        %v4988 = vunpack.c.h.b16 %v4809
        %v4989 = vunpack.c.l.b16 %v4810
        %v4990 = vunpack.c.h.b16 %v4810
        %v4991 = vunpack.c.l.b16 %v4811
        %v4992 = vunpack.c.h.b16 %v4811
        %v4993 = vunpack.c.l.b16 %v4812
        %v4994 = vunpack.c.h.b16 %v4812
        %v4995 = vunpack.c.l.b16 %v4813
        %v4996 = vunpack.c.h.b16 %v4813
        %v4997 = vunpack.c.l.b16 %v4814
        %v4998 = vunpack.c.h.b16 %v4814
        %v4999 = vunpack.c.l.b16 %v4815
        %v5000 = vunpack.c.h.b16 %v4815
        %v5001 = vunpack.c.l.b16 %v4816
        %v5002 = vunpack.c.h.b16 %v4816
        %v5003 = vunpack.c.l.b16 %v4817
        %v5004 = vunpack.c.h.b16 %v4817
        %v5005 = vunpack.c.l.b16 %v4818
        %v5006 = vunpack.c.h.b16 %v4818
        %v5007 = vunpack.c.l.b16 %v4819
        %v5008 = vunpack.c.h.b16 %v4819
        %v5009 = vunpack.c.l.b16 %v4820
        %v5010 = vunpack.c.h.b16 %v4820
        %v5011 = vunpack.c.l.b16 %v4821
        %v5012 = vunpack.c.h.b16 %v4821
        %v5013 = vunpack.c.l.b16 %v4822
        %v5014 = vunpack.c.h.b16 %v4822
        %v5015 = vpack.c.b16 %v4895, %v4887
        %v5016 = vpack.c.b16 %v4896, %v4888
        %v5017 = vpack.c.b16 %v4897, %v4889
        %v5018 = vpack.c.b16 %v4898, %v4890
        %v5019 = vpack.c.b16 %v4899, %v4891
        %v5020 = vpack.c.b16 %v4900, %v4892
        %v5021 = vpack.c.b16 %v4901, %v4893
        %v5022 = vpack.c.b16 %v4902, %v4894
        %v5023 = vpack.c.b16 %v4911, %v4903
        %v5024 = vpack.c.b16 %v4912, %v4904
        %v5025 = vpack.c.b16 %v4913, %v4905
        %v5026 = vpack.c.b16 %v4914, %v4906
        %v5027 = vpack.c.b16 %v4915, %v4907
        %v5028 = vpack.c.b16 %v4916, %v4908
        %v5029 = vpack.c.b16 %v4917, %v4909
        %v5030 = vpack.c.b16 %v4918, %v4910
        %v5031 = vpack.c.b16 %v4927, %v4919
        %v5032 = vpack.c.b16 %v4928, %v4920
        %v5033 = vpack.c.b16 %v4929, %v4921
        %v5034 = vpack.c.b16 %v4930, %v4922
        %v5035 = vpack.c.b16 %v4931, %v4923
        %v5036 = vpack.c.b16 %v4932, %v4924
        %v5037 = vpack.c.b16 %v4933, %v4925
        %v5038 = vpack.c.b16 %v4934, %v4926
        %v5039 = vpack.c.b16 %v4943, %v4935
        %v5040 = vpack.c.b16 %v4944, %v4936
        %v5041 = vpack.c.b16 %v4945, %v4937
        %v5042 = vpack.c.b16 %v4946, %v4938
        %v5043 = vpack.c.b16 %v4947, %v4939
        %v5044 = vpack.c.b16 %v4948, %v4940
        %v5045 = vpack.c.b16 %v4949, %v4941
        %v5046 = vpack.c.b16 %v4950, %v4942
        %v5047 = vpack.c.b16 %v4959, %v4951
        %v5048 = vpack.c.b16 %v4960, %v4952
        %v5049 = vpack.c.b16 %v4961, %v4953
        %v5050 = vpack.c.b16 %v4962, %v4954
        %v5051 = vpack.c.b16 %v4963, %v4955
        %v5052 = vpack.c.b16 %v4964, %v4956
        %v5053 = vpack.c.b16 %v4965, %v4957
        %v5054 = vpack.c.b16 %v4966, %v4958
        %v5055 = vpack.c.b16 %v4975, %v4967
        %v5056 = vpack.c.b16 %v4976, %v4968
        %v5057 = vpack.c.b16 %v4977, %v4969
        %v5058 = vpack.c.b16 %v4978, %v4970
        %v5059 = vpack.c.b16 %v4979, %v4971
        %v5060 = vpack.c.b16 %v4980, %v4972
        %v5061 = vpack.c.b16 %v4981, %v4973
        %v5062 = vpack.c.b16 %v4982, %v4974
        %v5063 = vpack.c.b16 %v4991, %v4983
        %v5064 = vpack.c.b16 %v4992, %v4984
        %v5065 = vpack.c.b16 %v4993, %v4985
        %v5066 = vpack.c.b16 %v4994, %v4986
        %v5067 = vpack.c.b16 %v4995, %v4987
        %v5068 = vpack.c.b16 %v4996, %v4988
        %v5069 = vpack.c.b16 %v4997, %v4989
        %v5070 = vpack.c.b16 %v4998, %v4990
        %v5071 = vpack.c.b16 %v5007, %v4999
        %v5072 = vpack.c.b16 %v5008, %v5000
        %v5073 = vpack.c.b16 %v5009, %v5001
        %v5074 = vpack.c.b16 %v5010, %v5002
        %v5075 = vpack.c.b16 %v5011, %v5003
        %v5076 = vpack.c.b16 %v5012, %v5004
        %v5077 = vpack.c.b16 %v5013, %v5005
        %v5078 = vpack.c.b16 %v5014, %v5006
        %5143 = vmatpush.bf16.msra.mxu0 %v5071
        %5144 = vmatpush.bf16.msra.mxu0 %v5063
        %5145 = vmatpush.bf16.msra.mxu0 %v5055
        %5146 = vmatpush.bf16.msra.mxu0 %v5047
        %5147 = vmatpush.bf16.msra.mxu0 %v5039
        %5148 = vmatpush.bf16.msra.mxu0 %v5031
        %5149 = vmatpush.bf16.msra.mxu0 %v5023
        %5150 = vmatpush.bf16.msra.mxu0 %v5015
        %5151 = vmatmul.bf16.gmra.mxu0 %v4757
        %v5152 = vpop.f32.mrf.mxu0
        %v5153 = vadd.f32 0.0, %v5152
        %v5154 = vpop.f32.mrf.mxu0
        %5155 = vdwg.mxu0
        %5156 = vmatpush.bf16.msra.mxu0 %v5072
        %5157 = vmatpush.bf16.msra.mxu0 %v5064
        %5158 = vmatpush.bf16.msra.mxu0 %v5056
        %5159 = vmatpush.bf16.msra.mxu0 %v5048
        %5160 = vmatpush.bf16.msra.mxu0 %v5040
        %5161 = vmatpush.bf16.msra.mxu0 %v5032
        %5162 = vmatpush.bf16.msra.mxu0 %v5024
        %5163 = vmatpush.bf16.msra.mxu0 %v5016
        %5164 = vmatmul.bf16.gmra.mxu0 %v4757
        %v5165 = vpop.f32.mrf.mxu0
        %v5166 = vadd.f32 0.0, %v5165
        %v5167 = vpop.f32.mrf.mxu0
        %5168 = vdwg.mxu0
        %5169 = vmatpush.bf16.msra.mxu0 %v5073
        %5170 = vmatpush.bf16.msra.mxu0 %v5065
        %5171 = vmatpush.bf16.msra.mxu0 %v5057
        %5172 = vmatpush.bf16.msra.mxu0 %v5049
        %5173 = vmatpush.bf16.msra.mxu0 %v5041
        %5174 = vmatpush.bf16.msra.mxu0 %v5033
        %5175 = vmatpush.bf16.msra.mxu0 %v5025
        %5176 = vmatpush.bf16.msra.mxu0 %v5017
        %5177 = vmatmul.bf16.gmra.mxu0 %v4757
        %v5178 = vpop.f32.mrf.mxu0
        %v5179 = vadd.f32 0.0, %v5178
        %v5180 = vpop.f32.mrf.mxu0
        %5181 = vdwg.mxu0
        %5182 = vmatpush.bf16.msra.mxu0 %v5074
        %5183 = vmatpush.bf16.msra.mxu0 %v5066
        %5184 = vmatpush.bf16.msra.mxu0 %v5058
        %5185 = vmatpush.bf16.msra.mxu0 %v5050
        %5186 = vmatpush.bf16.msra.mxu0 %v5042
        %5187 = vmatpush.bf16.msra.mxu0 %v5034
        %5188 = vmatpush.bf16.msra.mxu0 %v5026
        %5189 = vmatpush.bf16.msra.mxu0 %v5018
        %5190 = vmatmul.bf16.gmra.mxu0 %v4757
        %v5191 = vpop.f32.mrf.mxu0
        %v5192 = vadd.f32 0.0, %v5191
        %v5193 = vpop.f32.mrf.mxu0
        %5194 = vdwg.mxu0
        %5195 = vmatpush.bf16.msra.mxu0 %v5075
        %5196 = vmatpush.bf16.msra.mxu0 %v5067
        %5197 = vmatpush.bf16.msra.mxu0 %v5059
        %5198 = vmatpush.bf16.msra.mxu0 %v5051
        %5199 = vmatpush.bf16.msra.mxu0 %v5043
        %5200 = vmatpush.bf16.msra.mxu0 %v5035
        %5201 = vmatpush.bf16.msra.mxu0 %v5027
        %5202 = vmatpush.bf16.msra.mxu0 %v5019
        %5203 = vmatmul.bf16.gmra.mxu0 %v4757
        %v5204 = vpop.f32.mrf.mxu0
        %v5205 = vadd.f32 0.0, %v5204
        %v5206 = vpop.f32.mrf.mxu0
        %5207 = vdwg.mxu0
        %5208 = vmatpush.bf16.msra.mxu0 %v5076
        %5209 = vmatpush.bf16.msra.mxu0 %v5068
        %5210 = vmatpush.bf16.msra.mxu0 %v5060
        %5211 = vmatpush.bf16.msra.mxu0 %v5052
        %5212 = vmatpush.bf16.msra.mxu0 %v5044
        %5213 = vmatpush.bf16.msra.mxu0 %v5036
        %5214 = vmatpush.bf16.msra.mxu0 %v5028
        %5215 = vmatpush.bf16.msra.mxu0 %v5020
        %5216 = vmatmul.bf16.gmra.mxu0 %v4757
        %v5217 = vpop.f32.mrf.mxu0
        %v5218 = vadd.f32 0.0, %v5217
        %v5219 = vpop.f32.mrf.mxu0
        %5220 = vdwg.mxu0
        %5221 = vmatpush.bf16.msra.mxu0 %v5077
        %5222 = vmatpush.bf16.msra.mxu0 %v5069
        %5223 = vmatpush.bf16.msra.mxu0 %v5061
        %5224 = vmatpush.bf16.msra.mxu0 %v5053
        %5225 = vmatpush.bf16.msra.mxu0 %v5045
        %5226 = vmatpush.bf16.msra.mxu0 %v5037
        %5227 = vmatpush.bf16.msra.mxu0 %v5029
        %5228 = vmatpush.bf16.msra.mxu0 %v5021
        %5229 = vmatmul.bf16.gmra.mxu0 %v4757
        %v5230 = vpop.f32.mrf.mxu0
        %v5231 = vadd.f32 0.0, %v5230
        %v5232 = vpop.f32.mrf.mxu0
        %5233 = vdwg.mxu0
        %5234 = vmatpush.bf16.msra.mxu0 %v5078
        %5235 = vmatpush.bf16.msra.mxu0 %v5070
        %5236 = vmatpush.bf16.msra.mxu0 %v5062
        %5237 = vmatpush.bf16.msra.mxu0 %v5054
        %5238 = vmatpush.bf16.msra.mxu0 %v5046
        %5239 = vmatpush.bf16.msra.mxu0 %v5038
        %5240 = vmatpush.bf16.msra.mxu0 %v5030
        %5241 = vmatpush.bf16.msra.mxu0 %v5022
        %5242 = vmatmul.bf16.gmra.mxu0 %v4757
        %v5243 = vpop.f32.mrf.mxu0
        %v5244 = vadd.f32 0.0, %v5243
        %v5245 = vpop.f32.mrf.mxu0
        %5246 = vdwg.mxu0
        %p5247 = scmp.gt.s32.totalorder %s4747, 0
        %s5248 = scalar_select %p5247, %s4747, 0
        %p5249 = scmp.lt.s32.totalorder %s5248, 128
        %s5250 = scalar_select %p5249, %s5248, 128
        %p5251 = scmp.gt.s32.totalorder %s5250, %s4749
        %s5252 = scalar_select %p5251, %s5250, %s4749
        %p5253 = scmp.lt.s32.totalorder %s5252, 128
        %s5254 = scalar_select %p5253, %s5252, 128
        %s5255 = ssub.s32 %s5254, %s5250
        %s5256 = scvt.s32.f32 %s5255
        %v5257 = vstv %s5256
        %v5258 = vrcp.pop %v5257
        %v5259 = vmul.f32 %v5257, %v5258
        %v5260 = vsub.f32 1.0, %v5259
        %v5261 = vmul.f32 %v5258, %v5260
        %v5262 = vadd.f32 %v5258, %v5261
        %vm5263 = vweird.f32 %v5257
        %vm5264 = vweird.f32 %v5258
        %vm5265 = vmor %vm5263, %vm5264
        %v5266 = vsel %vm5265, %v5258, %v5262
        %v5267 = vand.u32 2147483647, %v5257
        %vm5268 = vcmp.eq.f32.partialorder %v5267, 8.507059e+37
        %v5269 = vand.u32 %v5257, 2147483648
        %v5270 = vor.u32 1.1754944e-38, %v5269
        %v5271 = vsel %vm5268, %v5270, %v5266
        %s5272 = vtos %v5271
        %v5273 = vstv %s5272
        %v5274 = vmul.f32 %v5153, %v5273
        %v5275 = vmul.f32 %v5166, %v5273
        %v5276 = vmul.f32 %v5179, %v5273
        %v5277 = vmul.f32 %v5192, %v5273
        %v5278 = vmul.f32 %v5205, %v5273
        %v5279 = vmul.f32 %v5218, %v5273
        %v5280 = vmul.f32 %v5231, %v5273
        %v5281 = vmul.f32 %v5244, %v5273
        %v5290 = vrot.slane %v5275, 7
        %v5291 = vrot.slane %v5276, 6
        %v5292 = vrot.slane %v5277, 5
        %v5293 = vrot.slane %v5278, 4
        %v5294 = vrot.slane %v5279, 3
        %v5295 = vrot.slane %v5280, 2
        %v5296 = vrot.slane %v5281, 1
        %v5297 = vsel %vm787, %v5274, %v5290
        %v5298 = vsel %vm789, %v5291, %v5292
        %v5299 = vsel %vm791, %v5297, %v5298
        %v5300 = vsel %vm793, %v5293, %v5294
        %v5301 = vsel %vm795, %v5295, %v5296
        %v5302 = vsel %vm797, %v5300, %v5301
        %v5303 = vsel %vm799, %v5299, %v5302
        %s5305 = scalar_lea.vmem [#allocation2], 64
        %5306 = vst [vmem:[%s5305] ss:$8 sm:$0xf] %v5303
        %5307 = vst [vmem:[%s5305] ss:$8 sm:$0xf0] %v5303
        %s5308 = sadd.s32 %s236, 9
        %s5309 = smul.u32 %s5308, 128
        %s5310 = sld [smem:[#allocation4 + %s5309]]
        %s5311 = sadd.s32 %s5309, 1
        %s5312 = sld [smem:[#allocation4 + %s5311]]
        %v5313 = vstv %s5310
        %vm5314 = vcmp.ge.s32.totalorder %v235, %v5313
        %v5315 = vstv %s5312
        %vm5316 = vcmp.lt.s32.totalorder %v235, %v5315
        %vm5317 = vmand %vm5314, %vm5316
        %v5318 = vsel %vm5317, 1, 0
        %v5319 = vcvt.s32.f32 %v5318
        %v5320 = vpack.c.bf16 %v5319, %v5319
        %s5321 = scalar_lea.vmem %s198, 4608 [#allocation5]
        %v5322 = vld [vmem:[%s5321] sm:$0xff]
        %v5323 = vld [vmem:[%s5321 + $0x8] sm:$0xff]
        %v5324 = vld [vmem:[%s5321 + $0x10] sm:$0xff]
        %v5325 = vld [vmem:[%s5321 + $0x18] sm:$0xff]
        %v5326 = vld [vmem:[%s5321 + $0x20] sm:$0xff]
        %v5327 = vld [vmem:[%s5321 + $0x28] sm:$0xff]
        %v5328 = vld [vmem:[%s5321 + $0x30] sm:$0xff]
        %v5329 = vld [vmem:[%s5321 + $0x38] sm:$0xff]
        %v5330 = vld [vmem:[%s5321 + $0x40] sm:$0xff]
        %v5331 = vld [vmem:[%s5321 + $0x48] sm:$0xff]
        %v5332 = vld [vmem:[%s5321 + $0x50] sm:$0xff]
        %v5333 = vld [vmem:[%s5321 + $0x58] sm:$0xff]
        %v5334 = vld [vmem:[%s5321 + $0x60] sm:$0xff]
        %v5335 = vld [vmem:[%s5321 + $0x68] sm:$0xff]
        %v5336 = vld [vmem:[%s5321 + $0x70] sm:$0xff]
        %v5337 = vld [vmem:[%s5321 + $0x78] sm:$0xff]
        %v5338 = vld [vmem:[%s5321 + $0x80] sm:$0xff]
        %v5339 = vld [vmem:[%s5321 + $0x88] sm:$0xff]
        %v5340 = vld [vmem:[%s5321 + $0x90] sm:$0xff]
        %v5341 = vld [vmem:[%s5321 + $0x98] sm:$0xff]
        %v5342 = vld [vmem:[%s5321 + $0xa0] sm:$0xff]
        %v5343 = vld [vmem:[%s5321 + $0xa8] sm:$0xff]
        %v5344 = vld [vmem:[%s5321 + $0xb0] sm:$0xff]
        %v5345 = vld [vmem:[%s5321 + $0xb8] sm:$0xff]
        %v5346 = vld [vmem:[%s5321 + $0xc0] sm:$0xff]
        %v5347 = vld [vmem:[%s5321 + $0xc8] sm:$0xff]
        %v5348 = vld [vmem:[%s5321 + $0xd0] sm:$0xff]
        %v5349 = vld [vmem:[%s5321 + $0xd8] sm:$0xff]
        %v5350 = vld [vmem:[%s5321 + $0xe0] sm:$0xff]
        %v5351 = vld [vmem:[%s5321 + $0xe8] sm:$0xff]
        %v5352 = vld [vmem:[%s5321 + $0xf0] sm:$0xff]
        %v5353 = vld [vmem:[%s5321 + $0xf8] sm:$0xff]
        %v5354 = vld [vmem:[%s5321 + $0x100] sm:$0xff]
        %v5355 = vld [vmem:[%s5321 + $0x108] sm:$0xff]
        %v5356 = vld [vmem:[%s5321 + $0x110] sm:$0xff]
        %v5357 = vld [vmem:[%s5321 + $0x118] sm:$0xff]
        %v5358 = vld [vmem:[%s5321 + $0x120] sm:$0xff]
        %v5359 = vld [vmem:[%s5321 + $0x128] sm:$0xff]
        %v5360 = vld [vmem:[%s5321 + $0x130] sm:$0xff]
        %v5361 = vld [vmem:[%s5321 + $0x138] sm:$0xff]
        %v5362 = vld [vmem:[%s5321 + $0x140] sm:$0xff]
        %v5363 = vld [vmem:[%s5321 + $0x148] sm:$0xff]
        %v5364 = vld [vmem:[%s5321 + $0x150] sm:$0xff]
        %v5365 = vld [vmem:[%s5321 + $0x158] sm:$0xff]
        %v5366 = vld [vmem:[%s5321 + $0x160] sm:$0xff]
        %v5367 = vld [vmem:[%s5321 + $0x168] sm:$0xff]
        %v5368 = vld [vmem:[%s5321 + $0x170] sm:$0xff]
        %v5369 = vld [vmem:[%s5321 + $0x178] sm:$0xff]
        %v5370 = vld [vmem:[%s5321 + $0x180] sm:$0xff]
        %v5371 = vld [vmem:[%s5321 + $0x188] sm:$0xff]
        %v5372 = vld [vmem:[%s5321 + $0x190] sm:$0xff]
        %v5373 = vld [vmem:[%s5321 + $0x198] sm:$0xff]
        %v5374 = vld [vmem:[%s5321 + $0x1a0] sm:$0xff]
        %v5375 = vld [vmem:[%s5321 + $0x1a8] sm:$0xff]
        %v5376 = vld [vmem:[%s5321 + $0x1b0] sm:$0xff]
        %v5377 = vld [vmem:[%s5321 + $0x1b8] sm:$0xff]
        %v5378 = vld [vmem:[%s5321 + $0x1c0] sm:$0xff]
        %v5379 = vld [vmem:[%s5321 + $0x1c8] sm:$0xff]
        %v5380 = vld [vmem:[%s5321 + $0x1d0] sm:$0xff]
        %v5381 = vld [vmem:[%s5321 + $0x1d8] sm:$0xff]
        %v5382 = vld [vmem:[%s5321 + $0x1e0] sm:$0xff]
        %v5383 = vld [vmem:[%s5321 + $0x1e8] sm:$0xff]
        %v5384 = vld [vmem:[%s5321 + $0x1f0] sm:$0xff]
        %v5385 = vld [vmem:[%s5321 + $0x1f8] sm:$0xff]
        %v5450 = vunpack.c.l.b16 %v5322
        %v5451 = vunpack.c.h.b16 %v5322
        %v5452 = vunpack.c.l.b16 %v5323
        %v5453 = vunpack.c.h.b16 %v5323
        %v5454 = vunpack.c.l.b16 %v5324
        %v5455 = vunpack.c.h.b16 %v5324
        %v5456 = vunpack.c.l.b16 %v5325
        %v5457 = vunpack.c.h.b16 %v5325
        %v5458 = vunpack.c.l.b16 %v5326
        %v5459 = vunpack.c.h.b16 %v5326
        %v5460 = vunpack.c.l.b16 %v5327
        %v5461 = vunpack.c.h.b16 %v5327
        %v5462 = vunpack.c.l.b16 %v5328
        %v5463 = vunpack.c.h.b16 %v5328
        %v5464 = vunpack.c.l.b16 %v5329
        %v5465 = vunpack.c.h.b16 %v5329
        %v5466 = vunpack.c.l.b16 %v5330
        %v5467 = vunpack.c.h.b16 %v5330
        %v5468 = vunpack.c.l.b16 %v5331
        %v5469 = vunpack.c.h.b16 %v5331
        %v5470 = vunpack.c.l.b16 %v5332
        %v5471 = vunpack.c.h.b16 %v5332
        %v5472 = vunpack.c.l.b16 %v5333
        %v5473 = vunpack.c.h.b16 %v5333
        %v5474 = vunpack.c.l.b16 %v5334
        %v5475 = vunpack.c.h.b16 %v5334
        %v5476 = vunpack.c.l.b16 %v5335
        %v5477 = vunpack.c.h.b16 %v5335
        %v5478 = vunpack.c.l.b16 %v5336
        %v5479 = vunpack.c.h.b16 %v5336
        %v5480 = vunpack.c.l.b16 %v5337
        %v5481 = vunpack.c.h.b16 %v5337
        %v5482 = vunpack.c.l.b16 %v5338
        %v5483 = vunpack.c.h.b16 %v5338
        %v5484 = vunpack.c.l.b16 %v5339
        %v5485 = vunpack.c.h.b16 %v5339
        %v5486 = vunpack.c.l.b16 %v5340
        %v5487 = vunpack.c.h.b16 %v5340
        %v5488 = vunpack.c.l.b16 %v5341
        %v5489 = vunpack.c.h.b16 %v5341
        %v5490 = vunpack.c.l.b16 %v5342
        %v5491 = vunpack.c.h.b16 %v5342
        %v5492 = vunpack.c.l.b16 %v5343
        %v5493 = vunpack.c.h.b16 %v5343
        %v5494 = vunpack.c.l.b16 %v5344
        %v5495 = vunpack.c.h.b16 %v5344
        %v5496 = vunpack.c.l.b16 %v5345
        %v5497 = vunpack.c.h.b16 %v5345
        %v5498 = vunpack.c.l.b16 %v5346
        %v5499 = vunpack.c.h.b16 %v5346
        %v5500 = vunpack.c.l.b16 %v5347
        %v5501 = vunpack.c.h.b16 %v5347
        %v5502 = vunpack.c.l.b16 %v5348
        %v5503 = vunpack.c.h.b16 %v5348
        %v5504 = vunpack.c.l.b16 %v5349
        %v5505 = vunpack.c.h.b16 %v5349
        %v5506 = vunpack.c.l.b16 %v5350
        %v5507 = vunpack.c.h.b16 %v5350
        %v5508 = vunpack.c.l.b16 %v5351
        %v5509 = vunpack.c.h.b16 %v5351
        %v5510 = vunpack.c.l.b16 %v5352
        %v5511 = vunpack.c.h.b16 %v5352
        %v5512 = vunpack.c.l.b16 %v5353
        %v5513 = vunpack.c.h.b16 %v5353
        %v5514 = vunpack.c.l.b16 %v5354
        %v5515 = vunpack.c.h.b16 %v5354
        %v5516 = vunpack.c.l.b16 %v5355
        %v5517 = vunpack.c.h.b16 %v5355
        %v5518 = vunpack.c.l.b16 %v5356
        %v5519 = vunpack.c.h.b16 %v5356
        %v5520 = vunpack.c.l.b16 %v5357
        %v5521 = vunpack.c.h.b16 %v5357
        %v5522 = vunpack.c.l.b16 %v5358
        %v5523 = vunpack.c.h.b16 %v5358
        %v5524 = vunpack.c.l.b16 %v5359
        %v5525 = vunpack.c.h.b16 %v5359
        %v5526 = vunpack.c.l.b16 %v5360
        %v5527 = vunpack.c.h.b16 %v5360
        %v5528 = vunpack.c.l.b16 %v5361
        %v5529 = vunpack.c.h.b16 %v5361
        %v5530 = vunpack.c.l.b16 %v5362
        %v5531 = vunpack.c.h.b16 %v5362
        %v5532 = vunpack.c.l.b16 %v5363
        %v5533 = vunpack.c.h.b16 %v5363
        %v5534 = vunpack.c.l.b16 %v5364
        %v5535 = vunpack.c.h.b16 %v5364
        %v5536 = vunpack.c.l.b16 %v5365
        %v5537 = vunpack.c.h.b16 %v5365
        %v5538 = vunpack.c.l.b16 %v5366
        %v5539 = vunpack.c.h.b16 %v5366
        %v5540 = vunpack.c.l.b16 %v5367
        %v5541 = vunpack.c.h.b16 %v5367
        %v5542 = vunpack.c.l.b16 %v5368
        %v5543 = vunpack.c.h.b16 %v5368
        %v5544 = vunpack.c.l.b16 %v5369
        %v5545 = vunpack.c.h.b16 %v5369
        %v5546 = vunpack.c.l.b16 %v5370
        %v5547 = vunpack.c.h.b16 %v5370
        %v5548 = vunpack.c.l.b16 %v5371
        %v5549 = vunpack.c.h.b16 %v5371
        %v5550 = vunpack.c.l.b16 %v5372
        %v5551 = vunpack.c.h.b16 %v5372
        %v5552 = vunpack.c.l.b16 %v5373
        %v5553 = vunpack.c.h.b16 %v5373
        %v5554 = vunpack.c.l.b16 %v5374
        %v5555 = vunpack.c.h.b16 %v5374
        %v5556 = vunpack.c.l.b16 %v5375
        %v5557 = vunpack.c.h.b16 %v5375
        %v5558 = vunpack.c.l.b16 %v5376
        %v5559 = vunpack.c.h.b16 %v5376
        %v5560 = vunpack.c.l.b16 %v5377
        %v5561 = vunpack.c.h.b16 %v5377
        %v5562 = vunpack.c.l.b16 %v5378
        %v5563 = vunpack.c.h.b16 %v5378
        %v5564 = vunpack.c.l.b16 %v5379
        %v5565 = vunpack.c.h.b16 %v5379
        %v5566 = vunpack.c.l.b16 %v5380
        %v5567 = vunpack.c.h.b16 %v5380
        %v5568 = vunpack.c.l.b16 %v5381
        %v5569 = vunpack.c.h.b16 %v5381
        %v5570 = vunpack.c.l.b16 %v5382
        %v5571 = vunpack.c.h.b16 %v5382
        %v5572 = vunpack.c.l.b16 %v5383
        %v5573 = vunpack.c.h.b16 %v5383
        %v5574 = vunpack.c.l.b16 %v5384
        %v5575 = vunpack.c.h.b16 %v5384
        %v5576 = vunpack.c.l.b16 %v5385
        %v5577 = vunpack.c.h.b16 %v5385
        %v5578 = vpack.c.b16 %v5458, %v5450
        %v5579 = vpack.c.b16 %v5459, %v5451
        %v5580 = vpack.c.b16 %v5460, %v5452
        %v5581 = vpack.c.b16 %v5461, %v5453
        %v5582 = vpack.c.b16 %v5462, %v5454
        %v5583 = vpack.c.b16 %v5463, %v5455
        %v5584 = vpack.c.b16 %v5464, %v5456
        %v5585 = vpack.c.b16 %v5465, %v5457
        %v5586 = vpack.c.b16 %v5474, %v5466
        %v5587 = vpack.c.b16 %v5475, %v5467
        %v5588 = vpack.c.b16 %v5476, %v5468
        %v5589 = vpack.c.b16 %v5477, %v5469
        %v5590 = vpack.c.b16 %v5478, %v5470
        %v5591 = vpack.c.b16 %v5479, %v5471
        %v5592 = vpack.c.b16 %v5480, %v5472
        %v5593 = vpack.c.b16 %v5481, %v5473
        %v5594 = vpack.c.b16 %v5490, %v5482
        %v5595 = vpack.c.b16 %v5491, %v5483
        %v5596 = vpack.c.b16 %v5492, %v5484
        %v5597 = vpack.c.b16 %v5493, %v5485
        %v5598 = vpack.c.b16 %v5494, %v5486
        %v5599 = vpack.c.b16 %v5495, %v5487
        %v5600 = vpack.c.b16 %v5496, %v5488
        %v5601 = vpack.c.b16 %v5497, %v5489
        %v5602 = vpack.c.b16 %v5506, %v5498
        %v5603 = vpack.c.b16 %v5507, %v5499
        %v5604 = vpack.c.b16 %v5508, %v5500
        %v5605 = vpack.c.b16 %v5509, %v5501
        %v5606 = vpack.c.b16 %v5510, %v5502
        %v5607 = vpack.c.b16 %v5511, %v5503
        %v5608 = vpack.c.b16 %v5512, %v5504
        %v5609 = vpack.c.b16 %v5513, %v5505
        %v5610 = vpack.c.b16 %v5522, %v5514
        %v5611 = vpack.c.b16 %v5523, %v5515
        %v5612 = vpack.c.b16 %v5524, %v5516
        %v5613 = vpack.c.b16 %v5525, %v5517
        %v5614 = vpack.c.b16 %v5526, %v5518
        %v5615 = vpack.c.b16 %v5527, %v5519
        %v5616 = vpack.c.b16 %v5528, %v5520
        %v5617 = vpack.c.b16 %v5529, %v5521
        %v5618 = vpack.c.b16 %v5538, %v5530
        %v5619 = vpack.c.b16 %v5539, %v5531
        %v5620 = vpack.c.b16 %v5540, %v5532
        %v5621 = vpack.c.b16 %v5541, %v5533
        %v5622 = vpack.c.b16 %v5542, %v5534
        %v5623 = vpack.c.b16 %v5543, %v5535
        %v5624 = vpack.c.b16 %v5544, %v5536
        %v5625 = vpack.c.b16 %v5545, %v5537
        %v5626 = vpack.c.b16 %v5554, %v5546
        %v5627 = vpack.c.b16 %v5555, %v5547
        %v5628 = vpack.c.b16 %v5556, %v5548
        %v5629 = vpack.c.b16 %v5557, %v5549
        %v5630 = vpack.c.b16 %v5558, %v5550
        %v5631 = vpack.c.b16 %v5559, %v5551
        %v5632 = vpack.c.b16 %v5560, %v5552
        %v5633 = vpack.c.b16 %v5561, %v5553
        %v5634 = vpack.c.b16 %v5570, %v5562
        %v5635 = vpack.c.b16 %v5571, %v5563
        %v5636 = vpack.c.b16 %v5572, %v5564
        %v5637 = vpack.c.b16 %v5573, %v5565
        %v5638 = vpack.c.b16 %v5574, %v5566
        %v5639 = vpack.c.b16 %v5575, %v5567
        %v5640 = vpack.c.b16 %v5576, %v5568
        %v5641 = vpack.c.b16 %v5577, %v5569
        %5706 = vmatpush.bf16.msra.mxu0 %v5634
        %5707 = vmatpush.bf16.msra.mxu0 %v5626
        %5708 = vmatpush.bf16.msra.mxu0 %v5618
        %5709 = vmatpush.bf16.msra.mxu0 %v5610
        %5710 = vmatpush.bf16.msra.mxu0 %v5602
        %5711 = vmatpush.bf16.msra.mxu0 %v5594
        %5712 = vmatpush.bf16.msra.mxu0 %v5586
        %5713 = vmatpush.bf16.msra.mxu0 %v5578
        %5714 = vmatmul.bf16.gmra.mxu0 %v5320
        %v5715 = vpop.f32.mrf.mxu0
        %v5716 = vadd.f32 0.0, %v5715
        %v5717 = vpop.f32.mrf.mxu0
        %5718 = vdwg.mxu0
        %5719 = vmatpush.bf16.msra.mxu0 %v5635
        %5720 = vmatpush.bf16.msra.mxu0 %v5627
        %5721 = vmatpush.bf16.msra.mxu0 %v5619
        %5722 = vmatpush.bf16.msra.mxu0 %v5611
        %5723 = vmatpush.bf16.msra.mxu0 %v5603
        %5724 = vmatpush.bf16.msra.mxu0 %v5595
        %5725 = vmatpush.bf16.msra.mxu0 %v5587
        %5726 = vmatpush.bf16.msra.mxu0 %v5579
        %5727 = vmatmul.bf16.gmra.mxu0 %v5320
        %v5728 = vpop.f32.mrf.mxu0
        %v5729 = vadd.f32 0.0, %v5728
        %v5730 = vpop.f32.mrf.mxu0
        %5731 = vdwg.mxu0
        %5732 = vmatpush.bf16.msra.mxu0 %v5636
        %5733 = vmatpush.bf16.msra.mxu0 %v5628
        %5734 = vmatpush.bf16.msra.mxu0 %v5620
        %5735 = vmatpush.bf16.msra.mxu0 %v5612
        %5736 = vmatpush.bf16.msra.mxu0 %v5604
        %5737 = vmatpush.bf16.msra.mxu0 %v5596
        %5738 = vmatpush.bf16.msra.mxu0 %v5588
        %5739 = vmatpush.bf16.msra.mxu0 %v5580
        %5740 = vmatmul.bf16.gmra.mxu0 %v5320
        %v5741 = vpop.f32.mrf.mxu0
        %v5742 = vadd.f32 0.0, %v5741
        %v5743 = vpop.f32.mrf.mxu0
        %5744 = vdwg.mxu0
        %5745 = vmatpush.bf16.msra.mxu0 %v5637
        %5746 = vmatpush.bf16.msra.mxu0 %v5629
        %5747 = vmatpush.bf16.msra.mxu0 %v5621
        %5748 = vmatpush.bf16.msra.mxu0 %v5613
        %5749 = vmatpush.bf16.msra.mxu0 %v5605
        %5750 = vmatpush.bf16.msra.mxu0 %v5597
        %5751 = vmatpush.bf16.msra.mxu0 %v5589
        %5752 = vmatpush.bf16.msra.mxu0 %v5581
        %5753 = vmatmul.bf16.gmra.mxu0 %v5320
        %v5754 = vpop.f32.mrf.mxu0
        %v5755 = vadd.f32 0.0, %v5754
        %v5756 = vpop.f32.mrf.mxu0
        %5757 = vdwg.mxu0
        %5758 = vmatpush.bf16.msra.mxu0 %v5638
        %5759 = vmatpush.bf16.msra.mxu0 %v5630
        %5760 = vmatpush.bf16.msra.mxu0 %v5622
        %5761 = vmatpush.bf16.msra.mxu0 %v5614
        %5762 = vmatpush.bf16.msra.mxu0 %v5606
        %5763 = vmatpush.bf16.msra.mxu0 %v5598
        %5764 = vmatpush.bf16.msra.mxu0 %v5590
        %5765 = vmatpush.bf16.msra.mxu0 %v5582
        %5766 = vmatmul.bf16.gmra.mxu0 %v5320
        %v5767 = vpop.f32.mrf.mxu0
        %v5768 = vadd.f32 0.0, %v5767
        %v5769 = vpop.f32.mrf.mxu0
        %5770 = vdwg.mxu0
        %5771 = vmatpush.bf16.msra.mxu0 %v5639
        %5772 = vmatpush.bf16.msra.mxu0 %v5631
        %5773 = vmatpush.bf16.msra.mxu0 %v5623
        %5774 = vmatpush.bf16.msra.mxu0 %v5615
        %5775 = vmatpush.bf16.msra.mxu0 %v5607
        %5776 = vmatpush.bf16.msra.mxu0 %v5599
        %5777 = vmatpush.bf16.msra.mxu0 %v5591
        %5778 = vmatpush.bf16.msra.mxu0 %v5583
        %5779 = vmatmul.bf16.gmra.mxu0 %v5320
        %v5780 = vpop.f32.mrf.mxu0
        %v5781 = vadd.f32 0.0, %v5780
        %v5782 = vpop.f32.mrf.mxu0
        %5783 = vdwg.mxu0
        %5784 = vmatpush.bf16.msra.mxu0 %v5640
        %5785 = vmatpush.bf16.msra.mxu0 %v5632
        %5786 = vmatpush.bf16.msra.mxu0 %v5624
        %5787 = vmatpush.bf16.msra.mxu0 %v5616
        %5788 = vmatpush.bf16.msra.mxu0 %v5608
        %5789 = vmatpush.bf16.msra.mxu0 %v5600
        %5790 = vmatpush.bf16.msra.mxu0 %v5592
        %5791 = vmatpush.bf16.msra.mxu0 %v5584
        %5792 = vmatmul.bf16.gmra.mxu0 %v5320
        %v5793 = vpop.f32.mrf.mxu0
        %v5794 = vadd.f32 0.0, %v5793
        %v5795 = vpop.f32.mrf.mxu0
        %5796 = vdwg.mxu0
        %5797 = vmatpush.bf16.msra.mxu0 %v5641
        %5798 = vmatpush.bf16.msra.mxu0 %v5633
        %5799 = vmatpush.bf16.msra.mxu0 %v5625
        %5800 = vmatpush.bf16.msra.mxu0 %v5617
        %5801 = vmatpush.bf16.msra.mxu0 %v5609
        %5802 = vmatpush.bf16.msra.mxu0 %v5601
        %5803 = vmatpush.bf16.msra.mxu0 %v5593
        %5804 = vmatpush.bf16.msra.mxu0 %v5585
        %5805 = vmatmul.bf16.gmra.mxu0 %v5320
        %v5806 = vpop.f32.mrf.mxu0
        %v5807 = vadd.f32 0.0, %v5806
        %v5808 = vpop.f32.mrf.mxu0
        %5809 = vdwg.mxu0
        %p5810 = scmp.gt.s32.totalorder %s5310, 0
        %s5811 = scalar_select %p5810, %s5310, 0
        %p5812 = scmp.lt.s32.totalorder %s5811, 128
        %s5813 = scalar_select %p5812, %s5811, 128
        %p5814 = scmp.gt.s32.totalorder %s5813, %s5312
        %s5815 = scalar_select %p5814, %s5813, %s5312
        %p5816 = scmp.lt.s32.totalorder %s5815, 128
        %s5817 = scalar_select %p5816, %s5815, 128
        %s5818 = ssub.s32 %s5817, %s5813
        %s5819 = scvt.s32.f32 %s5818
        %v5820 = vstv %s5819
        %v5821 = vrcp.pop %v5820
        %v5822 = vmul.f32 %v5820, %v5821
        %v5823 = vsub.f32 1.0, %v5822
        %v5824 = vmul.f32 %v5821, %v5823
        %v5825 = vadd.f32 %v5821, %v5824
        %vm5826 = vweird.f32 %v5820
        %vm5827 = vweird.f32 %v5821
        %vm5828 = vmor %vm5826, %vm5827
        %v5829 = vsel %vm5828, %v5821, %v5825
        %v5830 = vand.u32 2147483647, %v5820
        %vm5831 = vcmp.eq.f32.partialorder %v5830, 8.507059e+37
        %v5832 = vand.u32 %v5820, 2147483648
        %v5833 = vor.u32 1.1754944e-38, %v5832
        %v5834 = vsel %vm5831, %v5833, %v5829
        %s5835 = vtos %v5834
        %v5836 = vstv %s5835
        %v5837 = vmul.f32 %v5716, %v5836
        %v5838 = vmul.f32 %v5729, %v5836
        %v5839 = vmul.f32 %v5742, %v5836
        %v5840 = vmul.f32 %v5755, %v5836
        %v5841 = vmul.f32 %v5768, %v5836
        %v5842 = vmul.f32 %v5781, %v5836
        %v5843 = vmul.f32 %v5794, %v5836
        %v5844 = vmul.f32 %v5807, %v5836
        %v5853 = vrot.slane %v5838, 7
        %v5854 = vrot.slane %v5839, 6
        %v5855 = vrot.slane %v5840, 5
        %v5856 = vrot.slane %v5841, 4
        %v5857 = vrot.slane %v5842, 3
        %v5858 = vrot.slane %v5843, 2
        %v5859 = vrot.slane %v5844, 1
        %v5860 = vsel %vm787, %v5837, %v5853
        %v5861 = vsel %vm789, %v5854, %v5855
        %v5862 = vsel %vm791, %v5860, %v5861
        %v5863 = vsel %vm793, %v5856, %v5857
        %v5864 = vsel %vm795, %v5858, %v5859
        %v5865 = vsel %vm797, %v5863, %v5864
        %v5866 = vsel %vm799, %v5862, %v5865
        %s5868 = scalar_lea.vmem [#allocation2], 65
        %5869 = vst [vmem:[%s5868] ss:$8 sm:$0xf] %v5866
        %5870 = vst [vmem:[%s5868] ss:$8 sm:$0xf0] %v5866
        %s5871 = sadd.s32 %s236, 10
        %s5872 = smul.u32 %s5871, 128
        %s5873 = sld [smem:[#allocation4 + %s5872]]
        %s5874 = sadd.s32 %s5872, 1
        %s5875 = sld [smem:[#allocation4 + %s5874]]
        %v5876 = vstv %s5873
        %vm5877 = vcmp.ge.s32.totalorder %v235, %v5876
        %v5878 = vstv %s5875
        %vm5879 = vcmp.lt.s32.totalorder %v235, %v5878
        %vm5880 = vmand %vm5877, %vm5879
        %v5881 = vsel %vm5880, 1, 0
        %v5882 = vcvt.s32.f32 %v5881
        %v5883 = vpack.c.bf16 %v5882, %v5882
        %s5884 = scalar_lea.vmem %s198, 5120 [#allocation5]
        %v5885 = vld [vmem:[%s5884] sm:$0xff]
        %v5886 = vld [vmem:[%s5884 + $0x8] sm:$0xff]
        %v5887 = vld [vmem:[%s5884 + $0x10] sm:$0xff]
        %v5888 = vld [vmem:[%s5884 + $0x18] sm:$0xff]
        %v5889 = vld [vmem:[%s5884 + $0x20] sm:$0xff]
        %v5890 = vld [vmem:[%s5884 + $0x28] sm:$0xff]
        %v5891 = vld [vmem:[%s5884 + $0x30] sm:$0xff]
        %v5892 = vld [vmem:[%s5884 + $0x38] sm:$0xff]
        %v5893 = vld [vmem:[%s5884 + $0x40] sm:$0xff]
        %v5894 = vld [vmem:[%s5884 + $0x48] sm:$0xff]
        %v5895 = vld [vmem:[%s5884 + $0x50] sm:$0xff]
        %v5896 = vld [vmem:[%s5884 + $0x58] sm:$0xff]
        %v5897 = vld [vmem:[%s5884 + $0x60] sm:$0xff]
        %v5898 = vld [vmem:[%s5884 + $0x68] sm:$0xff]
        %v5899 = vld [vmem:[%s5884 + $0x70] sm:$0xff]
        %v5900 = vld [vmem:[%s5884 + $0x78] sm:$0xff]
        %v5901 = vld [vmem:[%s5884 + $0x80] sm:$0xff]
        %v5902 = vld [vmem:[%s5884 + $0x88] sm:$0xff]
        %v5903 = vld [vmem:[%s5884 + $0x90] sm:$0xff]
        %v5904 = vld [vmem:[%s5884 + $0x98] sm:$0xff]
        %v5905 = vld [vmem:[%s5884 + $0xa0] sm:$0xff]
        %v5906 = vld [vmem:[%s5884 + $0xa8] sm:$0xff]
        %v5907 = vld [vmem:[%s5884 + $0xb0] sm:$0xff]
        %v5908 = vld [vmem:[%s5884 + $0xb8] sm:$0xff]
        %v5909 = vld [vmem:[%s5884 + $0xc0] sm:$0xff]
        %v5910 = vld [vmem:[%s5884 + $0xc8] sm:$0xff]
        %v5911 = vld [vmem:[%s5884 + $0xd0] sm:$0xff]
        %v5912 = vld [vmem:[%s5884 + $0xd8] sm:$0xff]
        %v5913 = vld [vmem:[%s5884 + $0xe0] sm:$0xff]
        %v5914 = vld [vmem:[%s5884 + $0xe8] sm:$0xff]
        %v5915 = vld [vmem:[%s5884 + $0xf0] sm:$0xff]
        %v5916 = vld [vmem:[%s5884 + $0xf8] sm:$0xff]
        %v5917 = vld [vmem:[%s5884 + $0x100] sm:$0xff]
        %v5918 = vld [vmem:[%s5884 + $0x108] sm:$0xff]
        %v5919 = vld [vmem:[%s5884 + $0x110] sm:$0xff]
        %v5920 = vld [vmem:[%s5884 + $0x118] sm:$0xff]
        %v5921 = vld [vmem:[%s5884 + $0x120] sm:$0xff]
        %v5922 = vld [vmem:[%s5884 + $0x128] sm:$0xff]
        %v5923 = vld [vmem:[%s5884 + $0x130] sm:$0xff]
        %v5924 = vld [vmem:[%s5884 + $0x138] sm:$0xff]
        %v5925 = vld [vmem:[%s5884 + $0x140] sm:$0xff]
        %v5926 = vld [vmem:[%s5884 + $0x148] sm:$0xff]
        %v5927 = vld [vmem:[%s5884 + $0x150] sm:$0xff]
        %v5928 = vld [vmem:[%s5884 + $0x158] sm:$0xff]
        %v5929 = vld [vmem:[%s5884 + $0x160] sm:$0xff]
        %v5930 = vld [vmem:[%s5884 + $0x168] sm:$0xff]
        %v5931 = vld [vmem:[%s5884 + $0x170] sm:$0xff]
        %v5932 = vld [vmem:[%s5884 + $0x178] sm:$0xff]
        %v5933 = vld [vmem:[%s5884 + $0x180] sm:$0xff]
        %v5934 = vld [vmem:[%s5884 + $0x188] sm:$0xff]
        %v5935 = vld [vmem:[%s5884 + $0x190] sm:$0xff]
        %v5936 = vld [vmem:[%s5884 + $0x198] sm:$0xff]
        %v5937 = vld [vmem:[%s5884 + $0x1a0] sm:$0xff]
        %v5938 = vld [vmem:[%s5884 + $0x1a8] sm:$0xff]
        %v5939 = vld [vmem:[%s5884 + $0x1b0] sm:$0xff]
        %v5940 = vld [vmem:[%s5884 + $0x1b8] sm:$0xff]
        %v5941 = vld [vmem:[%s5884 + $0x1c0] sm:$0xff]
        %v5942 = vld [vmem:[%s5884 + $0x1c8] sm:$0xff]
        %v5943 = vld [vmem:[%s5884 + $0x1d0] sm:$0xff]
        %v5944 = vld [vmem:[%s5884 + $0x1d8] sm:$0xff]
        %v5945 = vld [vmem:[%s5884 + $0x1e0] sm:$0xff]
        %v5946 = vld [vmem:[%s5884 + $0x1e8] sm:$0xff]
        %v5947 = vld [vmem:[%s5884 + $0x1f0] sm:$0xff]
        %v5948 = vld [vmem:[%s5884 + $0x1f8] sm:$0xff]
        %v6013 = vunpack.c.l.b16 %v5885
        %v6014 = vunpack.c.h.b16 %v5885
        %v6015 = vunpack.c.l.b16 %v5886
        %v6016 = vunpack.c.h.b16 %v5886
        %v6017 = vunpack.c.l.b16 %v5887
        %v6018 = vunpack.c.h.b16 %v5887
        %v6019 = vunpack.c.l.b16 %v5888
        %v6020 = vunpack.c.h.b16 %v5888
        %v6021 = vunpack.c.l.b16 %v5889
        %v6022 = vunpack.c.h.b16 %v5889
        %v6023 = vunpack.c.l.b16 %v5890
        %v6024 = vunpack.c.h.b16 %v5890
        %v6025 = vunpack.c.l.b16 %v5891
        %v6026 = vunpack.c.h.b16 %v5891
        %v6027 = vunpack.c.l.b16 %v5892
        %v6028 = vunpack.c.h.b16 %v5892
        %v6029 = vunpack.c.l.b16 %v5893
        %v6030 = vunpack.c.h.b16 %v5893
        %v6031 = vunpack.c.l.b16 %v5894
        %v6032 = vunpack.c.h.b16 %v5894
        %v6033 = vunpack.c.l.b16 %v5895
        %v6034 = vunpack.c.h.b16 %v5895
        %v6035 = vunpack.c.l.b16 %v5896
        %v6036 = vunpack.c.h.b16 %v5896
        %v6037 = vunpack.c.l.b16 %v5897
        %v6038 = vunpack.c.h.b16 %v5897
        %v6039 = vunpack.c.l.b16 %v5898
        %v6040 = vunpack.c.h.b16 %v5898
        %v6041 = vunpack.c.l.b16 %v5899
        %v6042 = vunpack.c.h.b16 %v5899
        %v6043 = vunpack.c.l.b16 %v5900
        %v6044 = vunpack.c.h.b16 %v5900
        %v6045 = vunpack.c.l.b16 %v5901
        %v6046 = vunpack.c.h.b16 %v5901
        %v6047 = vunpack.c.l.b16 %v5902
        %v6048 = vunpack.c.h.b16 %v5902
        %v6049 = vunpack.c.l.b16 %v5903
        %v6050 = vunpack.c.h.b16 %v5903
        %v6051 = vunpack.c.l.b16 %v5904
        %v6052 = vunpack.c.h.b16 %v5904
        %v6053 = vunpack.c.l.b16 %v5905
        %v6054 = vunpack.c.h.b16 %v5905
        %v6055 = vunpack.c.l.b16 %v5906
        %v6056 = vunpack.c.h.b16 %v5906
        %v6057 = vunpack.c.l.b16 %v5907
        %v6058 = vunpack.c.h.b16 %v5907
        %v6059 = vunpack.c.l.b16 %v5908
        %v6060 = vunpack.c.h.b16 %v5908
        %v6061 = vunpack.c.l.b16 %v5909
        %v6062 = vunpack.c.h.b16 %v5909
        %v6063 = vunpack.c.l.b16 %v5910
        %v6064 = vunpack.c.h.b16 %v5910
        %v6065 = vunpack.c.l.b16 %v5911
        %v6066 = vunpack.c.h.b16 %v5911
        %v6067 = vunpack.c.l.b16 %v5912
        %v6068 = vunpack.c.h.b16 %v5912
        %v6069 = vunpack.c.l.b16 %v5913
        %v6070 = vunpack.c.h.b16 %v5913
        %v6071 = vunpack.c.l.b16 %v5914
        %v6072 = vunpack.c.h.b16 %v5914
        %v6073 = vunpack.c.l.b16 %v5915
        %v6074 = vunpack.c.h.b16 %v5915
        %v6075 = vunpack.c.l.b16 %v5916
        %v6076 = vunpack.c.h.b16 %v5916
        %v6077 = vunpack.c.l.b16 %v5917
        %v6078 = vunpack.c.h.b16 %v5917
        %v6079 = vunpack.c.l.b16 %v5918
        %v6080 = vunpack.c.h.b16 %v5918
        %v6081 = vunpack.c.l.b16 %v5919
        %v6082 = vunpack.c.h.b16 %v5919
        %v6083 = vunpack.c.l.b16 %v5920
        %v6084 = vunpack.c.h.b16 %v5920
        %v6085 = vunpack.c.l.b16 %v5921
        %v6086 = vunpack.c.h.b16 %v5921
        %v6087 = vunpack.c.l.b16 %v5922
        %v6088 = vunpack.c.h.b16 %v5922
        %v6089 = vunpack.c.l.b16 %v5923
        %v6090 = vunpack.c.h.b16 %v5923
        %v6091 = vunpack.c.l.b16 %v5924
        %v6092 = vunpack.c.h.b16 %v5924
        %v6093 = vunpack.c.l.b16 %v5925
        %v6094 = vunpack.c.h.b16 %v5925
        %v6095 = vunpack.c.l.b16 %v5926
        %v6096 = vunpack.c.h.b16 %v5926
        %v6097 = vunpack.c.l.b16 %v5927
        %v6098 = vunpack.c.h.b16 %v5927
        %v6099 = vunpack.c.l.b16 %v5928
        %v6100 = vunpack.c.h.b16 %v5928
        %v6101 = vunpack.c.l.b16 %v5929
        %v6102 = vunpack.c.h.b16 %v5929
        %v6103 = vunpack.c.l.b16 %v5930
        %v6104 = vunpack.c.h.b16 %v5930
        %v6105 = vunpack.c.l.b16 %v5931
        %v6106 = vunpack.c.h.b16 %v5931
        %v6107 = vunpack.c.l.b16 %v5932
        %v6108 = vunpack.c.h.b16 %v5932
        %v6109 = vunpack.c.l.b16 %v5933
        %v6110 = vunpack.c.h.b16 %v5933
        %v6111 = vunpack.c.l.b16 %v5934
        %v6112 = vunpack.c.h.b16 %v5934
        %v6113 = vunpack.c.l.b16 %v5935
        %v6114 = vunpack.c.h.b16 %v5935
        %v6115 = vunpack.c.l.b16 %v5936
        %v6116 = vunpack.c.h.b16 %v5936
        %v6117 = vunpack.c.l.b16 %v5937
        %v6118 = vunpack.c.h.b16 %v5937
        %v6119 = vunpack.c.l.b16 %v5938
        %v6120 = vunpack.c.h.b16 %v5938
        %v6121 = vunpack.c.l.b16 %v5939
        %v6122 = vunpack.c.h.b16 %v5939
        %v6123 = vunpack.c.l.b16 %v5940
        %v6124 = vunpack.c.h.b16 %v5940
        %v6125 = vunpack.c.l.b16 %v5941
        %v6126 = vunpack.c.h.b16 %v5941
        %v6127 = vunpack.c.l.b16 %v5942
        %v6128 = vunpack.c.h.b16 %v5942
        %v6129 = vunpack.c.l.b16 %v5943
        %v6130 = vunpack.c.h.b16 %v5943
        %v6131 = vunpack.c.l.b16 %v5944
        %v6132 = vunpack.c.h.b16 %v5944
        %v6133 = vunpack.c.l.b16 %v5945
        %v6134 = vunpack.c.h.b16 %v5945
        %v6135 = vunpack.c.l.b16 %v5946
        %v6136 = vunpack.c.h.b16 %v5946
        %v6137 = vunpack.c.l.b16 %v5947
        %v6138 = vunpack.c.h.b16 %v5947
        %v6139 = vunpack.c.l.b16 %v5948
        %v6140 = vunpack.c.h.b16 %v5948
        %v6141 = vpack.c.b16 %v6021, %v6013
        %v6142 = vpack.c.b16 %v6022, %v6014
        %v6143 = vpack.c.b16 %v6023, %v6015
        %v6144 = vpack.c.b16 %v6024, %v6016
        %v6145 = vpack.c.b16 %v6025, %v6017
        %v6146 = vpack.c.b16 %v6026, %v6018
        %v6147 = vpack.c.b16 %v6027, %v6019
        %v6148 = vpack.c.b16 %v6028, %v6020
        %v6149 = vpack.c.b16 %v6037, %v6029
        %v6150 = vpack.c.b16 %v6038, %v6030
        %v6151 = vpack.c.b16 %v6039, %v6031
        %v6152 = vpack.c.b16 %v6040, %v6032
        %v6153 = vpack.c.b16 %v6041, %v6033
        %v6154 = vpack.c.b16 %v6042, %v6034
        %v6155 = vpack.c.b16 %v6043, %v6035
        %v6156 = vpack.c.b16 %v6044, %v6036
        %v6157 = vpack.c.b16 %v6053, %v6045
        %v6158 = vpack.c.b16 %v6054, %v6046
        %v6159 = vpack.c.b16 %v6055, %v6047
        %v6160 = vpack.c.b16 %v6056, %v6048
        %v6161 = vpack.c.b16 %v6057, %v6049
        %v6162 = vpack.c.b16 %v6058, %v6050
        %v6163 = vpack.c.b16 %v6059, %v6051
        %v6164 = vpack.c.b16 %v6060, %v6052
        %v6165 = vpack.c.b16 %v6069, %v6061
        %v6166 = vpack.c.b16 %v6070, %v6062
        %v6167 = vpack.c.b16 %v6071, %v6063
        %v6168 = vpack.c.b16 %v6072, %v6064
        %v6169 = vpack.c.b16 %v6073, %v6065
        %v6170 = vpack.c.b16 %v6074, %v6066
        %v6171 = vpack.c.b16 %v6075, %v6067
        %v6172 = vpack.c.b16 %v6076, %v6068
        %v6173 = vpack.c.b16 %v6085, %v6077
        %v6174 = vpack.c.b16 %v6086, %v6078
        %v6175 = vpack.c.b16 %v6087, %v6079
        %v6176 = vpack.c.b16 %v6088, %v6080
        %v6177 = vpack.c.b16 %v6089, %v6081
        %v6178 = vpack.c.b16 %v6090, %v6082
        %v6179 = vpack.c.b16 %v6091, %v6083
        %v6180 = vpack.c.b16 %v6092, %v6084
        %v6181 = vpack.c.b16 %v6101, %v6093
        %v6182 = vpack.c.b16 %v6102, %v6094
        %v6183 = vpack.c.b16 %v6103, %v6095
        %v6184 = vpack.c.b16 %v6104, %v6096
        %v6185 = vpack.c.b16 %v6105, %v6097
        %v6186 = vpack.c.b16 %v6106, %v6098
        %v6187 = vpack.c.b16 %v6107, %v6099
        %v6188 = vpack.c.b16 %v6108, %v6100
        %v6189 = vpack.c.b16 %v6117, %v6109
        %v6190 = vpack.c.b16 %v6118, %v6110
        %v6191 = vpack.c.b16 %v6119, %v6111
        %v6192 = vpack.c.b16 %v6120, %v6112
        %v6193 = vpack.c.b16 %v6121, %v6113
        %v6194 = vpack.c.b16 %v6122, %v6114
        %v6195 = vpack.c.b16 %v6123, %v6115
        %v6196 = vpack.c.b16 %v6124, %v6116
        %v6197 = vpack.c.b16 %v6133, %v6125
        %v6198 = vpack.c.b16 %v6134, %v6126
        %v6199 = vpack.c.b16 %v6135, %v6127
        %v6200 = vpack.c.b16 %v6136, %v6128
        %v6201 = vpack.c.b16 %v6137, %v6129
        %v6202 = vpack.c.b16 %v6138, %v6130
        %v6203 = vpack.c.b16 %v6139, %v6131
        %v6204 = vpack.c.b16 %v6140, %v6132
        %6269 = vmatpush.bf16.msra.mxu0 %v6197
        %6270 = vmatpush.bf16.msra.mxu0 %v6189
        %6271 = vmatpush.bf16.msra.mxu0 %v6181
        %6272 = vmatpush.bf16.msra.mxu0 %v6173
        %6273 = vmatpush.bf16.msra.mxu0 %v6165
        %6274 = vmatpush.bf16.msra.mxu0 %v6157
        %6275 = vmatpush.bf16.msra.mxu0 %v6149
        %6276 = vmatpush.bf16.msra.mxu0 %v6141
        %6277 = vmatmul.bf16.gmra.mxu0 %v5883
        %v6278 = vpop.f32.mrf.mxu0
        %v6279 = vadd.f32 0.0, %v6278
        %v6280 = vpop.f32.mrf.mxu0
        %6281 = vdwg.mxu0
        %6282 = vmatpush.bf16.msra.mxu0 %v6198
        %6283 = vmatpush.bf16.msra.mxu0 %v6190
        %6284 = vmatpush.bf16.msra.mxu0 %v6182
        %6285 = vmatpush.bf16.msra.mxu0 %v6174
        %6286 = vmatpush.bf16.msra.mxu0 %v6166
        %6287 = vmatpush.bf16.msra.mxu0 %v6158
        %6288 = vmatpush.bf16.msra.mxu0 %v6150
        %6289 = vmatpush.bf16.msra.mxu0 %v6142
        %6290 = vmatmul.bf16.gmra.mxu0 %v5883
        %v6291 = vpop.f32.mrf.mxu0
        %v6292 = vadd.f32 0.0, %v6291
        %v6293 = vpop.f32.mrf.mxu0
        %6294 = vdwg.mxu0
        %6295 = vmatpush.bf16.msra.mxu0 %v6199
        %6296 = vmatpush.bf16.msra.mxu0 %v6191
        %6297 = vmatpush.bf16.msra.mxu0 %v6183
        %6298 = vmatpush.bf16.msra.mxu0 %v6175
        %6299 = vmatpush.bf16.msra.mxu0 %v6167
        %6300 = vmatpush.bf16.msra.mxu0 %v6159
        %6301 = vmatpush.bf16.msra.mxu0 %v6151
        %6302 = vmatpush.bf16.msra.mxu0 %v6143
        %6303 = vmatmul.bf16.gmra.mxu0 %v5883
        %v6304 = vpop.f32.mrf.mxu0
        %v6305 = vadd.f32 0.0, %v6304
        %v6306 = vpop.f32.mrf.mxu0
        %6307 = vdwg.mxu0
        %6308 = vmatpush.bf16.msra.mxu0 %v6200
        %6309 = vmatpush.bf16.msra.mxu0 %v6192
        %6310 = vmatpush.bf16.msra.mxu0 %v6184
        %6311 = vmatpush.bf16.msra.mxu0 %v6176
        %6312 = vmatpush.bf16.msra.mxu0 %v6168
        %6313 = vmatpush.bf16.msra.mxu0 %v6160
        %6314 = vmatpush.bf16.msra.mxu0 %v6152
        %6315 = vmatpush.bf16.msra.mxu0 %v6144
        %6316 = vmatmul.bf16.gmra.mxu0 %v5883
        %v6317 = vpop.f32.mrf.mxu0
        %v6318 = vadd.f32 0.0, %v6317
        %v6319 = vpop.f32.mrf.mxu0
        %6320 = vdwg.mxu0
        %6321 = vmatpush.bf16.msra.mxu0 %v6201
        %6322 = vmatpush.bf16.msra.mxu0 %v6193
        %6323 = vmatpush.bf16.msra.mxu0 %v6185
        %6324 = vmatpush.bf16.msra.mxu0 %v6177
        %6325 = vmatpush.bf16.msra.mxu0 %v6169
        %6326 = vmatpush.bf16.msra.mxu0 %v6161
        %6327 = vmatpush.bf16.msra.mxu0 %v6153
        %6328 = vmatpush.bf16.msra.mxu0 %v6145
        %6329 = vmatmul.bf16.gmra.mxu0 %v5883
        %v6330 = vpop.f32.mrf.mxu0
        %v6331 = vadd.f32 0.0, %v6330
        %v6332 = vpop.f32.mrf.mxu0
        %6333 = vdwg.mxu0
        %6334 = vmatpush.bf16.msra.mxu0 %v6202
        %6335 = vmatpush.bf16.msra.mxu0 %v6194
        %6336 = vmatpush.bf16.msra.mxu0 %v6186
        %6337 = vmatpush.bf16.msra.mxu0 %v6178
        %6338 = vmatpush.bf16.msra.mxu0 %v6170
        %6339 = vmatpush.bf16.msra.mxu0 %v6162
        %6340 = vmatpush.bf16.msra.mxu0 %v6154
        %6341 = vmatpush.bf16.msra.mxu0 %v6146
        %6342 = vmatmul.bf16.gmra.mxu0 %v5883
        %v6343 = vpop.f32.mrf.mxu0
        %v6344 = vadd.f32 0.0, %v6343
        %v6345 = vpop.f32.mrf.mxu0
        %6346 = vdwg.mxu0
        %6347 = vmatpush.bf16.msra.mxu0 %v6203
        %6348 = vmatpush.bf16.msra.mxu0 %v6195
        %6349 = vmatpush.bf16.msra.mxu0 %v6187
        %6350 = vmatpush.bf16.msra.mxu0 %v6179
        %6351 = vmatpush.bf16.msra.mxu0 %v6171
        %6352 = vmatpush.bf16.msra.mxu0 %v6163
        %6353 = vmatpush.bf16.msra.mxu0 %v6155
        %6354 = vmatpush.bf16.msra.mxu0 %v6147
        %6355 = vmatmul.bf16.gmra.mxu0 %v5883
        %v6356 = vpop.f32.mrf.mxu0
        %v6357 = vadd.f32 0.0, %v6356
        %v6358 = vpop.f32.mrf.mxu0
        %6359 = vdwg.mxu0
        %6360 = vmatpush.bf16.msra.mxu0 %v6204
        %6361 = vmatpush.bf16.msra.mxu0 %v6196
        %6362 = vmatpush.bf16.msra.mxu0 %v6188
        %6363 = vmatpush.bf16.msra.mxu0 %v6180
        %6364 = vmatpush.bf16.msra.mxu0 %v6172
        %6365 = vmatpush.bf16.msra.mxu0 %v6164
        %6366 = vmatpush.bf16.msra.mxu0 %v6156
        %6367 = vmatpush.bf16.msra.mxu0 %v6148
        %6368 = vmatmul.bf16.gmra.mxu0 %v5883
        %v6369 = vpop.f32.mrf.mxu0
        %v6370 = vadd.f32 0.0, %v6369
        %v6371 = vpop.f32.mrf.mxu0
        %6372 = vdwg.mxu0
        %p6373 = scmp.gt.s32.totalorder %s5873, 0
        %s6374 = scalar_select %p6373, %s5873, 0
        %p6375 = scmp.lt.s32.totalorder %s6374, 128
        %s6376 = scalar_select %p6375, %s6374, 128
        %p6377 = scmp.gt.s32.totalorder %s6376, %s5875
        %s6378 = scalar_select %p6377, %s6376, %s5875
        %p6379 = scmp.lt.s32.totalorder %s6378, 128
        %s6380 = scalar_select %p6379, %s6378, 128
        %s6381 = ssub.s32 %s6380, %s6376
        %s6382 = scvt.s32.f32 %s6381
        %v6383 = vstv %s6382
        %v6384 = vrcp.pop %v6383
        %v6385 = vmul.f32 %v6383, %v6384
        %v6386 = vsub.f32 1.0, %v6385
        %v6387 = vmul.f32 %v6384, %v6386
        %v6388 = vadd.f32 %v6384, %v6387
        %vm6389 = vweird.f32 %v6383
        %vm6390 = vweird.f32 %v6384
        %vm6391 = vmor %vm6389, %vm6390
        %v6392 = vsel %vm6391, %v6384, %v6388
        %v6393 = vand.u32 2147483647, %v6383
        %vm6394 = vcmp.eq.f32.partialorder %v6393, 8.507059e+37
        %v6395 = vand.u32 %v6383, 2147483648
        %v6396 = vor.u32 1.1754944e-38, %v6395
        %v6397 = vsel %vm6394, %v6396, %v6392
        %s6398 = vtos %v6397
        %v6399 = vstv %s6398
        %v6400 = vmul.f32 %v6279, %v6399
        %v6401 = vmul.f32 %v6292, %v6399
        %v6402 = vmul.f32 %v6305, %v6399
        %v6403 = vmul.f32 %v6318, %v6399
        %v6404 = vmul.f32 %v6331, %v6399
        %v6405 = vmul.f32 %v6344, %v6399
        %v6406 = vmul.f32 %v6357, %v6399
        %v6407 = vmul.f32 %v6370, %v6399
        %v6416 = vrot.slane %v6401, 7
        %v6417 = vrot.slane %v6402, 6
        %v6418 = vrot.slane %v6403, 5
        %v6419 = vrot.slane %v6404, 4
        %v6420 = vrot.slane %v6405, 3
        %v6421 = vrot.slane %v6406, 2
        %v6422 = vrot.slane %v6407, 1
        %v6423 = vsel %vm787, %v6400, %v6416
        %v6424 = vsel %vm789, %v6417, %v6418
        %v6425 = vsel %vm791, %v6423, %v6424
        %v6426 = vsel %vm793, %v6419, %v6420
        %v6427 = vsel %vm795, %v6421, %v6422
        %v6428 = vsel %vm797, %v6426, %v6427
        %v6429 = vsel %vm799, %v6425, %v6428
        %s6431 = scalar_lea.vmem [#allocation2], 66
        %6432 = vst [vmem:[%s6431] ss:$8 sm:$0xf] %v6429
        %6433 = vst [vmem:[%s6431] ss:$8 sm:$0xf0] %v6429
        %s6434 = sadd.s32 %s236, 11
        %s6435 = smul.u32 %s6434, 128
        %s6436 = sld [smem:[#allocation4 + %s6435]]
        %s6437 = sadd.s32 %s6435, 1
        %s6438 = sld [smem:[#allocation4 + %s6437]]
        %v6439 = vstv %s6436
        %vm6440 = vcmp.ge.s32.totalorder %v235, %v6439
        %v6441 = vstv %s6438
        %vm6442 = vcmp.lt.s32.totalorder %v235, %v6441
        %vm6443 = vmand %vm6440, %vm6442
        %v6444 = vsel %vm6443, 1, 0
        %v6445 = vcvt.s32.f32 %v6444
        %v6446 = vpack.c.bf16 %v6445, %v6445
        %s6447 = scalar_lea.vmem %s198, 5632 [#allocation5]
        %v6448 = vld [vmem:[%s6447] sm:$0xff]
        %v6449 = vld [vmem:[%s6447 + $0x8] sm:$0xff]
        %v6450 = vld [vmem:[%s6447 + $0x10] sm:$0xff]
        %v6451 = vld [vmem:[%s6447 + $0x18] sm:$0xff]
        %v6452 = vld [vmem:[%s6447 + $0x20] sm:$0xff]
        %v6453 = vld [vmem:[%s6447 + $0x28] sm:$0xff]
        %v6454 = vld [vmem:[%s6447 + $0x30] sm:$0xff]
        %v6455 = vld [vmem:[%s6447 + $0x38] sm:$0xff]
        %v6456 = vld [vmem:[%s6447 + $0x40] sm:$0xff]
        %v6457 = vld [vmem:[%s6447 + $0x48] sm:$0xff]
        %v6458 = vld [vmem:[%s6447 + $0x50] sm:$0xff]
        %v6459 = vld [vmem:[%s6447 + $0x58] sm:$0xff]
        %v6460 = vld [vmem:[%s6447 + $0x60] sm:$0xff]
        %v6461 = vld [vmem:[%s6447 + $0x68] sm:$0xff]
        %v6462 = vld [vmem:[%s6447 + $0x70] sm:$0xff]
        %v6463 = vld [vmem:[%s6447 + $0x78] sm:$0xff]
        %v6464 = vld [vmem:[%s6447 + $0x80] sm:$0xff]
        %v6465 = vld [vmem:[%s6447 + $0x88] sm:$0xff]
        %v6466 = vld [vmem:[%s6447 + $0x90] sm:$0xff]
        %v6467 = vld [vmem:[%s6447 + $0x98] sm:$0xff]
        %v6468 = vld [vmem:[%s6447 + $0xa0] sm:$0xff]
        %v6469 = vld [vmem:[%s6447 + $0xa8] sm:$0xff]
        %v6470 = vld [vmem:[%s6447 + $0xb0] sm:$0xff]
        %v6471 = vld [vmem:[%s6447 + $0xb8] sm:$0xff]
        %v6472 = vld [vmem:[%s6447 + $0xc0] sm:$0xff]
        %v6473 = vld [vmem:[%s6447 + $0xc8] sm:$0xff]
        %v6474 = vld [vmem:[%s6447 + $0xd0] sm:$0xff]
        %v6475 = vld [vmem:[%s6447 + $0xd8] sm:$0xff]
        %v6476 = vld [vmem:[%s6447 + $0xe0] sm:$0xff]
        %v6477 = vld [vmem:[%s6447 + $0xe8] sm:$0xff]
        %v6478 = vld [vmem:[%s6447 + $0xf0] sm:$0xff]
        %v6479 = vld [vmem:[%s6447 + $0xf8] sm:$0xff]
        %v6480 = vld [vmem:[%s6447 + $0x100] sm:$0xff]
        %v6481 = vld [vmem:[%s6447 + $0x108] sm:$0xff]
        %v6482 = vld [vmem:[%s6447 + $0x110] sm:$0xff]
        %v6483 = vld [vmem:[%s6447 + $0x118] sm:$0xff]
        %v6484 = vld [vmem:[%s6447 + $0x120] sm:$0xff]
        %v6485 = vld [vmem:[%s6447 + $0x128] sm:$0xff]
        %v6486 = vld [vmem:[%s6447 + $0x130] sm:$0xff]
        %v6487 = vld [vmem:[%s6447 + $0x138] sm:$0xff]
        %v6488 = vld [vmem:[%s6447 + $0x140] sm:$0xff]
        %v6489 = vld [vmem:[%s6447 + $0x148] sm:$0xff]
        %v6490 = vld [vmem:[%s6447 + $0x150] sm:$0xff]
        %v6491 = vld [vmem:[%s6447 + $0x158] sm:$0xff]
        %v6492 = vld [vmem:[%s6447 + $0x160] sm:$0xff]
        %v6493 = vld [vmem:[%s6447 + $0x168] sm:$0xff]
        %v6494 = vld [vmem:[%s6447 + $0x170] sm:$0xff]
        %v6495 = vld [vmem:[%s6447 + $0x178] sm:$0xff]
        %v6496 = vld [vmem:[%s6447 + $0x180] sm:$0xff]
        %v6497 = vld [vmem:[%s6447 + $0x188] sm:$0xff]
        %v6498 = vld [vmem:[%s6447 + $0x190] sm:$0xff]
        %v6499 = vld [vmem:[%s6447 + $0x198] sm:$0xff]
        %v6500 = vld [vmem:[%s6447 + $0x1a0] sm:$0xff]
        %v6501 = vld [vmem:[%s6447 + $0x1a8] sm:$0xff]
        %v6502 = vld [vmem:[%s6447 + $0x1b0] sm:$0xff]
        %v6503 = vld [vmem:[%s6447 + $0x1b8] sm:$0xff]
        %v6504 = vld [vmem:[%s6447 + $0x1c0] sm:$0xff]
        %v6505 = vld [vmem:[%s6447 + $0x1c8] sm:$0xff]
        %v6506 = vld [vmem:[%s6447 + $0x1d0] sm:$0xff]
        %v6507 = vld [vmem:[%s6447 + $0x1d8] sm:$0xff]
        %v6508 = vld [vmem:[%s6447 + $0x1e0] sm:$0xff]
        %v6509 = vld [vmem:[%s6447 + $0x1e8] sm:$0xff]
        %v6510 = vld [vmem:[%s6447 + $0x1f0] sm:$0xff]
        %v6511 = vld [vmem:[%s6447 + $0x1f8] sm:$0xff]
        %v6576 = vunpack.c.l.b16 %v6448
        %v6577 = vunpack.c.h.b16 %v6448
        %v6578 = vunpack.c.l.b16 %v6449
        %v6579 = vunpack.c.h.b16 %v6449
        %v6580 = vunpack.c.l.b16 %v6450
        %v6581 = vunpack.c.h.b16 %v6450
        %v6582 = vunpack.c.l.b16 %v6451
        %v6583 = vunpack.c.h.b16 %v6451
        %v6584 = vunpack.c.l.b16 %v6452
        %v6585 = vunpack.c.h.b16 %v6452
        %v6586 = vunpack.c.l.b16 %v6453
        %v6587 = vunpack.c.h.b16 %v6453
        %v6588 = vunpack.c.l.b16 %v6454
        %v6589 = vunpack.c.h.b16 %v6454
        %v6590 = vunpack.c.l.b16 %v6455
        %v6591 = vunpack.c.h.b16 %v6455
        %v6592 = vunpack.c.l.b16 %v6456
        %v6593 = vunpack.c.h.b16 %v6456
        %v6594 = vunpack.c.l.b16 %v6457
        %v6595 = vunpack.c.h.b16 %v6457
        %v6596 = vunpack.c.l.b16 %v6458
        %v6597 = vunpack.c.h.b16 %v6458
        %v6598 = vunpack.c.l.b16 %v6459
        %v6599 = vunpack.c.h.b16 %v6459
        %v6600 = vunpack.c.l.b16 %v6460
        %v6601 = vunpack.c.h.b16 %v6460
        %v6602 = vunpack.c.l.b16 %v6461
        %v6603 = vunpack.c.h.b16 %v6461
        %v6604 = vunpack.c.l.b16 %v6462
        %v6605 = vunpack.c.h.b16 %v6462
        %v6606 = vunpack.c.l.b16 %v6463
        %v6607 = vunpack.c.h.b16 %v6463
        %v6608 = vunpack.c.l.b16 %v6464
        %v6609 = vunpack.c.h.b16 %v6464
        %v6610 = vunpack.c.l.b16 %v6465
        %v6611 = vunpack.c.h.b16 %v6465
        %v6612 = vunpack.c.l.b16 %v6466
        %v6613 = vunpack.c.h.b16 %v6466
        %v6614 = vunpack.c.l.b16 %v6467
        %v6615 = vunpack.c.h.b16 %v6467
        %v6616 = vunpack.c.l.b16 %v6468
        %v6617 = vunpack.c.h.b16 %v6468
        %v6618 = vunpack.c.l.b16 %v6469
        %v6619 = vunpack.c.h.b16 %v6469
        %v6620 = vunpack.c.l.b16 %v6470
        %v6621 = vunpack.c.h.b16 %v6470
        %v6622 = vunpack.c.l.b16 %v6471
        %v6623 = vunpack.c.h.b16 %v6471
        %v6624 = vunpack.c.l.b16 %v6472
        %v6625 = vunpack.c.h.b16 %v6472
        %v6626 = vunpack.c.l.b16 %v6473
        %v6627 = vunpack.c.h.b16 %v6473
        %v6628 = vunpack.c.l.b16 %v6474
        %v6629 = vunpack.c.h.b16 %v6474
        %v6630 = vunpack.c.l.b16 %v6475
        %v6631 = vunpack.c.h.b16 %v6475
        %v6632 = vunpack.c.l.b16 %v6476
        %v6633 = vunpack.c.h.b16 %v6476
        %v6634 = vunpack.c.l.b16 %v6477
        %v6635 = vunpack.c.h.b16 %v6477
        %v6636 = vunpack.c.l.b16 %v6478
        %v6637 = vunpack.c.h.b16 %v6478
        %v6638 = vunpack.c.l.b16 %v6479
        %v6639 = vunpack.c.h.b16 %v6479
        %v6640 = vunpack.c.l.b16 %v6480
        %v6641 = vunpack.c.h.b16 %v6480
        %v6642 = vunpack.c.l.b16 %v6481
        %v6643 = vunpack.c.h.b16 %v6481
        %v6644 = vunpack.c.l.b16 %v6482
        %v6645 = vunpack.c.h.b16 %v6482
        %v6646 = vunpack.c.l.b16 %v6483
        %v6647 = vunpack.c.h.b16 %v6483
        %v6648 = vunpack.c.l.b16 %v6484
        %v6649 = vunpack.c.h.b16 %v6484
        %v6650 = vunpack.c.l.b16 %v6485
        %v6651 = vunpack.c.h.b16 %v6485
        %v6652 = vunpack.c.l.b16 %v6486
        %v6653 = vunpack.c.h.b16 %v6486
        %v6654 = vunpack.c.l.b16 %v6487
        %v6655 = vunpack.c.h.b16 %v6487
        %v6656 = vunpack.c.l.b16 %v6488
        %v6657 = vunpack.c.h.b16 %v6488
        %v6658 = vunpack.c.l.b16 %v6489
        %v6659 = vunpack.c.h.b16 %v6489
        %v6660 = vunpack.c.l.b16 %v6490
        %v6661 = vunpack.c.h.b16 %v6490
        %v6662 = vunpack.c.l.b16 %v6491
        %v6663 = vunpack.c.h.b16 %v6491
        %v6664 = vunpack.c.l.b16 %v6492
        %v6665 = vunpack.c.h.b16 %v6492
        %v6666 = vunpack.c.l.b16 %v6493
        %v6667 = vunpack.c.h.b16 %v6493
        %v6668 = vunpack.c.l.b16 %v6494
        %v6669 = vunpack.c.h.b16 %v6494
        %v6670 = vunpack.c.l.b16 %v6495
        %v6671 = vunpack.c.h.b16 %v6495
        %v6672 = vunpack.c.l.b16 %v6496
        %v6673 = vunpack.c.h.b16 %v6496
        %v6674 = vunpack.c.l.b16 %v6497
        %v6675 = vunpack.c.h.b16 %v6497
        %v6676 = vunpack.c.l.b16 %v6498
        %v6677 = vunpack.c.h.b16 %v6498
        %v6678 = vunpack.c.l.b16 %v6499
        %v6679 = vunpack.c.h.b16 %v6499
        %v6680 = vunpack.c.l.b16 %v6500
        %v6681 = vunpack.c.h.b16 %v6500
        %v6682 = vunpack.c.l.b16 %v6501
        %v6683 = vunpack.c.h.b16 %v6501
        %v6684 = vunpack.c.l.b16 %v6502
        %v6685 = vunpack.c.h.b16 %v6502
        %v6686 = vunpack.c.l.b16 %v6503
        %v6687 = vunpack.c.h.b16 %v6503
        %v6688 = vunpack.c.l.b16 %v6504
        %v6689 = vunpack.c.h.b16 %v6504
        %v6690 = vunpack.c.l.b16 %v6505
        %v6691 = vunpack.c.h.b16 %v6505
        %v6692 = vunpack.c.l.b16 %v6506
        %v6693 = vunpack.c.h.b16 %v6506
        %v6694 = vunpack.c.l.b16 %v6507
        %v6695 = vunpack.c.h.b16 %v6507
        %v6696 = vunpack.c.l.b16 %v6508
        %v6697 = vunpack.c.h.b16 %v6508
        %v6698 = vunpack.c.l.b16 %v6509
        %v6699 = vunpack.c.h.b16 %v6509
        %v6700 = vunpack.c.l.b16 %v6510
        %v6701 = vunpack.c.h.b16 %v6510
        %v6702 = vunpack.c.l.b16 %v6511
        %v6703 = vunpack.c.h.b16 %v6511
        %v6704 = vpack.c.b16 %v6584, %v6576
        %v6705 = vpack.c.b16 %v6585, %v6577
        %v6706 = vpack.c.b16 %v6586, %v6578
        %v6707 = vpack.c.b16 %v6587, %v6579
        %v6708 = vpack.c.b16 %v6588, %v6580
        %v6709 = vpack.c.b16 %v6589, %v6581
        %v6710 = vpack.c.b16 %v6590, %v6582
        %v6711 = vpack.c.b16 %v6591, %v6583
        %v6712 = vpack.c.b16 %v6600, %v6592
        %v6713 = vpack.c.b16 %v6601, %v6593
        %v6714 = vpack.c.b16 %v6602, %v6594
        %v6715 = vpack.c.b16 %v6603, %v6595
        %v6716 = vpack.c.b16 %v6604, %v6596
        %v6717 = vpack.c.b16 %v6605, %v6597
        %v6718 = vpack.c.b16 %v6606, %v6598
        %v6719 = vpack.c.b16 %v6607, %v6599
        %v6720 = vpack.c.b16 %v6616, %v6608
        %v6721 = vpack.c.b16 %v6617, %v6609
        %v6722 = vpack.c.b16 %v6618, %v6610
        %v6723 = vpack.c.b16 %v6619, %v6611
        %v6724 = vpack.c.b16 %v6620, %v6612
        %v6725 = vpack.c.b16 %v6621, %v6613
        %v6726 = vpack.c.b16 %v6622, %v6614
        %v6727 = vpack.c.b16 %v6623, %v6615
        %v6728 = vpack.c.b16 %v6632, %v6624
        %v6729 = vpack.c.b16 %v6633, %v6625
        %v6730 = vpack.c.b16 %v6634, %v6626
        %v6731 = vpack.c.b16 %v6635, %v6627
        %v6732 = vpack.c.b16 %v6636, %v6628
        %v6733 = vpack.c.b16 %v6637, %v6629
        %v6734 = vpack.c.b16 %v6638, %v6630
        %v6735 = vpack.c.b16 %v6639, %v6631
        %v6736 = vpack.c.b16 %v6648, %v6640
        %v6737 = vpack.c.b16 %v6649, %v6641
        %v6738 = vpack.c.b16 %v6650, %v6642
        %v6739 = vpack.c.b16 %v6651, %v6643
        %v6740 = vpack.c.b16 %v6652, %v6644
        %v6741 = vpack.c.b16 %v6653, %v6645
        %v6742 = vpack.c.b16 %v6654, %v6646
        %v6743 = vpack.c.b16 %v6655, %v6647
        %v6744 = vpack.c.b16 %v6664, %v6656
        %v6745 = vpack.c.b16 %v6665, %v6657
        %v6746 = vpack.c.b16 %v6666, %v6658
        %v6747 = vpack.c.b16 %v6667, %v6659
        %v6748 = vpack.c.b16 %v6668, %v6660
        %v6749 = vpack.c.b16 %v6669, %v6661
        %v6750 = vpack.c.b16 %v6670, %v6662
        %v6751 = vpack.c.b16 %v6671, %v6663
        %v6752 = vpack.c.b16 %v6680, %v6672
        %v6753 = vpack.c.b16 %v6681, %v6673
        %v6754 = vpack.c.b16 %v6682, %v6674
        %v6755 = vpack.c.b16 %v6683, %v6675
        %v6756 = vpack.c.b16 %v6684, %v6676
        %v6757 = vpack.c.b16 %v6685, %v6677
        %v6758 = vpack.c.b16 %v6686, %v6678
        %v6759 = vpack.c.b16 %v6687, %v6679
        %v6760 = vpack.c.b16 %v6696, %v6688
        %v6761 = vpack.c.b16 %v6697, %v6689
        %v6762 = vpack.c.b16 %v6698, %v6690
        %v6763 = vpack.c.b16 %v6699, %v6691
        %v6764 = vpack.c.b16 %v6700, %v6692
        %v6765 = vpack.c.b16 %v6701, %v6693
        %v6766 = vpack.c.b16 %v6702, %v6694
        %v6767 = vpack.c.b16 %v6703, %v6695
        %6832 = vmatpush.bf16.msra.mxu0 %v6760
        %6833 = vmatpush.bf16.msra.mxu0 %v6752
        %6834 = vmatpush.bf16.msra.mxu0 %v6744
        %6835 = vmatpush.bf16.msra.mxu0 %v6736
        %6836 = vmatpush.bf16.msra.mxu0 %v6728
        %6837 = vmatpush.bf16.msra.mxu0 %v6720
        %6838 = vmatpush.bf16.msra.mxu0 %v6712
        %6839 = vmatpush.bf16.msra.mxu0 %v6704
        %6840 = vmatmul.bf16.gmra.mxu0 %v6446
        %v6841 = vpop.f32.mrf.mxu0
        %v6842 = vadd.f32 0.0, %v6841
        %v6843 = vpop.f32.mrf.mxu0
        %6844 = vdwg.mxu0
        %6845 = vmatpush.bf16.msra.mxu0 %v6761
        %6846 = vmatpush.bf16.msra.mxu0 %v6753
        %6847 = vmatpush.bf16.msra.mxu0 %v6745
        %6848 = vmatpush.bf16.msra.mxu0 %v6737
        %6849 = vmatpush.bf16.msra.mxu0 %v6729
        %6850 = vmatpush.bf16.msra.mxu0 %v6721
        %6851 = vmatpush.bf16.msra.mxu0 %v6713
        %6852 = vmatpush.bf16.msra.mxu0 %v6705
        %6853 = vmatmul.bf16.gmra.mxu0 %v6446
        %v6854 = vpop.f32.mrf.mxu0
        %v6855 = vadd.f32 0.0, %v6854
        %v6856 = vpop.f32.mrf.mxu0
        %6857 = vdwg.mxu0
        %6858 = vmatpush.bf16.msra.mxu0 %v6762
        %6859 = vmatpush.bf16.msra.mxu0 %v6754
        %6860 = vmatpush.bf16.msra.mxu0 %v6746
        %6861 = vmatpush.bf16.msra.mxu0 %v6738
        %6862 = vmatpush.bf16.msra.mxu0 %v6730
        %6863 = vmatpush.bf16.msra.mxu0 %v6722
        %6864 = vmatpush.bf16.msra.mxu0 %v6714
        %6865 = vmatpush.bf16.msra.mxu0 %v6706
        %6866 = vmatmul.bf16.gmra.mxu0 %v6446
        %v6867 = vpop.f32.mrf.mxu0
        %v6868 = vadd.f32 0.0, %v6867
        %v6869 = vpop.f32.mrf.mxu0
        %6870 = vdwg.mxu0
        %6871 = vmatpush.bf16.msra.mxu0 %v6763
        %6872 = vmatpush.bf16.msra.mxu0 %v6755
        %6873 = vmatpush.bf16.msra.mxu0 %v6747
        %6874 = vmatpush.bf16.msra.mxu0 %v6739
        %6875 = vmatpush.bf16.msra.mxu0 %v6731
        %6876 = vmatpush.bf16.msra.mxu0 %v6723
        %6877 = vmatpush.bf16.msra.mxu0 %v6715
        %6878 = vmatpush.bf16.msra.mxu0 %v6707
        %6879 = vmatmul.bf16.gmra.mxu0 %v6446
        %v6880 = vpop.f32.mrf.mxu0
        %v6881 = vadd.f32 0.0, %v6880
        %v6882 = vpop.f32.mrf.mxu0
        %6883 = vdwg.mxu0
        %6884 = vmatpush.bf16.msra.mxu0 %v6764
        %6885 = vmatpush.bf16.msra.mxu0 %v6756
        %6886 = vmatpush.bf16.msra.mxu0 %v6748
        %6887 = vmatpush.bf16.msra.mxu0 %v6740
        %6888 = vmatpush.bf16.msra.mxu0 %v6732
        %6889 = vmatpush.bf16.msra.mxu0 %v6724
        %6890 = vmatpush.bf16.msra.mxu0 %v6716
        %6891 = vmatpush.bf16.msra.mxu0 %v6708
        %6892 = vmatmul.bf16.gmra.mxu0 %v6446
        %v6893 = vpop.f32.mrf.mxu0
        %v6894 = vadd.f32 0.0, %v6893
        %v6895 = vpop.f32.mrf.mxu0
        %6896 = vdwg.mxu0
        %6897 = vmatpush.bf16.msra.mxu0 %v6765
        %6898 = vmatpush.bf16.msra.mxu0 %v6757
        %6899 = vmatpush.bf16.msra.mxu0 %v6749
        %6900 = vmatpush.bf16.msra.mxu0 %v6741
        %6901 = vmatpush.bf16.msra.mxu0 %v6733
        %6902 = vmatpush.bf16.msra.mxu0 %v6725
        %6903 = vmatpush.bf16.msra.mxu0 %v6717
        %6904 = vmatpush.bf16.msra.mxu0 %v6709
        %6905 = vmatmul.bf16.gmra.mxu0 %v6446
        %v6906 = vpop.f32.mrf.mxu0
        %v6907 = vadd.f32 0.0, %v6906
        %v6908 = vpop.f32.mrf.mxu0
        %6909 = vdwg.mxu0
        %6910 = vmatpush.bf16.msra.mxu0 %v6766
        %6911 = vmatpush.bf16.msra.mxu0 %v6758
        %6912 = vmatpush.bf16.msra.mxu0 %v6750
        %6913 = vmatpush.bf16.msra.mxu0 %v6742
        %6914 = vmatpush.bf16.msra.mxu0 %v6734
        %6915 = vmatpush.bf16.msra.mxu0 %v6726
        %6916 = vmatpush.bf16.msra.mxu0 %v6718
        %6917 = vmatpush.bf16.msra.mxu0 %v6710
        %6918 = vmatmul.bf16.gmra.mxu0 %v6446
        %v6919 = vpop.f32.mrf.mxu0
        %v6920 = vadd.f32 0.0, %v6919
        %v6921 = vpop.f32.mrf.mxu0
        %6922 = vdwg.mxu0
        %6923 = vmatpush.bf16.msra.mxu0 %v6767
        %6924 = vmatpush.bf16.msra.mxu0 %v6759
        %6925 = vmatpush.bf16.msra.mxu0 %v6751
        %6926 = vmatpush.bf16.msra.mxu0 %v6743
        %6927 = vmatpush.bf16.msra.mxu0 %v6735
        %6928 = vmatpush.bf16.msra.mxu0 %v6727
        %6929 = vmatpush.bf16.msra.mxu0 %v6719
        %6930 = vmatpush.bf16.msra.mxu0 %v6711
        %6931 = vmatmul.bf16.gmra.mxu0 %v6446
        %v6932 = vpop.f32.mrf.mxu0
        %v6933 = vadd.f32 0.0, %v6932
        %v6934 = vpop.f32.mrf.mxu0
        %6935 = vdwg.mxu0
        %p6936 = scmp.gt.s32.totalorder %s6436, 0
        %s6937 = scalar_select %p6936, %s6436, 0
        %p6938 = scmp.lt.s32.totalorder %s6937, 128
        %s6939 = scalar_select %p6938, %s6937, 128
        %p6940 = scmp.gt.s32.totalorder %s6939, %s6438
        %s6941 = scalar_select %p6940, %s6939, %s6438
        %p6942 = scmp.lt.s32.totalorder %s6941, 128
        %s6943 = scalar_select %p6942, %s6941, 128
        %s6944 = ssub.s32 %s6943, %s6939
        %s6945 = scvt.s32.f32 %s6944
        %v6946 = vstv %s6945
        %v6947 = vrcp.pop %v6946
        %v6948 = vmul.f32 %v6946, %v6947
        %v6949 = vsub.f32 1.0, %v6948
        %v6950 = vmul.f32 %v6947, %v6949
        %v6951 = vadd.f32 %v6947, %v6950
        %vm6952 = vweird.f32 %v6946
        %vm6953 = vweird.f32 %v6947
        %vm6954 = vmor %vm6952, %vm6953
        %v6955 = vsel %vm6954, %v6947, %v6951
        %v6956 = vand.u32 2147483647, %v6946
        %vm6957 = vcmp.eq.f32.partialorder %v6956, 8.507059e+37
        %v6958 = vand.u32 %v6946, 2147483648
        %v6959 = vor.u32 1.1754944e-38, %v6958
        %v6960 = vsel %vm6957, %v6959, %v6955
        %s6961 = vtos %v6960
        %v6962 = vstv %s6961
        %v6963 = vmul.f32 %v6842, %v6962
        %v6964 = vmul.f32 %v6855, %v6962
        %v6965 = vmul.f32 %v6868, %v6962
        %v6966 = vmul.f32 %v6881, %v6962
        %v6967 = vmul.f32 %v6894, %v6962
        %v6968 = vmul.f32 %v6907, %v6962
        %v6969 = vmul.f32 %v6920, %v6962
        %v6970 = vmul.f32 %v6933, %v6962
        %v6979 = vrot.slane %v6964, 7
        %v6980 = vrot.slane %v6965, 6
        %v6981 = vrot.slane %v6966, 5
        %v6982 = vrot.slane %v6967, 4
        %v6983 = vrot.slane %v6968, 3
        %v6984 = vrot.slane %v6969, 2
        %v6985 = vrot.slane %v6970, 1
        %v6986 = vsel %vm787, %v6963, %v6979
        %v6987 = vsel %vm789, %v6980, %v6981
        %v6988 = vsel %vm791, %v6986, %v6987
        %v6989 = vsel %vm793, %v6982, %v6983
        %v6990 = vsel %vm795, %v6984, %v6985
        %v6991 = vsel %vm797, %v6989, %v6990
        %v6992 = vsel %vm799, %v6988, %v6991
        %s6994 = scalar_lea.vmem [#allocation2], 67
        %6995 = vst [vmem:[%s6994] ss:$8 sm:$0xf] %v6992
        %6996 = vst [vmem:[%s6994] ss:$8 sm:$0xf0] %v6992
        %s6997 = sadd.s32 %s236, 12
        %s6998 = smul.u32 %s6997, 128
        %s6999 = sld [smem:[#allocation4 + %s6998]]
        %s7000 = sadd.s32 %s6998, 1
        %s7001 = sld [smem:[#allocation4 + %s7000]]
        %v7002 = vstv %s6999
        %vm7003 = vcmp.ge.s32.totalorder %v235, %v7002
        %v7004 = vstv %s7001
        %vm7005 = vcmp.lt.s32.totalorder %v235, %v7004
        %vm7006 = vmand %vm7003, %vm7005
        %v7007 = vsel %vm7006, 1, 0
        %v7008 = vcvt.s32.f32 %v7007
        %v7009 = vpack.c.bf16 %v7008, %v7008
        %s7010 = scalar_lea.vmem %s198, 6144 [#allocation5]
        %v7011 = vld [vmem:[%s7010] sm:$0xff]
        %v7012 = vld [vmem:[%s7010 + $0x8] sm:$0xff]
        %v7013 = vld [vmem:[%s7010 + $0x10] sm:$0xff]
        %v7014 = vld [vmem:[%s7010 + $0x18] sm:$0xff]
        %v7015 = vld [vmem:[%s7010 + $0x20] sm:$0xff]
        %v7016 = vld [vmem:[%s7010 + $0x28] sm:$0xff]
        %v7017 = vld [vmem:[%s7010 + $0x30] sm:$0xff]
        %v7018 = vld [vmem:[%s7010 + $0x38] sm:$0xff]
        %v7019 = vld [vmem:[%s7010 + $0x40] sm:$0xff]
        %v7020 = vld [vmem:[%s7010 + $0x48] sm:$0xff]
        %v7021 = vld [vmem:[%s7010 + $0x50] sm:$0xff]
        %v7022 = vld [vmem:[%s7010 + $0x58] sm:$0xff]
        %v7023 = vld [vmem:[%s7010 + $0x60] sm:$0xff]
        %v7024 = vld [vmem:[%s7010 + $0x68] sm:$0xff]
        %v7025 = vld [vmem:[%s7010 + $0x70] sm:$0xff]
        %v7026 = vld [vmem:[%s7010 + $0x78] sm:$0xff]
        %v7027 = vld [vmem:[%s7010 + $0x80] sm:$0xff]
        %v7028 = vld [vmem:[%s7010 + $0x88] sm:$0xff]
        %v7029 = vld [vmem:[%s7010 + $0x90] sm:$0xff]
        %v7030 = vld [vmem:[%s7010 + $0x98] sm:$0xff]
        %v7031 = vld [vmem:[%s7010 + $0xa0] sm:$0xff]
        %v7032 = vld [vmem:[%s7010 + $0xa8] sm:$0xff]
        %v7033 = vld [vmem:[%s7010 + $0xb0] sm:$0xff]
        %v7034 = vld [vmem:[%s7010 + $0xb8] sm:$0xff]
        %v7035 = vld [vmem:[%s7010 + $0xc0] sm:$0xff]
        %v7036 = vld [vmem:[%s7010 + $0xc8] sm:$0xff]
        %v7037 = vld [vmem:[%s7010 + $0xd0] sm:$0xff]
        %v7038 = vld [vmem:[%s7010 + $0xd8] sm:$0xff]
        %v7039 = vld [vmem:[%s7010 + $0xe0] sm:$0xff]
        %v7040 = vld [vmem:[%s7010 + $0xe8] sm:$0xff]
        %v7041 = vld [vmem:[%s7010 + $0xf0] sm:$0xff]
        %v7042 = vld [vmem:[%s7010 + $0xf8] sm:$0xff]
        %v7043 = vld [vmem:[%s7010 + $0x100] sm:$0xff]
        %v7044 = vld [vmem:[%s7010 + $0x108] sm:$0xff]
        %v7045 = vld [vmem:[%s7010 + $0x110] sm:$0xff]
        %v7046 = vld [vmem:[%s7010 + $0x118] sm:$0xff]
        %v7047 = vld [vmem:[%s7010 + $0x120] sm:$0xff]
        %v7048 = vld [vmem:[%s7010 + $0x128] sm:$0xff]
        %v7049 = vld [vmem:[%s7010 + $0x130] sm:$0xff]
        %v7050 = vld [vmem:[%s7010 + $0x138] sm:$0xff]
        %v7051 = vld [vmem:[%s7010 + $0x140] sm:$0xff]
        %v7052 = vld [vmem:[%s7010 + $0x148] sm:$0xff]
        %v7053 = vld [vmem:[%s7010 + $0x150] sm:$0xff]
        %v7054 = vld [vmem:[%s7010 + $0x158] sm:$0xff]
        %v7055 = vld [vmem:[%s7010 + $0x160] sm:$0xff]
        %v7056 = vld [vmem:[%s7010 + $0x168] sm:$0xff]
        %v7057 = vld [vmem:[%s7010 + $0x170] sm:$0xff]
        %v7058 = vld [vmem:[%s7010 + $0x178] sm:$0xff]
        %v7059 = vld [vmem:[%s7010 + $0x180] sm:$0xff]
        %v7060 = vld [vmem:[%s7010 + $0x188] sm:$0xff]
        %v7061 = vld [vmem:[%s7010 + $0x190] sm:$0xff]
        %v7062 = vld [vmem:[%s7010 + $0x198] sm:$0xff]
        %v7063 = vld [vmem:[%s7010 + $0x1a0] sm:$0xff]
        %v7064 = vld [vmem:[%s7010 + $0x1a8] sm:$0xff]
        %v7065 = vld [vmem:[%s7010 + $0x1b0] sm:$0xff]
        %v7066 = vld [vmem:[%s7010 + $0x1b8] sm:$0xff]
        %v7067 = vld [vmem:[%s7010 + $0x1c0] sm:$0xff]
        %v7068 = vld [vmem:[%s7010 + $0x1c8] sm:$0xff]
        %v7069 = vld [vmem:[%s7010 + $0x1d0] sm:$0xff]
        %v7070 = vld [vmem:[%s7010 + $0x1d8] sm:$0xff]
        %v7071 = vld [vmem:[%s7010 + $0x1e0] sm:$0xff]
        %v7072 = vld [vmem:[%s7010 + $0x1e8] sm:$0xff]
        %v7073 = vld [vmem:[%s7010 + $0x1f0] sm:$0xff]
        %v7074 = vld [vmem:[%s7010 + $0x1f8] sm:$0xff]
        %v7139 = vunpack.c.l.b16 %v7011
        %v7140 = vunpack.c.h.b16 %v7011
        %v7141 = vunpack.c.l.b16 %v7012
        %v7142 = vunpack.c.h.b16 %v7012
        %v7143 = vunpack.c.l.b16 %v7013
        %v7144 = vunpack.c.h.b16 %v7013
        %v7145 = vunpack.c.l.b16 %v7014
        %v7146 = vunpack.c.h.b16 %v7014
        %v7147 = vunpack.c.l.b16 %v7015
        %v7148 = vunpack.c.h.b16 %v7015
        %v7149 = vunpack.c.l.b16 %v7016
        %v7150 = vunpack.c.h.b16 %v7016
        %v7151 = vunpack.c.l.b16 %v7017
        %v7152 = vunpack.c.h.b16 %v7017
        %v7153 = vunpack.c.l.b16 %v7018
        %v7154 = vunpack.c.h.b16 %v7018
        %v7155 = vunpack.c.l.b16 %v7019
        %v7156 = vunpack.c.h.b16 %v7019
        %v7157 = vunpack.c.l.b16 %v7020
        %v7158 = vunpack.c.h.b16 %v7020
        %v7159 = vunpack.c.l.b16 %v7021
        %v7160 = vunpack.c.h.b16 %v7021
        %v7161 = vunpack.c.l.b16 %v7022
        %v7162 = vunpack.c.h.b16 %v7022
        %v7163 = vunpack.c.l.b16 %v7023
        %v7164 = vunpack.c.h.b16 %v7023
        %v7165 = vunpack.c.l.b16 %v7024
        %v7166 = vunpack.c.h.b16 %v7024
        %v7167 = vunpack.c.l.b16 %v7025
        %v7168 = vunpack.c.h.b16 %v7025
        %v7169 = vunpack.c.l.b16 %v7026
        %v7170 = vunpack.c.h.b16 %v7026
        %v7171 = vunpack.c.l.b16 %v7027
        %v7172 = vunpack.c.h.b16 %v7027
        %v7173 = vunpack.c.l.b16 %v7028
        %v7174 = vunpack.c.h.b16 %v7028
        %v7175 = vunpack.c.l.b16 %v7029
        %v7176 = vunpack.c.h.b16 %v7029
        %v7177 = vunpack.c.l.b16 %v7030
        %v7178 = vunpack.c.h.b16 %v7030
        %v7179 = vunpack.c.l.b16 %v7031
        %v7180 = vunpack.c.h.b16 %v7031
        %v7181 = vunpack.c.l.b16 %v7032
        %v7182 = vunpack.c.h.b16 %v7032
        %v7183 = vunpack.c.l.b16 %v7033
        %v7184 = vunpack.c.h.b16 %v7033
        %v7185 = vunpack.c.l.b16 %v7034
        %v7186 = vunpack.c.h.b16 %v7034
        %v7187 = vunpack.c.l.b16 %v7035
        %v7188 = vunpack.c.h.b16 %v7035
        %v7189 = vunpack.c.l.b16 %v7036
        %v7190 = vunpack.c.h.b16 %v7036
        %v7191 = vunpack.c.l.b16 %v7037
        %v7192 = vunpack.c.h.b16 %v7037
        %v7193 = vunpack.c.l.b16 %v7038
        %v7194 = vunpack.c.h.b16 %v7038
        %v7195 = vunpack.c.l.b16 %v7039
        %v7196 = vunpack.c.h.b16 %v7039
        %v7197 = vunpack.c.l.b16 %v7040
        %v7198 = vunpack.c.h.b16 %v7040
        %v7199 = vunpack.c.l.b16 %v7041
        %v7200 = vunpack.c.h.b16 %v7041
        %v7201 = vunpack.c.l.b16 %v7042
        %v7202 = vunpack.c.h.b16 %v7042
        %v7203 = vunpack.c.l.b16 %v7043
        %v7204 = vunpack.c.h.b16 %v7043
        %v7205 = vunpack.c.l.b16 %v7044
        %v7206 = vunpack.c.h.b16 %v7044
        %v7207 = vunpack.c.l.b16 %v7045
        %v7208 = vunpack.c.h.b16 %v7045
        %v7209 = vunpack.c.l.b16 %v7046
        %v7210 = vunpack.c.h.b16 %v7046
        %v7211 = vunpack.c.l.b16 %v7047
        %v7212 = vunpack.c.h.b16 %v7047
        %v7213 = vunpack.c.l.b16 %v7048
        %v7214 = vunpack.c.h.b16 %v7048
        %v7215 = vunpack.c.l.b16 %v7049
        %v7216 = vunpack.c.h.b16 %v7049
        %v7217 = vunpack.c.l.b16 %v7050
        %v7218 = vunpack.c.h.b16 %v7050
        %v7219 = vunpack.c.l.b16 %v7051
        %v7220 = vunpack.c.h.b16 %v7051
        %v7221 = vunpack.c.l.b16 %v7052
        %v7222 = vunpack.c.h.b16 %v7052
        %v7223 = vunpack.c.l.b16 %v7053
        %v7224 = vunpack.c.h.b16 %v7053
        %v7225 = vunpack.c.l.b16 %v7054
        %v7226 = vunpack.c.h.b16 %v7054
        %v7227 = vunpack.c.l.b16 %v7055
        %v7228 = vunpack.c.h.b16 %v7055
        %v7229 = vunpack.c.l.b16 %v7056
        %v7230 = vunpack.c.h.b16 %v7056
        %v7231 = vunpack.c.l.b16 %v7057
        %v7232 = vunpack.c.h.b16 %v7057
        %v7233 = vunpack.c.l.b16 %v7058
        %v7234 = vunpack.c.h.b16 %v7058
        %v7235 = vunpack.c.l.b16 %v7059
        %v7236 = vunpack.c.h.b16 %v7059
        %v7237 = vunpack.c.l.b16 %v7060
        %v7238 = vunpack.c.h.b16 %v7060
        %v7239 = vunpack.c.l.b16 %v7061
        %v7240 = vunpack.c.h.b16 %v7061
        %v7241 = vunpack.c.l.b16 %v7062
        %v7242 = vunpack.c.h.b16 %v7062
        %v7243 = vunpack.c.l.b16 %v7063
        %v7244 = vunpack.c.h.b16 %v7063
        %v7245 = vunpack.c.l.b16 %v7064
        %v7246 = vunpack.c.h.b16 %v7064
        %v7247 = vunpack.c.l.b16 %v7065
        %v7248 = vunpack.c.h.b16 %v7065
        %v7249 = vunpack.c.l.b16 %v7066
        %v7250 = vunpack.c.h.b16 %v7066
        %v7251 = vunpack.c.l.b16 %v7067
        %v7252 = vunpack.c.h.b16 %v7067
        %v7253 = vunpack.c.l.b16 %v7068
        %v7254 = vunpack.c.h.b16 %v7068
        %v7255 = vunpack.c.l.b16 %v7069
        %v7256 = vunpack.c.h.b16 %v7069
        %v7257 = vunpack.c.l.b16 %v7070
        %v7258 = vunpack.c.h.b16 %v7070
        %v7259 = vunpack.c.l.b16 %v7071
        %v7260 = vunpack.c.h.b16 %v7071
        %v7261 = vunpack.c.l.b16 %v7072
        %v7262 = vunpack.c.h.b16 %v7072
        %v7263 = vunpack.c.l.b16 %v7073
        %v7264 = vunpack.c.h.b16 %v7073
        %v7265 = vunpack.c.l.b16 %v7074
        %v7266 = vunpack.c.h.b16 %v7074
        %v7267 = vpack.c.b16 %v7147, %v7139
        %v7268 = vpack.c.b16 %v7148, %v7140
        %v7269 = vpack.c.b16 %v7149, %v7141
        %v7270 = vpack.c.b16 %v7150, %v7142
        %v7271 = vpack.c.b16 %v7151, %v7143
        %v7272 = vpack.c.b16 %v7152, %v7144
        %v7273 = vpack.c.b16 %v7153, %v7145
        %v7274 = vpack.c.b16 %v7154, %v7146
        %v7275 = vpack.c.b16 %v7163, %v7155
        %v7276 = vpack.c.b16 %v7164, %v7156
        %v7277 = vpack.c.b16 %v7165, %v7157
        %v7278 = vpack.c.b16 %v7166, %v7158
        %v7279 = vpack.c.b16 %v7167, %v7159
        %v7280 = vpack.c.b16 %v7168, %v7160
        %v7281 = vpack.c.b16 %v7169, %v7161
        %v7282 = vpack.c.b16 %v7170, %v7162
        %v7283 = vpack.c.b16 %v7179, %v7171
        %v7284 = vpack.c.b16 %v7180, %v7172
        %v7285 = vpack.c.b16 %v7181, %v7173
        %v7286 = vpack.c.b16 %v7182, %v7174
        %v7287 = vpack.c.b16 %v7183, %v7175
        %v7288 = vpack.c.b16 %v7184, %v7176
        %v7289 = vpack.c.b16 %v7185, %v7177
        %v7290 = vpack.c.b16 %v7186, %v7178
        %v7291 = vpack.c.b16 %v7195, %v7187
        %v7292 = vpack.c.b16 %v7196, %v7188
        %v7293 = vpack.c.b16 %v7197, %v7189
        %v7294 = vpack.c.b16 %v7198, %v7190
        %v7295 = vpack.c.b16 %v7199, %v7191
        %v7296 = vpack.c.b16 %v7200, %v7192
        %v7297 = vpack.c.b16 %v7201, %v7193
        %v7298 = vpack.c.b16 %v7202, %v7194
        %v7299 = vpack.c.b16 %v7211, %v7203
        %v7300 = vpack.c.b16 %v7212, %v7204
        %v7301 = vpack.c.b16 %v7213, %v7205
        %v7302 = vpack.c.b16 %v7214, %v7206
        %v7303 = vpack.c.b16 %v7215, %v7207
        %v7304 = vpack.c.b16 %v7216, %v7208
        %v7305 = vpack.c.b16 %v7217, %v7209
        %v7306 = vpack.c.b16 %v7218, %v7210
        %v7307 = vpack.c.b16 %v7227, %v7219
        %v7308 = vpack.c.b16 %v7228, %v7220
        %v7309 = vpack.c.b16 %v7229, %v7221
        %v7310 = vpack.c.b16 %v7230, %v7222
        %v7311 = vpack.c.b16 %v7231, %v7223
        %v7312 = vpack.c.b16 %v7232, %v7224
        %v7313 = vpack.c.b16 %v7233, %v7225
        %v7314 = vpack.c.b16 %v7234, %v7226
        %v7315 = vpack.c.b16 %v7243, %v7235
        %v7316 = vpack.c.b16 %v7244, %v7236
        %v7317 = vpack.c.b16 %v7245, %v7237
        %v7318 = vpack.c.b16 %v7246, %v7238
        %v7319 = vpack.c.b16 %v7247, %v7239
        %v7320 = vpack.c.b16 %v7248, %v7240
        %v7321 = vpack.c.b16 %v7249, %v7241
        %v7322 = vpack.c.b16 %v7250, %v7242
        %v7323 = vpack.c.b16 %v7259, %v7251
        %v7324 = vpack.c.b16 %v7260, %v7252
        %v7325 = vpack.c.b16 %v7261, %v7253
        %v7326 = vpack.c.b16 %v7262, %v7254
        %v7327 = vpack.c.b16 %v7263, %v7255
        %v7328 = vpack.c.b16 %v7264, %v7256
        %v7329 = vpack.c.b16 %v7265, %v7257
        %v7330 = vpack.c.b16 %v7266, %v7258
        %7395 = vmatpush.bf16.msra.mxu0 %v7323
        %7396 = vmatpush.bf16.msra.mxu0 %v7315
        %7397 = vmatpush.bf16.msra.mxu0 %v7307
        %7398 = vmatpush.bf16.msra.mxu0 %v7299
        %7399 = vmatpush.bf16.msra.mxu0 %v7291
        %7400 = vmatpush.bf16.msra.mxu0 %v7283
        %7401 = vmatpush.bf16.msra.mxu0 %v7275
        %7402 = vmatpush.bf16.msra.mxu0 %v7267
        %7403 = vmatmul.bf16.gmra.mxu0 %v7009
        %v7404 = vpop.f32.mrf.mxu0
        %v7405 = vadd.f32 0.0, %v7404
        %v7406 = vpop.f32.mrf.mxu0
        %7407 = vdwg.mxu0
        %7408 = vmatpush.bf16.msra.mxu0 %v7324
        %7409 = vmatpush.bf16.msra.mxu0 %v7316
        %7410 = vmatpush.bf16.msra.mxu0 %v7308
        %7411 = vmatpush.bf16.msra.mxu0 %v7300
        %7412 = vmatpush.bf16.msra.mxu0 %v7292
        %7413 = vmatpush.bf16.msra.mxu0 %v7284
        %7414 = vmatpush.bf16.msra.mxu0 %v7276
        %7415 = vmatpush.bf16.msra.mxu0 %v7268
        %7416 = vmatmul.bf16.gmra.mxu0 %v7009
        %v7417 = vpop.f32.mrf.mxu0
        %v7418 = vadd.f32 0.0, %v7417
        %v7419 = vpop.f32.mrf.mxu0
        %7420 = vdwg.mxu0
        %7421 = vmatpush.bf16.msra.mxu0 %v7325
        %7422 = vmatpush.bf16.msra.mxu0 %v7317
        %7423 = vmatpush.bf16.msra.mxu0 %v7309
        %7424 = vmatpush.bf16.msra.mxu0 %v7301
        %7425 = vmatpush.bf16.msra.mxu0 %v7293
        %7426 = vmatpush.bf16.msra.mxu0 %v7285
        %7427 = vmatpush.bf16.msra.mxu0 %v7277
        %7428 = vmatpush.bf16.msra.mxu0 %v7269
        %7429 = vmatmul.bf16.gmra.mxu0 %v7009
        %v7430 = vpop.f32.mrf.mxu0
        %v7431 = vadd.f32 0.0, %v7430
        %v7432 = vpop.f32.mrf.mxu0
        %7433 = vdwg.mxu0
        %7434 = vmatpush.bf16.msra.mxu0 %v7326
        %7435 = vmatpush.bf16.msra.mxu0 %v7318
        %7436 = vmatpush.bf16.msra.mxu0 %v7310
        %7437 = vmatpush.bf16.msra.mxu0 %v7302
        %7438 = vmatpush.bf16.msra.mxu0 %v7294
        %7439 = vmatpush.bf16.msra.mxu0 %v7286
        %7440 = vmatpush.bf16.msra.mxu0 %v7278
        %7441 = vmatpush.bf16.msra.mxu0 %v7270
        %7442 = vmatmul.bf16.gmra.mxu0 %v7009
        %v7443 = vpop.f32.mrf.mxu0
        %v7444 = vadd.f32 0.0, %v7443
        %v7445 = vpop.f32.mrf.mxu0
        %7446 = vdwg.mxu0
        %7447 = vmatpush.bf16.msra.mxu0 %v7327
        %7448 = vmatpush.bf16.msra.mxu0 %v7319
        %7449 = vmatpush.bf16.msra.mxu0 %v7311
        %7450 = vmatpush.bf16.msra.mxu0 %v7303
        %7451 = vmatpush.bf16.msra.mxu0 %v7295
        %7452 = vmatpush.bf16.msra.mxu0 %v7287
        %7453 = vmatpush.bf16.msra.mxu0 %v7279
        %7454 = vmatpush.bf16.msra.mxu0 %v7271
        %7455 = vmatmul.bf16.gmra.mxu0 %v7009
        %v7456 = vpop.f32.mrf.mxu0
        %v7457 = vadd.f32 0.0, %v7456
        %v7458 = vpop.f32.mrf.mxu0
        %7459 = vdwg.mxu0
        %7460 = vmatpush.bf16.msra.mxu0 %v7328
        %7461 = vmatpush.bf16.msra.mxu0 %v7320
        %7462 = vmatpush.bf16.msra.mxu0 %v7312
        %7463 = vmatpush.bf16.msra.mxu0 %v7304
        %7464 = vmatpush.bf16.msra.mxu0 %v7296
        %7465 = vmatpush.bf16.msra.mxu0 %v7288
        %7466 = vmatpush.bf16.msra.mxu0 %v7280
        %7467 = vmatpush.bf16.msra.mxu0 %v7272
        %7468 = vmatmul.bf16.gmra.mxu0 %v7009
        %v7469 = vpop.f32.mrf.mxu0
        %v7470 = vadd.f32 0.0, %v7469
        %v7471 = vpop.f32.mrf.mxu0
        %7472 = vdwg.mxu0
        %7473 = vmatpush.bf16.msra.mxu0 %v7329
        %7474 = vmatpush.bf16.msra.mxu0 %v7321
        %7475 = vmatpush.bf16.msra.mxu0 %v7313
        %7476 = vmatpush.bf16.msra.mxu0 %v7305
        %7477 = vmatpush.bf16.msra.mxu0 %v7297
        %7478 = vmatpush.bf16.msra.mxu0 %v7289
        %7479 = vmatpush.bf16.msra.mxu0 %v7281
        %7480 = vmatpush.bf16.msra.mxu0 %v7273
        %7481 = vmatmul.bf16.gmra.mxu0 %v7009
        %v7482 = vpop.f32.mrf.mxu0
        %v7483 = vadd.f32 0.0, %v7482
        %v7484 = vpop.f32.mrf.mxu0
        %7485 = vdwg.mxu0
        %7486 = vmatpush.bf16.msra.mxu0 %v7330
        %7487 = vmatpush.bf16.msra.mxu0 %v7322
        %7488 = vmatpush.bf16.msra.mxu0 %v7314
        %7489 = vmatpush.bf16.msra.mxu0 %v7306
        %7490 = vmatpush.bf16.msra.mxu0 %v7298
        %7491 = vmatpush.bf16.msra.mxu0 %v7290
        %7492 = vmatpush.bf16.msra.mxu0 %v7282
        %7493 = vmatpush.bf16.msra.mxu0 %v7274
        %7494 = vmatmul.bf16.gmra.mxu0 %v7009
        %v7495 = vpop.f32.mrf.mxu0
        %v7496 = vadd.f32 0.0, %v7495
        %v7497 = vpop.f32.mrf.mxu0
        %7498 = vdwg.mxu0
        %p7499 = scmp.gt.s32.totalorder %s6999, 0
        %s7500 = scalar_select %p7499, %s6999, 0
        %p7501 = scmp.lt.s32.totalorder %s7500, 128
        %s7502 = scalar_select %p7501, %s7500, 128
        %p7503 = scmp.gt.s32.totalorder %s7502, %s7001
        %s7504 = scalar_select %p7503, %s7502, %s7001
        %p7505 = scmp.lt.s32.totalorder %s7504, 128
        %s7506 = scalar_select %p7505, %s7504, 128
        %s7507 = ssub.s32 %s7506, %s7502
        %s7508 = scvt.s32.f32 %s7507
        %v7509 = vstv %s7508
        %v7510 = vrcp.pop %v7509
        %v7511 = vmul.f32 %v7509, %v7510
        %v7512 = vsub.f32 1.0, %v7511
        %v7513 = vmul.f32 %v7510, %v7512
        %v7514 = vadd.f32 %v7510, %v7513
        %vm7515 = vweird.f32 %v7509
        %vm7516 = vweird.f32 %v7510
        %vm7517 = vmor %vm7515, %vm7516
        %v7518 = vsel %vm7517, %v7510, %v7514
        %v7519 = vand.u32 2147483647, %v7509
        %vm7520 = vcmp.eq.f32.partialorder %v7519, 8.507059e+37
        %v7521 = vand.u32 %v7509, 2147483648
        %v7522 = vor.u32 1.1754944e-38, %v7521
        %v7523 = vsel %vm7520, %v7522, %v7518
        %s7524 = vtos %v7523
        %v7525 = vstv %s7524
        %v7526 = vmul.f32 %v7405, %v7525
        %v7527 = vmul.f32 %v7418, %v7525
        %v7528 = vmul.f32 %v7431, %v7525
        %v7529 = vmul.f32 %v7444, %v7525
        %v7530 = vmul.f32 %v7457, %v7525
        %v7531 = vmul.f32 %v7470, %v7525
        %v7532 = vmul.f32 %v7483, %v7525
        %v7533 = vmul.f32 %v7496, %v7525
        %v7542 = vrot.slane %v7527, 7
        %v7543 = vrot.slane %v7528, 6
        %v7544 = vrot.slane %v7529, 5
        %v7545 = vrot.slane %v7530, 4
        %v7546 = vrot.slane %v7531, 3
        %v7547 = vrot.slane %v7532, 2
        %v7548 = vrot.slane %v7533, 1
        %v7549 = vsel %vm787, %v7526, %v7542
        %v7550 = vsel %vm789, %v7543, %v7544
        %v7551 = vsel %vm791, %v7549, %v7550
        %v7552 = vsel %vm793, %v7545, %v7546
        %v7553 = vsel %vm795, %v7547, %v7548
        %v7554 = vsel %vm797, %v7552, %v7553
        %v7555 = vsel %vm799, %v7551, %v7554
        %s7557 = scalar_lea.vmem [#allocation2], 68
        %7558 = vst [vmem:[%s7557] ss:$8 sm:$0xf] %v7555
        %7559 = vst [vmem:[%s7557] ss:$8 sm:$0xf0] %v7555
        %s7560 = sadd.s32 %s236, 13
        %s7561 = smul.u32 %s7560, 128
        %s7562 = sld [smem:[#allocation4 + %s7561]]
        %s7563 = sadd.s32 %s7561, 1
        %s7564 = sld [smem:[#allocation4 + %s7563]]
        %v7565 = vstv %s7562
        %vm7566 = vcmp.ge.s32.totalorder %v235, %v7565
        %v7567 = vstv %s7564
        %vm7568 = vcmp.lt.s32.totalorder %v235, %v7567
        %vm7569 = vmand %vm7566, %vm7568
        %v7570 = vsel %vm7569, 1, 0
        %v7571 = vcvt.s32.f32 %v7570
        %v7572 = vpack.c.bf16 %v7571, %v7571
        %s7573 = scalar_lea.vmem %s198, 6656 [#allocation5]
        %v7574 = vld [vmem:[%s7573] sm:$0xff]
        %v7575 = vld [vmem:[%s7573 + $0x8] sm:$0xff]
        %v7576 = vld [vmem:[%s7573 + $0x10] sm:$0xff]
        %v7577 = vld [vmem:[%s7573 + $0x18] sm:$0xff]
        %v7578 = vld [vmem:[%s7573 + $0x20] sm:$0xff]
        %v7579 = vld [vmem:[%s7573 + $0x28] sm:$0xff]
        %v7580 = vld [vmem:[%s7573 + $0x30] sm:$0xff]
        %v7581 = vld [vmem:[%s7573 + $0x38] sm:$0xff]
        %v7582 = vld [vmem:[%s7573 + $0x40] sm:$0xff]
        %v7583 = vld [vmem:[%s7573 + $0x48] sm:$0xff]
        %v7584 = vld [vmem:[%s7573 + $0x50] sm:$0xff]
        %v7585 = vld [vmem:[%s7573 + $0x58] sm:$0xff]
        %v7586 = vld [vmem:[%s7573 + $0x60] sm:$0xff]
        %v7587 = vld [vmem:[%s7573 + $0x68] sm:$0xff]
        %v7588 = vld [vmem:[%s7573 + $0x70] sm:$0xff]
        %v7589 = vld [vmem:[%s7573 + $0x78] sm:$0xff]
        %v7590 = vld [vmem:[%s7573 + $0x80] sm:$0xff]
        %v7591 = vld [vmem:[%s7573 + $0x88] sm:$0xff]
        %v7592 = vld [vmem:[%s7573 + $0x90] sm:$0xff]
        %v7593 = vld [vmem:[%s7573 + $0x98] sm:$0xff]
        %v7594 = vld [vmem:[%s7573 + $0xa0] sm:$0xff]
        %v7595 = vld [vmem:[%s7573 + $0xa8] sm:$0xff]
        %v7596 = vld [vmem:[%s7573 + $0xb0] sm:$0xff]
        %v7597 = vld [vmem:[%s7573 + $0xb8] sm:$0xff]
        %v7598 = vld [vmem:[%s7573 + $0xc0] sm:$0xff]
        %v7599 = vld [vmem:[%s7573 + $0xc8] sm:$0xff]
        %v7600 = vld [vmem:[%s7573 + $0xd0] sm:$0xff]
        %v7601 = vld [vmem:[%s7573 + $0xd8] sm:$0xff]
        %v7602 = vld [vmem:[%s7573 + $0xe0] sm:$0xff]
        %v7603 = vld [vmem:[%s7573 + $0xe8] sm:$0xff]
        %v7604 = vld [vmem:[%s7573 + $0xf0] sm:$0xff]
        %v7605 = vld [vmem:[%s7573 + $0xf8] sm:$0xff]
        %v7606 = vld [vmem:[%s7573 + $0x100] sm:$0xff]
        %v7607 = vld [vmem:[%s7573 + $0x108] sm:$0xff]
        %v7608 = vld [vmem:[%s7573 + $0x110] sm:$0xff]
        %v7609 = vld [vmem:[%s7573 + $0x118] sm:$0xff]
        %v7610 = vld [vmem:[%s7573 + $0x120] sm:$0xff]
        %v7611 = vld [vmem:[%s7573 + $0x128] sm:$0xff]
        %v7612 = vld [vmem:[%s7573 + $0x130] sm:$0xff]
        %v7613 = vld [vmem:[%s7573 + $0x138] sm:$0xff]
        %v7614 = vld [vmem:[%s7573 + $0x140] sm:$0xff]
        %v7615 = vld [vmem:[%s7573 + $0x148] sm:$0xff]
        %v7616 = vld [vmem:[%s7573 + $0x150] sm:$0xff]
        %v7617 = vld [vmem:[%s7573 + $0x158] sm:$0xff]
        %v7618 = vld [vmem:[%s7573 + $0x160] sm:$0xff]
        %v7619 = vld [vmem:[%s7573 + $0x168] sm:$0xff]
        %v7620 = vld [vmem:[%s7573 + $0x170] sm:$0xff]
        %v7621 = vld [vmem:[%s7573 + $0x178] sm:$0xff]
        %v7622 = vld [vmem:[%s7573 + $0x180] sm:$0xff]
        %v7623 = vld [vmem:[%s7573 + $0x188] sm:$0xff]
        %v7624 = vld [vmem:[%s7573 + $0x190] sm:$0xff]
        %v7625 = vld [vmem:[%s7573 + $0x198] sm:$0xff]
        %v7626 = vld [vmem:[%s7573 + $0x1a0] sm:$0xff]
        %v7627 = vld [vmem:[%s7573 + $0x1a8] sm:$0xff]
        %v7628 = vld [vmem:[%s7573 + $0x1b0] sm:$0xff]
        %v7629 = vld [vmem:[%s7573 + $0x1b8] sm:$0xff]
        %v7630 = vld [vmem:[%s7573 + $0x1c0] sm:$0xff]
        %v7631 = vld [vmem:[%s7573 + $0x1c8] sm:$0xff]
        %v7632 = vld [vmem:[%s7573 + $0x1d0] sm:$0xff]
        %v7633 = vld [vmem:[%s7573 + $0x1d8] sm:$0xff]
        %v7634 = vld [vmem:[%s7573 + $0x1e0] sm:$0xff]
        %v7635 = vld [vmem:[%s7573 + $0x1e8] sm:$0xff]
        %v7636 = vld [vmem:[%s7573 + $0x1f0] sm:$0xff]
        %v7637 = vld [vmem:[%s7573 + $0x1f8] sm:$0xff]
        %v7702 = vunpack.c.l.b16 %v7574
        %v7703 = vunpack.c.h.b16 %v7574
        %v7704 = vunpack.c.l.b16 %v7575
        %v7705 = vunpack.c.h.b16 %v7575
        %v7706 = vunpack.c.l.b16 %v7576
        %v7707 = vunpack.c.h.b16 %v7576
        %v7708 = vunpack.c.l.b16 %v7577
        %v7709 = vunpack.c.h.b16 %v7577
        %v7710 = vunpack.c.l.b16 %v7578
        %v7711 = vunpack.c.h.b16 %v7578
        %v7712 = vunpack.c.l.b16 %v7579
        %v7713 = vunpack.c.h.b16 %v7579
        %v7714 = vunpack.c.l.b16 %v7580
        %v7715 = vunpack.c.h.b16 %v7580
        %v7716 = vunpack.c.l.b16 %v7581
        %v7717 = vunpack.c.h.b16 %v7581
        %v7718 = vunpack.c.l.b16 %v7582
        %v7719 = vunpack.c.h.b16 %v7582
        %v7720 = vunpack.c.l.b16 %v7583
        %v7721 = vunpack.c.h.b16 %v7583
        %v7722 = vunpack.c.l.b16 %v7584
        %v7723 = vunpack.c.h.b16 %v7584
        %v7724 = vunpack.c.l.b16 %v7585
        %v7725 = vunpack.c.h.b16 %v7585
        %v7726 = vunpack.c.l.b16 %v7586
        %v7727 = vunpack.c.h.b16 %v7586
        %v7728 = vunpack.c.l.b16 %v7587
        %v7729 = vunpack.c.h.b16 %v7587
        %v7730 = vunpack.c.l.b16 %v7588
        %v7731 = vunpack.c.h.b16 %v7588
        %v7732 = vunpack.c.l.b16 %v7589
        %v7733 = vunpack.c.h.b16 %v7589
        %v7734 = vunpack.c.l.b16 %v7590
        %v7735 = vunpack.c.h.b16 %v7590
        %v7736 = vunpack.c.l.b16 %v7591
        %v7737 = vunpack.c.h.b16 %v7591
        %v7738 = vunpack.c.l.b16 %v7592
        %v7739 = vunpack.c.h.b16 %v7592
        %v7740 = vunpack.c.l.b16 %v7593
        %v7741 = vunpack.c.h.b16 %v7593
        %v7742 = vunpack.c.l.b16 %v7594
        %v7743 = vunpack.c.h.b16 %v7594
        %v7744 = vunpack.c.l.b16 %v7595
        %v7745 = vunpack.c.h.b16 %v7595
        %v7746 = vunpack.c.l.b16 %v7596
        %v7747 = vunpack.c.h.b16 %v7596
        %v7748 = vunpack.c.l.b16 %v7597
        %v7749 = vunpack.c.h.b16 %v7597
        %v7750 = vunpack.c.l.b16 %v7598
        %v7751 = vunpack.c.h.b16 %v7598
        %v7752 = vunpack.c.l.b16 %v7599
        %v7753 = vunpack.c.h.b16 %v7599
        %v7754 = vunpack.c.l.b16 %v7600
        %v7755 = vunpack.c.h.b16 %v7600
        %v7756 = vunpack.c.l.b16 %v7601
        %v7757 = vunpack.c.h.b16 %v7601
        %v7758 = vunpack.c.l.b16 %v7602
        %v7759 = vunpack.c.h.b16 %v7602
        %v7760 = vunpack.c.l.b16 %v7603
        %v7761 = vunpack.c.h.b16 %v7603
        %v7762 = vunpack.c.l.b16 %v7604
        %v7763 = vunpack.c.h.b16 %v7604
        %v7764 = vunpack.c.l.b16 %v7605
        %v7765 = vunpack.c.h.b16 %v7605
        %v7766 = vunpack.c.l.b16 %v7606
        %v7767 = vunpack.c.h.b16 %v7606
        %v7768 = vunpack.c.l.b16 %v7607
        %v7769 = vunpack.c.h.b16 %v7607
        %v7770 = vunpack.c.l.b16 %v7608
        %v7771 = vunpack.c.h.b16 %v7608
        %v7772 = vunpack.c.l.b16 %v7609
        %v7773 = vunpack.c.h.b16 %v7609
        %v7774 = vunpack.c.l.b16 %v7610
        %v7775 = vunpack.c.h.b16 %v7610
        %v7776 = vunpack.c.l.b16 %v7611
        %v7777 = vunpack.c.h.b16 %v7611
        %v7778 = vunpack.c.l.b16 %v7612
        %v7779 = vunpack.c.h.b16 %v7612
        %v7780 = vunpack.c.l.b16 %v7613
        %v7781 = vunpack.c.h.b16 %v7613
        %v7782 = vunpack.c.l.b16 %v7614
        %v7783 = vunpack.c.h.b16 %v7614
        %v7784 = vunpack.c.l.b16 %v7615
        %v7785 = vunpack.c.h.b16 %v7615
        %v7786 = vunpack.c.l.b16 %v7616
        %v7787 = vunpack.c.h.b16 %v7616
        %v7788 = vunpack.c.l.b16 %v7617
        %v7789 = vunpack.c.h.b16 %v7617
        %v7790 = vunpack.c.l.b16 %v7618
        %v7791 = vunpack.c.h.b16 %v7618
        %v7792 = vunpack.c.l.b16 %v7619
        %v7793 = vunpack.c.h.b16 %v7619
        %v7794 = vunpack.c.l.b16 %v7620
        %v7795 = vunpack.c.h.b16 %v7620
        %v7796 = vunpack.c.l.b16 %v7621
        %v7797 = vunpack.c.h.b16 %v7621
        %v7798 = vunpack.c.l.b16 %v7622
        %v7799 = vunpack.c.h.b16 %v7622
        %v7800 = vunpack.c.l.b16 %v7623
        %v7801 = vunpack.c.h.b16 %v7623
        %v7802 = vunpack.c.l.b16 %v7624
        %v7803 = vunpack.c.h.b16 %v7624
        %v7804 = vunpack.c.l.b16 %v7625
        %v7805 = vunpack.c.h.b16 %v7625
        %v7806 = vunpack.c.l.b16 %v7626
        %v7807 = vunpack.c.h.b16 %v7626
        %v7808 = vunpack.c.l.b16 %v7627
        %v7809 = vunpack.c.h.b16 %v7627
        %v7810 = vunpack.c.l.b16 %v7628
        %v7811 = vunpack.c.h.b16 %v7628
        %v7812 = vunpack.c.l.b16 %v7629
        %v7813 = vunpack.c.h.b16 %v7629
        %v7814 = vunpack.c.l.b16 %v7630
        %v7815 = vunpack.c.h.b16 %v7630
        %v7816 = vunpack.c.l.b16 %v7631
        %v7817 = vunpack.c.h.b16 %v7631
        %v7818 = vunpack.c.l.b16 %v7632
        %v7819 = vunpack.c.h.b16 %v7632
        %v7820 = vunpack.c.l.b16 %v7633
        %v7821 = vunpack.c.h.b16 %v7633
        %v7822 = vunpack.c.l.b16 %v7634
        %v7823 = vunpack.c.h.b16 %v7634
        %v7824 = vunpack.c.l.b16 %v7635
        %v7825 = vunpack.c.h.b16 %v7635
        %v7826 = vunpack.c.l.b16 %v7636
        %v7827 = vunpack.c.h.b16 %v7636
        %v7828 = vunpack.c.l.b16 %v7637
        %v7829 = vunpack.c.h.b16 %v7637
        %v7830 = vpack.c.b16 %v7710, %v7702
        %v7831 = vpack.c.b16 %v7711, %v7703
        %v7832 = vpack.c.b16 %v7712, %v7704
        %v7833 = vpack.c.b16 %v7713, %v7705
        %v7834 = vpack.c.b16 %v7714, %v7706
        %v7835 = vpack.c.b16 %v7715, %v7707
        %v7836 = vpack.c.b16 %v7716, %v7708
        %v7837 = vpack.c.b16 %v7717, %v7709
        %v7838 = vpack.c.b16 %v7726, %v7718
        %v7839 = vpack.c.b16 %v7727, %v7719
        %v7840 = vpack.c.b16 %v7728, %v7720
        %v7841 = vpack.c.b16 %v7729, %v7721
        %v7842 = vpack.c.b16 %v7730, %v7722
        %v7843 = vpack.c.b16 %v7731, %v7723
        %v7844 = vpack.c.b16 %v7732, %v7724
        %v7845 = vpack.c.b16 %v7733, %v7725
        %v7846 = vpack.c.b16 %v7742, %v7734
        %v7847 = vpack.c.b16 %v7743, %v7735
        %v7848 = vpack.c.b16 %v7744, %v7736
        %v7849 = vpack.c.b16 %v7745, %v7737
        %v7850 = vpack.c.b16 %v7746, %v7738
        %v7851 = vpack.c.b16 %v7747, %v7739
        %v7852 = vpack.c.b16 %v7748, %v7740
        %v7853 = vpack.c.b16 %v7749, %v7741
        %v7854 = vpack.c.b16 %v7758, %v7750
        %v7855 = vpack.c.b16 %v7759, %v7751
        %v7856 = vpack.c.b16 %v7760, %v7752
        %v7857 = vpack.c.b16 %v7761, %v7753
        %v7858 = vpack.c.b16 %v7762, %v7754
        %v7859 = vpack.c.b16 %v7763, %v7755
        %v7860 = vpack.c.b16 %v7764, %v7756
        %v7861 = vpack.c.b16 %v7765, %v7757
        %v7862 = vpack.c.b16 %v7774, %v7766
        %v7863 = vpack.c.b16 %v7775, %v7767
        %v7864 = vpack.c.b16 %v7776, %v7768
        %v7865 = vpack.c.b16 %v7777, %v7769
        %v7866 = vpack.c.b16 %v7778, %v7770
        %v7867 = vpack.c.b16 %v7779, %v7771
        %v7868 = vpack.c.b16 %v7780, %v7772
        %v7869 = vpack.c.b16 %v7781, %v7773
        %v7870 = vpack.c.b16 %v7790, %v7782
        %v7871 = vpack.c.b16 %v7791, %v7783
        %v7872 = vpack.c.b16 %v7792, %v7784
        %v7873 = vpack.c.b16 %v7793, %v7785
        %v7874 = vpack.c.b16 %v7794, %v7786
        %v7875 = vpack.c.b16 %v7795, %v7787
        %v7876 = vpack.c.b16 %v7796, %v7788
        %v7877 = vpack.c.b16 %v7797, %v7789
        %v7878 = vpack.c.b16 %v7806, %v7798
        %v7879 = vpack.c.b16 %v7807, %v7799
        %v7880 = vpack.c.b16 %v7808, %v7800
        %v7881 = vpack.c.b16 %v7809, %v7801
        %v7882 = vpack.c.b16 %v7810, %v7802
        %v7883 = vpack.c.b16 %v7811, %v7803
        %v7884 = vpack.c.b16 %v7812, %v7804
        %v7885 = vpack.c.b16 %v7813, %v7805
        %v7886 = vpack.c.b16 %v7822, %v7814
        %v7887 = vpack.c.b16 %v7823, %v7815
        %v7888 = vpack.c.b16 %v7824, %v7816
        %v7889 = vpack.c.b16 %v7825, %v7817
        %v7890 = vpack.c.b16 %v7826, %v7818
        %v7891 = vpack.c.b16 %v7827, %v7819
        %v7892 = vpack.c.b16 %v7828, %v7820
        %v7893 = vpack.c.b16 %v7829, %v7821
        %7958 = vmatpush.bf16.msra.mxu0 %v7886
        %7959 = vmatpush.bf16.msra.mxu0 %v7878
        %7960 = vmatpush.bf16.msra.mxu0 %v7870
        %7961 = vmatpush.bf16.msra.mxu0 %v7862
        %7962 = vmatpush.bf16.msra.mxu0 %v7854
        %7963 = vmatpush.bf16.msra.mxu0 %v7846
        %7964 = vmatpush.bf16.msra.mxu0 %v7838
        %7965 = vmatpush.bf16.msra.mxu0 %v7830
        %7966 = vmatmul.bf16.gmra.mxu0 %v7572
        %v7967 = vpop.f32.mrf.mxu0
        %v7968 = vadd.f32 0.0, %v7967
        %v7969 = vpop.f32.mrf.mxu0
        %7970 = vdwg.mxu0
        %7971 = vmatpush.bf16.msra.mxu0 %v7887
        %7972 = vmatpush.bf16.msra.mxu0 %v7879
        %7973 = vmatpush.bf16.msra.mxu0 %v7871
        %7974 = vmatpush.bf16.msra.mxu0 %v7863
        %7975 = vmatpush.bf16.msra.mxu0 %v7855
        %7976 = vmatpush.bf16.msra.mxu0 %v7847
        %7977 = vmatpush.bf16.msra.mxu0 %v7839
        %7978 = vmatpush.bf16.msra.mxu0 %v7831
        %7979 = vmatmul.bf16.gmra.mxu0 %v7572
        %v7980 = vpop.f32.mrf.mxu0
        %v7981 = vadd.f32 0.0, %v7980
        %v7982 = vpop.f32.mrf.mxu0
        %7983 = vdwg.mxu0
        %7984 = vmatpush.bf16.msra.mxu0 %v7888
        %7985 = vmatpush.bf16.msra.mxu0 %v7880
        %7986 = vmatpush.bf16.msra.mxu0 %v7872
        %7987 = vmatpush.bf16.msra.mxu0 %v7864
        %7988 = vmatpush.bf16.msra.mxu0 %v7856
        %7989 = vmatpush.bf16.msra.mxu0 %v7848
        %7990 = vmatpush.bf16.msra.mxu0 %v7840
        %7991 = vmatpush.bf16.msra.mxu0 %v7832
        %7992 = vmatmul.bf16.gmra.mxu0 %v7572
        %v7993 = vpop.f32.mrf.mxu0
        %v7994 = vadd.f32 0.0, %v7993
        %v7995 = vpop.f32.mrf.mxu0
        %7996 = vdwg.mxu0
        %7997 = vmatpush.bf16.msra.mxu0 %v7889
        %7998 = vmatpush.bf16.msra.mxu0 %v7881
        %7999 = vmatpush.bf16.msra.mxu0 %v7873
        %8000 = vmatpush.bf16.msra.mxu0 %v7865
        %8001 = vmatpush.bf16.msra.mxu0 %v7857
        %8002 = vmatpush.bf16.msra.mxu0 %v7849
        %8003 = vmatpush.bf16.msra.mxu0 %v7841
        %8004 = vmatpush.bf16.msra.mxu0 %v7833
        %8005 = vmatmul.bf16.gmra.mxu0 %v7572
        %v8006 = vpop.f32.mrf.mxu0
        %v8007 = vadd.f32 0.0, %v8006
        %v8008 = vpop.f32.mrf.mxu0
        %8009 = vdwg.mxu0
        %8010 = vmatpush.bf16.msra.mxu0 %v7890
        %8011 = vmatpush.bf16.msra.mxu0 %v7882
        %8012 = vmatpush.bf16.msra.mxu0 %v7874
        %8013 = vmatpush.bf16.msra.mxu0 %v7866
        %8014 = vmatpush.bf16.msra.mxu0 %v7858
        %8015 = vmatpush.bf16.msra.mxu0 %v7850
        %8016 = vmatpush.bf16.msra.mxu0 %v7842
        %8017 = vmatpush.bf16.msra.mxu0 %v7834
        %8018 = vmatmul.bf16.gmra.mxu0 %v7572
        %v8019 = vpop.f32.mrf.mxu0
        %v8020 = vadd.f32 0.0, %v8019
        %v8021 = vpop.f32.mrf.mxu0
        %8022 = vdwg.mxu0
        %8023 = vmatpush.bf16.msra.mxu0 %v7891
        %8024 = vmatpush.bf16.msra.mxu0 %v7883
        %8025 = vmatpush.bf16.msra.mxu0 %v7875
        %8026 = vmatpush.bf16.msra.mxu0 %v7867
        %8027 = vmatpush.bf16.msra.mxu0 %v7859
        %8028 = vmatpush.bf16.msra.mxu0 %v7851
        %8029 = vmatpush.bf16.msra.mxu0 %v7843
        %8030 = vmatpush.bf16.msra.mxu0 %v7835
        %8031 = vmatmul.bf16.gmra.mxu0 %v7572
        %v8032 = vpop.f32.mrf.mxu0
        %v8033 = vadd.f32 0.0, %v8032
        %v8034 = vpop.f32.mrf.mxu0
        %8035 = vdwg.mxu0
        %8036 = vmatpush.bf16.msra.mxu0 %v7892
        %8037 = vmatpush.bf16.msra.mxu0 %v7884
        %8038 = vmatpush.bf16.msra.mxu0 %v7876
        %8039 = vmatpush.bf16.msra.mxu0 %v7868
        %8040 = vmatpush.bf16.msra.mxu0 %v7860
        %8041 = vmatpush.bf16.msra.mxu0 %v7852
        %8042 = vmatpush.bf16.msra.mxu0 %v7844
        %8043 = vmatpush.bf16.msra.mxu0 %v7836
        %8044 = vmatmul.bf16.gmra.mxu0 %v7572
        %v8045 = vpop.f32.mrf.mxu0
        %v8046 = vadd.f32 0.0, %v8045
        %v8047 = vpop.f32.mrf.mxu0
        %8048 = vdwg.mxu0
        %8049 = vmatpush.bf16.msra.mxu0 %v7893
        %8050 = vmatpush.bf16.msra.mxu0 %v7885
        %8051 = vmatpush.bf16.msra.mxu0 %v7877
        %8052 = vmatpush.bf16.msra.mxu0 %v7869
        %8053 = vmatpush.bf16.msra.mxu0 %v7861
        %8054 = vmatpush.bf16.msra.mxu0 %v7853
        %8055 = vmatpush.bf16.msra.mxu0 %v7845
        %8056 = vmatpush.bf16.msra.mxu0 %v7837
        %8057 = vmatmul.bf16.gmra.mxu0 %v7572
        %v8058 = vpop.f32.mrf.mxu0
        %v8059 = vadd.f32 0.0, %v8058
        %v8060 = vpop.f32.mrf.mxu0
        %8061 = vdwg.mxu0
        %p8062 = scmp.gt.s32.totalorder %s7562, 0
        %s8063 = scalar_select %p8062, %s7562, 0
        %p8064 = scmp.lt.s32.totalorder %s8063, 128
        %s8065 = scalar_select %p8064, %s8063, 128
        %p8066 = scmp.gt.s32.totalorder %s8065, %s7564
        %s8067 = scalar_select %p8066, %s8065, %s7564
        %p8068 = scmp.lt.s32.totalorder %s8067, 128
        %s8069 = scalar_select %p8068, %s8067, 128
        %s8070 = ssub.s32 %s8069, %s8065
        %s8071 = scvt.s32.f32 %s8070
        %v8072 = vstv %s8071
        %v8073 = vrcp.pop %v8072
        %v8074 = vmul.f32 %v8072, %v8073
        %v8075 = vsub.f32 1.0, %v8074
        %v8076 = vmul.f32 %v8073, %v8075
        %v8077 = vadd.f32 %v8073, %v8076
        %vm8078 = vweird.f32 %v8072
        %vm8079 = vweird.f32 %v8073
        %vm8080 = vmor %vm8078, %vm8079
        %v8081 = vsel %vm8080, %v8073, %v8077
        %v8082 = vand.u32 2147483647, %v8072
        %vm8083 = vcmp.eq.f32.partialorder %v8082, 8.507059e+37
        %v8084 = vand.u32 %v8072, 2147483648
        %v8085 = vor.u32 1.1754944e-38, %v8084
        %v8086 = vsel %vm8083, %v8085, %v8081
        %s8087 = vtos %v8086
        %v8088 = vstv %s8087
        %v8089 = vmul.f32 %v7968, %v8088
        %v8090 = vmul.f32 %v7981, %v8088
        %v8091 = vmul.f32 %v7994, %v8088
        %v8092 = vmul.f32 %v8007, %v8088
        %v8093 = vmul.f32 %v8020, %v8088
        %v8094 = vmul.f32 %v8033, %v8088
        %v8095 = vmul.f32 %v8046, %v8088
        %v8096 = vmul.f32 %v8059, %v8088
        %v8105 = vrot.slane %v8090, 7
        %v8106 = vrot.slane %v8091, 6
        %v8107 = vrot.slane %v8092, 5
        %v8108 = vrot.slane %v8093, 4
        %v8109 = vrot.slane %v8094, 3
        %v8110 = vrot.slane %v8095, 2
        %v8111 = vrot.slane %v8096, 1
        %v8112 = vsel %vm787, %v8089, %v8105
        %v8113 = vsel %vm789, %v8106, %v8107
        %v8114 = vsel %vm791, %v8112, %v8113
        %v8115 = vsel %vm793, %v8108, %v8109
        %v8116 = vsel %vm795, %v8110, %v8111
        %v8117 = vsel %vm797, %v8115, %v8116
        %v8118 = vsel %vm799, %v8114, %v8117
        %s8120 = scalar_lea.vmem [#allocation2], 69
        %8121 = vst [vmem:[%s8120] ss:$8 sm:$0xf] %v8118
        %8122 = vst [vmem:[%s8120] ss:$8 sm:$0xf0] %v8118
        %s8123 = sadd.s32 %s236, 14
        %s8124 = smul.u32 %s8123, 128
        %s8125 = sld [smem:[#allocation4 + %s8124]]
        %s8126 = sadd.s32 %s8124, 1
        %s8127 = sld [smem:[#allocation4 + %s8126]]
        %v8128 = vstv %s8125
        %vm8129 = vcmp.ge.s32.totalorder %v235, %v8128
        %v8130 = vstv %s8127
        %vm8131 = vcmp.lt.s32.totalorder %v235, %v8130
        %vm8132 = vmand %vm8129, %vm8131
        %v8133 = vsel %vm8132, 1, 0
        %v8134 = vcvt.s32.f32 %v8133
        %v8135 = vpack.c.bf16 %v8134, %v8134
        %s8136 = scalar_lea.vmem %s198, 7168 [#allocation5]
        %v8137 = vld [vmem:[%s8136] sm:$0xff]
        %v8138 = vld [vmem:[%s8136 + $0x8] sm:$0xff]
        %v8139 = vld [vmem:[%s8136 + $0x10] sm:$0xff]
        %v8140 = vld [vmem:[%s8136 + $0x18] sm:$0xff]
        %v8141 = vld [vmem:[%s8136 + $0x20] sm:$0xff]
        %v8142 = vld [vmem:[%s8136 + $0x28] sm:$0xff]
        %v8143 = vld [vmem:[%s8136 + $0x30] sm:$0xff]
        %v8144 = vld [vmem:[%s8136 + $0x38] sm:$0xff]
        %v8145 = vld [vmem:[%s8136 + $0x40] sm:$0xff]
        %v8146 = vld [vmem:[%s8136 + $0x48] sm:$0xff]
        %v8147 = vld [vmem:[%s8136 + $0x50] sm:$0xff]
        %v8148 = vld [vmem:[%s8136 + $0x58] sm:$0xff]
        %v8149 = vld [vmem:[%s8136 + $0x60] sm:$0xff]
        %v8150 = vld [vmem:[%s8136 + $0x68] sm:$0xff]
        %v8151 = vld [vmem:[%s8136 + $0x70] sm:$0xff]
        %v8152 = vld [vmem:[%s8136 + $0x78] sm:$0xff]
        %v8153 = vld [vmem:[%s8136 + $0x80] sm:$0xff]
        %v8154 = vld [vmem:[%s8136 + $0x88] sm:$0xff]
        %v8155 = vld [vmem:[%s8136 + $0x90] sm:$0xff]
        %v8156 = vld [vmem:[%s8136 + $0x98] sm:$0xff]
        %v8157 = vld [vmem:[%s8136 + $0xa0] sm:$0xff]
        %v8158 = vld [vmem:[%s8136 + $0xa8] sm:$0xff]
        %v8159 = vld [vmem:[%s8136 + $0xb0] sm:$0xff]
        %v8160 = vld [vmem:[%s8136 + $0xb8] sm:$0xff]
        %v8161 = vld [vmem:[%s8136 + $0xc0] sm:$0xff]
        %v8162 = vld [vmem:[%s8136 + $0xc8] sm:$0xff]
        %v8163 = vld [vmem:[%s8136 + $0xd0] sm:$0xff]
        %v8164 = vld [vmem:[%s8136 + $0xd8] sm:$0xff]
        %v8165 = vld [vmem:[%s8136 + $0xe0] sm:$0xff]
        %v8166 = vld [vmem:[%s8136 + $0xe8] sm:$0xff]
        %v8167 = vld [vmem:[%s8136 + $0xf0] sm:$0xff]
        %v8168 = vld [vmem:[%s8136 + $0xf8] sm:$0xff]
        %v8169 = vld [vmem:[%s8136 + $0x100] sm:$0xff]
        %v8170 = vld [vmem:[%s8136 + $0x108] sm:$0xff]
        %v8171 = vld [vmem:[%s8136 + $0x110] sm:$0xff]
        %v8172 = vld [vmem:[%s8136 + $0x118] sm:$0xff]
        %v8173 = vld [vmem:[%s8136 + $0x120] sm:$0xff]
        %v8174 = vld [vmem:[%s8136 + $0x128] sm:$0xff]
        %v8175 = vld [vmem:[%s8136 + $0x130] sm:$0xff]
        %v8176 = vld [vmem:[%s8136 + $0x138] sm:$0xff]
        %v8177 = vld [vmem:[%s8136 + $0x140] sm:$0xff]
        %v8178 = vld [vmem:[%s8136 + $0x148] sm:$0xff]
        %v8179 = vld [vmem:[%s8136 + $0x150] sm:$0xff]
        %v8180 = vld [vmem:[%s8136 + $0x158] sm:$0xff]
        %v8181 = vld [vmem:[%s8136 + $0x160] sm:$0xff]
        %v8182 = vld [vmem:[%s8136 + $0x168] sm:$0xff]
        %v8183 = vld [vmem:[%s8136 + $0x170] sm:$0xff]
        %v8184 = vld [vmem:[%s8136 + $0x178] sm:$0xff]
        %v8185 = vld [vmem:[%s8136 + $0x180] sm:$0xff]
        %v8186 = vld [vmem:[%s8136 + $0x188] sm:$0xff]
        %v8187 = vld [vmem:[%s8136 + $0x190] sm:$0xff]
        %v8188 = vld [vmem:[%s8136 + $0x198] sm:$0xff]
        %v8189 = vld [vmem:[%s8136 + $0x1a0] sm:$0xff]
        %v8190 = vld [vmem:[%s8136 + $0x1a8] sm:$0xff]
        %v8191 = vld [vmem:[%s8136 + $0x1b0] sm:$0xff]
        %v8192 = vld [vmem:[%s8136 + $0x1b8] sm:$0xff]
        %v8193 = vld [vmem:[%s8136 + $0x1c0] sm:$0xff]
        %v8194 = vld [vmem:[%s8136 + $0x1c8] sm:$0xff]
        %v8195 = vld [vmem:[%s8136 + $0x1d0] sm:$0xff]
        %v8196 = vld [vmem:[%s8136 + $0x1d8] sm:$0xff]
        %v8197 = vld [vmem:[%s8136 + $0x1e0] sm:$0xff]
        %v8198 = vld [vmem:[%s8136 + $0x1e8] sm:$0xff]
        %v8199 = vld [vmem:[%s8136 + $0x1f0] sm:$0xff]
        %v8200 = vld [vmem:[%s8136 + $0x1f8] sm:$0xff]
        %v8265 = vunpack.c.l.b16 %v8137
        %v8266 = vunpack.c.h.b16 %v8137
        %v8267 = vunpack.c.l.b16 %v8138
        %v8268 = vunpack.c.h.b16 %v8138
        %v8269 = vunpack.c.l.b16 %v8139
        %v8270 = vunpack.c.h.b16 %v8139
        %v8271 = vunpack.c.l.b16 %v8140
        %v8272 = vunpack.c.h.b16 %v8140
        %v8273 = vunpack.c.l.b16 %v8141
        %v8274 = vunpack.c.h.b16 %v8141
        %v8275 = vunpack.c.l.b16 %v8142
        %v8276 = vunpack.c.h.b16 %v8142
        %v8277 = vunpack.c.l.b16 %v8143
        %v8278 = vunpack.c.h.b16 %v8143
        %v8279 = vunpack.c.l.b16 %v8144
        %v8280 = vunpack.c.h.b16 %v8144
        %v8281 = vunpack.c.l.b16 %v8145
        %v8282 = vunpack.c.h.b16 %v8145
        %v8283 = vunpack.c.l.b16 %v8146
        %v8284 = vunpack.c.h.b16 %v8146
        %v8285 = vunpack.c.l.b16 %v8147
        %v8286 = vunpack.c.h.b16 %v8147
        %v8287 = vunpack.c.l.b16 %v8148
        %v8288 = vunpack.c.h.b16 %v8148
        %v8289 = vunpack.c.l.b16 %v8149
        %v8290 = vunpack.c.h.b16 %v8149
        %v8291 = vunpack.c.l.b16 %v8150
        %v8292 = vunpack.c.h.b16 %v8150
        %v8293 = vunpack.c.l.b16 %v8151
        %v8294 = vunpack.c.h.b16 %v8151
        %v8295 = vunpack.c.l.b16 %v8152
        %v8296 = vunpack.c.h.b16 %v8152
        %v8297 = vunpack.c.l.b16 %v8153
        %v8298 = vunpack.c.h.b16 %v8153
        %v8299 = vunpack.c.l.b16 %v8154
        %v8300 = vunpack.c.h.b16 %v8154
        %v8301 = vunpack.c.l.b16 %v8155
        %v8302 = vunpack.c.h.b16 %v8155
        %v8303 = vunpack.c.l.b16 %v8156
        %v8304 = vunpack.c.h.b16 %v8156
        %v8305 = vunpack.c.l.b16 %v8157
        %v8306 = vunpack.c.h.b16 %v8157
        %v8307 = vunpack.c.l.b16 %v8158
        %v8308 = vunpack.c.h.b16 %v8158
        %v8309 = vunpack.c.l.b16 %v8159
        %v8310 = vunpack.c.h.b16 %v8159
        %v8311 = vunpack.c.l.b16 %v8160
        %v8312 = vunpack.c.h.b16 %v8160
        %v8313 = vunpack.c.l.b16 %v8161
        %v8314 = vunpack.c.h.b16 %v8161
        %v8315 = vunpack.c.l.b16 %v8162
        %v8316 = vunpack.c.h.b16 %v8162
        %v8317 = vunpack.c.l.b16 %v8163
        %v8318 = vunpack.c.h.b16 %v8163
        %v8319 = vunpack.c.l.b16 %v8164
        %v8320 = vunpack.c.h.b16 %v8164
        %v8321 = vunpack.c.l.b16 %v8165
        %v8322 = vunpack.c.h.b16 %v8165
        %v8323 = vunpack.c.l.b16 %v8166
        %v8324 = vunpack.c.h.b16 %v8166
        %v8325 = vunpack.c.l.b16 %v8167
        %v8326 = vunpack.c.h.b16 %v8167
        %v8327 = vunpack.c.l.b16 %v8168
        %v8328 = vunpack.c.h.b16 %v8168
        %v8329 = vunpack.c.l.b16 %v8169
        %v8330 = vunpack.c.h.b16 %v8169
        %v8331 = vunpack.c.l.b16 %v8170
        %v8332 = vunpack.c.h.b16 %v8170
        %v8333 = vunpack.c.l.b16 %v8171
        %v8334 = vunpack.c.h.b16 %v8171
        %v8335 = vunpack.c.l.b16 %v8172
        %v8336 = vunpack.c.h.b16 %v8172
        %v8337 = vunpack.c.l.b16 %v8173
        %v8338 = vunpack.c.h.b16 %v8173
        %v8339 = vunpack.c.l.b16 %v8174
        %v8340 = vunpack.c.h.b16 %v8174
        %v8341 = vunpack.c.l.b16 %v8175
        %v8342 = vunpack.c.h.b16 %v8175
        %v8343 = vunpack.c.l.b16 %v8176
        %v8344 = vunpack.c.h.b16 %v8176
        %v8345 = vunpack.c.l.b16 %v8177
        %v8346 = vunpack.c.h.b16 %v8177
        %v8347 = vunpack.c.l.b16 %v8178
        %v8348 = vunpack.c.h.b16 %v8178
        %v8349 = vunpack.c.l.b16 %v8179
        %v8350 = vunpack.c.h.b16 %v8179
        %v8351 = vunpack.c.l.b16 %v8180
        %v8352 = vunpack.c.h.b16 %v8180
        %v8353 = vunpack.c.l.b16 %v8181
        %v8354 = vunpack.c.h.b16 %v8181
        %v8355 = vunpack.c.l.b16 %v8182
        %v8356 = vunpack.c.h.b16 %v8182
        %v8357 = vunpack.c.l.b16 %v8183
        %v8358 = vunpack.c.h.b16 %v8183
        %v8359 = vunpack.c.l.b16 %v8184
        %v8360 = vunpack.c.h.b16 %v8184
        %v8361 = vunpack.c.l.b16 %v8185
        %v8362 = vunpack.c.h.b16 %v8185
        %v8363 = vunpack.c.l.b16 %v8186
        %v8364 = vunpack.c.h.b16 %v8186
        %v8365 = vunpack.c.l.b16 %v8187
        %v8366 = vunpack.c.h.b16 %v8187
        %v8367 = vunpack.c.l.b16 %v8188
        %v8368 = vunpack.c.h.b16 %v8188
        %v8369 = vunpack.c.l.b16 %v8189
        %v8370 = vunpack.c.h.b16 %v8189
        %v8371 = vunpack.c.l.b16 %v8190
        %v8372 = vunpack.c.h.b16 %v8190
        %v8373 = vunpack.c.l.b16 %v8191
        %v8374 = vunpack.c.h.b16 %v8191
        %v8375 = vunpack.c.l.b16 %v8192
        %v8376 = vunpack.c.h.b16 %v8192
        %v8377 = vunpack.c.l.b16 %v8193
        %v8378 = vunpack.c.h.b16 %v8193
        %v8379 = vunpack.c.l.b16 %v8194
        %v8380 = vunpack.c.h.b16 %v8194
        %v8381 = vunpack.c.l.b16 %v8195
        %v8382 = vunpack.c.h.b16 %v8195
        %v8383 = vunpack.c.l.b16 %v8196
        %v8384 = vunpack.c.h.b16 %v8196
        %v8385 = vunpack.c.l.b16 %v8197
        %v8386 = vunpack.c.h.b16 %v8197
        %v8387 = vunpack.c.l.b16 %v8198
        %v8388 = vunpack.c.h.b16 %v8198
        %v8389 = vunpack.c.l.b16 %v8199
        %v8390 = vunpack.c.h.b16 %v8199
        %v8391 = vunpack.c.l.b16 %v8200
        %v8392 = vunpack.c.h.b16 %v8200
        %v8393 = vpack.c.b16 %v8273, %v8265
        %v8394 = vpack.c.b16 %v8274, %v8266
        %v8395 = vpack.c.b16 %v8275, %v8267
        %v8396 = vpack.c.b16 %v8276, %v8268
        %v8397 = vpack.c.b16 %v8277, %v8269
        %v8398 = vpack.c.b16 %v8278, %v8270
        %v8399 = vpack.c.b16 %v8279, %v8271
        %v8400 = vpack.c.b16 %v8280, %v8272
        %v8401 = vpack.c.b16 %v8289, %v8281
        %v8402 = vpack.c.b16 %v8290, %v8282
        %v8403 = vpack.c.b16 %v8291, %v8283
        %v8404 = vpack.c.b16 %v8292, %v8284
        %v8405 = vpack.c.b16 %v8293, %v8285
        %v8406 = vpack.c.b16 %v8294, %v8286
        %v8407 = vpack.c.b16 %v8295, %v8287
        %v8408 = vpack.c.b16 %v8296, %v8288
        %v8409 = vpack.c.b16 %v8305, %v8297
        %v8410 = vpack.c.b16 %v8306, %v8298
        %v8411 = vpack.c.b16 %v8307, %v8299
        %v8412 = vpack.c.b16 %v8308, %v8300
        %v8413 = vpack.c.b16 %v8309, %v8301
        %v8414 = vpack.c.b16 %v8310, %v8302
        %v8415 = vpack.c.b16 %v8311, %v8303
        %v8416 = vpack.c.b16 %v8312, %v8304
        %v8417 = vpack.c.b16 %v8321, %v8313
        %v8418 = vpack.c.b16 %v8322, %v8314
        %v8419 = vpack.c.b16 %v8323, %v8315
        %v8420 = vpack.c.b16 %v8324, %v8316
        %v8421 = vpack.c.b16 %v8325, %v8317
        %v8422 = vpack.c.b16 %v8326, %v8318
        %v8423 = vpack.c.b16 %v8327, %v8319
        %v8424 = vpack.c.b16 %v8328, %v8320
        %v8425 = vpack.c.b16 %v8337, %v8329
        %v8426 = vpack.c.b16 %v8338, %v8330
        %v8427 = vpack.c.b16 %v8339, %v8331
        %v8428 = vpack.c.b16 %v8340, %v8332
        %v8429 = vpack.c.b16 %v8341, %v8333
        %v8430 = vpack.c.b16 %v8342, %v8334
        %v8431 = vpack.c.b16 %v8343, %v8335
        %v8432 = vpack.c.b16 %v8344, %v8336
        %v8433 = vpack.c.b16 %v8353, %v8345
        %v8434 = vpack.c.b16 %v8354, %v8346
        %v8435 = vpack.c.b16 %v8355, %v8347
        %v8436 = vpack.c.b16 %v8356, %v8348
        %v8437 = vpack.c.b16 %v8357, %v8349
        %v8438 = vpack.c.b16 %v8358, %v8350
        %v8439 = vpack.c.b16 %v8359, %v8351
        %v8440 = vpack.c.b16 %v8360, %v8352
        %v8441 = vpack.c.b16 %v8369, %v8361
        %v8442 = vpack.c.b16 %v8370, %v8362
        %v8443 = vpack.c.b16 %v8371, %v8363
        %v8444 = vpack.c.b16 %v8372, %v8364
        %v8445 = vpack.c.b16 %v8373, %v8365
        %v8446 = vpack.c.b16 %v8374, %v8366
        %v8447 = vpack.c.b16 %v8375, %v8367
        %v8448 = vpack.c.b16 %v8376, %v8368
        %v8449 = vpack.c.b16 %v8385, %v8377
        %v8450 = vpack.c.b16 %v8386, %v8378
        %v8451 = vpack.c.b16 %v8387, %v8379
        %v8452 = vpack.c.b16 %v8388, %v8380
        %v8453 = vpack.c.b16 %v8389, %v8381
        %v8454 = vpack.c.b16 %v8390, %v8382
        %v8455 = vpack.c.b16 %v8391, %v8383
        %v8456 = vpack.c.b16 %v8392, %v8384
        %8521 = vmatpush.bf16.msra.mxu0 %v8449
        %8522 = vmatpush.bf16.msra.mxu0 %v8441
        %8523 = vmatpush.bf16.msra.mxu0 %v8433
        %8524 = vmatpush.bf16.msra.mxu0 %v8425
        %8525 = vmatpush.bf16.msra.mxu0 %v8417
        %8526 = vmatpush.bf16.msra.mxu0 %v8409
        %8527 = vmatpush.bf16.msra.mxu0 %v8401
        %8528 = vmatpush.bf16.msra.mxu0 %v8393
        %8529 = vmatmul.bf16.gmra.mxu0 %v8135
        %v8530 = vpop.f32.mrf.mxu0
        %v8531 = vadd.f32 0.0, %v8530
        %v8532 = vpop.f32.mrf.mxu0
        %8533 = vdwg.mxu0
        %8534 = vmatpush.bf16.msra.mxu0 %v8450
        %8535 = vmatpush.bf16.msra.mxu0 %v8442
        %8536 = vmatpush.bf16.msra.mxu0 %v8434
        %8537 = vmatpush.bf16.msra.mxu0 %v8426
        %8538 = vmatpush.bf16.msra.mxu0 %v8418
        %8539 = vmatpush.bf16.msra.mxu0 %v8410
        %8540 = vmatpush.bf16.msra.mxu0 %v8402
        %8541 = vmatpush.bf16.msra.mxu0 %v8394
        %8542 = vmatmul.bf16.gmra.mxu0 %v8135
        %v8543 = vpop.f32.mrf.mxu0
        %v8544 = vadd.f32 0.0, %v8543
        %v8545 = vpop.f32.mrf.mxu0
        %8546 = vdwg.mxu0
        %8547 = vmatpush.bf16.msra.mxu0 %v8451
        %8548 = vmatpush.bf16.msra.mxu0 %v8443
        %8549 = vmatpush.bf16.msra.mxu0 %v8435
        %8550 = vmatpush.bf16.msra.mxu0 %v8427
        %8551 = vmatpush.bf16.msra.mxu0 %v8419
        %8552 = vmatpush.bf16.msra.mxu0 %v8411
        %8553 = vmatpush.bf16.msra.mxu0 %v8403
        %8554 = vmatpush.bf16.msra.mxu0 %v8395
        %8555 = vmatmul.bf16.gmra.mxu0 %v8135
        %v8556 = vpop.f32.mrf.mxu0
        %v8557 = vadd.f32 0.0, %v8556
        %v8558 = vpop.f32.mrf.mxu0
        %8559 = vdwg.mxu0
        %8560 = vmatpush.bf16.msra.mxu0 %v8452
        %8561 = vmatpush.bf16.msra.mxu0 %v8444
        %8562 = vmatpush.bf16.msra.mxu0 %v8436
        %8563 = vmatpush.bf16.msra.mxu0 %v8428
        %8564 = vmatpush.bf16.msra.mxu0 %v8420
        %8565 = vmatpush.bf16.msra.mxu0 %v8412
        %8566 = vmatpush.bf16.msra.mxu0 %v8404
        %8567 = vmatpush.bf16.msra.mxu0 %v8396
        %8568 = vmatmul.bf16.gmra.mxu0 %v8135
        %v8569 = vpop.f32.mrf.mxu0
        %v8570 = vadd.f32 0.0, %v8569
        %v8571 = vpop.f32.mrf.mxu0
        %8572 = vdwg.mxu0
        %8573 = vmatpush.bf16.msra.mxu0 %v8453
        %8574 = vmatpush.bf16.msra.mxu0 %v8445
        %8575 = vmatpush.bf16.msra.mxu0 %v8437
        %8576 = vmatpush.bf16.msra.mxu0 %v8429
        %8577 = vmatpush.bf16.msra.mxu0 %v8421
        %8578 = vmatpush.bf16.msra.mxu0 %v8413
        %8579 = vmatpush.bf16.msra.mxu0 %v8405
        %8580 = vmatpush.bf16.msra.mxu0 %v8397
        %8581 = vmatmul.bf16.gmra.mxu0 %v8135
        %v8582 = vpop.f32.mrf.mxu0
        %v8583 = vadd.f32 0.0, %v8582
        %v8584 = vpop.f32.mrf.mxu0
        %8585 = vdwg.mxu0
        %8586 = vmatpush.bf16.msra.mxu0 %v8454
        %8587 = vmatpush.bf16.msra.mxu0 %v8446
        %8588 = vmatpush.bf16.msra.mxu0 %v8438
        %8589 = vmatpush.bf16.msra.mxu0 %v8430
        %8590 = vmatpush.bf16.msra.mxu0 %v8422
        %8591 = vmatpush.bf16.msra.mxu0 %v8414
        %8592 = vmatpush.bf16.msra.mxu0 %v8406
        %8593 = vmatpush.bf16.msra.mxu0 %v8398
        %8594 = vmatmul.bf16.gmra.mxu0 %v8135
        %v8595 = vpop.f32.mrf.mxu0
        %v8596 = vadd.f32 0.0, %v8595
        %v8597 = vpop.f32.mrf.mxu0
        %8598 = vdwg.mxu0
        %8599 = vmatpush.bf16.msra.mxu0 %v8455
        %8600 = vmatpush.bf16.msra.mxu0 %v8447
        %8601 = vmatpush.bf16.msra.mxu0 %v8439
        %8602 = vmatpush.bf16.msra.mxu0 %v8431
        %8603 = vmatpush.bf16.msra.mxu0 %v8423
        %8604 = vmatpush.bf16.msra.mxu0 %v8415
        %8605 = vmatpush.bf16.msra.mxu0 %v8407
        %8606 = vmatpush.bf16.msra.mxu0 %v8399
        %8607 = vmatmul.bf16.gmra.mxu0 %v8135
        %v8608 = vpop.f32.mrf.mxu0
        %v8609 = vadd.f32 0.0, %v8608
        %v8610 = vpop.f32.mrf.mxu0
        %8611 = vdwg.mxu0
        %8612 = vmatpush.bf16.msra.mxu0 %v8456
        %8613 = vmatpush.bf16.msra.mxu0 %v8448
        %8614 = vmatpush.bf16.msra.mxu0 %v8440
        %8615 = vmatpush.bf16.msra.mxu0 %v8432
        %8616 = vmatpush.bf16.msra.mxu0 %v8424
        %8617 = vmatpush.bf16.msra.mxu0 %v8416
        %8618 = vmatpush.bf16.msra.mxu0 %v8408
        %8619 = vmatpush.bf16.msra.mxu0 %v8400
        %8620 = vmatmul.bf16.gmra.mxu0 %v8135
        %v8621 = vpop.f32.mrf.mxu0
        %v8622 = vadd.f32 0.0, %v8621
        %v8623 = vpop.f32.mrf.mxu0
        %8624 = vdwg.mxu0
        %p8625 = scmp.gt.s32.totalorder %s8125, 0
        %s8626 = scalar_select %p8625, %s8125, 0
        %p8627 = scmp.lt.s32.totalorder %s8626, 128
        %s8628 = scalar_select %p8627, %s8626, 128
        %p8629 = scmp.gt.s32.totalorder %s8628, %s8127
        %s8630 = scalar_select %p8629, %s8628, %s8127
        %p8631 = scmp.lt.s32.totalorder %s8630, 128
        %s8632 = scalar_select %p8631, %s8630, 128
        %s8633 = ssub.s32 %s8632, %s8628
        %s8634 = scvt.s32.f32 %s8633
        %v8635 = vstv %s8634
        %v8636 = vrcp.pop %v8635
        %v8637 = vmul.f32 %v8635, %v8636
        %v8638 = vsub.f32 1.0, %v8637
        %v8639 = vmul.f32 %v8636, %v8638
        %v8640 = vadd.f32 %v8636, %v8639
        %vm8641 = vweird.f32 %v8635
        %vm8642 = vweird.f32 %v8636
        %vm8643 = vmor %vm8641, %vm8642
        %v8644 = vsel %vm8643, %v8636, %v8640
        %v8645 = vand.u32 2147483647, %v8635
        %vm8646 = vcmp.eq.f32.partialorder %v8645, 8.507059e+37
        %v8647 = vand.u32 %v8635, 2147483648
        %v8648 = vor.u32 1.1754944e-38, %v8647
        %v8649 = vsel %vm8646, %v8648, %v8644
        %s8650 = vtos %v8649
        %v8651 = vstv %s8650
        %v8652 = vmul.f32 %v8531, %v8651
        %v8653 = vmul.f32 %v8544, %v8651
        %v8654 = vmul.f32 %v8557, %v8651
        %v8655 = vmul.f32 %v8570, %v8651
        %v8656 = vmul.f32 %v8583, %v8651
        %v8657 = vmul.f32 %v8596, %v8651
        %v8658 = vmul.f32 %v8609, %v8651
        %v8659 = vmul.f32 %v8622, %v8651
        %v8668 = vrot.slane %v8653, 7
        %v8669 = vrot.slane %v8654, 6
        %v8670 = vrot.slane %v8655, 5
        %v8671 = vrot.slane %v8656, 4
        %v8672 = vrot.slane %v8657, 3
        %v8673 = vrot.slane %v8658, 2
        %v8674 = vrot.slane %v8659, 1
        %v8675 = vsel %vm787, %v8652, %v8668
        %v8676 = vsel %vm789, %v8669, %v8670
        %v8677 = vsel %vm791, %v8675, %v8676
        %v8678 = vsel %vm793, %v8671, %v8672
        %v8679 = vsel %vm795, %v8673, %v8674
        %v8680 = vsel %vm797, %v8678, %v8679
        %v8681 = vsel %vm799, %v8677, %v8680
        %s8683 = scalar_lea.vmem [#allocation2], 70
        %8684 = vst [vmem:[%s8683] ss:$8 sm:$0xf] %v8681
        %8685 = vst [vmem:[%s8683] ss:$8 sm:$0xf0] %v8681
        %s8686 = sadd.s32 %s236, 15
        %s8687 = smul.u32 %s8686, 128
        %s8688 = sld [smem:[#allocation4 + %s8687]]
        %s8689 = sadd.s32 %s8687, 1
        %s8690 = sld [smem:[#allocation4 + %s8689]]
        %v8691 = vstv %s8688
        %vm8692 = vcmp.ge.s32.totalorder %v235, %v8691
        %v8693 = vstv %s8690
        %vm8694 = vcmp.lt.s32.totalorder %v235, %v8693
        %vm8695 = vmand %vm8692, %vm8694
        %v8696 = vsel %vm8695, 1, 0
        %v8697 = vcvt.s32.f32 %v8696
        %v8698 = vpack.c.bf16 %v8697, %v8697
        %s8699 = scalar_lea.vmem %s198, 7680 [#allocation5]
        %v8700 = vld [vmem:[%s8699] sm:$0xff]
        %v8701 = vld [vmem:[%s8699 + $0x8] sm:$0xff]
        %v8702 = vld [vmem:[%s8699 + $0x10] sm:$0xff]
        %v8703 = vld [vmem:[%s8699 + $0x18] sm:$0xff]
        %v8704 = vld [vmem:[%s8699 + $0x20] sm:$0xff]
        %v8705 = vld [vmem:[%s8699 + $0x28] sm:$0xff]
        %v8706 = vld [vmem:[%s8699 + $0x30] sm:$0xff]
        %v8707 = vld [vmem:[%s8699 + $0x38] sm:$0xff]
        %v8708 = vld [vmem:[%s8699 + $0x40] sm:$0xff]
        %v8709 = vld [vmem:[%s8699 + $0x48] sm:$0xff]
        %v8710 = vld [vmem:[%s8699 + $0x50] sm:$0xff]
        %v8711 = vld [vmem:[%s8699 + $0x58] sm:$0xff]
        %v8712 = vld [vmem:[%s8699 + $0x60] sm:$0xff]
        %v8713 = vld [vmem:[%s8699 + $0x68] sm:$0xff]
        %v8714 = vld [vmem:[%s8699 + $0x70] sm:$0xff]
        %v8715 = vld [vmem:[%s8699 + $0x78] sm:$0xff]
        %v8716 = vld [vmem:[%s8699 + $0x80] sm:$0xff]
        %v8717 = vld [vmem:[%s8699 + $0x88] sm:$0xff]
        %v8718 = vld [vmem:[%s8699 + $0x90] sm:$0xff]
        %v8719 = vld [vmem:[%s8699 + $0x98] sm:$0xff]
        %v8720 = vld [vmem:[%s8699 + $0xa0] sm:$0xff]
        %v8721 = vld [vmem:[%s8699 + $0xa8] sm:$0xff]
        %v8722 = vld [vmem:[%s8699 + $0xb0] sm:$0xff]
        %v8723 = vld [vmem:[%s8699 + $0xb8] sm:$0xff]
        %v8724 = vld [vmem:[%s8699 + $0xc0] sm:$0xff]
        %v8725 = vld [vmem:[%s8699 + $0xc8] sm:$0xff]
        %v8726 = vld [vmem:[%s8699 + $0xd0] sm:$0xff]
        %v8727 = vld [vmem:[%s8699 + $0xd8] sm:$0xff]
        %v8728 = vld [vmem:[%s8699 + $0xe0] sm:$0xff]
        %v8729 = vld [vmem:[%s8699 + $0xe8] sm:$0xff]
        %v8730 = vld [vmem:[%s8699 + $0xf0] sm:$0xff]
        %v8731 = vld [vmem:[%s8699 + $0xf8] sm:$0xff]
        %v8732 = vld [vmem:[%s8699 + $0x100] sm:$0xff]
        %v8733 = vld [vmem:[%s8699 + $0x108] sm:$0xff]
        %v8734 = vld [vmem:[%s8699 + $0x110] sm:$0xff]
        %v8735 = vld [vmem:[%s8699 + $0x118] sm:$0xff]
        %v8736 = vld [vmem:[%s8699 + $0x120] sm:$0xff]
        %v8737 = vld [vmem:[%s8699 + $0x128] sm:$0xff]
        %v8738 = vld [vmem:[%s8699 + $0x130] sm:$0xff]
        %v8739 = vld [vmem:[%s8699 + $0x138] sm:$0xff]
        %v8740 = vld [vmem:[%s8699 + $0x140] sm:$0xff]
        %v8741 = vld [vmem:[%s8699 + $0x148] sm:$0xff]
        %v8742 = vld [vmem:[%s8699 + $0x150] sm:$0xff]
        %v8743 = vld [vmem:[%s8699 + $0x158] sm:$0xff]
        %v8744 = vld [vmem:[%s8699 + $0x160] sm:$0xff]
        %v8745 = vld [vmem:[%s8699 + $0x168] sm:$0xff]
        %v8746 = vld [vmem:[%s8699 + $0x170] sm:$0xff]
        %v8747 = vld [vmem:[%s8699 + $0x178] sm:$0xff]
        %v8748 = vld [vmem:[%s8699 + $0x180] sm:$0xff]
        %v8749 = vld [vmem:[%s8699 + $0x188] sm:$0xff]
        %v8750 = vld [vmem:[%s8699 + $0x190] sm:$0xff]
        %v8751 = vld [vmem:[%s8699 + $0x198] sm:$0xff]
        %v8752 = vld [vmem:[%s8699 + $0x1a0] sm:$0xff]
        %v8753 = vld [vmem:[%s8699 + $0x1a8] sm:$0xff]
        %v8754 = vld [vmem:[%s8699 + $0x1b0] sm:$0xff]
        %v8755 = vld [vmem:[%s8699 + $0x1b8] sm:$0xff]
        %v8756 = vld [vmem:[%s8699 + $0x1c0] sm:$0xff]
        %v8757 = vld [vmem:[%s8699 + $0x1c8] sm:$0xff]
        %v8758 = vld [vmem:[%s8699 + $0x1d0] sm:$0xff]
        %v8759 = vld [vmem:[%s8699 + $0x1d8] sm:$0xff]
        %v8760 = vld [vmem:[%s8699 + $0x1e0] sm:$0xff]
        %v8761 = vld [vmem:[%s8699 + $0x1e8] sm:$0xff]
        %v8762 = vld [vmem:[%s8699 + $0x1f0] sm:$0xff]
        %v8763 = vld [vmem:[%s8699 + $0x1f8] sm:$0xff]
        %v8828 = vunpack.c.l.b16 %v8700
        %v8829 = vunpack.c.h.b16 %v8700
        %v8830 = vunpack.c.l.b16 %v8701
        %v8831 = vunpack.c.h.b16 %v8701
        %v8832 = vunpack.c.l.b16 %v8702
        %v8833 = vunpack.c.h.b16 %v8702
        %v8834 = vunpack.c.l.b16 %v8703
        %v8835 = vunpack.c.h.b16 %v8703
        %v8836 = vunpack.c.l.b16 %v8704
        %v8837 = vunpack.c.h.b16 %v8704
        %v8838 = vunpack.c.l.b16 %v8705
        %v8839 = vunpack.c.h.b16 %v8705
        %v8840 = vunpack.c.l.b16 %v8706
        %v8841 = vunpack.c.h.b16 %v8706
        %v8842 = vunpack.c.l.b16 %v8707
        %v8843 = vunpack.c.h.b16 %v8707
        %v8844 = vunpack.c.l.b16 %v8708
        %v8845 = vunpack.c.h.b16 %v8708
        %v8846 = vunpack.c.l.b16 %v8709
        %v8847 = vunpack.c.h.b16 %v8709
        %v8848 = vunpack.c.l.b16 %v8710
        %v8849 = vunpack.c.h.b16 %v8710
        %v8850 = vunpack.c.l.b16 %v8711
        %v8851 = vunpack.c.h.b16 %v8711
        %v8852 = vunpack.c.l.b16 %v8712
        %v8853 = vunpack.c.h.b16 %v8712
        %v8854 = vunpack.c.l.b16 %v8713
        %v8855 = vunpack.c.h.b16 %v8713
        %v8856 = vunpack.c.l.b16 %v8714
        %v8857 = vunpack.c.h.b16 %v8714
        %v8858 = vunpack.c.l.b16 %v8715
        %v8859 = vunpack.c.h.b16 %v8715
        %v8860 = vunpack.c.l.b16 %v8716
        %v8861 = vunpack.c.h.b16 %v8716
        %v8862 = vunpack.c.l.b16 %v8717
        %v8863 = vunpack.c.h.b16 %v8717
        %v8864 = vunpack.c.l.b16 %v8718
        %v8865 = vunpack.c.h.b16 %v8718
        %v8866 = vunpack.c.l.b16 %v8719
        %v8867 = vunpack.c.h.b16 %v8719
        %v8868 = vunpack.c.l.b16 %v8720
        %v8869 = vunpack.c.h.b16 %v8720
        %v8870 = vunpack.c.l.b16 %v8721
        %v8871 = vunpack.c.h.b16 %v8721
        %v8872 = vunpack.c.l.b16 %v8722
        %v8873 = vunpack.c.h.b16 %v8722
        %v8874 = vunpack.c.l.b16 %v8723
        %v8875 = vunpack.c.h.b16 %v8723
        %v8876 = vunpack.c.l.b16 %v8724
        %v8877 = vunpack.c.h.b16 %v8724
        %v8878 = vunpack.c.l.b16 %v8725
        %v8879 = vunpack.c.h.b16 %v8725
        %v8880 = vunpack.c.l.b16 %v8726
        %v8881 = vunpack.c.h.b16 %v8726
        %v8882 = vunpack.c.l.b16 %v8727
        %v8883 = vunpack.c.h.b16 %v8727
        %v8884 = vunpack.c.l.b16 %v8728
        %v8885 = vunpack.c.h.b16 %v8728
        %v8886 = vunpack.c.l.b16 %v8729
        %v8887 = vunpack.c.h.b16 %v8729
        %v8888 = vunpack.c.l.b16 %v8730
        %v8889 = vunpack.c.h.b16 %v8730
        %v8890 = vunpack.c.l.b16 %v8731
        %v8891 = vunpack.c.h.b16 %v8731
        %v8892 = vunpack.c.l.b16 %v8732
        %v8893 = vunpack.c.h.b16 %v8732
        %v8894 = vunpack.c.l.b16 %v8733
        %v8895 = vunpack.c.h.b16 %v8733
        %v8896 = vunpack.c.l.b16 %v8734
        %v8897 = vunpack.c.h.b16 %v8734
        %v8898 = vunpack.c.l.b16 %v8735
        %v8899 = vunpack.c.h.b16 %v8735
        %v8900 = vunpack.c.l.b16 %v8736
        %v8901 = vunpack.c.h.b16 %v8736
        %v8902 = vunpack.c.l.b16 %v8737
        %v8903 = vunpack.c.h.b16 %v8737
        %v8904 = vunpack.c.l.b16 %v8738
        %v8905 = vunpack.c.h.b16 %v8738
        %v8906 = vunpack.c.l.b16 %v8739
        %v8907 = vunpack.c.h.b16 %v8739
        %v8908 = vunpack.c.l.b16 %v8740
        %v8909 = vunpack.c.h.b16 %v8740
        %v8910 = vunpack.c.l.b16 %v8741
        %v8911 = vunpack.c.h.b16 %v8741
        %v8912 = vunpack.c.l.b16 %v8742
        %v8913 = vunpack.c.h.b16 %v8742
        %v8914 = vunpack.c.l.b16 %v8743
        %v8915 = vunpack.c.h.b16 %v8743
        %v8916 = vunpack.c.l.b16 %v8744
        %v8917 = vunpack.c.h.b16 %v8744
        %v8918 = vunpack.c.l.b16 %v8745
        %v8919 = vunpack.c.h.b16 %v8745
        %v8920 = vunpack.c.l.b16 %v8746
        %v8921 = vunpack.c.h.b16 %v8746
        %v8922 = vunpack.c.l.b16 %v8747
        %v8923 = vunpack.c.h.b16 %v8747
        %v8924 = vunpack.c.l.b16 %v8748
        %v8925 = vunpack.c.h.b16 %v8748
        %v8926 = vunpack.c.l.b16 %v8749
        %v8927 = vunpack.c.h.b16 %v8749
        %v8928 = vunpack.c.l.b16 %v8750
        %v8929 = vunpack.c.h.b16 %v8750
        %v8930 = vunpack.c.l.b16 %v8751
        %v8931 = vunpack.c.h.b16 %v8751
        %v8932 = vunpack.c.l.b16 %v8752
        %v8933 = vunpack.c.h.b16 %v8752
        %v8934 = vunpack.c.l.b16 %v8753
        %v8935 = vunpack.c.h.b16 %v8753
        %v8936 = vunpack.c.l.b16 %v8754
        %v8937 = vunpack.c.h.b16 %v8754
        %v8938 = vunpack.c.l.b16 %v8755
        %v8939 = vunpack.c.h.b16 %v8755
        %v8940 = vunpack.c.l.b16 %v8756
        %v8941 = vunpack.c.h.b16 %v8756
        %v8942 = vunpack.c.l.b16 %v8757
        %v8943 = vunpack.c.h.b16 %v8757
        %v8944 = vunpack.c.l.b16 %v8758
        %v8945 = vunpack.c.h.b16 %v8758
        %v8946 = vunpack.c.l.b16 %v8759
        %v8947 = vunpack.c.h.b16 %v8759
        %v8948 = vunpack.c.l.b16 %v8760
        %v8949 = vunpack.c.h.b16 %v8760
        %v8950 = vunpack.c.l.b16 %v8761
        %v8951 = vunpack.c.h.b16 %v8761
        %v8952 = vunpack.c.l.b16 %v8762
        %v8953 = vunpack.c.h.b16 %v8762
        %v8954 = vunpack.c.l.b16 %v8763
        %v8955 = vunpack.c.h.b16 %v8763
        %v8956 = vpack.c.b16 %v8836, %v8828
        %v8957 = vpack.c.b16 %v8837, %v8829
        %v8958 = vpack.c.b16 %v8838, %v8830
        %v8959 = vpack.c.b16 %v8839, %v8831
        %v8960 = vpack.c.b16 %v8840, %v8832
        %v8961 = vpack.c.b16 %v8841, %v8833
        %v8962 = vpack.c.b16 %v8842, %v8834
        %v8963 = vpack.c.b16 %v8843, %v8835
        %v8964 = vpack.c.b16 %v8852, %v8844
        %v8965 = vpack.c.b16 %v8853, %v8845
        %v8966 = vpack.c.b16 %v8854, %v8846
        %v8967 = vpack.c.b16 %v8855, %v8847
        %v8968 = vpack.c.b16 %v8856, %v8848
        %v8969 = vpack.c.b16 %v8857, %v8849
        %v8970 = vpack.c.b16 %v8858, %v8850
        %v8971 = vpack.c.b16 %v8859, %v8851
        %v8972 = vpack.c.b16 %v8868, %v8860
        %v8973 = vpack.c.b16 %v8869, %v8861
        %v8974 = vpack.c.b16 %v8870, %v8862
        %v8975 = vpack.c.b16 %v8871, %v8863
        %v8976 = vpack.c.b16 %v8872, %v8864
        %v8977 = vpack.c.b16 %v8873, %v8865
        %v8978 = vpack.c.b16 %v8874, %v8866
        %v8979 = vpack.c.b16 %v8875, %v8867
        %v8980 = vpack.c.b16 %v8884, %v8876
        %v8981 = vpack.c.b16 %v8885, %v8877
        %v8982 = vpack.c.b16 %v8886, %v8878
        %v8983 = vpack.c.b16 %v8887, %v8879
        %v8984 = vpack.c.b16 %v8888, %v8880
        %v8985 = vpack.c.b16 %v8889, %v8881
        %v8986 = vpack.c.b16 %v8890, %v8882
        %v8987 = vpack.c.b16 %v8891, %v8883
        %v8988 = vpack.c.b16 %v8900, %v8892
        %v8989 = vpack.c.b16 %v8901, %v8893
        %v8990 = vpack.c.b16 %v8902, %v8894
        %v8991 = vpack.c.b16 %v8903, %v8895
        %v8992 = vpack.c.b16 %v8904, %v8896
        %v8993 = vpack.c.b16 %v8905, %v8897
        %v8994 = vpack.c.b16 %v8906, %v8898
        %v8995 = vpack.c.b16 %v8907, %v8899
        %v8996 = vpack.c.b16 %v8916, %v8908
        %v8997 = vpack.c.b16 %v8917, %v8909
        %v8998 = vpack.c.b16 %v8918, %v8910
        %v8999 = vpack.c.b16 %v8919, %v8911
        %v9000 = vpack.c.b16 %v8920, %v8912
        %v9001 = vpack.c.b16 %v8921, %v8913
        %v9002 = vpack.c.b16 %v8922, %v8914
        %v9003 = vpack.c.b16 %v8923, %v8915
        %v9004 = vpack.c.b16 %v8932, %v8924
        %v9005 = vpack.c.b16 %v8933, %v8925
        %v9006 = vpack.c.b16 %v8934, %v8926
        %v9007 = vpack.c.b16 %v8935, %v8927
        %v9008 = vpack.c.b16 %v8936, %v8928
        %v9009 = vpack.c.b16 %v8937, %v8929
        %v9010 = vpack.c.b16 %v8938, %v8930
        %v9011 = vpack.c.b16 %v8939, %v8931
        %v9012 = vpack.c.b16 %v8948, %v8940
        %v9013 = vpack.c.b16 %v8949, %v8941
        %v9014 = vpack.c.b16 %v8950, %v8942
        %v9015 = vpack.c.b16 %v8951, %v8943
        %v9016 = vpack.c.b16 %v8952, %v8944
        %v9017 = vpack.c.b16 %v8953, %v8945
        %v9018 = vpack.c.b16 %v8954, %v8946
        %v9019 = vpack.c.b16 %v8955, %v8947
        %9084 = vmatpush.bf16.msra.mxu0 %v9012
        %9085 = vmatpush.bf16.msra.mxu0 %v9004
        %9086 = vmatpush.bf16.msra.mxu0 %v8996
        %9087 = vmatpush.bf16.msra.mxu0 %v8988
        %9088 = vmatpush.bf16.msra.mxu0 %v8980
        %9089 = vmatpush.bf16.msra.mxu0 %v8972
        %9090 = vmatpush.bf16.msra.mxu0 %v8964
        %9091 = vmatpush.bf16.msra.mxu0 %v8956
        %9092 = vmatmul.bf16.gmra.mxu0 %v8698
        %v9093 = vpop.f32.mrf.mxu0
        %v9094 = vadd.f32 0.0, %v9093
        %v9095 = vpop.f32.mrf.mxu0
        %9096 = vdwg.mxu0
        %9097 = vmatpush.bf16.msra.mxu0 %v9013
        %9098 = vmatpush.bf16.msra.mxu0 %v9005
        %9099 = vmatpush.bf16.msra.mxu0 %v8997
        %9100 = vmatpush.bf16.msra.mxu0 %v8989
        %9101 = vmatpush.bf16.msra.mxu0 %v8981
        %9102 = vmatpush.bf16.msra.mxu0 %v8973
        %9103 = vmatpush.bf16.msra.mxu0 %v8965
        %9104 = vmatpush.bf16.msra.mxu0 %v8957
        %9105 = vmatmul.bf16.gmra.mxu0 %v8698
        %v9106 = vpop.f32.mrf.mxu0
        %v9107 = vadd.f32 0.0, %v9106
        %v9108 = vpop.f32.mrf.mxu0
        %9109 = vdwg.mxu0
        %9110 = vmatpush.bf16.msra.mxu0 %v9014
        %9111 = vmatpush.bf16.msra.mxu0 %v9006
        %9112 = vmatpush.bf16.msra.mxu0 %v8998
        %9113 = vmatpush.bf16.msra.mxu0 %v8990
        %9114 = vmatpush.bf16.msra.mxu0 %v8982
        %9115 = vmatpush.bf16.msra.mxu0 %v8974
        %9116 = vmatpush.bf16.msra.mxu0 %v8966
        %9117 = vmatpush.bf16.msra.mxu0 %v8958
        %9118 = vmatmul.bf16.gmra.mxu0 %v8698
        %v9119 = vpop.f32.mrf.mxu0
        %v9120 = vadd.f32 0.0, %v9119
        %v9121 = vpop.f32.mrf.mxu0
        %9122 = vdwg.mxu0
        %9123 = vmatpush.bf16.msra.mxu0 %v9015
        %9124 = vmatpush.bf16.msra.mxu0 %v9007
        %9125 = vmatpush.bf16.msra.mxu0 %v8999
        %9126 = vmatpush.bf16.msra.mxu0 %v8991
        %9127 = vmatpush.bf16.msra.mxu0 %v8983
        %9128 = vmatpush.bf16.msra.mxu0 %v8975
        %9129 = vmatpush.bf16.msra.mxu0 %v8967
        %9130 = vmatpush.bf16.msra.mxu0 %v8959
        %9131 = vmatmul.bf16.gmra.mxu0 %v8698
        %v9132 = vpop.f32.mrf.mxu0
        %v9133 = vadd.f32 0.0, %v9132
        %v9134 = vpop.f32.mrf.mxu0
        %9135 = vdwg.mxu0
        %9136 = vmatpush.bf16.msra.mxu0 %v9016
        %9137 = vmatpush.bf16.msra.mxu0 %v9008
        %9138 = vmatpush.bf16.msra.mxu0 %v9000
        %9139 = vmatpush.bf16.msra.mxu0 %v8992
        %9140 = vmatpush.bf16.msra.mxu0 %v8984
        %9141 = vmatpush.bf16.msra.mxu0 %v8976
        %9142 = vmatpush.bf16.msra.mxu0 %v8968
        %9143 = vmatpush.bf16.msra.mxu0 %v8960
        %9144 = vmatmul.bf16.gmra.mxu0 %v8698
        %v9145 = vpop.f32.mrf.mxu0
        %v9146 = vadd.f32 0.0, %v9145
        %v9147 = vpop.f32.mrf.mxu0
        %9148 = vdwg.mxu0
        %9149 = vmatpush.bf16.msra.mxu0 %v9017
        %9150 = vmatpush.bf16.msra.mxu0 %v9009
        %9151 = vmatpush.bf16.msra.mxu0 %v9001
        %9152 = vmatpush.bf16.msra.mxu0 %v8993
        %9153 = vmatpush.bf16.msra.mxu0 %v8985
        %9154 = vmatpush.bf16.msra.mxu0 %v8977
        %9155 = vmatpush.bf16.msra.mxu0 %v8969
        %9156 = vmatpush.bf16.msra.mxu0 %v8961
        %9157 = vmatmul.bf16.gmra.mxu0 %v8698
        %v9158 = vpop.f32.mrf.mxu0
        %v9159 = vadd.f32 0.0, %v9158
        %v9160 = vpop.f32.mrf.mxu0
        %9161 = vdwg.mxu0
        %9162 = vmatpush.bf16.msra.mxu0 %v9018
        %9163 = vmatpush.bf16.msra.mxu0 %v9010
        %9164 = vmatpush.bf16.msra.mxu0 %v9002
        %9165 = vmatpush.bf16.msra.mxu0 %v8994
        %9166 = vmatpush.bf16.msra.mxu0 %v8986
        %9167 = vmatpush.bf16.msra.mxu0 %v8978
        %9168 = vmatpush.bf16.msra.mxu0 %v8970
        %9169 = vmatpush.bf16.msra.mxu0 %v8962
        %9170 = vmatmul.bf16.gmra.mxu0 %v8698
        %v9171 = vpop.f32.mrf.mxu0
        %v9172 = vadd.f32 0.0, %v9171
        %v9173 = vpop.f32.mrf.mxu0
        %9174 = vdwg.mxu0
        %9175 = vmatpush.bf16.msra.mxu0 %v9019
        %9176 = vmatpush.bf16.msra.mxu0 %v9011
        %9177 = vmatpush.bf16.msra.mxu0 %v9003
        %9178 = vmatpush.bf16.msra.mxu0 %v8995
        %9179 = vmatpush.bf16.msra.mxu0 %v8987
        %9180 = vmatpush.bf16.msra.mxu0 %v8979
        %9181 = vmatpush.bf16.msra.mxu0 %v8971
        %9182 = vmatpush.bf16.msra.mxu0 %v8963
        %9183 = vmatmul.bf16.gmra.mxu0 %v8698
        %v9184 = vpop.f32.mrf.mxu0
        %v9185 = vadd.f32 0.0, %v9184
        %v9186 = vpop.f32.mrf.mxu0
        %9187 = vdwg.mxu0
        %p9188 = scmp.gt.s32.totalorder %s8688, 0
        %s9189 = scalar_select %p9188, %s8688, 0
        %p9190 = scmp.lt.s32.totalorder %s9189, 128
        %s9191 = scalar_select %p9190, %s9189, 128
        %p9192 = scmp.gt.s32.totalorder %s9191, %s8690
        %s9193 = scalar_select %p9192, %s9191, %s8690
        %p9194 = scmp.lt.s32.totalorder %s9193, 128
        %s9195 = scalar_select %p9194, %s9193, 128
        %s9196 = ssub.s32 %s9195, %s9191
        %s9197 = scvt.s32.f32 %s9196
        %v9198 = vstv %s9197
        %v9199 = vrcp.pop %v9198
        %v9200 = vmul.f32 %v9198, %v9199
        %v9201 = vsub.f32 1.0, %v9200
        %v9202 = vmul.f32 %v9199, %v9201
        %v9203 = vadd.f32 %v9199, %v9202
        %vm9204 = vweird.f32 %v9198
        %vm9205 = vweird.f32 %v9199
        %vm9206 = vmor %vm9204, %vm9205
        %v9207 = vsel %vm9206, %v9199, %v9203
        %v9208 = vand.u32 2147483647, %v9198
        %vm9209 = vcmp.eq.f32.partialorder %v9208, 8.507059e+37
        %v9210 = vand.u32 %v9198, 2147483648
        %v9211 = vor.u32 1.1754944e-38, %v9210
        %v9212 = vsel %vm9209, %v9211, %v9207
        %s9213 = vtos %v9212
        %v9214 = vstv %s9213
        %v9215 = vmul.f32 %v9094, %v9214
        %v9216 = vmul.f32 %v9107, %v9214
        %v9217 = vmul.f32 %v9120, %v9214
        %v9218 = vmul.f32 %v9133, %v9214
        %v9219 = vmul.f32 %v9146, %v9214
        %v9220 = vmul.f32 %v9159, %v9214
        %v9221 = vmul.f32 %v9172, %v9214
        %v9222 = vmul.f32 %v9185, %v9214
        %v9231 = vrot.slane %v9216, 7
        %v9232 = vrot.slane %v9217, 6
        %v9233 = vrot.slane %v9218, 5
        %v9234 = vrot.slane %v9219, 4
        %v9235 = vrot.slane %v9220, 3
        %v9236 = vrot.slane %v9221, 2
        %v9237 = vrot.slane %v9222, 1
        %v9238 = vsel %vm787, %v9215, %v9231
        %v9239 = vsel %vm789, %v9232, %v9233
        %v9240 = vsel %vm791, %v9238, %v9239
        %v9241 = vsel %vm793, %v9234, %v9235
        %v9242 = vsel %vm795, %v9236, %v9237
        %v9243 = vsel %vm797, %v9241, %v9242
        %v9244 = vsel %vm799, %v9240, %v9243
        %s9246 = scalar_lea.vmem [#allocation2], 71
        %9247 = vst [vmem:[%s9246] ss:$8 sm:$0xf] %v9244
        %9248 = vst [vmem:[%s9246] ss:$8 sm:$0xf0] %v9244
        %v9249 = vld [vmem:[#allocation2] sm:$0xff]
        %v9250 = vld [vmem:[#allocation2 + $0x8] sm:$0xff]
        %v9251 = vld [vmem:[#allocation2 + $0x10] sm:$0xff]
        %v9252 = vld [vmem:[#allocation2 + $0x18] sm:$0xff]
        %v9253 = vld [vmem:[#allocation2 + $0x20] sm:$0xff]
        %v9254 = vld [vmem:[#allocation2 + $0x28] sm:$0xff]
        %v9255 = vld [vmem:[#allocation2 + $0x30] sm:$0xff]
        %v9256 = vld [vmem:[#allocation2 + $0x38] sm:$0xff]
        %v9257 = vld [vmem:[#allocation2 + $0x40] sm:$0xff]
        %v9258 = vld [vmem:[#allocation2 + $0x48] sm:$0xff]
        %v9259 = vld [vmem:[#allocation2 + $0x50] sm:$0xff]
        %v9260 = vld [vmem:[#allocation2 + $0x58] sm:$0xff]
        %v9261 = vld [vmem:[#allocation2 + $0x60] sm:$0xff]
        %v9262 = vld [vmem:[#allocation2 + $0x68] sm:$0xff]
        %v9263 = vld [vmem:[#allocation2 + $0x70] sm:$0xff]
        %v9264 = vld [vmem:[#allocation2 + $0x78] sm:$0xff]
        %v9265 = vpack.c.bf16 %v9257, %v9249
        %v9266 = vpack.c.bf16 %v9258, %v9250
        %v9267 = vpack.c.bf16 %v9259, %v9251
        %v9268 = vpack.c.bf16 %v9260, %v9252
        %v9269 = vpack.c.bf16 %v9261, %v9253
        %v9270 = vpack.c.bf16 %v9262, %v9254
        %v9271 = vpack.c.bf16 %v9263, %v9255
        %v9272 = vpack.c.bf16 %v9264, %v9256
        %v9273 = vld [vmem:[#allocation8] sm:$0xf]
        %v9274 = vld [vmem:[#allocation8 + $0x4] sm:$0xf]
        %v9275 = vld [vmem:[#allocation8 + $0x8] sm:$0xf]
        %v9276 = vld [vmem:[#allocation8 + $0xc] sm:$0xf]
        %v9277 = vld [vmem:[#allocation8 + $0x10] sm:$0xf]
        %v9278 = vld [vmem:[#allocation8 + $0x14] sm:$0xf]
        %v9279 = vld [vmem:[#allocation8 + $0x18] sm:$0xf]
        %v9280 = vld [vmem:[#allocation8 + $0x1c] sm:$0xf]
        %v9281 = vld [vmem:[#allocation8 + $0x20] sm:$0xf]
        %v9282 = vld [vmem:[#allocation8 + $0x24] sm:$0xf]
        %v9283 = vld [vmem:[#allocation8 + $0x28] sm:$0xf]
        %v9284 = vld [vmem:[#allocation8 + $0x2c] sm:$0xf]
        %v9285 = vld [vmem:[#allocation8 + $0x30] sm:$0xf]
        %v9286 = vld [vmem:[#allocation8 + $0x34] sm:$0xf]
        %v9287 = vld [vmem:[#allocation8 + $0x38] sm:$0xf]
        %v9288 = vld [vmem:[#allocation8 + $0x3c] sm:$0xf]
        %v9289 = vld [vmem:[#allocation8 + $0x40] sm:$0xf]
        %v9290 = vld [vmem:[#allocation8 + $0x44] sm:$0xf]
        %v9291 = vld [vmem:[#allocation8 + $0x48] sm:$0xf]
        %v9292 = vld [vmem:[#allocation8 + $0x4c] sm:$0xf]
        %v9293 = vld [vmem:[#allocation8 + $0x50] sm:$0xf]
        %v9294 = vld [vmem:[#allocation8 + $0x54] sm:$0xf]
        %v9295 = vld [vmem:[#allocation8 + $0x58] sm:$0xf]
        %v9296 = vld [vmem:[#allocation8 + $0x5c] sm:$0xf]
        %v9297 = vld [vmem:[#allocation8 + $0x60] sm:$0xf]
        %v9298 = vld [vmem:[#allocation8 + $0x64] sm:$0xf]
        %v9299 = vld [vmem:[#allocation8 + $0x68] sm:$0xf]
        %v9300 = vld [vmem:[#allocation8 + $0x6c] sm:$0xf]
        %v9301 = vld [vmem:[#allocation8 + $0x70] sm:$0xf]
        %v9302 = vld [vmem:[#allocation8 + $0x74] sm:$0xf]
        %v9303 = vld [vmem:[#allocation8 + $0x78] sm:$0xf]
        %v9304 = vld [vmem:[#allocation8 + $0x7c] sm:$0xf]
        %v9305 = vld [vmem:[#allocation8 + $0x80] sm:$0xf]
        %v9306 = vld [vmem:[#allocation8 + $0x84] sm:$0xf]
        %v9307 = vld [vmem:[#allocation8 + $0x88] sm:$0xf]
        %v9308 = vld [vmem:[#allocation8 + $0x8c] sm:$0xf]
        %v9309 = vld [vmem:[#allocation8 + $0x90] sm:$0xf]
        %v9310 = vld [vmem:[#allocation8 + $0x94] sm:$0xf]
        %v9311 = vld [vmem:[#allocation8 + $0x98] sm:$0xf]
        %v9312 = vld [vmem:[#allocation8 + $0x9c] sm:$0xf]
        %v9313 = vld [vmem:[#allocation8 + $0xa0] sm:$0xf]
        %v9314 = vld [vmem:[#allocation8 + $0xa4] sm:$0xf]
        %v9315 = vld [vmem:[#allocation8 + $0xa8] sm:$0xf]
        %v9316 = vld [vmem:[#allocation8 + $0xac] sm:$0xf]
        %v9317 = vld [vmem:[#allocation8 + $0xb0] sm:$0xf]
        %v9318 = vld [vmem:[#allocation8 + $0xb4] sm:$0xf]
        %v9319 = vld [vmem:[#allocation8 + $0xb8] sm:$0xf]
        %v9320 = vld [vmem:[#allocation8 + $0xbc] sm:$0xf]
        %v9321 = vld [vmem:[#allocation8 + $0xc0] sm:$0xf]
        %v9322 = vld [vmem:[#allocation8 + $0xc4] sm:$0xf]
        %v9323 = vld [vmem:[#allocation8 + $0xc8] sm:$0xf]
        %v9324 = vld [vmem:[#allocation8 + $0xcc] sm:$0xf]
        %v9325 = vld [vmem:[#allocation8 + $0xd0] sm:$0xf]
        %v9326 = vld [vmem:[#allocation8 + $0xd4] sm:$0xf]
        %v9327 = vld [vmem:[#allocation8 + $0xd8] sm:$0xf]
        %v9328 = vld [vmem:[#allocation8 + $0xdc] sm:$0xf]
        %v9329 = vld [vmem:[#allocation8 + $0xe0] sm:$0xf]
        %v9330 = vld [vmem:[#allocation8 + $0xe4] sm:$0xf]
        %v9331 = vld [vmem:[#allocation8 + $0xe8] sm:$0xf]
        %v9332 = vld [vmem:[#allocation8 + $0xec] sm:$0xf]
        %v9333 = vld [vmem:[#allocation8 + $0xf0] sm:$0xf]
        %v9334 = vld [vmem:[#allocation8 + $0xf4] sm:$0xf]
        %v9335 = vld [vmem:[#allocation8 + $0xf8] sm:$0xf]
        %v9336 = vld [vmem:[#allocation8 + $0xfc] sm:$0xf]
        %v9337 = vld [vmem:[#allocation8 + $0x100] sm:$0xf]
        %v9338 = vld [vmem:[#allocation8 + $0x104] sm:$0xf]
        %v9339 = vld [vmem:[#allocation8 + $0x108] sm:$0xf]
        %v9340 = vld [vmem:[#allocation8 + $0x10c] sm:$0xf]
        %v9341 = vld [vmem:[#allocation8 + $0x110] sm:$0xf]
        %v9342 = vld [vmem:[#allocation8 + $0x114] sm:$0xf]
        %v9343 = vld [vmem:[#allocation8 + $0x118] sm:$0xf]
        %v9344 = vld [vmem:[#allocation8 + $0x11c] sm:$0xf]
        %v9345 = vld [vmem:[#allocation8 + $0x120] sm:$0xf]
        %v9346 = vld [vmem:[#allocation8 + $0x124] sm:$0xf]
        %v9347 = vld [vmem:[#allocation8 + $0x128] sm:$0xf]
        %v9348 = vld [vmem:[#allocation8 + $0x12c] sm:$0xf]
        %v9349 = vld [vmem:[#allocation8 + $0x130] sm:$0xf]
        %v9350 = vld [vmem:[#allocation8 + $0x134] sm:$0xf]
        %v9351 = vld [vmem:[#allocation8 + $0x138] sm:$0xf]
        %v9352 = vld [vmem:[#allocation8 + $0x13c] sm:$0xf]
        %v9353 = vld [vmem:[#allocation8 + $0x140] sm:$0xf]
        %v9354 = vld [vmem:[#allocation8 + $0x144] sm:$0xf]
        %v9355 = vld [vmem:[#allocation8 + $0x148] sm:$0xf]
        %v9356 = vld [vmem:[#allocation8 + $0x14c] sm:$0xf]
        %v9357 = vld [vmem:[#allocation8 + $0x150] sm:$0xf]
        %v9358 = vld [vmem:[#allocation8 + $0x154] sm:$0xf]
        %v9359 = vld [vmem:[#allocation8 + $0x158] sm:$0xf]
        %v9360 = vld [vmem:[#allocation8 + $0x15c] sm:$0xf]
        %v9361 = vld [vmem:[#allocation8 + $0x160] sm:$0xf]
        %v9362 = vld [vmem:[#allocation8 + $0x164] sm:$0xf]
        %v9363 = vld [vmem:[#allocation8 + $0x168] sm:$0xf]
        %v9364 = vld [vmem:[#allocation8 + $0x16c] sm:$0xf]
        %v9365 = vld [vmem:[#allocation8 + $0x170] sm:$0xf]
        %v9366 = vld [vmem:[#allocation8 + $0x174] sm:$0xf]
        %v9367 = vld [vmem:[#allocation8 + $0x178] sm:$0xf]
        %v9368 = vld [vmem:[#allocation8 + $0x17c] sm:$0xf]
        %v9369 = vld [vmem:[#allocation8 + $0x180] sm:$0xf]
        %v9370 = vld [vmem:[#allocation8 + $0x184] sm:$0xf]
        %v9371 = vld [vmem:[#allocation8 + $0x188] sm:$0xf]
        %v9372 = vld [vmem:[#allocation8 + $0x18c] sm:$0xf]
        %v9373 = vld [vmem:[#allocation8 + $0x190] sm:$0xf]
        %v9374 = vld [vmem:[#allocation8 + $0x194] sm:$0xf]
        %v9375 = vld [vmem:[#allocation8 + $0x198] sm:$0xf]
        %v9376 = vld [vmem:[#allocation8 + $0x19c] sm:$0xf]
        %v9377 = vld [vmem:[#allocation8 + $0x1a0] sm:$0xf]
        %v9378 = vld [vmem:[#allocation8 + $0x1a4] sm:$0xf]
        %v9379 = vld [vmem:[#allocation8 + $0x1a8] sm:$0xf]
        %v9380 = vld [vmem:[#allocation8 + $0x1ac] sm:$0xf]
        %v9381 = vld [vmem:[#allocation8 + $0x1b0] sm:$0xf]
        %v9382 = vld [vmem:[#allocation8 + $0x1b4] sm:$0xf]
        %v9383 = vld [vmem:[#allocation8 + $0x1b8] sm:$0xf]
        %v9384 = vld [vmem:[#allocation8 + $0x1bc] sm:$0xf]
        %v9385 = vld [vmem:[#allocation8 + $0x1c0] sm:$0xf]
        %v9386 = vld [vmem:[#allocation8 + $0x1c4] sm:$0xf]
        %v9387 = vld [vmem:[#allocation8 + $0x1c8] sm:$0xf]
        %v9388 = vld [vmem:[#allocation8 + $0x1cc] sm:$0xf]
        %v9389 = vld [vmem:[#allocation8 + $0x1d0] sm:$0xf]
        %v9390 = vld [vmem:[#allocation8 + $0x1d4] sm:$0xf]
        %v9391 = vld [vmem:[#allocation8 + $0x1d8] sm:$0xf]
        %v9392 = vld [vmem:[#allocation8 + $0x1dc] sm:$0xf]
        %v9393 = vld [vmem:[#allocation8 + $0x1e0] sm:$0xf]
        %v9394 = vld [vmem:[#allocation8 + $0x1e4] sm:$0xf]
        %v9395 = vld [vmem:[#allocation8 + $0x1e8] sm:$0xf]
        %v9396 = vld [vmem:[#allocation8 + $0x1ec] sm:$0xf]
        %v9397 = vld [vmem:[#allocation8 + $0x1f0] sm:$0xf]
        %v9398 = vld [vmem:[#allocation8 + $0x1f4] sm:$0xf]
        %v9399 = vld [vmem:[#allocation8 + $0x1f8] sm:$0xf]
        %v9400 = vld [vmem:[#allocation8 + $0x1fc] sm:$0xf]
        %v9401 = vld [vmem:[#allocation10] sm:$0x1]
        %v9403 = vperm.slane %v9401, 0
        %v9533 = vunpack.c.l.b16 %v9273
        %v9534 = vunpack.c.l.b16 %v9274
        %v9535 = vunpack.c.l.b16 %v9275
        %v9536 = vunpack.c.l.b16 %v9276
        %v9537 = vunpack.c.l.b16 %v9277
        %v9538 = vunpack.c.l.b16 %v9278
        %v9539 = vunpack.c.l.b16 %v9279
        %v9540 = vunpack.c.l.b16 %v9280
        %v9541 = vunpack.c.l.b16 %v9281
        %v9542 = vunpack.c.l.b16 %v9282
        %v9543 = vunpack.c.l.b16 %v9283
        %v9544 = vunpack.c.l.b16 %v9284
        %v9545 = vunpack.c.l.b16 %v9285
        %v9546 = vunpack.c.l.b16 %v9286
        %v9547 = vunpack.c.l.b16 %v9287
        %v9548 = vunpack.c.l.b16 %v9288
        %v9549 = vunpack.c.l.b16 %v9289
        %v9550 = vunpack.c.l.b16 %v9290
        %v9551 = vunpack.c.l.b16 %v9291
        %v9552 = vunpack.c.l.b16 %v9292
        %v9553 = vunpack.c.l.b16 %v9293
        %v9554 = vunpack.c.l.b16 %v9294
        %v9555 = vunpack.c.l.b16 %v9295
        %v9556 = vunpack.c.l.b16 %v9296
        %v9557 = vunpack.c.l.b16 %v9297
        %v9558 = vunpack.c.l.b16 %v9298
        %v9559 = vunpack.c.l.b16 %v9299
        %v9560 = vunpack.c.l.b16 %v9300
        %v9561 = vunpack.c.l.b16 %v9301
        %v9562 = vunpack.c.l.b16 %v9302
        %v9563 = vunpack.c.l.b16 %v9303
        %v9564 = vunpack.c.l.b16 %v9304
        %v9565 = vunpack.c.l.b16 %v9305
        %v9566 = vunpack.c.l.b16 %v9306
        %v9567 = vunpack.c.l.b16 %v9307
        %v9568 = vunpack.c.l.b16 %v9308
        %v9569 = vunpack.c.l.b16 %v9309
        %v9570 = vunpack.c.l.b16 %v9310
        %v9571 = vunpack.c.l.b16 %v9311
        %v9572 = vunpack.c.l.b16 %v9312
        %v9573 = vunpack.c.l.b16 %v9313
        %v9574 = vunpack.c.l.b16 %v9314
        %v9575 = vunpack.c.l.b16 %v9315
        %v9576 = vunpack.c.l.b16 %v9316
        %v9577 = vunpack.c.l.b16 %v9317
        %v9578 = vunpack.c.l.b16 %v9318
        %v9579 = vunpack.c.l.b16 %v9319
        %v9580 = vunpack.c.l.b16 %v9320
        %v9581 = vunpack.c.l.b16 %v9321
        %v9582 = vunpack.c.l.b16 %v9322
        %v9583 = vunpack.c.l.b16 %v9323
        %v9584 = vunpack.c.l.b16 %v9324
        %v9585 = vunpack.c.l.b16 %v9325
        %v9586 = vunpack.c.l.b16 %v9326
        %v9587 = vunpack.c.l.b16 %v9327
        %v9588 = vunpack.c.l.b16 %v9328
        %v9589 = vunpack.c.l.b16 %v9329
        %v9590 = vunpack.c.l.b16 %v9330
        %v9591 = vunpack.c.l.b16 %v9331
        %v9592 = vunpack.c.l.b16 %v9332
        %v9593 = vunpack.c.l.b16 %v9333
        %v9594 = vunpack.c.l.b16 %v9334
        %v9595 = vunpack.c.l.b16 %v9335
        %v9596 = vunpack.c.l.b16 %v9336
        %v9597 = vunpack.c.l.b16 %v9337
        %v9598 = vunpack.c.l.b16 %v9338
        %v9599 = vunpack.c.l.b16 %v9339
        %v9600 = vunpack.c.l.b16 %v9340
        %v9601 = vunpack.c.l.b16 %v9341
        %v9602 = vunpack.c.l.b16 %v9342
        %v9603 = vunpack.c.l.b16 %v9343
        %v9604 = vunpack.c.l.b16 %v9344
        %v9605 = vunpack.c.l.b16 %v9345
        %v9606 = vunpack.c.l.b16 %v9346
        %v9607 = vunpack.c.l.b16 %v9347
        %v9608 = vunpack.c.l.b16 %v9348
        %v9609 = vunpack.c.l.b16 %v9349
        %v9610 = vunpack.c.l.b16 %v9350
        %v9611 = vunpack.c.l.b16 %v9351
        %v9612 = vunpack.c.l.b16 %v9352
        %v9613 = vunpack.c.l.b16 %v9353
        %v9614 = vunpack.c.l.b16 %v9354
        %v9615 = vunpack.c.l.b16 %v9355
        %v9616 = vunpack.c.l.b16 %v9356
        %v9617 = vunpack.c.l.b16 %v9357
        %v9618 = vunpack.c.l.b16 %v9358
        %v9619 = vunpack.c.l.b16 %v9359
        %v9620 = vunpack.c.l.b16 %v9360
        %v9621 = vunpack.c.l.b16 %v9361
        %v9622 = vunpack.c.l.b16 %v9362
        %v9623 = vunpack.c.l.b16 %v9363
        %v9624 = vunpack.c.l.b16 %v9364
        %v9625 = vunpack.c.l.b16 %v9365
        %v9626 = vunpack.c.l.b16 %v9366
        %v9627 = vunpack.c.l.b16 %v9367
        %v9628 = vunpack.c.l.b16 %v9368
        %v9629 = vunpack.c.l.b16 %v9369
        %v9630 = vunpack.c.l.b16 %v9370
        %v9631 = vunpack.c.l.b16 %v9371
        %v9632 = vunpack.c.l.b16 %v9372
        %v9633 = vunpack.c.l.b16 %v9373
        %v9634 = vunpack.c.l.b16 %v9374
        %v9635 = vunpack.c.l.b16 %v9375
        %v9636 = vunpack.c.l.b16 %v9376
        %v9637 = vunpack.c.l.b16 %v9377
        %v9638 = vunpack.c.l.b16 %v9378
        %v9639 = vunpack.c.l.b16 %v9379
        %v9640 = vunpack.c.l.b16 %v9380
        %v9641 = vunpack.c.l.b16 %v9381
        %v9642 = vunpack.c.l.b16 %v9382
        %v9643 = vunpack.c.l.b16 %v9383
        %v9644 = vunpack.c.l.b16 %v9384
        %v9645 = vunpack.c.l.b16 %v9385
        %v9646 = vunpack.c.l.b16 %v9386
        %v9647 = vunpack.c.l.b16 %v9387
        %v9648 = vunpack.c.l.b16 %v9388
        %v9649 = vunpack.c.l.b16 %v9389
        %v9650 = vunpack.c.l.b16 %v9390
        %v9651 = vunpack.c.l.b16 %v9391
        %v9652 = vunpack.c.l.b16 %v9392
        %v9653 = vunpack.c.l.b16 %v9393
        %v9654 = vunpack.c.l.b16 %v9394
        %v9655 = vunpack.c.l.b16 %v9395
        %v9656 = vunpack.c.l.b16 %v9396
        %v9657 = vunpack.c.l.b16 %v9397
        %v9658 = vunpack.c.l.b16 %v9398
        %v9659 = vunpack.c.l.b16 %v9399
        %v9660 = vunpack.c.l.b16 %v9400
        %v9661 = vpack.c.b16 %v9534, %v9533
        %v9662 = vpack.c.b16 %v9536, %v9535
        %v9663 = vpack.c.b16 %v9538, %v9537
        %v9664 = vpack.c.b16 %v9540, %v9539
        %v9665 = vpack.c.b16 %v9542, %v9541
        %v9666 = vpack.c.b16 %v9544, %v9543
        %v9667 = vpack.c.b16 %v9546, %v9545
        %v9668 = vpack.c.b16 %v9548, %v9547
        %v9669 = vpack.c.b16 %v9550, %v9549
        %v9670 = vpack.c.b16 %v9552, %v9551
        %v9671 = vpack.c.b16 %v9554, %v9553
        %v9672 = vpack.c.b16 %v9556, %v9555
        %v9673 = vpack.c.b16 %v9558, %v9557
        %v9674 = vpack.c.b16 %v9560, %v9559
        %v9675 = vpack.c.b16 %v9562, %v9561
        %v9676 = vpack.c.b16 %v9564, %v9563
        %v9677 = vpack.c.b16 %v9566, %v9565
        %v9678 = vpack.c.b16 %v9568, %v9567
        %v9679 = vpack.c.b16 %v9570, %v9569
        %v9680 = vpack.c.b16 %v9572, %v9571
        %v9681 = vpack.c.b16 %v9574, %v9573
        %v9682 = vpack.c.b16 %v9576, %v9575
        %v9683 = vpack.c.b16 %v9578, %v9577
        %v9684 = vpack.c.b16 %v9580, %v9579
        %v9685 = vpack.c.b16 %v9582, %v9581
        %v9686 = vpack.c.b16 %v9584, %v9583
        %v9687 = vpack.c.b16 %v9586, %v9585
        %v9688 = vpack.c.b16 %v9588, %v9587
        %v9689 = vpack.c.b16 %v9590, %v9589
        %v9690 = vpack.c.b16 %v9592, %v9591
        %v9691 = vpack.c.b16 %v9594, %v9593
        %v9692 = vpack.c.b16 %v9596, %v9595
        %v9693 = vpack.c.b16 %v9598, %v9597
        %v9694 = vpack.c.b16 %v9600, %v9599
        %v9695 = vpack.c.b16 %v9602, %v9601
        %v9696 = vpack.c.b16 %v9604, %v9603
        %v9697 = vpack.c.b16 %v9606, %v9605
        %v9698 = vpack.c.b16 %v9608, %v9607
        %v9699 = vpack.c.b16 %v9610, %v9609
        %v9700 = vpack.c.b16 %v9612, %v9611
        %v9701 = vpack.c.b16 %v9614, %v9613
        %v9702 = vpack.c.b16 %v9616, %v9615
        %v9703 = vpack.c.b16 %v9618, %v9617
        %v9704 = vpack.c.b16 %v9620, %v9619
        %v9705 = vpack.c.b16 %v9622, %v9621
        %v9706 = vpack.c.b16 %v9624, %v9623
        %v9707 = vpack.c.b16 %v9626, %v9625
        %v9708 = vpack.c.b16 %v9628, %v9627
        %v9709 = vpack.c.b16 %v9630, %v9629
        %v9710 = vpack.c.b16 %v9632, %v9631
        %v9711 = vpack.c.b16 %v9634, %v9633
        %v9712 = vpack.c.b16 %v9636, %v9635
        %v9713 = vpack.c.b16 %v9638, %v9637
        %v9714 = vpack.c.b16 %v9640, %v9639
        %v9715 = vpack.c.b16 %v9642, %v9641
        %v9716 = vpack.c.b16 %v9644, %v9643
        %v9717 = vpack.c.b16 %v9646, %v9645
        %v9718 = vpack.c.b16 %v9648, %v9647
        %v9719 = vpack.c.b16 %v9650, %v9649
        %v9720 = vpack.c.b16 %v9652, %v9651
        %v9721 = vpack.c.b16 %v9654, %v9653
        %v9722 = vpack.c.b16 %v9656, %v9655
        %v9723 = vpack.c.b16 %v9658, %v9657
        %v9724 = vpack.c.b16 %v9660, %v9659
        %9789 = vmatpush.bf16.msra.mxu0 %v9668
        %9790 = vmatpush.bf16.msra.mxu0 %v9667
        %9791 = vmatpush.bf16.msra.mxu0 %v9666
        %9792 = vmatpush.bf16.msra.mxu0 %v9665
        %9793 = vmatpush.bf16.msra.mxu0 %v9664
        %9794 = vmatpush.bf16.msra.mxu0 %v9663
        %9795 = vmatpush.bf16.msra.mxu0 %v9662
        %9796 = vmatpush.bf16.msra.mxu0 %v9661
        %9797 = vmatmul.bf16.gmra.mxu0 %v9265
        %v9798 = vpop.f32.mrf.mxu0
        %v9799 = vadd.f32 %v9403, %v9798
        %v9800 = vpop.f32.mrf.mxu0
        %v9801 = vadd.f32 %v9403, %v9800
        %9802 = vdwg.mxu0
        %9803 = vmatpush.bf16.msra.mxu0 %v9676
        %9804 = vmatpush.bf16.msra.mxu0 %v9675
        %9805 = vmatpush.bf16.msra.mxu0 %v9674
        %9806 = vmatpush.bf16.msra.mxu0 %v9673
        %9807 = vmatpush.bf16.msra.mxu0 %v9672
        %9808 = vmatpush.bf16.msra.mxu0 %v9671
        %9809 = vmatpush.bf16.msra.mxu0 %v9670
        %9810 = vmatpush.bf16.msra.mxu0 %v9669
        %9811 = vmatmul.bf16.gmra.mxu0 %v9266
        %v9812 = vpop.f32.mrf.mxu0
        %v9813 = vadd.f32 %v9799, %v9812
        %v9814 = vpop.f32.mrf.mxu0
        %v9815 = vadd.f32 %v9801, %v9814
        %9816 = vdwg.mxu0
        %9817 = vmatpush.bf16.msra.mxu0 %v9684
        %9818 = vmatpush.bf16.msra.mxu0 %v9683
        %9819 = vmatpush.bf16.msra.mxu0 %v9682
        %9820 = vmatpush.bf16.msra.mxu0 %v9681
        %9821 = vmatpush.bf16.msra.mxu0 %v9680
        %9822 = vmatpush.bf16.msra.mxu0 %v9679
        %9823 = vmatpush.bf16.msra.mxu0 %v9678
        %9824 = vmatpush.bf16.msra.mxu0 %v9677
        %9825 = vmatmul.bf16.gmra.mxu0 %v9267
        %v9826 = vpop.f32.mrf.mxu0
        %v9827 = vadd.f32 %v9813, %v9826
        %v9828 = vpop.f32.mrf.mxu0
        %v9829 = vadd.f32 %v9815, %v9828
        %9830 = vdwg.mxu0
        %9831 = vmatpush.bf16.msra.mxu0 %v9692
        %9832 = vmatpush.bf16.msra.mxu0 %v9691
        %9833 = vmatpush.bf16.msra.mxu0 %v9690
        %9834 = vmatpush.bf16.msra.mxu0 %v9689
        %9835 = vmatpush.bf16.msra.mxu0 %v9688
        %9836 = vmatpush.bf16.msra.mxu0 %v9687
        %9837 = vmatpush.bf16.msra.mxu0 %v9686
        %9838 = vmatpush.bf16.msra.mxu0 %v9685
        %9839 = vmatmul.bf16.gmra.mxu0 %v9268
        %v9840 = vpop.f32.mrf.mxu0
        %v9841 = vadd.f32 %v9827, %v9840
        %v9842 = vpop.f32.mrf.mxu0
        %v9843 = vadd.f32 %v9829, %v9842
        %9844 = vdwg.mxu0
        %9845 = vmatpush.bf16.msra.mxu0 %v9700
        %9846 = vmatpush.bf16.msra.mxu0 %v9699
        %9847 = vmatpush.bf16.msra.mxu0 %v9698
        %9848 = vmatpush.bf16.msra.mxu0 %v9697
        %9849 = vmatpush.bf16.msra.mxu0 %v9696
        %9850 = vmatpush.bf16.msra.mxu0 %v9695
        %9851 = vmatpush.bf16.msra.mxu0 %v9694
        %9852 = vmatpush.bf16.msra.mxu0 %v9693
        %9853 = vmatmul.bf16.gmra.mxu0 %v9269
        %v9854 = vpop.f32.mrf.mxu0
        %v9855 = vadd.f32 %v9841, %v9854
        %v9856 = vpop.f32.mrf.mxu0
        %v9857 = vadd.f32 %v9843, %v9856
        %9858 = vdwg.mxu0
        %9859 = vmatpush.bf16.msra.mxu0 %v9708
        %9860 = vmatpush.bf16.msra.mxu0 %v9707
        %9861 = vmatpush.bf16.msra.mxu0 %v9706
        %9862 = vmatpush.bf16.msra.mxu0 %v9705
        %9863 = vmatpush.bf16.msra.mxu0 %v9704
        %9864 = vmatpush.bf16.msra.mxu0 %v9703
        %9865 = vmatpush.bf16.msra.mxu0 %v9702
        %9866 = vmatpush.bf16.msra.mxu0 %v9701
        %9867 = vmatmul.bf16.gmra.mxu0 %v9270
        %v9868 = vpop.f32.mrf.mxu0
        %v9869 = vadd.f32 %v9855, %v9868
        %v9870 = vpop.f32.mrf.mxu0
        %v9871 = vadd.f32 %v9857, %v9870
        %9872 = vdwg.mxu0
        %9873 = vmatpush.bf16.msra.mxu0 %v9716
        %9874 = vmatpush.bf16.msra.mxu0 %v9715
        %9875 = vmatpush.bf16.msra.mxu0 %v9714
        %9876 = vmatpush.bf16.msra.mxu0 %v9713
        %9877 = vmatpush.bf16.msra.mxu0 %v9712
        %9878 = vmatpush.bf16.msra.mxu0 %v9711
        %9879 = vmatpush.bf16.msra.mxu0 %v9710
        %9880 = vmatpush.bf16.msra.mxu0 %v9709
        %9881 = vmatmul.bf16.gmra.mxu0 %v9271
        %v9882 = vpop.f32.mrf.mxu0
        %v9883 = vadd.f32 %v9869, %v9882
        %v9884 = vpop.f32.mrf.mxu0
        %v9885 = vadd.f32 %v9871, %v9884
        %9886 = vdwg.mxu0
        %9887 = vmatpush.bf16.msra.mxu0 %v9724
        %9888 = vmatpush.bf16.msra.mxu0 %v9723
        %9889 = vmatpush.bf16.msra.mxu0 %v9722
        %9890 = vmatpush.bf16.msra.mxu0 %v9721
        %9891 = vmatpush.bf16.msra.mxu0 %v9720
        %9892 = vmatpush.bf16.msra.mxu0 %v9719
        %9893 = vmatpush.bf16.msra.mxu0 %v9718
        %9894 = vmatpush.bf16.msra.mxu0 %v9717
        %9895 = vmatmul.bf16.gmra.mxu0 %v9272
        %v9896 = vpop.f32.mrf.mxu0
        %v9897 = vadd.f32 %v9883, %v9896
        %v9898 = vpop.f32.mrf.mxu0
        %v9899 = vadd.f32 %v9885, %v9898
        %9900 = vdwg.mxu0
        %9901 = vst [vmem:[%s231] sm:$0xff] %v9897
        %9902 = vst [vmem:[%s231 + $0x8] sm:$0xff] %v9899
        %s9903 = sand.u32 %s106, 1
        %s9904 = scalar_lea.sflag [#allocation7], %s9903
        %s9905 = sand.u32 %s106, 1
        %s9906 = smul.addr %s9905, 16
        %s9907 = scalar_lea.vmem [#allocation11], %s9906
        // Predicated region
        $region45: #{tpu_custom_call.1} parent=31 // pred_check
          %p9908 = pneg %p116
        $region46: #{tpu_custom_call.1} parent=31 // pred_check_branch
          %9910 = sbr.rel (%p9908) target = $region48
        $region47: #{tpu_custom_call.1} parent=31 // pred_region
          %s9911 = smul.u32 2, %s30
          %9913 = vsyncadd %s9904, 0
          %s9914 = smul.addr %s9911, 8
          %s9915 = scalar_lea.hbm %s4, %s9914
          %s9916 = sshll.u32 %s9907, 4
          %s9917 = int_to_ptr.vmem [resolvable:$true] %s9916
          %s9918 = sshll.u32 %s9915, 4
          %s9919 = int_to_ptr.hbm [resolvable:$true] %s9918
          %9924 = dma.vmem_to_hbm [thread:$0]  %s9917, 256, %s9919, %s9904, 128, 128, 8
        $region48: #{tpu_custom_call.1} parent=31 // pred_fallthru
          _
      $region32: #{tpu_custom_call.1} parent=5 // pred_fallthru
        _
      %p9925 = scmp.le.s32.totalorder 2, %s25
      // Predicated region
      $region49: #{tpu_custom_call.1} parent=5 // pred_check
        %p9926 = pneg %p9925
      $region50: #{tpu_custom_call.1} parent=5 // pred_check_branch
        %9928 = sbr.rel (%p9926) target = $region52
      $region51: #{tpu_custom_call.1} parent=5 // pred_region
        %s9929 = ssub.s32 %s25, 2
        // Predicated region
        $region53: #{tpu_custom_call.1} parent=51 // pred_check
          %p9930 = pneg %p122
        $region54: #{tpu_custom_call.1} parent=51 // pred_check_branch
          %9932 = sbr.rel (%p9930) target = $region56
        $region55: #{tpu_custom_call.1} parent=51 // pred_region
          %s9933 = sand.u32 %s107, 1
          %s9934 = scalar_lea.sflag [#allocation7], %s9933
          %s9935 = sand.u32 %s107, 1
          %s9936 = smul.addr %s9935, 16
          %s9937 = scalar_lea.vmem [#allocation11], %s9936
          %9939 = dma.done %s9934, 256
        $region56: #{tpu_custom_call.1} parent=51 // pred_fallthru
          _
      $region52: #{tpu_custom_call.1} parent=5 // pred_fallthru
        _
    $region6: #{tpu_custom_call.1} parent=1 // loop_footer
      %s29 = sadd.s32 1, %s25
    $region7: #{tpu_custom_call.1} parent=1 // loop_footer_branch
      %24 = sbr.rel target = $region3
    $region8: #{tpu_custom_call.1} parent=1 // loop_exit
      _
    %9940 = vsyncpa [#allocation6], 1
    %s9941 = scalar_lea.sflag [#allocation6], 1
    %9942 = vsyncpa %s9941, 1
    %9943 = vsyncpa [#allocation9], 1
    %9944 = vsyncpa [#allocation7], 1
    %s9945 = scalar_lea.sflag [#allocation7], 1
    %9946 = vsyncpa %s9945, 1

</llo_original>
